<compile_context>
chip_gen: v7x
topology: tpu7x:2x2x1
jax: 0.10.0
libtpu: 0.0.40
codegen_flags: <defaults>
</compile_context>

<pallas_src>
import jax
import jax.numpy as jnp
from jax import lax
from jax.experimental import pallas as pl
from jax.experimental.pallas import tpu as pltpu


_VMEM_STEP_BUDGET = 16 * 1024 * 1024   # per-step working set (safe on v5e/v6e/v7x)
_KRON_BUDGET = 6 * 1024 * 1024         # max resident fused (kron) weight matrix


# -----------------------------------------------------------------------------
# Interpolation matrices for bilinear, align_corners=True (PyTorch convention).
# -----------------------------------------------------------------------------
def _interp_matrix(out_size, in_size):
    """M of shape (out_size, in_size) s.t. out = M @ in along that axis."""
    if in_size == 1:
        return jnp.ones((out_size, 1), jnp.float32)
    if out_size == 1:
        coords = jnp.zeros((1,), jnp.float32)
    else:
        scale = (in_size - 1) / (out_size - 1)
        coords = jnp.arange(out_size, dtype=jnp.float32) * scale
    lo = jnp.clip(jnp.floor(coords).astype(jnp.int32), 0, in_size - 2)
    frac = coords - lo.astype(jnp.float32)
    m_lo = jax.nn.one_hot(lo, in_size, dtype=jnp.float32) * (1.0 - frac)[:, None]
    m_hi = jax.nn.one_hot(lo + 1, in_size, dtype=jnp.float32) * frac[:, None]
    return m_lo + m_hi


# -----------------------------------------------------------------------------
# Tiling / budgeting helpers.
# -----------------------------------------------------------------------------
def _tensor_budget_terms(x, out_hw):
    """(per_channel_bytes, resident_bytes) contributed by one resized tensor."""
    _, _, Hin, Win = x.shape
    Hout, Wout = out_hw
    isz = x.dtype.itemsize
    kron_bytes = Hin * Win * Hout * Wout * isz
    use_kron = (Wout % 128 != 0) and (kron_bytes <= _KRON_BUDGET)
    per_channel = (Hout * Wout + Hin * Win) * isz          # out block + in block
    resident = Win * Wout * isz                            # small W matrix
    if use_kron:
        resident += kron_bytes
    else:
        per_channel += Hout * Hin * isz                    # pre-broadcast H matrix
    return per_channel, resident


def _pick_channel_tile(C, per_channel_bytes, resident_bytes,
                       budget_bytes=_VMEM_STEP_BUDGET):
    """Largest divisor of C keeping the double-buffered working set in budget,
    while keeping >= 2 channel blocks (so v7x's two TensorCores both get work)."""
    best = 1
    for t in range(1, C + 1):
        if C % t:
            continue
        if C >= 2 and C // t < 2:
            continue
        if 2 * t * per_channel_bytes + 2 * resident_bytes <= budget_bytes:
            best = max(best, t)
    return best


# -----------------------------------------------------------------------------
# Per-tensor plan: inputs, specs, kernel body, post-processing.
# -----------------------------------------------------------------------------
def _build_plan(x, out_hw, tc):
    B, C, Hin, Win = x.shape
    Hout, Wout = out_hw
    dt = x.dtype
    isz = dt.itemsize

    mh = _interp_matrix(Hout, Hin)                 # (Hout, Hin) f32
    mw = _interp_matrix(Wout, Win)                 # (Wout, Win) f32

    kron_bytes = Hin * Win * Hout * Wout * isz
    # kron path needs tc as the second-minor block dim -> keep it sublane-aligned.
    use_kron = ((Wout % 128 != 0) and (kron_bytes <= _KRON_BUDGET)
                and (tc % 8 == 0 or tc == C))

    if use_kron:
        # Lane-dense flattened output: one MXU matmul against kron(mh, mw).
        kron = jnp.einsum('oh,pw->hwop', mh, mw).reshape(
            Hin * Win, Hout * Wout).astype(dt)
        inputs = (x.reshape(B, C, Hin * Win), kron)
        in_specs = [
            pl.BlockSpec((1, tc, Hin * Win), lambda b, c: (b, c, 0)),
            pl.BlockSpec((Hin * Win, Hout * Wout), lambda b, c: (0, 0)),
        ]
        out_shape = jax.ShapeDtypeStruct((B, C, Hout * Wout), dt)
        out_spec = pl.BlockSpec((1, tc, Hout * Wout), lambda b, c: (b, c, 0))

        def body(refs, o_ref):
            x_ref, k_ref = refs
            o_ref[0] = jnp.dot(x_ref[0], k_ref[...],
                               preferred_element_type=jnp.float32
                               ).astype(o_ref.dtype)

        def post(y):
            return y.reshape(B, C, Hout, Wout)     # free reshape in the wrapper

        flops = 2 * B * C * (Hin * Win) * (Hout * Wout)
    else:
        # Separable: H resize first (small batched dot on the input), then one
        # big lane-dense matmul (tc*Hout, Win) @ (Win, Wout) feeding the store.
        mh_b = jnp.broadcast_to(mh[None, :, :], (tc, Hout, Hin)).astype(dt)
        mw_t = mw.T.astype(dt)                     # (Win, Wout)
        inputs = (x, mh_b, mw_t)
        in_specs = [
            pl.BlockSpec((1, tc, Hin, Win), lambda b, c: (b, c, 0, 0)),
            pl.BlockSpec((tc, Hout, Hin), lambda b, c: (0, 0, 0)),
            pl.BlockSpec((Win, Wout), lambda b, c: (0, 0)),
        ]
        out_shape = jax.ShapeDtypeStruct((B, C, Hout, Wout), dt)
        out_spec = pl.BlockSpec((1, tc, Hout, Wout), lambda b, c: (b, c, 0, 0))

        def body(refs, o_ref):
            x_ref, mhb_ref, mwt_ref = refs
            xb = x_ref[0]                                  # (tc, Hin, Win)
            y = lax.dot_general(
                mhb_ref[...], xb,
                dimension_numbers=(((2,), (1,)), ((0,), (0,))),
                preferred_element_type=jnp.float32)        # (tc, Hout, Win)
            y = y.astype(xb.dtype)                         # no-op for f32 inputs
            y = jnp.dot(y.reshape(tc * Hout, Win), mwt_ref[...],
                        preferred_element_type=jnp.float32)  # (tc*Hout, Wout)
            o_ref[0] = y.reshape(tc, Hout, Wout).astype(o_ref.dtype)

        def post(y):
            return y

        flops = 2 * B * C * (Hout * Hin * Win + Hout * Win * Wout)

    bytes_accessed = (B * C * Hin * Win * isz          # input read
                      + B * C * Hout * Wout * isz      # output write
                      + sum(int(a.size) * isz for a in inputs[1:]))  # constants
    return dict(inputs=inputs, in_specs=in_specs, out_shape=out_shape,
                out_spec=out_spec, body=body, post=post,
                flops=int(flops), bytes=int(bytes_accessed))


# -----------------------------------------------------------------------------
# Fused pallas_call over one or more (tensor, out_hw) pairs sharing (B, C).
# -----------------------------------------------------------------------------
def _fused_resize(tensors_and_sizes):
    B, C = tensors_and_sizes[0][0].shape[:2]
    for x, _ in tensors_and_sizes:
        assert x.shape[:2] == (B, C)

    per_ch = 0
    resident = 0
    for x, hw in tensors_and_sizes:
        p, r = _tensor_budget_terms(x, hw)
        per_ch += p
        resident += r
    tc = _pick_channel_tile(C, per_ch, resident)

    plans = [_build_plan(x, hw, tc) for x, hw in tensors_and_sizes]
    n_per_plan = [len(p['inputs']) for p in plans]
    n_out = len(plans)

    def kernel(*refs):
        in_refs = refs[:-n_out]
        out_refs = refs[-n_out:]
        off = 0
        for p, n, o_ref in zip(plans, n_per_plan, out_refs):
            p['body'](in_refs[off:off + n], o_ref)
            off += n

    footprint = 2 * tc * per_ch + 2 * resident
    vmem_limit = int(min(max(2 * footprint, 16 * 1024 * 1024), 48 * 1024 * 1024))

    grid = (B, C // tc)
    all_inputs = [a for p in plans for a in p['inputs']]
    all_specs = [s for p in plans for s in p['in_specs']]

    outs = pl.pallas_call(
        kernel,
        out_shape=tuple(p['out_shape'] for p in plans),
        grid=grid,
        in_specs=all_specs,
        out_specs=tuple(p['out_spec'] for p in plans),
        compiler_params=pltpu.CompilerParams(
            dimension_semantics=("parallel", "parallel"),
            vmem_limit_bytes=vmem_limit),
        cost_estimate=pl.CostEstimate(
            flops=sum(p['flops'] for p in plans),
            transcendentals=0,
            bytes_accessed=sum(p['bytes'] for p in plans)),
    )(*all_inputs)
    if not isinstance(outs, (tuple, list)):
        outs = (outs,)
    return tuple(p['post'](y) for p, y in zip(plans, outs))


def bilinear_resize_align_corners(x, out_hw):
    """x: (B, C, Hin, Win) -> (B, C, Hout, Wout), bilinear, align_corners=True."""
    return _fused_resize([(x, tuple(out_hw))])[0]


def depth_head_forward(hidden_states, output_sizes=((128, 128), (64, 64)),
                       patch_height=None, patch_width=None):
    """DepthAnythingDepthEstimationHead.forward.

    hidden_states: list of (B, C, H, W) arrays (only [-1] and [-2] are used).
    Returns (feat_early, feat_late). patch_height / patch_width are unused,
    matching the reference module.
    """
    del patch_height, patch_width
    x_early = hidden_states[-1]
    x_late = hidden_states[-2]
    (He, We), (Hl, Wl) = output_sizes

    if x_early.shape[:2] == x_late.shape[:2]:
        feat_early, feat_late = _fused_resize(
            [(x_early, (He, We)), (x_late, (Hl, Wl))])
    else:
        # Fallback: two fused-resize calls (still one pallas_call each).
        feat_early = bilinear_resize_align_corners(x_early, (He, We))
        feat_late = bilinear_resize_align_corners(x_late, (Hl, Wl))
    return feat_early, feat_late


# -----------------------------------------------------------------------------
# Independent (gather-based) reference for the numerical check.
# -----------------------------------------------------------------------------
def _ref_bilinear_align_corners(x, out_hw):
    B, C, Hin, Win = x.shape
    Hout, Wout = out_hw

    def coords(out_s, in_s):
        if in_s == 1:
            z = jnp.zeros((out_s,), jnp.int32)
            return z, z, jnp.zeros((out_s,), jnp.float32)
        if out_s == 1:
            c = jnp.zeros((1,), jnp.float32)
        else:
            c = jnp.arange(out_s, dtype=jnp.float32) * ((in_s - 1) / (out_s - 1))
        lo = jnp.clip(jnp.floor(c).astype(jnp.int32), 0, in_s - 2)
        return lo, lo + 1, c - lo.astype(jnp.float32)

    hlo, hhi, hf = coords(Hout, Hin)
    wlo, whi, wf = coords(Wout, Win)
    rows = (jnp.take(x, hlo, axis=2) * (1.0 - hf)[None, None, :, None]
            + jnp.take(x, hhi, axis=2) * hf[None, None, :, None])
    return (jnp.take(rows, wlo, axis=3) * (1.0 - wf)[None, None, None, :]
            + jnp.take(rows, whi, axis=3) * wf[None, None, None, :])


# -----------------------------------------------------------------------------
if __name__ == "__main__":
    key = jax.random.PRNGKey(0)
    k1, k2, k3, k4 = jax.random.split(key, 4)

    B, C = 2, 32
    # List of hidden states; the head only consumes the last two.
    hidden_states = [
        jax.random.normal(k1, (B, C, 8, 8), jnp.float32),
        jax.random.normal(k2, (B, C, 8, 8), jnp.float32),
        jax.random.normal(k3, (B, C, 16, 16), jnp.float32),   # hidden_states[-2]
        jax.random.normal(k4, (B, C, 16, 16), jnp.float32),   # hidden_states[-1]
    ]
    output_sizes = ((128, 128), (64, 64))

    feat_early, feat_late = depth_head_forward(hidden_states, output_sizes)
    jax.block_until_ready(feat_early)
    jax.block_until_ready(feat_late)

    assert feat_early.shape == (B, C, 128, 128)
    assert feat_late.shape == (B, C, 64, 64)

    # Numerical check against an independent gather-based reference.
    ref_e = _ref_bilinear_align_corners(hidden_states[-1], (128, 128))
    ref_l = _ref_bilinear_align_corners(hidden_states[-2], (64, 64))
    assert jnp.allclose(feat_early, ref_e, atol=1e-3, rtol=1e-3)
    assert jnp.allclose(feat_late, ref_l, atol=1e-3, rtol=1e-3)

    print("KERNEL_OK")
</pallas_src>

<mosaic_0001>
module attributes {stable_mosaic.version = 11 : i64} {
  func.func @kernel(%arg0: i32, %arg1: i32, %arg2: memref<1x16x16x16xf32, #tpu.memory_space<vmem>>, %arg3: memref<16x128x16xf32, #tpu.memory_space<vmem>>, %arg4: memref<16x128xf32, #tpu.memory_space<vmem>>, %arg5: memref<1x16x256xf32, #tpu.memory_space<vmem>>, %arg6: memref<256x4096xf32, #tpu.memory_space<vmem>>, %arg7: memref<1x16x128x128xf32, #tpu.memory_space<vmem>>, %arg8: memref<1x16x4096xf32, #tpu.memory_space<vmem>>) attributes {dimension_semantics = [#tpu.dimension_semantics<parallel>, #tpu.dimension_semantics<parallel>], iteration_bounds = array<i64: 2, 2>, scalar_prefetch = 0 : i64, scratch_operands = 0 : i64, tpu.core_type = #tpu.core_type<tc>, window_params = [{transform_indices = @transform_0, window_bounds = array<i64: 1, 16, 16, 16>}, {pipeline_mode = #tpu.pipeline_mode<synchronous>, transform_indices = @transform_1, window_bounds = array<i64: 16, 128, 16>}, {pipeline_mode = #tpu.pipeline_mode<synchronous>, transform_indices = @transform_2, window_bounds = array<i64: 16, 128>}, {transform_indices = @transform_3, window_bounds = array<i64: 1, 16, 256>}, {pipeline_mode = #tpu.pipeline_mode<synchronous>, transform_indices = @transform_4, window_bounds = array<i64: 256, 4096>}, {transform_indices = @transform_5, window_bounds = array<i64: 1, 16, 128, 128>}, {transform_indices = @transform_6, window_bounds = array<i64: 1, 16, 4096>}]} {
    %c0 = arith.constant 0 : index
    %c0_0 = arith.constant 0 : index
    %c0_1 = arith.constant 0 : index
    %c0_2 = arith.constant 0 : index
    %0 = vector.load %arg2[%c0, %c0_0, %c0_1, %c0_2] : memref<1x16x16x16xf32, #tpu.memory_space<vmem>>, vector<1x16x16x16xf32>
    %1 = vector.shape_cast %0 : vector<1x16x16x16xf32> to vector<16x16x16xf32>
    %c0_3 = arith.constant 0 : index
    %c0_4 = arith.constant 0 : index
    %c0_5 = arith.constant 0 : index
    %2 = vector.load %arg3[%c0_3, %c0_4, %c0_5] : memref<16x128x16xf32, #tpu.memory_space<vmem>>, vector<16x128x16xf32>
    %cst = arith.constant dense<0.000000e+00> : vector<16x128x16xf32>
    %3 = tpu.matmul %2, %1, %cst {dimension_numbers = #tpu.dot_dimension_numbers<[2], [1], [1], [2], [0, 0, 0, 1, 1, 2], [0], [0]>} : vector<16x128x16xf32>, vector<16x16x16xf32>, vector<16x128x16xf32> -> vector<16x128x16xf32>
    %4 = vector.shape_cast %3 : vector<16x128x16xf32> to vector<2048x16xf32>
    %c0_6 = arith.constant 0 : index
    %c0_7 = arith.constant 0 : index
    %5 = vector.load %arg4[%c0_6, %c0_7] : memref<16x128xf32, #tpu.memory_space<vmem>>, vector<16x128xf32>
    %cst_8 = arith.constant dense<0.000000e+00> : vector<2048x128xf32>
    %6 = tpu.matmul %4, %5, %cst_8 {dimension_numbers = #tpu.dot_dimension_numbers<[1], [0], [0], [1], [0, 0, 1, 1], [], []>} : vector<2048x16xf32>, vector<16x128xf32>, vector<2048x128xf32> -> vector<2048x128xf32>
    %7 = vector.shape_cast %6 : vector<2048x128xf32> to vector<16x128x128xf32>
    %c0_9 = arith.constant 0 : index
    %c0_10 = arith.constant 0 : index
    %c0_11 = arith.constant 0 : index
    %c0_12 = arith.constant 0 : index
    %8 = vector.load %arg7[%c0_9, %c0_10, %c0_11, %c0_12] : memref<1x16x128x128xf32, #tpu.memory_space<vmem>>, vector<1x16x128x128xf32>
    %9 = vector.shape_cast %8 : vector<1x16x128x128xf32> to vector<16x128x128xf32>
    %10 = vector.shape_cast %7 : vector<16x128x128xf32> to vector<1x16x128x128xf32>
    tpu.vector_store %arg7[%c0_9, %c0_10, %c0_11, %c0_12], %10 {strides = array<i32>} : memref<1x16x128x128xf32, #tpu.memory_space<vmem>>, vector<1x16x128x128xf32>,
    %c0_13 = arith.constant 0 : index
    %c0_14 = arith.constant 0 : index
    %c0_15 = arith.constant 0 : index
    %11 = vector.load %arg5[%c0_13, %c0_14, %c0_15] : memref<1x16x256xf32, #tpu.memory_space<vmem>>, vector<1x16x256xf32>
    %12 = vector.shape_cast %11 : vector<1x16x256xf32> to vector<16x256xf32>
    %c0_16 = arith.constant 0 : index
    %c0_17 = arith.constant 0 : index
    %13 = vector.load %arg6[%c0_16, %c0_17] : memref<256x4096xf32, #tpu.memory_space<vmem>>, vector<256x4096xf32>
    %cst_18 = arith.constant dense<0.000000e+00> : vector<16x4096xf32>
    %14 = tpu.matmul %12, %13, %cst_18 {dimension_numbers = #tpu.dot_dimension_numbers<[1], [0], [0], [1], [0, 0, 1, 1], [], []>} : vector<16x256xf32>, vector<256x4096xf32>, vector<16x4096xf32> -> vector<16x4096xf32>
    %c0_19 = arith.constant 0 : index
    %c0_20 = arith.constant 0 : index
    %c0_21 = arith.constant 0 : index
    %15 = vector.load %arg8[%c0_19, %c0_20, %c0_21] : memref<1x16x4096xf32, #tpu.memory_space<vmem>>, vector<1x16x4096xf32>
    %16 = vector.shape_cast %15 : vector<1x16x4096xf32> to vector<16x4096xf32>
    %17 = vector.shape_cast %14 : vector<16x4096xf32> to vector<1x16x4096xf32>
    tpu.vector_store %arg8[%c0_19, %c0_20, %c0_21], %17 {strides = array<i32>} : memref<1x16x4096xf32, #tpu.memory_space<vmem>>, vector<1x16x4096xf32>,
    return
  }
  func.func @transform_0(%arg0: i32, %arg1: i32) -> (i32, i32, i32, i32) {
    %c0_i32 = arith.constant 0 : i32
    %c0_i32_0 = arith.constant 0 : i32
    %c0_i32_1 = arith.constant 0 : i32
    return %arg0, %arg1, %c0_i32, %c0_i32_0 : i32, i32, i32, i32
  }
  func.func @transform_1(%arg0: i32, %arg1: i32) -> (i32, i32, i32) {
    %c0_i32 = arith.constant 0 : i32
    %c0_i32_0 = arith.constant 0 : i32
    %c0_i32_1 = arith.constant 0 : i32
    %c0_i32_2 = arith.constant 0 : i32
    return %c0_i32, %c0_i32_0, %c0_i32_1 : i32, i32, i32
  }
  func.func @transform_2(%arg0: i32, %arg1: i32) -> (i32, i32) {
    %c0_i32 = arith.constant 0 : i32
    %c0_i32_0 = arith.constant 0 : i32
    %c0_i32_1 = arith.constant 0 : i32
    return %c0_i32, %c0_i32_0 : i32, i32
  }
  func.func @transform_3(%arg0: i32, %arg1: i32) -> (i32, i32, i32) {
    %c0_i32 = arith.constant 0 : i32
    %c0_i32_0 = arith.constant 0 : i32
    return %arg0, %arg1, %c0_i32 : i32, i32, i32
  }
  func.func @transform_4(%arg0: i32, %arg1: i32) -> (i32, i32) {
    %c0_i32 = arith.constant 0 : i32
    %c0_i32_0 = arith.constant 0 : i32
    %c0_i32_1 = arith.constant 0 : i32
    return %c0_i32, %c0_i32_0 : i32, i32
  }
  func.func @transform_5(%arg0: i32, %arg1: i32) -> (i32, i32, i32, i32) {
    %c0_i32 = arith.constant 0 : i32
    %c0_i32_0 = arith.constant 0 : i32
    %c0_i32_1 = arith.constant 0 : i32
    return %arg0, %arg1, %c0_i32, %c0_i32_0 : i32, i32, i32, i32
  }
  func.func @transform_6(%arg0: i32, %arg1: i32) -> (i32, i32, i32) {
    %c0_i32 = arith.constant 0 : i32
    %c0_i32_0 = arith.constant 0 : i32
    return %arg0, %arg1, %c0_i32 : i32, i32, i32
  }
}

</mosaic_0001>

<llo_original>
// kernel: tpu_custom_call.1
$region0: #{tpu_custom_call.1}
  #allocation0 [shape = 'u32[]', space=smem, size = 0x4, offset = 0x4, fixed_abs, tag = 'smem constant byte address 0x4 - core index']
  #allocation1 [shape = 'u32[144,128]{1,0:T(1,128)}', space=vmem, size = 0x12000, scoped, tag = 'internal scratch']
  %s0 = inlined_call_operand.vmem [shape: f32[2,32,16,16], index: 0, kind: input, shape index: {}]
  %s1 = inlined_call_operand.vmem [shape: f32[16,128,16], index: 1, kind: input, shape index: {}]
  %s2 = inlined_call_operand.hbm [shape: f32[16,128], index: 2, kind: input, shape index: {}]
  %s3 = inlined_call_operand.hbm [shape: f32[2,32,256], index: 3, kind: input, shape index: {}]
  %s4 = inlined_call_operand.hbm [shape: f32[256,4096], index: 4, kind: input, shape index: {}]
  %s5 = inlined_call_operand.hbm [shape: f32[2,32,128,128], index: 5, kind: output, shape index: {0}]
  %s6 = inlined_call_operand.hbm [shape: f32[2,32,4096], index: 6, kind: output, shape index: {1}]
  %7 = xla_tuple %s5, %s6
  %s8 = sld [smem:[#allocation0]]
  $region73: #{tpu_custom_call.1} parent=0
    _
  %s10 = ssub.s32 1, %s8
  %s11 = scalar_select 0, %s10, %s8
  $region1: #{tpu_custom_call.1} parent=0
    #allocation2 [shape = 'u8[8192]{0}', space=vmem, size = 0x2000, scoped, tag = 'input window, operand 2, single buffered']
    #allocation3 [shape = 's32[2]{0}', space=sflag, size = 0x8, scoped, tag = 'scoped memory for tpu_custom_call.1']
    #allocation4 [shape = 's32[2]{0}', space=sflag, size = 0x8, scoped, tag = 'scoped memory for tpu_custom_call.1']
    #allocation5 [shape = 'u8[32768]{0}', space=vmem, size = 0x8000, scoped, tag = 'input window, operand 3']
    #allocation6 [shape = 's32[2]{0}', space=sflag, size = 0x8, scoped, tag = 'scoped memory for tpu_custom_call.1']
    #allocation7 [shape = 'u8[4194304]{0}', space=vmem, size = 0x400000, scoped, tag = 'input window, operand 4, single buffered']
    #allocation8 [shape = 'u8[2097152]{0}', space=vmem, size = 0x200000, scoped, tag = 'output window, operand 0']
    #allocation9 [shape = 'u8[524288]{0}', space=vmem, size = 0x80000, scoped, tag = 'output window, operand 1']
    #allocation10 [shape = 's32[2]{0}', space=sflag, size = 0x8, scoped, tag = 'scoped memory for tpu_custom_call.1']
    %12 = vsyncpa [#allocation3], 0
    %13 = vsyncpa [#allocation6], 0
    %s14 = scalar_lea.sflag [#allocation6], 1
    %15 = vsyncpa %s14, 0
    %16 = vsyncpa [#allocation4], 0
    %s17 = scalar_lea.sflag [#allocation4], 1
    %18 = vsyncpa %s17, 0
    %19 = vsyncpa [#allocation10], 0
    %s20 = scalar_lea.sflag [#allocation10], 1
    %21 = vsyncpa %s20, 0
    loop: start=0, step=1, limit=6
    $region2: #{tpu_custom_call.1} parent=1 // loop_pre_header
      _
    $region3: #{tpu_custom_call.1} parent=1 // loop_header
      %s23 = sphi 0, %s27
      %p24 = scmp.ge.s32.totalorder %s23, 6
      %s30 = sphi 0, %s42
      %s31 = sphi 0, %s38
      %s32 = sphi 0, %s30
      %s33 = sphi 0, %s31
      %s34 = sphi 0, %s32
      %s35 = sphi 0, %s33
      %s47 = sphi 0, %s49
      %s50 = sphi 0, %s47
      %s51 = sphi 0, %s50
      %s67 = sphi 0, %s51
      %s71 = sphi 0, %s71
      %s73 = sphi 0, %s71
      %s74 = sphi 0, %s73
      %s88 = sphi 0, %s74
      %s92 = sphi 0, %s92
      %s94 = sphi 0, %s92
      %s95 = sphi 0, %s94
      %s109 = sphi 0, %s95
      %s117 = sphi 0, %s119
      %s120 = sphi 0, %s117
      %s121 = sphi 0, %s120
      %s137 = sphi 0, %s121
      %s141 = sphi 0, %s141
      %s143 = sphi 0, %s141
      %s144 = sphi 0, %s143
      %s158 = sphi 0, %s144
      %s166 = sphi 0, %s168
      %s169 = sphi 0, %s166
      %s170 = sphi 0, %s169
      %s186 = sphi 0, %s170
      %s194 = sphi 0, %s196
      %s197 = sphi 0, %s194
      %s198 = sphi 0, %s197
      %s214 = sphi 0, %s198
    $region4: #{tpu_custom_call.1} parent=1 // loop_header_branch
      %26 = sbr.rel (%p24) target = $region8
    $region5: #{tpu_custom_call.1} parent=1 // loop_body
      %s28 = ssub.s32 %s23, 1
      %s29 = ssub.s32 %s23, 2
      %s36 = sadd.s32 1, %s31
      %p37 = scmp.ge.s32.totalorder %s36, 2
      %s38 = scalar_select %p37, 0, %s36
      %s39 = sadd.s32 1, %s30
      %s40 = scalar_select %p37, %s39, %s30
      %p41 = scmp.ge.s32.totalorder %s40, 2
      %s42 = scalar_select %p41, 0, %s40
      %s43 = ssub.s32 %s30, %s42
      %s44 = ssub.s32 %s31, %s38
      %s45 = sor.u32 %s43, %s44
      %p46 = scmp.eq.s32.totalorder %s45, 0
      %s48 = sadd.s32 %s47, 1
      %s49 = scalar_select %p46, %s47, %s48
      %p52 = pneg %p46
      %p53 = scmp.eq.s32.totalorder %s23, 3
      %p54 = por %p52, %p53
      %p55 = scmp.ne.s32.totalorder %s47, %s50
      %p56 = scmp.eq.s32.totalorder %s23, 0
      %p57 = por %p55, %p56
      %p58 = scmp.ne.s32.totalorder %s47, %s50
      %p59 = scmp.eq.s32.totalorder %s28, 3
      %p60 = por %p58, %p59
      %p61 = scmp.ne.s32.totalorder %s50, %s51
      %p62 = scmp.eq.s32.totalorder %s28, 0
      %p63 = por %p61, %p62
      %p64 = scmp.ne.s32.totalorder %s50, %s51
      %p65 = scmp.eq.s32.totalorder %s29, 3
      %p66 = por %p64, %p65
      %p68 = scmp.ne.s32.totalorder %s51, %s67
      %p69 = scmp.eq.s32.totalorder %s29, 0
      %p70 = por %p68, %p69
      %s72 = sadd.s32 %s71, 1
      %p75 = scmp.eq.s32.totalorder %s23, 3
      %p76 = scmp.ne.s32.totalorder %s71, %s73
      %p77 = scmp.eq.s32.totalorder %s23, 0
      %p78 = por %p76, %p77
      %p79 = scmp.ne.s32.totalorder %s71, %s73
      %p80 = scmp.eq.s32.totalorder %s28, 3
      %p81 = por %p79, %p80
      %p82 = scmp.ne.s32.totalorder %s73, %s74
      %p83 = scmp.eq.s32.totalorder %s28, 0
      %p84 = por %p82, %p83
      %p85 = scmp.ne.s32.totalorder %s73, %s74
      %p86 = scmp.eq.s32.totalorder %s29, 3
      %p87 = por %p85, %p86
      %p89 = scmp.ne.s32.totalorder %s74, %s88
      %p90 = scmp.eq.s32.totalorder %s29, 0
      %p91 = por %p89, %p90
      %s93 = sadd.s32 %s92, 1
      %p96 = scmp.eq.s32.totalorder %s23, 3
      %p97 = scmp.ne.s32.totalorder %s92, %s94
      %p98 = scmp.eq.s32.totalorder %s23, 0
      %p99 = por %p97, %p98
      %p100 = scmp.ne.s32.totalorder %s92, %s94
      %p101 = scmp.eq.s32.totalorder %s28, 3
      %p102 = por %p100, %p101
      %p103 = scmp.ne.s32.totalorder %s94, %s95
      %p104 = scmp.eq.s32.totalorder %s28, 0
      %p105 = por %p103, %p104
      %p106 = scmp.ne.s32.totalorder %s94, %s95
      %p107 = scmp.eq.s32.totalorder %s29, 3
      %p108 = por %p106, %p107
      %p110 = scmp.ne.s32.totalorder %s95, %s109
      %p111 = scmp.eq.s32.totalorder %s29, 0
      %p112 = por %p110, %p111
      %s113 = ssub.s32 %s30, %s42
      %s114 = ssub.s32 %s31, %s38
      %s115 = sor.u32 %s113, %s114
      %p116 = scmp.eq.s32.totalorder %s115, 0
      %s118 = sadd.s32 %s117, 1
      %s119 = scalar_select %p116, %s117, %s118
      %p122 = pneg %p116
      %p123 = scmp.eq.s32.totalorder %s23, 3
      %p124 = por %p122, %p123
      %p125 = scmp.ne.s32.totalorder %s117, %s120
      %p126 = scmp.eq.s32.totalorder %s23, 0
      %p127 = por %p125, %p126
      %p128 = scmp.ne.s32.totalorder %s117, %s120
      %p129 = scmp.eq.s32.totalorder %s28, 3
      %p130 = por %p128, %p129
      %p131 = scmp.ne.s32.totalorder %s120, %s121
      %p132 = scmp.eq.s32.totalorder %s28, 0
      %p133 = por %p131, %p132
      %p134 = scmp.ne.s32.totalorder %s120, %s121
      %p135 = scmp.eq.s32.totalorder %s29, 3
      %p136 = por %p134, %p135
      %p138 = scmp.ne.s32.totalorder %s121, %s137
      %p139 = scmp.eq.s32.totalorder %s29, 0
      %p140 = por %p138, %p139
      %s142 = sadd.s32 %s141, 1
      %p145 = scmp.eq.s32.totalorder %s23, 3
      %p146 = scmp.ne.s32.totalorder %s141, %s143
      %p147 = scmp.eq.s32.totalorder %s23, 0
      %p148 = por %p146, %p147
      %p149 = scmp.ne.s32.totalorder %s141, %s143
      %p150 = scmp.eq.s32.totalorder %s28, 3
      %p151 = por %p149, %p150
      %p152 = scmp.ne.s32.totalorder %s143, %s144
      %p153 = scmp.eq.s32.totalorder %s28, 0
      %p154 = por %p152, %p153
      %p155 = scmp.ne.s32.totalorder %s143, %s144
      %p156 = scmp.eq.s32.totalorder %s29, 3
      %p157 = por %p155, %p156
      %p159 = scmp.ne.s32.totalorder %s144, %s158
      %p160 = scmp.eq.s32.totalorder %s29, 0
      %p161 = por %p159, %p160
      %s162 = ssub.s32 %s30, %s42
      %s163 = ssub.s32 %s31, %s38
      %s164 = sor.u32 %s162, %s163
      %p165 = scmp.eq.s32.totalorder %s164, 0
      %s167 = sadd.s32 %s166, 1
      %s168 = scalar_select %p165, %s166, %s167
      %p171 = pneg %p165
      %p172 = scmp.eq.s32.totalorder %s23, 3
      %p173 = por %p171, %p172
      %p174 = scmp.ne.s32.totalorder %s166, %s169
      %p175 = scmp.eq.s32.totalorder %s23, 0
      %p176 = por %p174, %p175
      %p177 = scmp.ne.s32.totalorder %s166, %s169
      %p178 = scmp.eq.s32.totalorder %s28, 3
      %p179 = por %p177, %p178
      %p180 = scmp.ne.s32.totalorder %s169, %s170
      %p181 = scmp.eq.s32.totalorder %s28, 0
      %p182 = por %p180, %p181
      %p183 = scmp.ne.s32.totalorder %s169, %s170
      %p184 = scmp.eq.s32.totalorder %s29, 3
      %p185 = por %p183, %p184
      %p187 = scmp.ne.s32.totalorder %s170, %s186
      %p188 = scmp.eq.s32.totalorder %s29, 0
      %p189 = por %p187, %p188
      %s190 = ssub.s32 %s30, %s42
      %s191 = ssub.s32 %s31, %s38
      %s192 = sor.u32 %s190, %s191
      %p193 = scmp.eq.s32.totalorder %s192, 0
      %s195 = sadd.s32 %s194, 1
      %s196 = scalar_select %p193, %s194, %s195
      %p199 = pneg %p193
      %p200 = scmp.eq.s32.totalorder %s23, 3
      %p201 = por %p199, %p200
      %p202 = scmp.ne.s32.totalorder %s194, %s197
      %p203 = scmp.eq.s32.totalorder %s23, 0
      %p204 = por %p202, %p203
      %p205 = scmp.ne.s32.totalorder %s194, %s197
      %p206 = scmp.eq.s32.totalorder %s28, 3
      %p207 = por %p205, %p206
      %p208 = scmp.ne.s32.totalorder %s197, %s198
      %p209 = scmp.eq.s32.totalorder %s28, 0
      %p210 = por %p208, %p209
      %p211 = scmp.ne.s32.totalorder %s197, %s198
      %p212 = scmp.eq.s32.totalorder %s29, 3
      %p213 = por %p211, %p212
      %p215 = scmp.ne.s32.totalorder %s198, %s214
      %p216 = scmp.eq.s32.totalorder %s29, 0
      %p217 = por %p215, %p216
      %p218 = scmp.le.s32.totalorder 1, %s23
      %p219 = scmp.lt.s32.totalorder %s23, 5
      %p220 = pnand %p218, %p219
      %p221 = pneg %p220
      // Predicated region
      $region9: #{tpu_custom_call.1} parent=5 // pred_check
        _
      $region10: #{tpu_custom_call.1} parent=5 // pred_check_branch
        %223 = sbr.rel (%p220) target = $region12
      $region11: #{tpu_custom_call.1} parent=5 // pred_region
        %s224 = ssub.s32 %s23, 1
        // Predicated region
        $region13: #{tpu_custom_call.1} parent=11 // pred_check
          %p225 = pneg %p84
        $region14: #{tpu_custom_call.1} parent=11 // pred_check_branch
          %227 = sbr.rel (%p225) target = $region16
        $region15: #{tpu_custom_call.1} parent=11 // pred_region
          _
        $region16: #{tpu_custom_call.1} parent=11 // pred_fallthru
          _
        // Predicated region
        $region17: #{tpu_custom_call.1} parent=11 // pred_check
          %p228 = pneg %p105
        $region18: #{tpu_custom_call.1} parent=11 // pred_check_branch
          %230 = sbr.rel (%p228) target = $region20
        $region19: #{tpu_custom_call.1} parent=11 // pred_region
          %s232 = ssub.s32 256, 256
          %233 = vsyncadd [#allocation3], %s232
          %s234 = sshll.u32 [#allocation2], 4
          %s235 = int_to_ptr.vmem [resolvable:$true] %s234
          %240 = dma.hbm_to_vmem [thread:$0]  %s2, 256, %s235, [#allocation3], 128, 128, 8
        $region20: #{tpu_custom_call.1} parent=11 // pred_fallthru
          _
        // Predicated region
        $region21: #{tpu_custom_call.1} parent=11 // pred_check
          %p241 = pneg %p154
        $region22: #{tpu_custom_call.1} parent=11 // pred_check_branch
          %243 = sbr.rel (%p241) target = $region24
        $region23: #{tpu_custom_call.1} parent=11 // pred_region
          %s245 = ssub.s32 131072, 131072
          %246 = vsyncadd [#allocation6], %s245
          %s247 = sshll.u32 [#allocation7], 4
          %s248 = int_to_ptr.vmem [resolvable:$true] %s247
          %253 = dma.hbm_to_vmem [thread:$0]  %s4, 131072, %s248, [#allocation6], 4096, 4096, 256
        $region24: #{tpu_custom_call.1} parent=11 // pred_fallthru
          _
      $region12: #{tpu_custom_call.1} parent=5 // pred_fallthru
        _
      %p254 = scmp.lt.s32.totalorder %s23, 4
      // Predicated region
      $region25: #{tpu_custom_call.1} parent=5 // pred_check
        %p255 = pneg %p254
      $region26: #{tpu_custom_call.1} parent=5 // pred_check_branch
        %257 = sbr.rel (%p255) target = $region28
      $region27: #{tpu_custom_call.1} parent=5 // pred_region
        // Predicated region
        $region29: #{tpu_custom_call.1} parent=27 // pred_check
          %p258 = pneg %p57
        $region30: #{tpu_custom_call.1} parent=27 // pred_check_branch
          %260 = sbr.rel (%p258) target = $region32
        $region31: #{tpu_custom_call.1} parent=27 // pred_region
          %s261 = smul.u32 16, %s31
          %p262 = scmp.lt.s32.totalorder %s30, 1
          %s263 = scalar_select %p262, %s30, 1
          %p264 = scmp.lt.s32.totalorder %s261, 31
          %s265 = scalar_select %p264, %s261, 31
          %s266 = smul.addr %s265, 2
          %s267 = smul.addr %s263, 64
          %s268 = sadd.s32 %s266, %s267
          %s269 = smul.addr %s268, 8
          %s270 = scalar_lea.vmem %s0, %s269
          %s271 = smul.u32 16, %s31
        $region32: #{tpu_custom_call.1} parent=27 // pred_fallthru
          _
        // Predicated region
        $region33: #{tpu_custom_call.1} parent=27 // pred_check
          %p272 = pneg %p127
        $region34: #{tpu_custom_call.1} parent=27 // pred_check_branch
          %274 = sbr.rel (%p272) target = $region36
        $region35: #{tpu_custom_call.1} parent=27 // pred_region
          %s275 = sand.u32 %s23, 1
          %s276 = scalar_lea.sflag [#allocation6], %s275
          %s277 = sand.u32 %s117, 1
          %s278 = smul.addr %s277, 32
          %s279 = scalar_lea.vmem [#allocation5], %s278
          %s280 = smul.u32 2, %s31
          %s282 = ssub.s32 512, 512
          %283 = vsyncadd %s276, %s282
          %s284 = smul.addr %s280, 2
          %s285 = smul.addr %s30, 8
          %s286 = sadd.s32 %s284, %s285
          %s287 = smul.addr %s286, 128
          %s288 = scalar_lea.hbm %s3, %s287
          %s289 = sshll.u32 %s279, 4
          %s290 = int_to_ptr.vmem [resolvable:$true] %s289
          %295 = dma.hbm_to_vmem [thread:$0]  %s288, 512, %s290, %s276, 256, 256, 16
        $region36: #{tpu_custom_call.1} parent=27 // pred_fallthru
          _
      $region28: #{tpu_custom_call.1} parent=5 // pred_fallthru
        _
      %p296 = scmp.le.s32.totalorder 1, %s23
      %p297 = scmp.lt.s32.totalorder %s23, 5
      %p298 = pnand %p296, %p297
      %p299 = pneg %p298
      // Predicated region
      $region37: #{tpu_custom_call.1} parent=5 // pred_check
        _
      $region38: #{tpu_custom_call.1} parent=5 // pred_check_branch
        %301 = sbr.rel (%p298) target = $region40
      $region39: #{tpu_custom_call.1} parent=5 // pred_region
        %s302 = ssub.s32 %s23, 1
        // Predicated region
        $region41: #{tpu_custom_call.1} parent=39 // pred_check
          %p303 = pneg %p105
        $region42: #{tpu_custom_call.1} parent=39 // pred_check_branch
          %305 = sbr.rel (%p303) target = $region44
        $region43: #{tpu_custom_call.1} parent=39 // pred_region
          %306 = dma.done [#allocation3], 256
        $region44: #{tpu_custom_call.1} parent=39 // pred_fallthru
          _
        %s307 = sand.u32 %s28, 1
        %s308 = scalar_lea.sflag [#allocation6], %s307
        %s309 = sand.u32 %s120, 1
        %s310 = smul.addr %s309, 32
        %s311 = scalar_lea.vmem [#allocation5], %s310
        // Predicated region
        $region45: #{tpu_custom_call.1} parent=39 // pred_check
          %p312 = pneg %p133
        $region46: #{tpu_custom_call.1} parent=39 // pred_check_branch
          %314 = sbr.rel (%p312) target = $region48
        $region47: #{tpu_custom_call.1} parent=39 // pred_region
          %315 = dma.done %s308, 512
        $region48: #{tpu_custom_call.1} parent=39 // pred_fallthru
          _
        // Predicated region
        $region49: #{tpu_custom_call.1} parent=39 // pred_check
          %p316 = pneg %p154
        $region50: #{tpu_custom_call.1} parent=39 // pred_check_branch
          %318 = sbr.rel (%p316) target = $region52
        $region51: #{tpu_custom_call.1} parent=39 // pred_region
          %319 = dma.done [#allocation6], 131072
        $region52: #{tpu_custom_call.1} parent=39 // pred_fallthru
          _
        %s320 = smul.u32 16, %s33
        %p321 = scmp.lt.s32.totalorder %s32, 1
        %s322 = scalar_select %p321, %s32, 1
        %p323 = scmp.lt.s32.totalorder %s320, 31
        %s324 = scalar_select %p323, %s320, 31
        %s325 = smul.addr %s324, 2
        %s326 = smul.addr %s322, 64
        %s327 = sadd.s32 %s325, %s326
        %s328 = smul.addr %s327, 8
        %s329 = scalar_lea.vmem %s0, %s328
        %p330 = pneg %p63
        %p331 = pneg %p60
        %p332 = pneg %p84
        %p333 = pneg %p81
        %p334 = pneg %p105
        %p335 = pneg %p102
        %s336 = sand.u32 %s28, 1
        %s337 = scalar_lea.sflag [#allocation6], %s336
        %s338 = sand.u32 %s120, 1
        %s339 = smul.addr %s338, 32
        %s340 = scalar_lea.vmem [#allocation5], %s339
        %p341 = pneg %p133
        %p342 = pneg %p130
        %p343 = pneg %p154
        %p344 = pneg %p151
        %p345 = pneg %p182
        %p346 = pneg %p179
        %s347 = sand.u32 %s169, 1
        %s348 = scalar_lea.sflag [#allocation4], %s347
        %s349 = sand.u32 %s169, 1
        %s350 = smul.addr %s349, 2048
        %s351 = scalar_lea.vmem [#allocation8], %s350
        %p352 = pneg %p210
        %p353 = pneg %p207
        %s354 = sand.u32 %s197, 1
        %s355 = scalar_lea.sflag [#allocation10], %s354
        %s356 = sand.u32 %s197, 1
        %s357 = smul.addr %s356, 512
        %s358 = scalar_lea.vmem [#allocation9], %s357
        %s359 = smul.u32 16, %s33
        %p360 = scmp.lt.s32.totalorder %s32, 1
        %s361 = scalar_select %p360, %s32, 1
        %p362 = scmp.lt.s32.totalorder %s359, 31
        %s363 = scalar_select %p362, %s359, 31
        %s364 = smul.addr %s363, 2
        %s365 = smul.addr %s361, 64
        %s366 = sadd.s32 %s364, %s365
        %s367 = smul.addr %s366, 8
        %s368 = scalar_lea.vmem %s0, %s367
        %s369 = smul.u32 16, %s33
        %s370 = smul.u32 2, %s33
        %s371 = smul.u32 16, %s33
        %s372 = smul.u32 2, %s33
        %v373 = vld [vmem:[%s368] sm:$0xff]
        %v374 = vld [vmem:[%s368 + $0x8] sm:$0xff]
        %v375 = vld [vmem:[%s368 + $0x10] sm:$0xff]
        %v376 = vld [vmem:[%s368 + $0x18] sm:$0xff]
        %v377 = vld [vmem:[%s368 + $0x20] sm:$0xff]
        %v378 = vld [vmem:[%s368 + $0x28] sm:$0xff]
        %v379 = vld [vmem:[%s368 + $0x30] sm:$0xff]
        %v380 = vld [vmem:[%s368 + $0x38] sm:$0xff]
        %v381 = vld [vmem:[%s368 + $0x40] sm:$0xff]
        %v382 = vld [vmem:[%s368 + $0x48] sm:$0xff]
        %v383 = vld [vmem:[%s368 + $0x50] sm:$0xff]
        %v384 = vld [vmem:[%s368 + $0x58] sm:$0xff]
        %v385 = vld [vmem:[%s368 + $0x60] sm:$0xff]
        %v386 = vld [vmem:[%s368 + $0x68] sm:$0xff]
        %v387 = vld [vmem:[%s368 + $0x70] sm:$0xff]
        %v388 = vld [vmem:[%s368 + $0x78] sm:$0xff]
        %v389 = vld [vmem:[%s368 + $0x80] sm:$0xff]
        %v390 = vld [vmem:[%s368 + $0x88] sm:$0xff]
        %v391 = vld [vmem:[%s368 + $0x90] sm:$0xff]
        %v392 = vld [vmem:[%s368 + $0x98] sm:$0xff]
        %v393 = vld [vmem:[%s368 + $0xa0] sm:$0xff]
        %v394 = vld [vmem:[%s368 + $0xa8] sm:$0xff]
        %v395 = vld [vmem:[%s368 + $0xb0] sm:$0xff]
        %v396 = vld [vmem:[%s368 + $0xb8] sm:$0xff]
        %v397 = vld [vmem:[%s368 + $0xc0] sm:$0xff]
        %v398 = vld [vmem:[%s368 + $0xc8] sm:$0xff]
        %v399 = vld [vmem:[%s368 + $0xd0] sm:$0xff]
        %v400 = vld [vmem:[%s368 + $0xd8] sm:$0xff]
        %v401 = vld [vmem:[%s368 + $0xe0] sm:$0xff]
        %v402 = vld [vmem:[%s368 + $0xe8] sm:$0xff]
        %v403 = vld [vmem:[%s368 + $0xf0] sm:$0xff]
        %v404 = vld [vmem:[%s368 + $0xf8] sm:$0xff]
        %v405 = vld [vmem:[%s1] sm:$0xff]
        %v406 = vld [vmem:[%s1 + $0x8] sm:$0xff]
        %v407 = vld [vmem:[%s1 + $0x10] sm:$0xff]
        %v408 = vld [vmem:[%s1 + $0x18] sm:$0xff]
        %v409 = vld [vmem:[%s1 + $0x20] sm:$0xff]
        %v410 = vld [vmem:[%s1 + $0x28] sm:$0xff]
        %v411 = vld [vmem:[%s1 + $0x30] sm:$0xff]
        %v412 = vld [vmem:[%s1 + $0x38] sm:$0xff]
        %v413 = vld [vmem:[%s1 + $0x40] sm:$0xff]
        %v414 = vld [vmem:[%s1 + $0x48] sm:$0xff]
        %v415 = vld [vmem:[%s1 + $0x50] sm:$0xff]
        %v416 = vld [vmem:[%s1 + $0x58] sm:$0xff]
        %v417 = vld [vmem:[%s1 + $0x60] sm:$0xff]
        %v418 = vld [vmem:[%s1 + $0x68] sm:$0xff]
        %v419 = vld [vmem:[%s1 + $0x70] sm:$0xff]
        %v420 = vld [vmem:[%s1 + $0x78] sm:$0xff]
        %v421 = vld [vmem:[%s1 + $0x80] sm:$0xff]
        %v422 = vld [vmem:[%s1 + $0x88] sm:$0xff]
        %v423 = vld [vmem:[%s1 + $0x90] sm:$0xff]
        %v424 = vld [vmem:[%s1 + $0x98] sm:$0xff]
        %v425 = vld [vmem:[%s1 + $0xa0] sm:$0xff]
        %v426 = vld [vmem:[%s1 + $0xa8] sm:$0xff]
        %v427 = vld [vmem:[%s1 + $0xb0] sm:$0xff]
        %v428 = vld [vmem:[%s1 + $0xb8] sm:$0xff]
        %v429 = vld [vmem:[%s1 + $0xc0] sm:$0xff]
        %v430 = vld [vmem:[%s1 + $0xc8] sm:$0xff]
        %v431 = vld [vmem:[%s1 + $0xd0] sm:$0xff]
        %v432 = vld [vmem:[%s1 + $0xd8] sm:$0xff]
        %v433 = vld [vmem:[%s1 + $0xe0] sm:$0xff]
        %v434 = vld [vmem:[%s1 + $0xe8] sm:$0xff]
        %v435 = vld [vmem:[%s1 + $0xf0] sm:$0xff]
        %v436 = vld [vmem:[%s1 + $0xf8] sm:$0xff]
        %v437 = vld [vmem:[%s1 + $0x100] sm:$0xff]
        %v438 = vld [vmem:[%s1 + $0x108] sm:$0xff]
        %v439 = vld [vmem:[%s1 + $0x110] sm:$0xff]
        %v440 = vld [vmem:[%s1 + $0x118] sm:$0xff]
        %v441 = vld [vmem:[%s1 + $0x120] sm:$0xff]
        %v442 = vld [vmem:[%s1 + $0x128] sm:$0xff]
        %v443 = vld [vmem:[%s1 + $0x130] sm:$0xff]
        %v444 = vld [vmem:[%s1 + $0x138] sm:$0xff]
        %v445 = vld [vmem:[%s1 + $0x140] sm:$0xff]
        %v446 = vld [vmem:[%s1 + $0x148] sm:$0xff]
        %v447 = vld [vmem:[%s1 + $0x150] sm:$0xff]
        %v448 = vld [vmem:[%s1 + $0x158] sm:$0xff]
        %v449 = vld [vmem:[%s1 + $0x160] sm:$0xff]
        %v450 = vld [vmem:[%s1 + $0x168] sm:$0xff]
        %v451 = vld [vmem:[%s1 + $0x170] sm:$0xff]
        %v452 = vld [vmem:[%s1 + $0x178] sm:$0xff]
        %v453 = vld [vmem:[%s1 + $0x180] sm:$0xff]
        %v454 = vld [vmem:[%s1 + $0x188] sm:$0xff]
        %v455 = vld [vmem:[%s1 + $0x190] sm:$0xff]
        %v456 = vld [vmem:[%s1 + $0x198] sm:$0xff]
        %v457 = vld [vmem:[%s1 + $0x1a0] sm:$0xff]
        %v458 = vld [vmem:[%s1 + $0x1a8] sm:$0xff]
        %v459 = vld [vmem:[%s1 + $0x1b0] sm:$0xff]
        %v460 = vld [vmem:[%s1 + $0x1b8] sm:$0xff]
        %v461 = vld [vmem:[%s1 + $0x1c0] sm:$0xff]
        %v462 = vld [vmem:[%s1 + $0x1c8] sm:$0xff]
        %v463 = vld [vmem:[%s1 + $0x1d0] sm:$0xff]
        %v464 = vld [vmem:[%s1 + $0x1d8] sm:$0xff]
        %v465 = vld [vmem:[%s1 + $0x1e0] sm:$0xff]
        %v466 = vld [vmem:[%s1 + $0x1e8] sm:$0xff]
        %v467 = vld [vmem:[%s1 + $0x1f0] sm:$0xff]
        %v468 = vld [vmem:[%s1 + $0x1f8] sm:$0xff]
        %v469 = vld [vmem:[%s1 + $0x200] sm:$0xff]
        %v470 = vld [vmem:[%s1 + $0x208] sm:$0xff]
        %v471 = vld [vmem:[%s1 + $0x210] sm:$0xff]
        %v472 = vld [vmem:[%s1 + $0x218] sm:$0xff]
        %v473 = vld [vmem:[%s1 + $0x220] sm:$0xff]
        %v474 = vld [vmem:[%s1 + $0x228] sm:$0xff]
        %v475 = vld [vmem:[%s1 + $0x230] sm:$0xff]
        %v476 = vld [vmem:[%s1 + $0x238] sm:$0xff]
        %v477 = vld [vmem:[%s1 + $0x240] sm:$0xff]
        %v478 = vld [vmem:[%s1 + $0x248] sm:$0xff]
        %v479 = vld [vmem:[%s1 + $0x250] sm:$0xff]
        %v480 = vld [vmem:[%s1 + $0x258] sm:$0xff]
        %v481 = vld [vmem:[%s1 + $0x260] sm:$0xff]
        %v482 = vld [vmem:[%s1 + $0x268] sm:$0xff]
        %v483 = vld [vmem:[%s1 + $0x270] sm:$0xff]
        %v484 = vld [vmem:[%s1 + $0x278] sm:$0xff]
        %v485 = vld [vmem:[%s1 + $0x280] sm:$0xff]
        %v486 = vld [vmem:[%s1 + $0x288] sm:$0xff]
        %v487 = vld [vmem:[%s1 + $0x290] sm:$0xff]
        %v488 = vld [vmem:[%s1 + $0x298] sm:$0xff]
        %v489 = vld [vmem:[%s1 + $0x2a0] sm:$0xff]
        %v490 = vld [vmem:[%s1 + $0x2a8] sm:$0xff]
        %v491 = vld [vmem:[%s1 + $0x2b0] sm:$0xff]
        %v492 = vld [vmem:[%s1 + $0x2b8] sm:$0xff]
        %v493 = vld [vmem:[%s1 + $0x2c0] sm:$0xff]
        %v494 = vld [vmem:[%s1 + $0x2c8] sm:$0xff]
        %v495 = vld [vmem:[%s1 + $0x2d0] sm:$0xff]
        %v496 = vld [vmem:[%s1 + $0x2d8] sm:$0xff]
        %v497 = vld [vmem:[%s1 + $0x2e0] sm:$0xff]
        %v498 = vld [vmem:[%s1 + $0x2e8] sm:$0xff]
        %v499 = vld [vmem:[%s1 + $0x2f0] sm:$0xff]
        %v500 = vld [vmem:[%s1 + $0x2f8] sm:$0xff]
        %v501 = vld [vmem:[%s1 + $0x300] sm:$0xff]
        %v502 = vld [vmem:[%s1 + $0x308] sm:$0xff]
        %v503 = vld [vmem:[%s1 + $0x310] sm:$0xff]
        %v504 = vld [vmem:[%s1 + $0x318] sm:$0xff]
        %v505 = vld [vmem:[%s1 + $0x320] sm:$0xff]
        %v506 = vld [vmem:[%s1 + $0x328] sm:$0xff]
        %v507 = vld [vmem:[%s1 + $0x330] sm:$0xff]
        %v508 = vld [vmem:[%s1 + $0x338] sm:$0xff]
        %v509 = vld [vmem:[%s1 + $0x340] sm:$0xff]
        %v510 = vld [vmem:[%s1 + $0x348] sm:$0xff]
        %v511 = vld [vmem:[%s1 + $0x350] sm:$0xff]
        %v512 = vld [vmem:[%s1 + $0x358] sm:$0xff]
        %v513 = vld [vmem:[%s1 + $0x360] sm:$0xff]
        %v514 = vld [vmem:[%s1 + $0x368] sm:$0xff]
        %v515 = vld [vmem:[%s1 + $0x370] sm:$0xff]
        %v516 = vld [vmem:[%s1 + $0x378] sm:$0xff]
        %v517 = vld [vmem:[%s1 + $0x380] sm:$0xff]
        %v518 = vld [vmem:[%s1 + $0x388] sm:$0xff]
        %v519 = vld [vmem:[%s1 + $0x390] sm:$0xff]
        %v520 = vld [vmem:[%s1 + $0x398] sm:$0xff]
        %v521 = vld [vmem:[%s1 + $0x3a0] sm:$0xff]
        %v522 = vld [vmem:[%s1 + $0x3a8] sm:$0xff]
        %v523 = vld [vmem:[%s1 + $0x3b0] sm:$0xff]
        %v524 = vld [vmem:[%s1 + $0x3b8] sm:$0xff]
        %v525 = vld [vmem:[%s1 + $0x3c0] sm:$0xff]
        %v526 = vld [vmem:[%s1 + $0x3c8] sm:$0xff]
        %v527 = vld [vmem:[%s1 + $0x3d0] sm:$0xff]
        %v528 = vld [vmem:[%s1 + $0x3d8] sm:$0xff]
        %v529 = vld [vmem:[%s1 + $0x3e0] sm:$0xff]
        %v530 = vld [vmem:[%s1 + $0x3e8] sm:$0xff]
        %v531 = vld [vmem:[%s1 + $0x3f0] sm:$0xff]
        %v532 = vld [vmem:[%s1 + $0x3f8] sm:$0xff]
        %v533 = vld [vmem:[%s1 + $0x400] sm:$0xff]
        %v534 = vld [vmem:[%s1 + $0x408] sm:$0xff]
        %v535 = vld [vmem:[%s1 + $0x410] sm:$0xff]
        %v536 = vld [vmem:[%s1 + $0x418] sm:$0xff]
        %v537 = vld [vmem:[%s1 + $0x420] sm:$0xff]
        %v538 = vld [vmem:[%s1 + $0x428] sm:$0xff]
        %v539 = vld [vmem:[%s1 + $0x430] sm:$0xff]
        %v540 = vld [vmem:[%s1 + $0x438] sm:$0xff]
        %v541 = vld [vmem:[%s1 + $0x440] sm:$0xff]
        %v542 = vld [vmem:[%s1 + $0x448] sm:$0xff]
        %v543 = vld [vmem:[%s1 + $0x450] sm:$0xff]
        %v544 = vld [vmem:[%s1 + $0x458] sm:$0xff]
        %v545 = vld [vmem:[%s1 + $0x460] sm:$0xff]
        %v546 = vld [vmem:[%s1 + $0x468] sm:$0xff]
        %v547 = vld [vmem:[%s1 + $0x470] sm:$0xff]
        %v548 = vld [vmem:[%s1 + $0x478] sm:$0xff]
        %v549 = vld [vmem:[%s1 + $0x480] sm:$0xff]
        %v550 = vld [vmem:[%s1 + $0x488] sm:$0xff]
        %v551 = vld [vmem:[%s1 + $0x490] sm:$0xff]
        %v552 = vld [vmem:[%s1 + $0x498] sm:$0xff]
        %v553 = vld [vmem:[%s1 + $0x4a0] sm:$0xff]
        %v554 = vld [vmem:[%s1 + $0x4a8] sm:$0xff]
        %v555 = vld [vmem:[%s1 + $0x4b0] sm:$0xff]
        %v556 = vld [vmem:[%s1 + $0x4b8] sm:$0xff]
        %v557 = vld [vmem:[%s1 + $0x4c0] sm:$0xff]
        %v558 = vld [vmem:[%s1 + $0x4c8] sm:$0xff]
        %v559 = vld [vmem:[%s1 + $0x4d0] sm:$0xff]
        %v560 = vld [vmem:[%s1 + $0x4d8] sm:$0xff]
        %v561 = vld [vmem:[%s1 + $0x4e0] sm:$0xff]
        %v562 = vld [vmem:[%s1 + $0x4e8] sm:$0xff]
        %v563 = vld [vmem:[%s1 + $0x4f0] sm:$0xff]
        %v564 = vld [vmem:[%s1 + $0x4f8] sm:$0xff]
        %v565 = vld [vmem:[%s1 + $0x500] sm:$0xff]
        %v566 = vld [vmem:[%s1 + $0x508] sm:$0xff]
        %v567 = vld [vmem:[%s1 + $0x510] sm:$0xff]
        %v568 = vld [vmem:[%s1 + $0x518] sm:$0xff]
        %v569 = vld [vmem:[%s1 + $0x520] sm:$0xff]
        %v570 = vld [vmem:[%s1 + $0x528] sm:$0xff]
        %v571 = vld [vmem:[%s1 + $0x530] sm:$0xff]
        %v572 = vld [vmem:[%s1 + $0x538] sm:$0xff]
        %v573 = vld [vmem:[%s1 + $0x540] sm:$0xff]
        %v574 = vld [vmem:[%s1 + $0x548] sm:$0xff]
        %v575 = vld [vmem:[%s1 + $0x550] sm:$0xff]
        %v576 = vld [vmem:[%s1 + $0x558] sm:$0xff]
        %v577 = vld [vmem:[%s1 + $0x560] sm:$0xff]
        %v578 = vld [vmem:[%s1 + $0x568] sm:$0xff]
        %v579 = vld [vmem:[%s1 + $0x570] sm:$0xff]
        %v580 = vld [vmem:[%s1 + $0x578] sm:$0xff]
        %v581 = vld [vmem:[%s1 + $0x580] sm:$0xff]
        %v582 = vld [vmem:[%s1 + $0x588] sm:$0xff]
        %v583 = vld [vmem:[%s1 + $0x590] sm:$0xff]
        %v584 = vld [vmem:[%s1 + $0x598] sm:$0xff]
        %v585 = vld [vmem:[%s1 + $0x5a0] sm:$0xff]
        %v586 = vld [vmem:[%s1 + $0x5a8] sm:$0xff]
        %v587 = vld [vmem:[%s1 + $0x5b0] sm:$0xff]
        %v588 = vld [vmem:[%s1 + $0x5b8] sm:$0xff]
        %v589 = vld [vmem:[%s1 + $0x5c0] sm:$0xff]
        %v590 = vld [vmem:[%s1 + $0x5c8] sm:$0xff]
        %v591 = vld [vmem:[%s1 + $0x5d0] sm:$0xff]
        %v592 = vld [vmem:[%s1 + $0x5d8] sm:$0xff]
        %v593 = vld [vmem:[%s1 + $0x5e0] sm:$0xff]
        %v594 = vld [vmem:[%s1 + $0x5e8] sm:$0xff]
        %v595 = vld [vmem:[%s1 + $0x5f0] sm:$0xff]
        %v596 = vld [vmem:[%s1 + $0x5f8] sm:$0xff]
        %v597 = vld [vmem:[%s1 + $0x600] sm:$0xff]
        %v598 = vld [vmem:[%s1 + $0x608] sm:$0xff]
        %v599 = vld [vmem:[%s1 + $0x610] sm:$0xff]
        %v600 = vld [vmem:[%s1 + $0x618] sm:$0xff]
        %v601 = vld [vmem:[%s1 + $0x620] sm:$0xff]
        %v602 = vld [vmem:[%s1 + $0x628] sm:$0xff]
        %v603 = vld [vmem:[%s1 + $0x630] sm:$0xff]
        %v604 = vld [vmem:[%s1 + $0x638] sm:$0xff]
        %v605 = vld [vmem:[%s1 + $0x640] sm:$0xff]
        %v606 = vld [vmem:[%s1 + $0x648] sm:$0xff]
        %v607 = vld [vmem:[%s1 + $0x650] sm:$0xff]
        %v608 = vld [vmem:[%s1 + $0x658] sm:$0xff]
        %v609 = vld [vmem:[%s1 + $0x660] sm:$0xff]
        %v610 = vld [vmem:[%s1 + $0x668] sm:$0xff]
        %v611 = vld [vmem:[%s1 + $0x670] sm:$0xff]
        %v612 = vld [vmem:[%s1 + $0x678] sm:$0xff]
        %v613 = vld [vmem:[%s1 + $0x680] sm:$0xff]
        %v614 = vld [vmem:[%s1 + $0x688] sm:$0xff]
        %v615 = vld [vmem:[%s1 + $0x690] sm:$0xff]
        %v616 = vld [vmem:[%s1 + $0x698] sm:$0xff]
        %v617 = vld [vmem:[%s1 + $0x6a0] sm:$0xff]
        %v618 = vld [vmem:[%s1 + $0x6a8] sm:$0xff]
        %v619 = vld [vmem:[%s1 + $0x6b0] sm:$0xff]
        %v620 = vld [vmem:[%s1 + $0x6b8] sm:$0xff]
        %v621 = vld [vmem:[%s1 + $0x6c0] sm:$0xff]
        %v622 = vld [vmem:[%s1 + $0x6c8] sm:$0xff]
        %v623 = vld [vmem:[%s1 + $0x6d0] sm:$0xff]
        %v624 = vld [vmem:[%s1 + $0x6d8] sm:$0xff]
        %v625 = vld [vmem:[%s1 + $0x6e0] sm:$0xff]
        %v626 = vld [vmem:[%s1 + $0x6e8] sm:$0xff]
        %v627 = vld [vmem:[%s1 + $0x6f0] sm:$0xff]
        %v628 = vld [vmem:[%s1 + $0x6f8] sm:$0xff]
        %v629 = vld [vmem:[%s1 + $0x700] sm:$0xff]
        %v630 = vld [vmem:[%s1 + $0x708] sm:$0xff]
        %v631 = vld [vmem:[%s1 + $0x710] sm:$0xff]
        %v632 = vld [vmem:[%s1 + $0x718] sm:$0xff]
        %v633 = vld [vmem:[%s1 + $0x720] sm:$0xff]
        %v634 = vld [vmem:[%s1 + $0x728] sm:$0xff]
        %v635 = vld [vmem:[%s1 + $0x730] sm:$0xff]
        %v636 = vld [vmem:[%s1 + $0x738] sm:$0xff]
        %v637 = vld [vmem:[%s1 + $0x740] sm:$0xff]
        %v638 = vld [vmem:[%s1 + $0x748] sm:$0xff]
        %v639 = vld [vmem:[%s1 + $0x750] sm:$0xff]
        %v640 = vld [vmem:[%s1 + $0x758] sm:$0xff]
        %v641 = vld [vmem:[%s1 + $0x760] sm:$0xff]
        %v642 = vld [vmem:[%s1 + $0x768] sm:$0xff]
        %v643 = vld [vmem:[%s1 + $0x770] sm:$0xff]
        %v644 = vld [vmem:[%s1 + $0x778] sm:$0xff]
        %v645 = vld [vmem:[%s1 + $0x780] sm:$0xff]
        %v646 = vld [vmem:[%s1 + $0x788] sm:$0xff]
        %v647 = vld [vmem:[%s1 + $0x790] sm:$0xff]
        %v648 = vld [vmem:[%s1 + $0x798] sm:$0xff]
        %v649 = vld [vmem:[%s1 + $0x7a0] sm:$0xff]
        %v650 = vld [vmem:[%s1 + $0x7a8] sm:$0xff]
        %v651 = vld [vmem:[%s1 + $0x7b0] sm:$0xff]
        %v652 = vld [vmem:[%s1 + $0x7b8] sm:$0xff]
        %v653 = vld [vmem:[%s1 + $0x7c0] sm:$0xff]
        %v654 = vld [vmem:[%s1 + $0x7c8] sm:$0xff]
        %v655 = vld [vmem:[%s1 + $0x7d0] sm:$0xff]
        %v656 = vld [vmem:[%s1 + $0x7d8] sm:$0xff]
        %v657 = vld [vmem:[%s1 + $0x7e0] sm:$0xff]
        %v658 = vld [vmem:[%s1 + $0x7e8] sm:$0xff]
        %v659 = vld [vmem:[%s1 + $0x7f0] sm:$0xff]
        %v660 = vld [vmem:[%s1 + $0x7f8] sm:$0xff]
        %vm661 = vcmask 130048
        %v663 = vsel %vm661, %v405, 0
        %v666 = vsel %vm661, %v406, 0
        %v669 = vsel %vm661, %v407, 0
        %v672 = vsel %vm661, %v408, 0
        %v675 = vsel %vm661, %v409, 0
        %v678 = vsel %vm661, %v410, 0
        %v681 = vsel %vm661, %v411, 0
        %v684 = vsel %vm661, %v412, 0
        %v687 = vsel %vm661, %v413, 0
        %v690 = vsel %vm661, %v414, 0
        %v693 = vsel %vm661, %v415, 0
        %v696 = vsel %vm661, %v416, 0
        %v699 = vsel %vm661, %v417, 0
        %v702 = vsel %vm661, %v418, 0
        %v705 = vsel %vm661, %v419, 0
        %v708 = vsel %vm661, %v420, 0
        %710 = vmatprep.subr.mxu0 0.0
        %711 = vmatpush1.msra.mxu0 %v373
        %712 = vmatprep.subr.mxu0 0.0
        %713 = vmatpush1.msra.mxu0 %v374
        %714 = vmatprep.subr.mxu0 0.0
        %715 = vmatpush1.msra.mxu0 0.0
        %716 = vmatprep.subr.mxu0 0.0
        %717 = vmatpush1.msra.mxu0 0.0
        %718 = vmatprep.subr.mxu0 0.0
        %719 = vmatpush1.msra.mxu0 0.0
        %720 = vmatprep.subr.mxu0 0.0
        %721 = vmatpush1.msra.mxu0 0.0
        %722 = vmatprep.subr.mxu0 0.0
        %723 = vmatpush1.msra.mxu0 0.0
        %724 = vmatprep.subr.mxu0 0.0
        %725 = vmatpush1.msra.mxu0 0.0
        %726 = vmatprep.subr.mxu0 0.0
        %727 = vmatpush1.msra.mxu0 0.0
        %728 = vmatprep.subr.mxu0 0.0
        %729 = vmatpush1.msra.mxu0 0.0
        %730 = vmatprep.subr.mxu0 0.0
        %731 = vmatpush1.msra.mxu0 0.0
        %732 = vmatprep.subr.mxu0 0.0
        %733 = vmatpush1.msra.mxu0 0.0
        %734 = vmatprep.subr.mxu0 0.0
        %735 = vmatpush1.msra.mxu0 0.0
        %736 = vmatprep.subr.mxu0 0.0
        %737 = vmatpush1.msra.mxu0 0.0
        %738 = vmatprep.subr.mxu0 0.0
        %739 = vmatpush1.msra.mxu0 0.0
        %740 = vmatprep.subr.mxu0 0.0
        %741 = vmatpush1.msra.mxu0 0.0
        %742 = vmatprep.subr.mxu0 0.0
        %743 = vmatpush1.msra.mxu0 0.0
        %744 = vmatprep.subr.mxu0 0.0
        %745 = vmatpush1.msra.mxu0 0.0
        %746 = vmatprep.subr.mxu0 0.0
        %747 = vmatpush1.msra.mxu0 0.0
        %748 = vmatprep.subr.mxu0 0.0
        %749 = vmatpush1.msra.mxu0 0.0
        %750 = vmatprep.subr.mxu0 0.0
        %751 = vmatpush1.msra.mxu0 0.0
        %752 = vmatprep.subr.mxu0 0.0
        %753 = vmatpush1.msra.mxu0 0.0
        %754 = vmatprep.subr.mxu0 0.0
        %755 = vmatpush1.msra.mxu0 0.0
        %756 = vmatprep.subr.mxu0 0.0
        %757 = vmatpush1.msra.mxu0 0.0
        %758 = vmatprep.subr.mxu0 0.0
        %759 = vmatpush1.msra.mxu0 0.0
        %760 = vmatprep.subr.mxu0 0.0
        %761 = vmatpush1.msra.mxu0 0.0
        %762 = vmatprep.subr.mxu0 0.0
        %763 = vmatpush1.msra.mxu0 0.0
        %764 = vmatprep.subr.mxu0 0.0
        %765 = vmatpush1.msra.mxu0 0.0
        %766 = vmatprep.subr.mxu0 0.0
        %767 = vmatpush1.msra.mxu0 0.0
        %768 = vmatprep.subr.mxu0 0.0
        %769 = vmatpush1.msra.mxu0 0.0
        %770 = vmatprep.subr.mxu0 0.0
        %771 = vmatpush1.msra.mxu0 0.0
        %772 = vmatprep.subr.mxu0 0.0
        %773 = vmatpush1.msra.mxu0 0.0
        %774 = vmatprep.mubr.f32.mxu0 0.0
        %775 = vmatmul.mubr.f32.gmra.mrb[0].mxu0 %v663
        %v776 = vpop.f32.mrb[0].mxu0
        %v777 = vadd.f32 0.0, %v776
        %v778 = vpop.f32.mrb[0].mxu0
        %779 = vmatprep.mubr.f32.mxu0 0.0
        %780 = vmatmul.mubr.f32.gmra.mrb[0].mxu0 %v666
        %v781 = vpop.f32.mrb[0].mxu0
        %v782 = vadd.f32 0.0, %v781
        %v783 = vpop.f32.mrb[0].mxu0
        %784 = vmatprep.mubr.f32.mxu0 0.0
        %785 = vmatmul.mubr.f32.gmra.mrb[0].mxu0 %v669
        %v786 = vpop.f32.mrb[0].mxu0
        %v787 = vadd.f32 0.0, %v786
        %v788 = vpop.f32.mrb[0].mxu0
        %789 = vmatprep.mubr.f32.mxu0 0.0
        %790 = vmatmul.mubr.f32.gmra.mrb[0].mxu0 %v672
        %v791 = vpop.f32.mrb[0].mxu0
        %v792 = vadd.f32 0.0, %v791
        %v793 = vpop.f32.mrb[0].mxu0
        %794 = vmatprep.mubr.f32.mxu0 0.0
        %795 = vmatmul.mubr.f32.gmra.mrb[0].mxu0 %v675
        %v796 = vpop.f32.mrb[0].mxu0
        %v797 = vadd.f32 0.0, %v796
        %v798 = vpop.f32.mrb[0].mxu0
        %799 = vmatprep.mubr.f32.mxu0 0.0
        %800 = vmatmul.mubr.f32.gmra.mrb[0].mxu0 %v678
        %v801 = vpop.f32.mrb[0].mxu0
        %v802 = vadd.f32 0.0, %v801
        %v803 = vpop.f32.mrb[0].mxu0
        %804 = vmatprep.mubr.f32.mxu0 0.0
        %805 = vmatmul.mubr.f32.gmra.mrb[0].mxu0 %v681
        %v806 = vpop.f32.mrb[0].mxu0
        %v807 = vadd.f32 0.0, %v806
        %v808 = vpop.f32.mrb[0].mxu0
        %809 = vmatprep.mubr.f32.mxu0 0.0
        %810 = vmatmul.mubr.f32.gmra.mrb[0].mxu0 %v684
        %v811 = vpop.f32.mrb[0].mxu0
        %v812 = vadd.f32 0.0, %v811
        %v813 = vpop.f32.mrb[0].mxu0
        %814 = vmatprep.mubr.f32.mxu0 0.0
        %815 = vmatmul.mubr.f32.gmra.mrb[0].mxu0 %v687
        %v816 = vpop.f32.mrb[0].mxu0
        %v817 = vadd.f32 0.0, %v816
        %v818 = vpop.f32.mrb[0].mxu0
        %819 = vmatprep.mubr.f32.mxu0 0.0
        %820 = vmatmul.mubr.f32.gmra.mrb[0].mxu0 %v690
        %v821 = vpop.f32.mrb[0].mxu0
        %v822 = vadd.f32 0.0, %v821
        %v823 = vpop.f32.mrb[0].mxu0
        %824 = vmatprep.mubr.f32.mxu0 0.0
        %825 = vmatmul.mubr.f32.gmra.mrb[0].mxu0 %v693
        %v826 = vpop.f32.mrb[0].mxu0
        %v827 = vadd.f32 0.0, %v826
        %v828 = vpop.f32.mrb[0].mxu0
        %829 = vmatprep.mubr.f32.mxu0 0.0
        %830 = vmatmul.mubr.f32.gmra.mrb[0].mxu0 %v696
        %v831 = vpop.f32.mrb[0].mxu0
        %v832 = vadd.f32 0.0, %v831
        %v833 = vpop.f32.mrb[0].mxu0
        %834 = vmatprep.mubr.f32.mxu0 0.0
        %835 = vmatmul.mubr.f32.gmra.mrb[0].mxu0 %v699
        %v836 = vpop.f32.mrb[0].mxu0
        %v837 = vadd.f32 0.0, %v836
        %v838 = vpop.f32.mrb[0].mxu0
        %839 = vmatprep.mubr.f32.mxu0 0.0
        %840 = vmatmul.mubr.f32.gmra.mrb[0].mxu0 %v702
        %v841 = vpop.f32.mrb[0].mxu0
        %v842 = vadd.f32 0.0, %v841
        %v843 = vpop.f32.mrb[0].mxu0
        %844 = vmatprep.mubr.f32.mxu0 0.0
        %845 = vmatmul.mubr.f32.gmra.mrb[0].mxu0 %v705
        %v846 = vpop.f32.mrb[0].mxu0
        %v847 = vadd.f32 0.0, %v846
        %v848 = vpop.f32.mrb[0].mxu0
        %849 = vmatprep.mubr.f32.mxu0 0.0
        %850 = vmatmul.mubr.f32.gmra.mrb[0].mxu0 %v708
        %v851 = vpop.f32.mrb[0].mxu0
        %v852 = vadd.f32 0.0, %v851
        %v853 = vpop.f32.mrb[0].mxu0
        %854 = vdwg.mxu0
        %v856 = vsel %vm661, %v421, 0
        %v859 = vsel %vm661, %v422, 0
        %v862 = vsel %vm661, %v423, 0
        %v865 = vsel %vm661, %v424, 0
        %v868 = vsel %vm661, %v425, 0
        %v871 = vsel %vm661, %v426, 0
        %v874 = vsel %vm661, %v427, 0
        %v877 = vsel %vm661, %v428, 0
        %v880 = vsel %vm661, %v429, 0
        %v883 = vsel %vm661, %v430, 0
        %v886 = vsel %vm661, %v431, 0
        %v889 = vsel %vm661, %v432, 0
        %v892 = vsel %vm661, %v433, 0
        %v895 = vsel %vm661, %v434, 0
        %v898 = vsel %vm661, %v435, 0
        %v901 = vsel %vm661, %v436, 0
        %903 = vmatprep.subr.mxu0 0.0
        %904 = vmatpush1.msra.mxu0 %v375
        %905 = vmatprep.subr.mxu0 0.0
        %906 = vmatpush1.msra.mxu0 %v376
        %907 = vmatprep.subr.mxu0 0.0
        %908 = vmatpush1.msra.mxu0 0.0
        %909 = vmatprep.subr.mxu0 0.0
        %910 = vmatpush1.msra.mxu0 0.0
        %911 = vmatprep.subr.mxu0 0.0
        %912 = vmatpush1.msra.mxu0 0.0
        %913 = vmatprep.subr.mxu0 0.0
        %914 = vmatpush1.msra.mxu0 0.0
        %915 = vmatprep.subr.mxu0 0.0
        %916 = vmatpush1.msra.mxu0 0.0
        %917 = vmatprep.subr.mxu0 0.0
        %918 = vmatpush1.msra.mxu0 0.0
        %919 = vmatprep.subr.mxu0 0.0
        %920 = vmatpush1.msra.mxu0 0.0
        %921 = vmatprep.subr.mxu0 0.0
        %922 = vmatpush1.msra.mxu0 0.0
        %923 = vmatprep.subr.mxu0 0.0
        %924 = vmatpush1.msra.mxu0 0.0
        %925 = vmatprep.subr.mxu0 0.0
        %926 = vmatpush1.msra.mxu0 0.0
        %927 = vmatprep.subr.mxu0 0.0
        %928 = vmatpush1.msra.mxu0 0.0
        %929 = vmatprep.subr.mxu0 0.0
        %930 = vmatpush1.msra.mxu0 0.0
        %931 = vmatprep.subr.mxu0 0.0
        %932 = vmatpush1.msra.mxu0 0.0
        %933 = vmatprep.subr.mxu0 0.0
        %934 = vmatpush1.msra.mxu0 0.0
        %935 = vmatprep.subr.mxu0 0.0
        %936 = vmatpush1.msra.mxu0 0.0
        %937 = vmatprep.subr.mxu0 0.0
        %938 = vmatpush1.msra.mxu0 0.0
        %939 = vmatprep.subr.mxu0 0.0
        %940 = vmatpush1.msra.mxu0 0.0
        %941 = vmatprep.subr.mxu0 0.0
        %942 = vmatpush1.msra.mxu0 0.0
        %943 = vmatprep.subr.mxu0 0.0
        %944 = vmatpush1.msra.mxu0 0.0
        %945 = vmatprep.subr.mxu0 0.0
        %946 = vmatpush1.msra.mxu0 0.0
        %947 = vmatprep.subr.mxu0 0.0
        %948 = vmatpush1.msra.mxu0 0.0
        %949 = vmatprep.subr.mxu0 0.0
        %950 = vmatpush1.msra.mxu0 0.0
        %951 = vmatprep.subr.mxu0 0.0
        %952 = vmatpush1.msra.mxu0 0.0
        %953 = vmatprep.subr.mxu0 0.0
        %954 = vmatpush1.msra.mxu0 0.0
        %955 = vmatprep.subr.mxu0 0.0
        %956 = vmatpush1.msra.mxu0 0.0
        %957 = vmatprep.subr.mxu0 0.0
        %958 = vmatpush1.msra.mxu0 0.0
        %959 = vmatprep.subr.mxu0 0.0
        %960 = vmatpush1.msra.mxu0 0.0
        %961 = vmatprep.subr.mxu0 0.0
        %962 = vmatpush1.msra.mxu0 0.0
        %963 = vmatprep.subr.mxu0 0.0
        %964 = vmatpush1.msra.mxu0 0.0
        %965 = vmatprep.subr.mxu0 0.0
        %966 = vmatpush1.msra.mxu0 0.0
        %967 = vmatprep.mubr.f32.mxu0 0.0
        %968 = vmatmul.mubr.f32.gmra.mrb[0].mxu0 %v856
        %v969 = vpop.f32.mrb[0].mxu0
        %v970 = vadd.f32 0.0, %v969
        %v971 = vpop.f32.mrb[0].mxu0
        %972 = vmatprep.mubr.f32.mxu0 0.0
        %973 = vmatmul.mubr.f32.gmra.mrb[0].mxu0 %v859
        %v974 = vpop.f32.mrb[0].mxu0
        %v975 = vadd.f32 0.0, %v974
        %v976 = vpop.f32.mrb[0].mxu0
        %977 = vmatprep.mubr.f32.mxu0 0.0
        %978 = vmatmul.mubr.f32.gmra.mrb[0].mxu0 %v862
        %v979 = vpop.f32.mrb[0].mxu0
        %v980 = vadd.f32 0.0, %v979
        %v981 = vpop.f32.mrb[0].mxu0
        %982 = vmatprep.mubr.f32.mxu0 0.0
        %983 = vmatmul.mubr.f32.gmra.mrb[0].mxu0 %v865
        %v984 = vpop.f32.mrb[0].mxu0
        %v985 = vadd.f32 0.0, %v984
        %v986 = vpop.f32.mrb[0].mxu0
        %987 = vmatprep.mubr.f32.mxu0 0.0
        %988 = vmatmul.mubr.f32.gmra.mrb[0].mxu0 %v868
        %v989 = vpop.f32.mrb[0].mxu0
        %v990 = vadd.f32 0.0, %v989
        %v991 = vpop.f32.mrb[0].mxu0
        %992 = vmatprep.mubr.f32.mxu0 0.0
        %993 = vmatmul.mubr.f32.gmra.mrb[0].mxu0 %v871
        %v994 = vpop.f32.mrb[0].mxu0
        %v995 = vadd.f32 0.0, %v994
        %v996 = vpop.f32.mrb[0].mxu0
        %997 = vmatprep.mubr.f32.mxu0 0.0
        %998 = vmatmul.mubr.f32.gmra.mrb[0].mxu0 %v874
        %v999 = vpop.f32.mrb[0].mxu0
        %v1000 = vadd.f32 0.0, %v999
        %v1001 = vpop.f32.mrb[0].mxu0
        %1002 = vmatprep.mubr.f32.mxu0 0.0
        %1003 = vmatmul.mubr.f32.gmra.mrb[0].mxu0 %v877
        %v1004 = vpop.f32.mrb[0].mxu0
        %v1005 = vadd.f32 0.0, %v1004
        %v1006 = vpop.f32.mrb[0].mxu0
        %1007 = vmatprep.mubr.f32.mxu0 0.0
        %1008 = vmatmul.mubr.f32.gmra.mrb[0].mxu0 %v880
        %v1009 = vpop.f32.mrb[0].mxu0
        %v1010 = vadd.f32 0.0, %v1009
        %v1011 = vpop.f32.mrb[0].mxu0
        %1012 = vmatprep.mubr.f32.mxu0 0.0
        %1013 = vmatmul.mubr.f32.gmra.mrb[0].mxu0 %v883
        %v1014 = vpop.f32.mrb[0].mxu0
        %v1015 = vadd.f32 0.0, %v1014
        %v1016 = vpop.f32.mrb[0].mxu0
        %1017 = vmatprep.mubr.f32.mxu0 0.0
        %1018 = vmatmul.mubr.f32.gmra.mrb[0].mxu0 %v886
        %v1019 = vpop.f32.mrb[0].mxu0
        %v1020 = vadd.f32 0.0, %v1019
        %v1021 = vpop.f32.mrb[0].mxu0
        %1022 = vmatprep.mubr.f32.mxu0 0.0
        %1023 = vmatmul.mubr.f32.gmra.mrb[0].mxu0 %v889
        %v1024 = vpop.f32.mrb[0].mxu0
        %v1025 = vadd.f32 0.0, %v1024
        %v1026 = vpop.f32.mrb[0].mxu0
        %1027 = vmatprep.mubr.f32.mxu0 0.0
        %1028 = vmatmul.mubr.f32.gmra.mrb[0].mxu0 %v892
        %v1029 = vpop.f32.mrb[0].mxu0
        %v1030 = vadd.f32 0.0, %v1029
        %v1031 = vpop.f32.mrb[0].mxu0
        %1032 = vmatprep.mubr.f32.mxu0 0.0
        %1033 = vmatmul.mubr.f32.gmra.mrb[0].mxu0 %v895
        %v1034 = vpop.f32.mrb[0].mxu0
        %v1035 = vadd.f32 0.0, %v1034
        %v1036 = vpop.f32.mrb[0].mxu0
        %1037 = vmatprep.mubr.f32.mxu0 0.0
        %1038 = vmatmul.mubr.f32.gmra.mrb[0].mxu0 %v898
        %v1039 = vpop.f32.mrb[0].mxu0
        %v1040 = vadd.f32 0.0, %v1039
        %v1041 = vpop.f32.mrb[0].mxu0
        %1042 = vmatprep.mubr.f32.mxu0 0.0
        %1043 = vmatmul.mubr.f32.gmra.mrb[0].mxu0 %v901
        %v1044 = vpop.f32.mrb[0].mxu0
        %v1045 = vadd.f32 0.0, %v1044
        %v1046 = vpop.f32.mrb[0].mxu0
        %1047 = vdwg.mxu0
        %v1049 = vsel %vm661, %v437, 0
        %v1052 = vsel %vm661, %v438, 0
        %v1055 = vsel %vm661, %v439, 0
        %v1058 = vsel %vm661, %v440, 0
        %v1061 = vsel %vm661, %v441, 0
        %v1064 = vsel %vm661, %v442, 0
        %v1067 = vsel %vm661, %v443, 0
        %v1070 = vsel %vm661, %v444, 0
        %v1073 = vsel %vm661, %v445, 0
        %v1076 = vsel %vm661, %v446, 0
        %v1079 = vsel %vm661, %v447, 0
        %v1082 = vsel %vm661, %v448, 0
        %v1085 = vsel %vm661, %v449, 0
        %v1088 = vsel %vm661, %v450, 0
        %v1091 = vsel %vm661, %v451, 0
        %v1094 = vsel %vm661, %v452, 0
        %1096 = vmatprep.subr.mxu0 0.0
        %1097 = vmatpush1.msra.mxu0 %v377
        %1098 = vmatprep.subr.mxu0 0.0
        %1099 = vmatpush1.msra.mxu0 %v378
        %1100 = vmatprep.subr.mxu0 0.0
        %1101 = vmatpush1.msra.mxu0 0.0
        %1102 = vmatprep.subr.mxu0 0.0
        %1103 = vmatpush1.msra.mxu0 0.0
        %1104 = vmatprep.subr.mxu0 0.0
        %1105 = vmatpush1.msra.mxu0 0.0
        %1106 = vmatprep.subr.mxu0 0.0
        %1107 = vmatpush1.msra.mxu0 0.0
        %1108 = vmatprep.subr.mxu0 0.0
        %1109 = vmatpush1.msra.mxu0 0.0
        %1110 = vmatprep.subr.mxu0 0.0
        %1111 = vmatpush1.msra.mxu0 0.0
        %1112 = vmatprep.subr.mxu0 0.0
        %1113 = vmatpush1.msra.mxu0 0.0
        %1114 = vmatprep.subr.mxu0 0.0
        %1115 = vmatpush1.msra.mxu0 0.0
        %1116 = vmatprep.subr.mxu0 0.0
        %1117 = vmatpush1.msra.mxu0 0.0
        %1118 = vmatprep.subr.mxu0 0.0
        %1119 = vmatpush1.msra.mxu0 0.0
        %1120 = vmatprep.subr.mxu0 0.0
        %1121 = vmatpush1.msra.mxu0 0.0
        %1122 = vmatprep.subr.mxu0 0.0
        %1123 = vmatpush1.msra.mxu0 0.0
        %1124 = vmatprep.subr.mxu0 0.0
        %1125 = vmatpush1.msra.mxu0 0.0
        %1126 = vmatprep.subr.mxu0 0.0
        %1127 = vmatpush1.msra.mxu0 0.0
        %1128 = vmatprep.subr.mxu0 0.0
        %1129 = vmatpush1.msra.mxu0 0.0
        %1130 = vmatprep.subr.mxu0 0.0
        %1131 = vmatpush1.msra.mxu0 0.0
        %1132 = vmatprep.subr.mxu0 0.0
        %1133 = vmatpush1.msra.mxu0 0.0
        %1134 = vmatprep.subr.mxu0 0.0
        %1135 = vmatpush1.msra.mxu0 0.0
        %1136 = vmatprep.subr.mxu0 0.0
        %1137 = vmatpush1.msra.mxu0 0.0
        %1138 = vmatprep.subr.mxu0 0.0
        %1139 = vmatpush1.msra.mxu0 0.0
        %1140 = vmatprep.subr.mxu0 0.0
        %1141 = vmatpush1.msra.mxu0 0.0
        %1142 = vmatprep.subr.mxu0 0.0
        %1143 = vmatpush1.msra.mxu0 0.0
        %1144 = vmatprep.subr.mxu0 0.0
        %1145 = vmatpush1.msra.mxu0 0.0
        %1146 = vmatprep.subr.mxu0 0.0
        %1147 = vmatpush1.msra.mxu0 0.0
        %1148 = vmatprep.subr.mxu0 0.0
        %1149 = vmatpush1.msra.mxu0 0.0
        %1150 = vmatprep.subr.mxu0 0.0
        %1151 = vmatpush1.msra.mxu0 0.0
        %1152 = vmatprep.subr.mxu0 0.0
        %1153 = vmatpush1.msra.mxu0 0.0
        %1154 = vmatprep.subr.mxu0 0.0
        %1155 = vmatpush1.msra.mxu0 0.0
        %1156 = vmatprep.subr.mxu0 0.0
        %1157 = vmatpush1.msra.mxu0 0.0
        %1158 = vmatprep.subr.mxu0 0.0
        %1159 = vmatpush1.msra.mxu0 0.0
        %1160 = vmatprep.mubr.f32.mxu0 0.0
        %1161 = vmatmul.mubr.f32.gmra.mrb[0].mxu0 %v1049
        %v1162 = vpop.f32.mrb[0].mxu0
        %v1163 = vadd.f32 0.0, %v1162
        %v1164 = vpop.f32.mrb[0].mxu0
        %1165 = vmatprep.mubr.f32.mxu0 0.0
        %1166 = vmatmul.mubr.f32.gmra.mrb[0].mxu0 %v1052
        %v1167 = vpop.f32.mrb[0].mxu0
        %v1168 = vadd.f32 0.0, %v1167
        %v1169 = vpop.f32.mrb[0].mxu0
        %1170 = vmatprep.mubr.f32.mxu0 0.0
        %1171 = vmatmul.mubr.f32.gmra.mrb[0].mxu0 %v1055
        %v1172 = vpop.f32.mrb[0].mxu0
        %v1173 = vadd.f32 0.0, %v1172
        %v1174 = vpop.f32.mrb[0].mxu0
        %1175 = vmatprep.mubr.f32.mxu0 0.0
        %1176 = vmatmul.mubr.f32.gmra.mrb[0].mxu0 %v1058
        %v1177 = vpop.f32.mrb[0].mxu0
        %v1178 = vadd.f32 0.0, %v1177
        %v1179 = vpop.f32.mrb[0].mxu0
        %1180 = vmatprep.mubr.f32.mxu0 0.0
        %1181 = vmatmul.mubr.f32.gmra.mrb[0].mxu0 %v1061
        %v1182 = vpop.f32.mrb[0].mxu0
        %v1183 = vadd.f32 0.0, %v1182
        %v1184 = vpop.f32.mrb[0].mxu0
        %1185 = vmatprep.mubr.f32.mxu0 0.0
        %1186 = vmatmul.mubr.f32.gmra.mrb[0].mxu0 %v1064
        %v1187 = vpop.f32.mrb[0].mxu0
        %v1188 = vadd.f32 0.0, %v1187
        %v1189 = vpop.f32.mrb[0].mxu0
        %1190 = vmatprep.mubr.f32.mxu0 0.0
        %1191 = vmatmul.mubr.f32.gmra.mrb[0].mxu0 %v1067
        %v1192 = vpop.f32.mrb[0].mxu0
        %v1193 = vadd.f32 0.0, %v1192
        %v1194 = vpop.f32.mrb[0].mxu0
        %1195 = vmatprep.mubr.f32.mxu0 0.0
        %1196 = vmatmul.mubr.f32.gmra.mrb[0].mxu0 %v1070
        %v1197 = vpop.f32.mrb[0].mxu0
        %v1198 = vadd.f32 0.0, %v1197
        %v1199 = vpop.f32.mrb[0].mxu0
        %1200 = vmatprep.mubr.f32.mxu0 0.0
        %1201 = vmatmul.mubr.f32.gmra.mrb[0].mxu0 %v1073
        %v1202 = vpop.f32.mrb[0].mxu0
        %v1203 = vadd.f32 0.0, %v1202
        %v1204 = vpop.f32.mrb[0].mxu0
        %1205 = vmatprep.mubr.f32.mxu0 0.0
        %1206 = vmatmul.mubr.f32.gmra.mrb[0].mxu0 %v1076
        %v1207 = vpop.f32.mrb[0].mxu0
        %v1208 = vadd.f32 0.0, %v1207
        %v1209 = vpop.f32.mrb[0].mxu0
        %1210 = vmatprep.mubr.f32.mxu0 0.0
        %1211 = vmatmul.mubr.f32.gmra.mrb[0].mxu0 %v1079
        %v1212 = vpop.f32.mrb[0].mxu0
        %v1213 = vadd.f32 0.0, %v1212
        %v1214 = vpop.f32.mrb[0].mxu0
        %1215 = vmatprep.mubr.f32.mxu0 0.0
        %1216 = vmatmul.mubr.f32.gmra.mrb[0].mxu0 %v1082
        %v1217 = vpop.f32.mrb[0].mxu0
        %v1218 = vadd.f32 0.0, %v1217
        %v1219 = vpop.f32.mrb[0].mxu0
        %1220 = vmatprep.mubr.f32.mxu0 0.0
        %1221 = vmatmul.mubr.f32.gmra.mrb[0].mxu0 %v1085
        %v1222 = vpop.f32.mrb[0].mxu0
        %v1223 = vadd.f32 0.0, %v1222
        %v1224 = vpop.f32.mrb[0].mxu0
        %1225 = vmatprep.mubr.f32.mxu0 0.0
        %1226 = vmatmul.mubr.f32.gmra.mrb[0].mxu0 %v1088
        %v1227 = vpop.f32.mrb[0].mxu0
        %v1228 = vadd.f32 0.0, %v1227
        %v1229 = vpop.f32.mrb[0].mxu0
        %1230 = vmatprep.mubr.f32.mxu0 0.0
        %1231 = vmatmul.mubr.f32.gmra.mrb[0].mxu0 %v1091
        %v1232 = vpop.f32.mrb[0].mxu0
        %v1233 = vadd.f32 0.0, %v1232
        %v1234 = vpop.f32.mrb[0].mxu0
        %1235 = vmatprep.mubr.f32.mxu0 0.0
        %1236 = vmatmul.mubr.f32.gmra.mrb[0].mxu0 %v1094
        %v1237 = vpop.f32.mrb[0].mxu0
        %v1238 = vadd.f32 0.0, %v1237
        %v1239 = vpop.f32.mrb[0].mxu0
        %1240 = vdwg.mxu0
        %v1242 = vsel %vm661, %v453, 0
        %v1245 = vsel %vm661, %v454, 0
        %v1248 = vsel %vm661, %v455, 0
        %v1251 = vsel %vm661, %v456, 0
        %v1254 = vsel %vm661, %v457, 0
        %v1257 = vsel %vm661, %v458, 0
        %v1260 = vsel %vm661, %v459, 0
        %v1263 = vsel %vm661, %v460, 0
        %v1266 = vsel %vm661, %v461, 0
        %v1269 = vsel %vm661, %v462, 0
        %v1272 = vsel %vm661, %v463, 0
        %v1275 = vsel %vm661, %v464, 0
        %v1278 = vsel %vm661, %v465, 0
        %v1281 = vsel %vm661, %v466, 0
        %v1284 = vsel %vm661, %v467, 0
        %v1287 = vsel %vm661, %v468, 0
        %1289 = vmatprep.subr.mxu0 0.0
        %1290 = vmatpush1.msra.mxu0 %v379
        %1291 = vmatprep.subr.mxu0 0.0
        %1292 = vmatpush1.msra.mxu0 %v380
        %1293 = vmatprep.subr.mxu0 0.0
        %1294 = vmatpush1.msra.mxu0 0.0
        %1295 = vmatprep.subr.mxu0 0.0
        %1296 = vmatpush1.msra.mxu0 0.0
        %1297 = vmatprep.subr.mxu0 0.0
        %1298 = vmatpush1.msra.mxu0 0.0
        %1299 = vmatprep.subr.mxu0 0.0
        %1300 = vmatpush1.msra.mxu0 0.0
        %1301 = vmatprep.subr.mxu0 0.0
        %1302 = vmatpush1.msra.mxu0 0.0
        %1303 = vmatprep.subr.mxu0 0.0
        %1304 = vmatpush1.msra.mxu0 0.0
        %1305 = vmatprep.subr.mxu0 0.0
        %1306 = vmatpush1.msra.mxu0 0.0
        %1307 = vmatprep.subr.mxu0 0.0
        %1308 = vmatpush1.msra.mxu0 0.0
        %1309 = vmatprep.subr.mxu0 0.0
        %1310 = vmatpush1.msra.mxu0 0.0
        %1311 = vmatprep.subr.mxu0 0.0
        %1312 = vmatpush1.msra.mxu0 0.0
        %1313 = vmatprep.subr.mxu0 0.0
        %1314 = vmatpush1.msra.mxu0 0.0
        %1315 = vmatprep.subr.mxu0 0.0
        %1316 = vmatpush1.msra.mxu0 0.0
        %1317 = vmatprep.subr.mxu0 0.0
        %1318 = vmatpush1.msra.mxu0 0.0
        %1319 = vmatprep.subr.mxu0 0.0
        %1320 = vmatpush1.msra.mxu0 0.0
        %1321 = vmatprep.subr.mxu0 0.0
        %1322 = vmatpush1.msra.mxu0 0.0
        %1323 = vmatprep.subr.mxu0 0.0
        %1324 = vmatpush1.msra.mxu0 0.0
        %1325 = vmatprep.subr.mxu0 0.0
        %1326 = vmatpush1.msra.mxu0 0.0
        %1327 = vmatprep.subr.mxu0 0.0
        %1328 = vmatpush1.msra.mxu0 0.0
        %1329 = vmatprep.subr.mxu0 0.0
        %1330 = vmatpush1.msra.mxu0 0.0
        %1331 = vmatprep.subr.mxu0 0.0
        %1332 = vmatpush1.msra.mxu0 0.0
        %1333 = vmatprep.subr.mxu0 0.0
        %1334 = vmatpush1.msra.mxu0 0.0
        %1335 = vmatprep.subr.mxu0 0.0
        %1336 = vmatpush1.msra.mxu0 0.0
        %1337 = vmatprep.subr.mxu0 0.0
        %1338 = vmatpush1.msra.mxu0 0.0
        %1339 = vmatprep.subr.mxu0 0.0
        %1340 = vmatpush1.msra.mxu0 0.0
        %1341 = vmatprep.subr.mxu0 0.0
        %1342 = vmatpush1.msra.mxu0 0.0
        %1343 = vmatprep.subr.mxu0 0.0
        %1344 = vmatpush1.msra.mxu0 0.0
        %1345 = vmatprep.subr.mxu0 0.0
        %1346 = vmatpush1.msra.mxu0 0.0
        %1347 = vmatprep.subr.mxu0 0.0
        %1348 = vmatpush1.msra.mxu0 0.0
        %1349 = vmatprep.subr.mxu0 0.0
        %1350 = vmatpush1.msra.mxu0 0.0
        %1351 = vmatprep.subr.mxu0 0.0
        %1352 = vmatpush1.msra.mxu0 0.0
        %1353 = vmatprep.mubr.f32.mxu0 0.0
        %1354 = vmatmul.mubr.f32.gmra.mrb[0].mxu0 %v1242
        %v1355 = vpop.f32.mrb[0].mxu0
        %v1356 = vadd.f32 0.0, %v1355
        %v1357 = vpop.f32.mrb[0].mxu0
        %1358 = vmatprep.mubr.f32.mxu0 0.0
        %1359 = vmatmul.mubr.f32.gmra.mrb[0].mxu0 %v1245
        %v1360 = vpop.f32.mrb[0].mxu0
        %v1361 = vadd.f32 0.0, %v1360
        %v1362 = vpop.f32.mrb[0].mxu0
        %1363 = vmatprep.mubr.f32.mxu0 0.0
        %1364 = vmatmul.mubr.f32.gmra.mrb[0].mxu0 %v1248
        %v1365 = vpop.f32.mrb[0].mxu0
        %v1366 = vadd.f32 0.0, %v1365
        %v1367 = vpop.f32.mrb[0].mxu0
        %1368 = vmatprep.mubr.f32.mxu0 0.0
        %1369 = vmatmul.mubr.f32.gmra.mrb[0].mxu0 %v1251
        %v1370 = vpop.f32.mrb[0].mxu0
        %v1371 = vadd.f32 0.0, %v1370
        %v1372 = vpop.f32.mrb[0].mxu0
        %1373 = vmatprep.mubr.f32.mxu0 0.0
        %1374 = vmatmul.mubr.f32.gmra.mrb[0].mxu0 %v1254
        %v1375 = vpop.f32.mrb[0].mxu0
        %v1376 = vadd.f32 0.0, %v1375
        %v1377 = vpop.f32.mrb[0].mxu0
        %1378 = vmatprep.mubr.f32.mxu0 0.0
        %1379 = vmatmul.mubr.f32.gmra.mrb[0].mxu0 %v1257
        %v1380 = vpop.f32.mrb[0].mxu0
        %v1381 = vadd.f32 0.0, %v1380
        %v1382 = vpop.f32.mrb[0].mxu0
        %1383 = vmatprep.mubr.f32.mxu0 0.0
        %1384 = vmatmul.mubr.f32.gmra.mrb[0].mxu0 %v1260
        %v1385 = vpop.f32.mrb[0].mxu0
        %v1386 = vadd.f32 0.0, %v1385
        %v1387 = vpop.f32.mrb[0].mxu0
        %1388 = vmatprep.mubr.f32.mxu0 0.0
        %1389 = vmatmul.mubr.f32.gmra.mrb[0].mxu0 %v1263
        %v1390 = vpop.f32.mrb[0].mxu0
        %v1391 = vadd.f32 0.0, %v1390
        %v1392 = vpop.f32.mrb[0].mxu0
        %1393 = vmatprep.mubr.f32.mxu0 0.0
        %1394 = vmatmul.mubr.f32.gmra.mrb[0].mxu0 %v1266
        %v1395 = vpop.f32.mrb[0].mxu0
        %v1396 = vadd.f32 0.0, %v1395
        %v1397 = vpop.f32.mrb[0].mxu0
        %1398 = vmatprep.mubr.f32.mxu0 0.0
        %1399 = vmatmul.mubr.f32.gmra.mrb[0].mxu0 %v1269
        %v1400 = vpop.f32.mrb[0].mxu0
        %v1401 = vadd.f32 0.0, %v1400
        %v1402 = vpop.f32.mrb[0].mxu0
        %1403 = vmatprep.mubr.f32.mxu0 0.0
        %1404 = vmatmul.mubr.f32.gmra.mrb[0].mxu0 %v1272
        %v1405 = vpop.f32.mrb[0].mxu0
        %v1406 = vadd.f32 0.0, %v1405
        %v1407 = vpop.f32.mrb[0].mxu0
        %1408 = vmatprep.mubr.f32.mxu0 0.0
        %1409 = vmatmul.mubr.f32.gmra.mrb[0].mxu0 %v1275
        %v1410 = vpop.f32.mrb[0].mxu0
        %v1411 = vadd.f32 0.0, %v1410
        %v1412 = vpop.f32.mrb[0].mxu0
        %1413 = vmatprep.mubr.f32.mxu0 0.0
        %1414 = vmatmul.mubr.f32.gmra.mrb[0].mxu0 %v1278
        %v1415 = vpop.f32.mrb[0].mxu0
        %v1416 = vadd.f32 0.0, %v1415
        %v1417 = vpop.f32.mrb[0].mxu0
        %1418 = vmatprep.mubr.f32.mxu0 0.0
        %1419 = vmatmul.mubr.f32.gmra.mrb[0].mxu0 %v1281
        %v1420 = vpop.f32.mrb[0].mxu0
        %v1421 = vadd.f32 0.0, %v1420
        %v1422 = vpop.f32.mrb[0].mxu0
        %1423 = vmatprep.mubr.f32.mxu0 0.0
        %1424 = vmatmul.mubr.f32.gmra.mrb[0].mxu0 %v1284
        %v1425 = vpop.f32.mrb[0].mxu0
        %v1426 = vadd.f32 0.0, %v1425
        %v1427 = vpop.f32.mrb[0].mxu0
        %1428 = vmatprep.mubr.f32.mxu0 0.0
        %1429 = vmatmul.mubr.f32.gmra.mrb[0].mxu0 %v1287
        %v1430 = vpop.f32.mrb[0].mxu0
        %v1431 = vadd.f32 0.0, %v1430
        %v1432 = vpop.f32.mrb[0].mxu0
        %1433 = vdwg.mxu0
        %v1435 = vsel %vm661, %v469, 0
        %v1438 = vsel %vm661, %v470, 0
        %v1441 = vsel %vm661, %v471, 0
        %v1444 = vsel %vm661, %v472, 0
        %v1447 = vsel %vm661, %v473, 0
        %v1450 = vsel %vm661, %v474, 0
        %v1453 = vsel %vm661, %v475, 0
        %v1456 = vsel %vm661, %v476, 0
        %v1459 = vsel %vm661, %v477, 0
        %v1462 = vsel %vm661, %v478, 0
        %v1465 = vsel %vm661, %v479, 0
        %v1468 = vsel %vm661, %v480, 0
        %v1471 = vsel %vm661, %v481, 0
        %v1474 = vsel %vm661, %v482, 0
        %v1477 = vsel %vm661, %v483, 0
        %v1480 = vsel %vm661, %v484, 0
        %1482 = vmatprep.subr.mxu0 0.0
        %1483 = vmatpush1.msra.mxu0 %v381
        %1484 = vmatprep.subr.mxu0 0.0
        %1485 = vmatpush1.msra.mxu0 %v382
        %1486 = vmatprep.subr.mxu0 0.0
        %1487 = vmatpush1.msra.mxu0 0.0
        %1488 = vmatprep.subr.mxu0 0.0
        %1489 = vmatpush1.msra.mxu0 0.0
        %1490 = vmatprep.subr.mxu0 0.0
        %1491 = vmatpush1.msra.mxu0 0.0
        %1492 = vmatprep.subr.mxu0 0.0
        %1493 = vmatpush1.msra.mxu0 0.0
        %1494 = vmatprep.subr.mxu0 0.0
        %1495 = vmatpush1.msra.mxu0 0.0
        %1496 = vmatprep.subr.mxu0 0.0
        %1497 = vmatpush1.msra.mxu0 0.0
        %1498 = vmatprep.subr.mxu0 0.0
        %1499 = vmatpush1.msra.mxu0 0.0
        %1500 = vmatprep.subr.mxu0 0.0
        %1501 = vmatpush1.msra.mxu0 0.0
        %1502 = vmatprep.subr.mxu0 0.0
        %1503 = vmatpush1.msra.mxu0 0.0
        %1504 = vmatprep.subr.mxu0 0.0
        %1505 = vmatpush1.msra.mxu0 0.0
        %1506 = vmatprep.subr.mxu0 0.0
        %1507 = vmatpush1.msra.mxu0 0.0
        %1508 = vmatprep.subr.mxu0 0.0
        %1509 = vmatpush1.msra.mxu0 0.0
        %1510 = vmatprep.subr.mxu0 0.0
        %1511 = vmatpush1.msra.mxu0 0.0
        %1512 = vmatprep.subr.mxu0 0.0
        %1513 = vmatpush1.msra.mxu0 0.0
        %1514 = vmatprep.subr.mxu0 0.0
        %1515 = vmatpush1.msra.mxu0 0.0
        %1516 = vmatprep.subr.mxu0 0.0
        %1517 = vmatpush1.msra.mxu0 0.0
        %1518 = vmatprep.subr.mxu0 0.0
        %1519 = vmatpush1.msra.mxu0 0.0
        %1520 = vmatprep.subr.mxu0 0.0
        %1521 = vmatpush1.msra.mxu0 0.0
        %1522 = vmatprep.subr.mxu0 0.0
        %1523 = vmatpush1.msra.mxu0 0.0
        %1524 = vmatprep.subr.mxu0 0.0
        %1525 = vmatpush1.msra.mxu0 0.0
        %1526 = vmatprep.subr.mxu0 0.0
        %1527 = vmatpush1.msra.mxu0 0.0
        %1528 = vmatprep.subr.mxu0 0.0
        %1529 = vmatpush1.msra.mxu0 0.0
        %1530 = vmatprep.subr.mxu0 0.0
        %1531 = vmatpush1.msra.mxu0 0.0
        %1532 = vmatprep.subr.mxu0 0.0
        %1533 = vmatpush1.msra.mxu0 0.0
        %1534 = vmatprep.subr.mxu0 0.0
        %1535 = vmatpush1.msra.mxu0 0.0
        %1536 = vmatprep.subr.mxu0 0.0
        %1537 = vmatpush1.msra.mxu0 0.0
        %1538 = vmatprep.subr.mxu0 0.0
        %1539 = vmatpush1.msra.mxu0 0.0
        %1540 = vmatprep.subr.mxu0 0.0
        %1541 = vmatpush1.msra.mxu0 0.0
        %1542 = vmatprep.subr.mxu0 0.0
        %1543 = vmatpush1.msra.mxu0 0.0
        %1544 = vmatprep.subr.mxu0 0.0
        %1545 = vmatpush1.msra.mxu0 0.0
        %1546 = vmatprep.mubr.f32.mxu0 0.0
        %1547 = vmatmul.mubr.f32.gmra.mrb[0].mxu0 %v1435
        %v1548 = vpop.f32.mrb[0].mxu0
        %v1549 = vadd.f32 0.0, %v1548
        %v1550 = vpop.f32.mrb[0].mxu0
        %1551 = vmatprep.mubr.f32.mxu0 0.0
        %1552 = vmatmul.mubr.f32.gmra.mrb[0].mxu0 %v1438
        %v1553 = vpop.f32.mrb[0].mxu0
        %v1554 = vadd.f32 0.0, %v1553
        %v1555 = vpop.f32.mrb[0].mxu0
        %1556 = vmatprep.mubr.f32.mxu0 0.0
        %1557 = vmatmul.mubr.f32.gmra.mrb[0].mxu0 %v1441
        %v1558 = vpop.f32.mrb[0].mxu0
        %v1559 = vadd.f32 0.0, %v1558
        %v1560 = vpop.f32.mrb[0].mxu0
        %1561 = vmatprep.mubr.f32.mxu0 0.0
        %1562 = vmatmul.mubr.f32.gmra.mrb[0].mxu0 %v1444
        %v1563 = vpop.f32.mrb[0].mxu0
        %v1564 = vadd.f32 0.0, %v1563
        %v1565 = vpop.f32.mrb[0].mxu0
        %1566 = vmatprep.mubr.f32.mxu0 0.0
        %1567 = vmatmul.mubr.f32.gmra.mrb[0].mxu0 %v1447
        %v1568 = vpop.f32.mrb[0].mxu0
        %v1569 = vadd.f32 0.0, %v1568
        %v1570 = vpop.f32.mrb[0].mxu0
        %1571 = vmatprep.mubr.f32.mxu0 0.0
        %1572 = vmatmul.mubr.f32.gmra.mrb[0].mxu0 %v1450
        %v1573 = vpop.f32.mrb[0].mxu0
        %v1574 = vadd.f32 0.0, %v1573
        %v1575 = vpop.f32.mrb[0].mxu0
        %1576 = vmatprep.mubr.f32.mxu0 0.0
        %1577 = vmatmul.mubr.f32.gmra.mrb[0].mxu0 %v1453
        %v1578 = vpop.f32.mrb[0].mxu0
        %v1579 = vadd.f32 0.0, %v1578
        %v1580 = vpop.f32.mrb[0].mxu0
        %1581 = vmatprep.mubr.f32.mxu0 0.0
        %1582 = vmatmul.mubr.f32.gmra.mrb[0].mxu0 %v1456
        %v1583 = vpop.f32.mrb[0].mxu0
        %v1584 = vadd.f32 0.0, %v1583
        %v1585 = vpop.f32.mrb[0].mxu0
        %1586 = vmatprep.mubr.f32.mxu0 0.0
        %1587 = vmatmul.mubr.f32.gmra.mrb[0].mxu0 %v1459
        %v1588 = vpop.f32.mrb[0].mxu0
        %v1589 = vadd.f32 0.0, %v1588
        %v1590 = vpop.f32.mrb[0].mxu0
        %1591 = vmatprep.mubr.f32.mxu0 0.0
        %1592 = vmatmul.mubr.f32.gmra.mrb[0].mxu0 %v1462
        %v1593 = vpop.f32.mrb[0].mxu0
        %v1594 = vadd.f32 0.0, %v1593
        %v1595 = vpop.f32.mrb[0].mxu0
        %1596 = vmatprep.mubr.f32.mxu0 0.0
        %1597 = vmatmul.mubr.f32.gmra.mrb[0].mxu0 %v1465
        %v1598 = vpop.f32.mrb[0].mxu0
        %v1599 = vadd.f32 0.0, %v1598
        %v1600 = vpop.f32.mrb[0].mxu0
        %1601 = vmatprep.mubr.f32.mxu0 0.0
        %1602 = vmatmul.mubr.f32.gmra.mrb[0].mxu0 %v1468
        %v1603 = vpop.f32.mrb[0].mxu0
        %v1604 = vadd.f32 0.0, %v1603
        %v1605 = vpop.f32.mrb[0].mxu0
        %1606 = vmatprep.mubr.f32.mxu0 0.0
        %1607 = vmatmul.mubr.f32.gmra.mrb[0].mxu0 %v1471
        %v1608 = vpop.f32.mrb[0].mxu0
        %v1609 = vadd.f32 0.0, %v1608
        %v1610 = vpop.f32.mrb[0].mxu0
        %1611 = vmatprep.mubr.f32.mxu0 0.0
        %1612 = vmatmul.mubr.f32.gmra.mrb[0].mxu0 %v1474
        %v1613 = vpop.f32.mrb[0].mxu0
        %v1614 = vadd.f32 0.0, %v1613
        %v1615 = vpop.f32.mrb[0].mxu0
        %1616 = vmatprep.mubr.f32.mxu0 0.0
        %1617 = vmatmul.mubr.f32.gmra.mrb[0].mxu0 %v1477
        %v1618 = vpop.f32.mrb[0].mxu0
        %v1619 = vadd.f32 0.0, %v1618
        %v1620 = vpop.f32.mrb[0].mxu0
        %1621 = vmatprep.mubr.f32.mxu0 0.0
        %1622 = vmatmul.mubr.f32.gmra.mrb[0].mxu0 %v1480
        %v1623 = vpop.f32.mrb[0].mxu0
        %v1624 = vadd.f32 0.0, %v1623
        %v1625 = vpop.f32.mrb[0].mxu0
        %1626 = vdwg.mxu0
        %v1628 = vsel %vm661, %v485, 0
        %v1631 = vsel %vm661, %v486, 0
        %v1634 = vsel %vm661, %v487, 0
        %v1637 = vsel %vm661, %v488, 0
        %v1640 = vsel %vm661, %v489, 0
        %v1643 = vsel %vm661, %v490, 0
        %v1646 = vsel %vm661, %v491, 0
        %v1649 = vsel %vm661, %v492, 0
        %v1652 = vsel %vm661, %v493, 0
        %v1655 = vsel %vm661, %v494, 0
        %v1658 = vsel %vm661, %v495, 0
        %v1661 = vsel %vm661, %v496, 0
        %v1664 = vsel %vm661, %v497, 0
        %v1667 = vsel %vm661, %v498, 0
        %v1670 = vsel %vm661, %v499, 0
        %v1673 = vsel %vm661, %v500, 0
        %1675 = vmatprep.subr.mxu0 0.0
        %1676 = vmatpush1.msra.mxu0 %v383
        %1677 = vmatprep.subr.mxu0 0.0
        %1678 = vmatpush1.msra.mxu0 %v384
        %1679 = vmatprep.subr.mxu0 0.0
        %1680 = vmatpush1.msra.mxu0 0.0
        %1681 = vmatprep.subr.mxu0 0.0
        %1682 = vmatpush1.msra.mxu0 0.0
        %1683 = vmatprep.subr.mxu0 0.0
        %1684 = vmatpush1.msra.mxu0 0.0
        %1685 = vmatprep.subr.mxu0 0.0
        %1686 = vmatpush1.msra.mxu0 0.0
        %1687 = vmatprep.subr.mxu0 0.0
        %1688 = vmatpush1.msra.mxu0 0.0
        %1689 = vmatprep.subr.mxu0 0.0
        %1690 = vmatpush1.msra.mxu0 0.0
        %1691 = vmatprep.subr.mxu0 0.0
        %1692 = vmatpush1.msra.mxu0 0.0
        %1693 = vmatprep.subr.mxu0 0.0
        %1694 = vmatpush1.msra.mxu0 0.0
        %1695 = vmatprep.subr.mxu0 0.0
        %1696 = vmatpush1.msra.mxu0 0.0
        %1697 = vmatprep.subr.mxu0 0.0
        %1698 = vmatpush1.msra.mxu0 0.0
        %1699 = vmatprep.subr.mxu0 0.0
        %1700 = vmatpush1.msra.mxu0 0.0
        %1701 = vmatprep.subr.mxu0 0.0
        %1702 = vmatpush1.msra.mxu0 0.0
        %1703 = vmatprep.subr.mxu0 0.0
        %1704 = vmatpush1.msra.mxu0 0.0
        %1705 = vmatprep.subr.mxu0 0.0
        %1706 = vmatpush1.msra.mxu0 0.0
        %1707 = vmatprep.subr.mxu0 0.0
        %1708 = vmatpush1.msra.mxu0 0.0
        %1709 = vmatprep.subr.mxu0 0.0
        %1710 = vmatpush1.msra.mxu0 0.0
        %1711 = vmatprep.subr.mxu0 0.0
        %1712 = vmatpush1.msra.mxu0 0.0
        %1713 = vmatprep.subr.mxu0 0.0
        %1714 = vmatpush1.msra.mxu0 0.0
        %1715 = vmatprep.subr.mxu0 0.0
        %1716 = vmatpush1.msra.mxu0 0.0
        %1717 = vmatprep.subr.mxu0 0.0
        %1718 = vmatpush1.msra.mxu0 0.0
        %1719 = vmatprep.subr.mxu0 0.0
        %1720 = vmatpush1.msra.mxu0 0.0
        %1721 = vmatprep.subr.mxu0 0.0
        %1722 = vmatpush1.msra.mxu0 0.0
        %1723 = vmatprep.subr.mxu0 0.0
        %1724 = vmatpush1.msra.mxu0 0.0
        %1725 = vmatprep.subr.mxu0 0.0
        %1726 = vmatpush1.msra.mxu0 0.0
        %1727 = vmatprep.subr.mxu0 0.0
        %1728 = vmatpush1.msra.mxu0 0.0
        %1729 = vmatprep.subr.mxu0 0.0
        %1730 = vmatpush1.msra.mxu0 0.0
        %1731 = vmatprep.subr.mxu0 0.0
        %1732 = vmatpush1.msra.mxu0 0.0
        %1733 = vmatprep.subr.mxu0 0.0
        %1734 = vmatpush1.msra.mxu0 0.0
        %1735 = vmatprep.subr.mxu0 0.0
        %1736 = vmatpush1.msra.mxu0 0.0
        %1737 = vmatprep.subr.mxu0 0.0
        %1738 = vmatpush1.msra.mxu0 0.0
        %1739 = vmatprep.mubr.f32.mxu0 0.0
        %1740 = vmatmul.mubr.f32.gmra.mrb[0].mxu0 %v1628
        %v1741 = vpop.f32.mrb[0].mxu0
        %v1742 = vadd.f32 0.0, %v1741
        %v1743 = vpop.f32.mrb[0].mxu0
        %1744 = vmatprep.mubr.f32.mxu0 0.0
        %1745 = vmatmul.mubr.f32.gmra.mrb[0].mxu0 %v1631
        %v1746 = vpop.f32.mrb[0].mxu0
        %v1747 = vadd.f32 0.0, %v1746
        %v1748 = vpop.f32.mrb[0].mxu0
        %1749 = vmatprep.mubr.f32.mxu0 0.0
        %1750 = vmatmul.mubr.f32.gmra.mrb[0].mxu0 %v1634
        %v1751 = vpop.f32.mrb[0].mxu0
        %v1752 = vadd.f32 0.0, %v1751
        %v1753 = vpop.f32.mrb[0].mxu0
        %1754 = vmatprep.mubr.f32.mxu0 0.0
        %1755 = vmatmul.mubr.f32.gmra.mrb[0].mxu0 %v1637
        %v1756 = vpop.f32.mrb[0].mxu0
        %v1757 = vadd.f32 0.0, %v1756
        %v1758 = vpop.f32.mrb[0].mxu0
        %1759 = vmatprep.mubr.f32.mxu0 0.0
        %1760 = vmatmul.mubr.f32.gmra.mrb[0].mxu0 %v1640
        %v1761 = vpop.f32.mrb[0].mxu0
        %v1762 = vadd.f32 0.0, %v1761
        %v1763 = vpop.f32.mrb[0].mxu0
        %1764 = vmatprep.mubr.f32.mxu0 0.0
        %1765 = vmatmul.mubr.f32.gmra.mrb[0].mxu0 %v1643
        %v1766 = vpop.f32.mrb[0].mxu0
        %v1767 = vadd.f32 0.0, %v1766
        %v1768 = vpop.f32.mrb[0].mxu0
        %1769 = vmatprep.mubr.f32.mxu0 0.0
        %1770 = vmatmul.mubr.f32.gmra.mrb[0].mxu0 %v1646
        %v1771 = vpop.f32.mrb[0].mxu0
        %v1772 = vadd.f32 0.0, %v1771
        %v1773 = vpop.f32.mrb[0].mxu0
        %1774 = vmatprep.mubr.f32.mxu0 0.0
        %1775 = vmatmul.mubr.f32.gmra.mrb[0].mxu0 %v1649
        %v1776 = vpop.f32.mrb[0].mxu0
        %v1777 = vadd.f32 0.0, %v1776
        %v1778 = vpop.f32.mrb[0].mxu0
        %1779 = vmatprep.mubr.f32.mxu0 0.0
        %1780 = vmatmul.mubr.f32.gmra.mrb[0].mxu0 %v1652
        %v1781 = vpop.f32.mrb[0].mxu0
        %v1782 = vadd.f32 0.0, %v1781
        %v1783 = vpop.f32.mrb[0].mxu0
        %1784 = vmatprep.mubr.f32.mxu0 0.0
        %1785 = vmatmul.mubr.f32.gmra.mrb[0].mxu0 %v1655
        %v1786 = vpop.f32.mrb[0].mxu0
        %v1787 = vadd.f32 0.0, %v1786
        %v1788 = vpop.f32.mrb[0].mxu0
        %1789 = vmatprep.mubr.f32.mxu0 0.0
        %1790 = vmatmul.mubr.f32.gmra.mrb[0].mxu0 %v1658
        %v1791 = vpop.f32.mrb[0].mxu0
        %v1792 = vadd.f32 0.0, %v1791
        %v1793 = vpop.f32.mrb[0].mxu0
        %1794 = vmatprep.mubr.f32.mxu0 0.0
        %1795 = vmatmul.mubr.f32.gmra.mrb[0].mxu0 %v1661
        %v1796 = vpop.f32.mrb[0].mxu0
        %v1797 = vadd.f32 0.0, %v1796
        %v1798 = vpop.f32.mrb[0].mxu0
        %1799 = vmatprep.mubr.f32.mxu0 0.0
        %1800 = vmatmul.mubr.f32.gmra.mrb[0].mxu0 %v1664
        %v1801 = vpop.f32.mrb[0].mxu0
        %v1802 = vadd.f32 0.0, %v1801
        %v1803 = vpop.f32.mrb[0].mxu0
        %1804 = vmatprep.mubr.f32.mxu0 0.0
        %1805 = vmatmul.mubr.f32.gmra.mrb[0].mxu0 %v1667
        %v1806 = vpop.f32.mrb[0].mxu0
        %v1807 = vadd.f32 0.0, %v1806
        %v1808 = vpop.f32.mrb[0].mxu0
        %1809 = vmatprep.mubr.f32.mxu0 0.0
        %1810 = vmatmul.mubr.f32.gmra.mrb[0].mxu0 %v1670
        %v1811 = vpop.f32.mrb[0].mxu0
        %v1812 = vadd.f32 0.0, %v1811
        %v1813 = vpop.f32.mrb[0].mxu0
        %1814 = vmatprep.mubr.f32.mxu0 0.0
        %1815 = vmatmul.mubr.f32.gmra.mrb[0].mxu0 %v1673
        %v1816 = vpop.f32.mrb[0].mxu0
        %v1817 = vadd.f32 0.0, %v1816
        %v1818 = vpop.f32.mrb[0].mxu0
        %1819 = vdwg.mxu0
        %v1821 = vsel %vm661, %v501, 0
        %v1824 = vsel %vm661, %v502, 0
        %v1827 = vsel %vm661, %v503, 0
        %v1830 = vsel %vm661, %v504, 0
        %v1833 = vsel %vm661, %v505, 0
        %v1836 = vsel %vm661, %v506, 0
        %v1839 = vsel %vm661, %v507, 0
        %v1842 = vsel %vm661, %v508, 0
        %v1845 = vsel %vm661, %v509, 0
        %v1848 = vsel %vm661, %v510, 0
        %v1851 = vsel %vm661, %v511, 0
        %v1854 = vsel %vm661, %v512, 0
        %v1857 = vsel %vm661, %v513, 0
        %v1860 = vsel %vm661, %v514, 0
        %v1863 = vsel %vm661, %v515, 0
        %v1866 = vsel %vm661, %v516, 0
        %1868 = vmatprep.subr.mxu0 0.0
        %1869 = vmatpush1.msra.mxu0 %v385
        %1870 = vmatprep.subr.mxu0 0.0
        %1871 = vmatpush1.msra.mxu0 %v386
        %1872 = vmatprep.subr.mxu0 0.0
        %1873 = vmatpush1.msra.mxu0 0.0
        %1874 = vmatprep.subr.mxu0 0.0
        %1875 = vmatpush1.msra.mxu0 0.0
        %1876 = vmatprep.subr.mxu0 0.0
        %1877 = vmatpush1.msra.mxu0 0.0
        %1878 = vmatprep.subr.mxu0 0.0
        %1879 = vmatpush1.msra.mxu0 0.0
        %1880 = vmatprep.subr.mxu0 0.0
        %1881 = vmatpush1.msra.mxu0 0.0
        %1882 = vmatprep.subr.mxu0 0.0
        %1883 = vmatpush1.msra.mxu0 0.0
        %1884 = vmatprep.subr.mxu0 0.0
        %1885 = vmatpush1.msra.mxu0 0.0
        %1886 = vmatprep.subr.mxu0 0.0
        %1887 = vmatpush1.msra.mxu0 0.0
        %1888 = vmatprep.subr.mxu0 0.0
        %1889 = vmatpush1.msra.mxu0 0.0
        %1890 = vmatprep.subr.mxu0 0.0
        %1891 = vmatpush1.msra.mxu0 0.0
        %1892 = vmatprep.subr.mxu0 0.0
        %1893 = vmatpush1.msra.mxu0 0.0
        %1894 = vmatprep.subr.mxu0 0.0
        %1895 = vmatpush1.msra.mxu0 0.0
        %1896 = vmatprep.subr.mxu0 0.0
        %1897 = vmatpush1.msra.mxu0 0.0
        %1898 = vmatprep.subr.mxu0 0.0
        %1899 = vmatpush1.msra.mxu0 0.0
        %1900 = vmatprep.subr.mxu0 0.0
        %1901 = vmatpush1.msra.mxu0 0.0
        %1902 = vmatprep.subr.mxu0 0.0
        %1903 = vmatpush1.msra.mxu0 0.0
        %1904 = vmatprep.subr.mxu0 0.0
        %1905 = vmatpush1.msra.mxu0 0.0
        %1906 = vmatprep.subr.mxu0 0.0
        %1907 = vmatpush1.msra.mxu0 0.0
        %1908 = vmatprep.subr.mxu0 0.0
        %1909 = vmatpush1.msra.mxu0 0.0
        %1910 = vmatprep.subr.mxu0 0.0
        %1911 = vmatpush1.msra.mxu0 0.0
        %1912 = vmatprep.subr.mxu0 0.0
        %1913 = vmatpush1.msra.mxu0 0.0
        %1914 = vmatprep.subr.mxu0 0.0
        %1915 = vmatpush1.msra.mxu0 0.0
        %1916 = vmatprep.subr.mxu0 0.0
        %1917 = vmatpush1.msra.mxu0 0.0
        %1918 = vmatprep.subr.mxu0 0.0
        %1919 = vmatpush1.msra.mxu0 0.0
        %1920 = vmatprep.subr.mxu0 0.0
        %1921 = vmatpush1.msra.mxu0 0.0
        %1922 = vmatprep.subr.mxu0 0.0
        %1923 = vmatpush1.msra.mxu0 0.0
        %1924 = vmatprep.subr.mxu0 0.0
        %1925 = vmatpush1.msra.mxu0 0.0
        %1926 = vmatprep.subr.mxu0 0.0
        %1927 = vmatpush1.msra.mxu0 0.0
        %1928 = vmatprep.subr.mxu0 0.0
        %1929 = vmatpush1.msra.mxu0 0.0
        %1930 = vmatprep.subr.mxu0 0.0
        %1931 = vmatpush1.msra.mxu0 0.0
        %1932 = vmatprep.mubr.f32.mxu0 0.0
        %1933 = vmatmul.mubr.f32.gmra.mrb[0].mxu0 %v1821
        %v1934 = vpop.f32.mrb[0].mxu0
        %v1935 = vadd.f32 0.0, %v1934
        %v1936 = vpop.f32.mrb[0].mxu0
        %1937 = vmatprep.mubr.f32.mxu0 0.0
        %1938 = vmatmul.mubr.f32.gmra.mrb[0].mxu0 %v1824
        %v1939 = vpop.f32.mrb[0].mxu0
        %v1940 = vadd.f32 0.0, %v1939
        %v1941 = vpop.f32.mrb[0].mxu0
        %1942 = vmatprep.mubr.f32.mxu0 0.0
        %1943 = vmatmul.mubr.f32.gmra.mrb[0].mxu0 %v1827
        %v1944 = vpop.f32.mrb[0].mxu0
        %v1945 = vadd.f32 0.0, %v1944
        %v1946 = vpop.f32.mrb[0].mxu0
        %1947 = vmatprep.mubr.f32.mxu0 0.0
        %1948 = vmatmul.mubr.f32.gmra.mrb[0].mxu0 %v1830
        %v1949 = vpop.f32.mrb[0].mxu0
        %v1950 = vadd.f32 0.0, %v1949
        %v1951 = vpop.f32.mrb[0].mxu0
        %1952 = vmatprep.mubr.f32.mxu0 0.0
        %1953 = vmatmul.mubr.f32.gmra.mrb[0].mxu0 %v1833
        %v1954 = vpop.f32.mrb[0].mxu0
        %v1955 = vadd.f32 0.0, %v1954
        %v1956 = vpop.f32.mrb[0].mxu0
        %1957 = vmatprep.mubr.f32.mxu0 0.0
        %1958 = vmatmul.mubr.f32.gmra.mrb[0].mxu0 %v1836
        %v1959 = vpop.f32.mrb[0].mxu0
        %v1960 = vadd.f32 0.0, %v1959
        %v1961 = vpop.f32.mrb[0].mxu0
        %1962 = vmatprep.mubr.f32.mxu0 0.0
        %1963 = vmatmul.mubr.f32.gmra.mrb[0].mxu0 %v1839
        %v1964 = vpop.f32.mrb[0].mxu0
        %v1965 = vadd.f32 0.0, %v1964
        %v1966 = vpop.f32.mrb[0].mxu0
        %1967 = vmatprep.mubr.f32.mxu0 0.0
        %1968 = vmatmul.mubr.f32.gmra.mrb[0].mxu0 %v1842
        %v1969 = vpop.f32.mrb[0].mxu0
        %v1970 = vadd.f32 0.0, %v1969
        %v1971 = vpop.f32.mrb[0].mxu0
        %1972 = vmatprep.mubr.f32.mxu0 0.0
        %1973 = vmatmul.mubr.f32.gmra.mrb[0].mxu0 %v1845
        %v1974 = vpop.f32.mrb[0].mxu0
        %v1975 = vadd.f32 0.0, %v1974
        %v1976 = vpop.f32.mrb[0].mxu0
        %1977 = vmatprep.mubr.f32.mxu0 0.0
        %1978 = vmatmul.mubr.f32.gmra.mrb[0].mxu0 %v1848
        %v1979 = vpop.f32.mrb[0].mxu0
        %v1980 = vadd.f32 0.0, %v1979
        %v1981 = vpop.f32.mrb[0].mxu0
        %1982 = vmatprep.mubr.f32.mxu0 0.0
        %1983 = vmatmul.mubr.f32.gmra.mrb[0].mxu0 %v1851
        %v1984 = vpop.f32.mrb[0].mxu0
        %v1985 = vadd.f32 0.0, %v1984
        %v1986 = vpop.f32.mrb[0].mxu0
        %1987 = vmatprep.mubr.f32.mxu0 0.0
        %1988 = vmatmul.mubr.f32.gmra.mrb[0].mxu0 %v1854
        %v1989 = vpop.f32.mrb[0].mxu0
        %v1990 = vadd.f32 0.0, %v1989
        %v1991 = vpop.f32.mrb[0].mxu0
        %1992 = vmatprep.mubr.f32.mxu0 0.0
        %1993 = vmatmul.mubr.f32.gmra.mrb[0].mxu0 %v1857
        %v1994 = vpop.f32.mrb[0].mxu0
        %v1995 = vadd.f32 0.0, %v1994
        %v1996 = vpop.f32.mrb[0].mxu0
        %1997 = vmatprep.mubr.f32.mxu0 0.0
        %1998 = vmatmul.mubr.f32.gmra.mrb[0].mxu0 %v1860
        %v1999 = vpop.f32.mrb[0].mxu0
        %v2000 = vadd.f32 0.0, %v1999
        %v2001 = vpop.f32.mrb[0].mxu0
        %2002 = vmatprep.mubr.f32.mxu0 0.0
        %2003 = vmatmul.mubr.f32.gmra.mrb[0].mxu0 %v1863
        %v2004 = vpop.f32.mrb[0].mxu0
        %v2005 = vadd.f32 0.0, %v2004
        %v2006 = vpop.f32.mrb[0].mxu0
        %2007 = vmatprep.mubr.f32.mxu0 0.0
        %2008 = vmatmul.mubr.f32.gmra.mrb[0].mxu0 %v1866
        %v2009 = vpop.f32.mrb[0].mxu0
        %v2010 = vadd.f32 0.0, %v2009
        %v2011 = vpop.f32.mrb[0].mxu0
        %2012 = vdwg.mxu0
        %v2014 = vsel %vm661, %v517, 0
        %v2017 = vsel %vm661, %v518, 0
        %v2020 = vsel %vm661, %v519, 0
        %v2023 = vsel %vm661, %v520, 0
        %v2026 = vsel %vm661, %v521, 0
        %v2029 = vsel %vm661, %v522, 0
        %v2032 = vsel %vm661, %v523, 0
        %v2035 = vsel %vm661, %v524, 0
        %v2038 = vsel %vm661, %v525, 0
        %v2041 = vsel %vm661, %v526, 0
        %v2044 = vsel %vm661, %v527, 0
        %v2047 = vsel %vm661, %v528, 0
        %v2050 = vsel %vm661, %v529, 0
        %v2053 = vsel %vm661, %v530, 0
        %v2056 = vsel %vm661, %v531, 0
        %v2059 = vsel %vm661, %v532, 0
        %2061 = vmatprep.subr.mxu0 0.0
        %2062 = vmatpush1.msra.mxu0 %v387
        %2063 = vmatprep.subr.mxu0 0.0
        %2064 = vmatpush1.msra.mxu0 %v388
        %2065 = vmatprep.subr.mxu0 0.0
        %2066 = vmatpush1.msra.mxu0 0.0
        %2067 = vmatprep.subr.mxu0 0.0
        %2068 = vmatpush1.msra.mxu0 0.0
        %2069 = vmatprep.subr.mxu0 0.0
        %2070 = vmatpush1.msra.mxu0 0.0
        %2071 = vmatprep.subr.mxu0 0.0
        %2072 = vmatpush1.msra.mxu0 0.0
        %2073 = vmatprep.subr.mxu0 0.0
        %2074 = vmatpush1.msra.mxu0 0.0
        %2075 = vmatprep.subr.mxu0 0.0
        %2076 = vmatpush1.msra.mxu0 0.0
        %2077 = vmatprep.subr.mxu0 0.0
        %2078 = vmatpush1.msra.mxu0 0.0
        %2079 = vmatprep.subr.mxu0 0.0
        %2080 = vmatpush1.msra.mxu0 0.0
        %2081 = vmatprep.subr.mxu0 0.0
        %2082 = vmatpush1.msra.mxu0 0.0
        %2083 = vmatprep.subr.mxu0 0.0
        %2084 = vmatpush1.msra.mxu0 0.0
        %2085 = vmatprep.subr.mxu0 0.0
        %2086 = vmatpush1.msra.mxu0 0.0
        %2087 = vmatprep.subr.mxu0 0.0
        %2088 = vmatpush1.msra.mxu0 0.0
        %2089 = vmatprep.subr.mxu0 0.0
        %2090 = vmatpush1.msra.mxu0 0.0
        %2091 = vmatprep.subr.mxu0 0.0
        %2092 = vmatpush1.msra.mxu0 0.0
        %2093 = vmatprep.subr.mxu0 0.0
        %2094 = vmatpush1.msra.mxu0 0.0
        %2095 = vmatprep.subr.mxu0 0.0
        %2096 = vmatpush1.msra.mxu0 0.0
        %2097 = vmatprep.subr.mxu0 0.0
        %2098 = vmatpush1.msra.mxu0 0.0
        %2099 = vmatprep.subr.mxu0 0.0
        %2100 = vmatpush1.msra.mxu0 0.0
        %2101 = vmatprep.subr.mxu0 0.0
        %2102 = vmatpush1.msra.mxu0 0.0
        %2103 = vmatprep.subr.mxu0 0.0
        %2104 = vmatpush1.msra.mxu0 0.0
        %2105 = vmatprep.subr.mxu0 0.0
        %2106 = vmatpush1.msra.mxu0 0.0
        %2107 = vmatprep.subr.mxu0 0.0
        %2108 = vmatpush1.msra.mxu0 0.0
        %2109 = vmatprep.subr.mxu0 0.0
        %2110 = vmatpush1.msra.mxu0 0.0
        %2111 = vmatprep.subr.mxu0 0.0
        %2112 = vmatpush1.msra.mxu0 0.0
        %2113 = vmatprep.subr.mxu0 0.0
        %2114 = vmatpush1.msra.mxu0 0.0
        %2115 = vmatprep.subr.mxu0 0.0
        %2116 = vmatpush1.msra.mxu0 0.0
        %2117 = vmatprep.subr.mxu0 0.0
        %2118 = vmatpush1.msra.mxu0 0.0
        %2119 = vmatprep.subr.mxu0 0.0
        %2120 = vmatpush1.msra.mxu0 0.0
        %2121 = vmatprep.subr.mxu0 0.0
        %2122 = vmatpush1.msra.mxu0 0.0
        %2123 = vmatprep.subr.mxu0 0.0
        %2124 = vmatpush1.msra.mxu0 0.0
        %2125 = vmatprep.mubr.f32.mxu0 0.0
        %2126 = vmatmul.mubr.f32.gmra.mrb[0].mxu0 %v2014
        %v2127 = vpop.f32.mrb[0].mxu0
        %v2128 = vadd.f32 0.0, %v2127
        %v2129 = vpop.f32.mrb[0].mxu0
        %2130 = vmatprep.mubr.f32.mxu0 0.0
        %2131 = vmatmul.mubr.f32.gmra.mrb[0].mxu0 %v2017
        %v2132 = vpop.f32.mrb[0].mxu0
        %v2133 = vadd.f32 0.0, %v2132
        %v2134 = vpop.f32.mrb[0].mxu0
        %2135 = vmatprep.mubr.f32.mxu0 0.0
        %2136 = vmatmul.mubr.f32.gmra.mrb[0].mxu0 %v2020
        %v2137 = vpop.f32.mrb[0].mxu0
        %v2138 = vadd.f32 0.0, %v2137
        %v2139 = vpop.f32.mrb[0].mxu0
        %2140 = vmatprep.mubr.f32.mxu0 0.0
        %2141 = vmatmul.mubr.f32.gmra.mrb[0].mxu0 %v2023
        %v2142 = vpop.f32.mrb[0].mxu0
        %v2143 = vadd.f32 0.0, %v2142
        %v2144 = vpop.f32.mrb[0].mxu0
        %2145 = vmatprep.mubr.f32.mxu0 0.0
        %2146 = vmatmul.mubr.f32.gmra.mrb[0].mxu0 %v2026
        %v2147 = vpop.f32.mrb[0].mxu0
        %v2148 = vadd.f32 0.0, %v2147
        %v2149 = vpop.f32.mrb[0].mxu0
        %2150 = vmatprep.mubr.f32.mxu0 0.0
        %2151 = vmatmul.mubr.f32.gmra.mrb[0].mxu0 %v2029
        %v2152 = vpop.f32.mrb[0].mxu0
        %v2153 = vadd.f32 0.0, %v2152
        %v2154 = vpop.f32.mrb[0].mxu0
        %2155 = vmatprep.mubr.f32.mxu0 0.0
        %2156 = vmatmul.mubr.f32.gmra.mrb[0].mxu0 %v2032
        %v2157 = vpop.f32.mrb[0].mxu0
        %v2158 = vadd.f32 0.0, %v2157
        %v2159 = vpop.f32.mrb[0].mxu0
        %2160 = vmatprep.mubr.f32.mxu0 0.0
        %2161 = vmatmul.mubr.f32.gmra.mrb[0].mxu0 %v2035
        %v2162 = vpop.f32.mrb[0].mxu0
        %v2163 = vadd.f32 0.0, %v2162
        %v2164 = vpop.f32.mrb[0].mxu0
        %2165 = vmatprep.mubr.f32.mxu0 0.0
        %2166 = vmatmul.mubr.f32.gmra.mrb[0].mxu0 %v2038
        %v2167 = vpop.f32.mrb[0].mxu0
        %v2168 = vadd.f32 0.0, %v2167
        %v2169 = vpop.f32.mrb[0].mxu0
        %2170 = vmatprep.mubr.f32.mxu0 0.0
        %2171 = vmatmul.mubr.f32.gmra.mrb[0].mxu0 %v2041
        %v2172 = vpop.f32.mrb[0].mxu0
        %v2173 = vadd.f32 0.0, %v2172
        %v2174 = vpop.f32.mrb[0].mxu0
        %2175 = vmatprep.mubr.f32.mxu0 0.0
        %2176 = vmatmul.mubr.f32.gmra.mrb[0].mxu0 %v2044
        %v2177 = vpop.f32.mrb[0].mxu0
        %v2178 = vadd.f32 0.0, %v2177
        %v2179 = vpop.f32.mrb[0].mxu0
        %2180 = vmatprep.mubr.f32.mxu0 0.0
        %2181 = vmatmul.mubr.f32.gmra.mrb[0].mxu0 %v2047
        %v2182 = vpop.f32.mrb[0].mxu0
        %v2183 = vadd.f32 0.0, %v2182
        %v2184 = vpop.f32.mrb[0].mxu0
        %2185 = vmatprep.mubr.f32.mxu0 0.0
        %2186 = vmatmul.mubr.f32.gmra.mrb[0].mxu0 %v2050
        %v2187 = vpop.f32.mrb[0].mxu0
        %v2188 = vadd.f32 0.0, %v2187
        %v2189 = vpop.f32.mrb[0].mxu0
        %2190 = vmatprep.mubr.f32.mxu0 0.0
        %2191 = vmatmul.mubr.f32.gmra.mrb[0].mxu0 %v2053
        %v2192 = vpop.f32.mrb[0].mxu0
        %v2193 = vadd.f32 0.0, %v2192
        %v2194 = vpop.f32.mrb[0].mxu0
        %2195 = vmatprep.mubr.f32.mxu0 0.0
        %2196 = vmatmul.mubr.f32.gmra.mrb[0].mxu0 %v2056
        %v2197 = vpop.f32.mrb[0].mxu0
        %v2198 = vadd.f32 0.0, %v2197
        %v2199 = vpop.f32.mrb[0].mxu0
        %2200 = vmatprep.mubr.f32.mxu0 0.0
        %2201 = vmatmul.mubr.f32.gmra.mrb[0].mxu0 %v2059
        %v2202 = vpop.f32.mrb[0].mxu0
        %v2203 = vadd.f32 0.0, %v2202
        %v2204 = vpop.f32.mrb[0].mxu0
        %2205 = vdwg.mxu0
        %v2207 = vsel %vm661, %v533, 0
        %v2210 = vsel %vm661, %v534, 0
        %v2213 = vsel %vm661, %v535, 0
        %v2216 = vsel %vm661, %v536, 0
        %v2219 = vsel %vm661, %v537, 0
        %v2222 = vsel %vm661, %v538, 0
        %v2225 = vsel %vm661, %v539, 0
        %v2228 = vsel %vm661, %v540, 0
        %v2231 = vsel %vm661, %v541, 0
        %v2234 = vsel %vm661, %v542, 0
        %v2237 = vsel %vm661, %v543, 0
        %v2240 = vsel %vm661, %v544, 0
        %v2243 = vsel %vm661, %v545, 0
        %v2246 = vsel %vm661, %v546, 0
        %v2249 = vsel %vm661, %v547, 0
        %v2252 = vsel %vm661, %v548, 0
        %2254 = vmatprep.subr.mxu0 0.0
        %2255 = vmatpush1.msra.mxu0 %v389
        %2256 = vmatprep.subr.mxu0 0.0
        %2257 = vmatpush1.msra.mxu0 %v390
        %2258 = vmatprep.subr.mxu0 0.0
        %2259 = vmatpush1.msra.mxu0 0.0
        %2260 = vmatprep.subr.mxu0 0.0
        %2261 = vmatpush1.msra.mxu0 0.0
        %2262 = vmatprep.subr.mxu0 0.0
        %2263 = vmatpush1.msra.mxu0 0.0
        %2264 = vmatprep.subr.mxu0 0.0
        %2265 = vmatpush1.msra.mxu0 0.0
        %2266 = vmatprep.subr.mxu0 0.0
        %2267 = vmatpush1.msra.mxu0 0.0
        %2268 = vmatprep.subr.mxu0 0.0
        %2269 = vmatpush1.msra.mxu0 0.0
        %2270 = vmatprep.subr.mxu0 0.0
        %2271 = vmatpush1.msra.mxu0 0.0
        %2272 = vmatprep.subr.mxu0 0.0
        %2273 = vmatpush1.msra.mxu0 0.0
        %2274 = vmatprep.subr.mxu0 0.0
        %2275 = vmatpush1.msra.mxu0 0.0
        %2276 = vmatprep.subr.mxu0 0.0
        %2277 = vmatpush1.msra.mxu0 0.0
        %2278 = vmatprep.subr.mxu0 0.0
        %2279 = vmatpush1.msra.mxu0 0.0
        %2280 = vmatprep.subr.mxu0 0.0
        %2281 = vmatpush1.msra.mxu0 0.0
        %2282 = vmatprep.subr.mxu0 0.0
        %2283 = vmatpush1.msra.mxu0 0.0
        %2284 = vmatprep.subr.mxu0 0.0
        %2285 = vmatpush1.msra.mxu0 0.0
        %2286 = vmatprep.subr.mxu0 0.0
        %2287 = vmatpush1.msra.mxu0 0.0
        %2288 = vmatprep.subr.mxu0 0.0
        %2289 = vmatpush1.msra.mxu0 0.0
        %2290 = vmatprep.subr.mxu0 0.0
        %2291 = vmatpush1.msra.mxu0 0.0
        %2292 = vmatprep.subr.mxu0 0.0
        %2293 = vmatpush1.msra.mxu0 0.0
        %2294 = vmatprep.subr.mxu0 0.0
        %2295 = vmatpush1.msra.mxu0 0.0
        %2296 = vmatprep.subr.mxu0 0.0
        %2297 = vmatpush1.msra.mxu0 0.0
        %2298 = vmatprep.subr.mxu0 0.0
        %2299 = vmatpush1.msra.mxu0 0.0
        %2300 = vmatprep.subr.mxu0 0.0
        %2301 = vmatpush1.msra.mxu0 0.0
        %2302 = vmatprep.subr.mxu0 0.0
        %2303 = vmatpush1.msra.mxu0 0.0
        %2304 = vmatprep.subr.mxu0 0.0
        %2305 = vmatpush1.msra.mxu0 0.0
        %2306 = vmatprep.subr.mxu0 0.0
        %2307 = vmatpush1.msra.mxu0 0.0
        %2308 = vmatprep.subr.mxu0 0.0
        %2309 = vmatpush1.msra.mxu0 0.0
        %2310 = vmatprep.subr.mxu0 0.0
        %2311 = vmatpush1.msra.mxu0 0.0
        %2312 = vmatprep.subr.mxu0 0.0
        %2313 = vmatpush1.msra.mxu0 0.0
        %2314 = vmatprep.subr.mxu0 0.0
        %2315 = vmatpush1.msra.mxu0 0.0
        %2316 = vmatprep.subr.mxu0 0.0
        %2317 = vmatpush1.msra.mxu0 0.0
        %2318 = vmatprep.mubr.f32.mxu0 0.0
        %2319 = vmatmul.mubr.f32.gmra.mrb[0].mxu0 %v2207
        %v2320 = vpop.f32.mrb[0].mxu0
        %v2321 = vadd.f32 0.0, %v2320
        %v2322 = vpop.f32.mrb[0].mxu0
        %2323 = vmatprep.mubr.f32.mxu0 0.0
        %2324 = vmatmul.mubr.f32.gmra.mrb[0].mxu0 %v2210
        %v2325 = vpop.f32.mrb[0].mxu0
        %v2326 = vadd.f32 0.0, %v2325
        %v2327 = vpop.f32.mrb[0].mxu0
        %2328 = vmatprep.mubr.f32.mxu0 0.0
        %2329 = vmatmul.mubr.f32.gmra.mrb[0].mxu0 %v2213
        %v2330 = vpop.f32.mrb[0].mxu0
        %v2331 = vadd.f32 0.0, %v2330
        %v2332 = vpop.f32.mrb[0].mxu0
        %2333 = vmatprep.mubr.f32.mxu0 0.0
        %2334 = vmatmul.mubr.f32.gmra.mrb[0].mxu0 %v2216
        %v2335 = vpop.f32.mrb[0].mxu0
        %v2336 = vadd.f32 0.0, %v2335
        %v2337 = vpop.f32.mrb[0].mxu0
        %2338 = vmatprep.mubr.f32.mxu0 0.0
        %2339 = vmatmul.mubr.f32.gmra.mrb[0].mxu0 %v2219
        %v2340 = vpop.f32.mrb[0].mxu0
        %v2341 = vadd.f32 0.0, %v2340
        %v2342 = vpop.f32.mrb[0].mxu0
        %2343 = vmatprep.mubr.f32.mxu0 0.0
        %2344 = vmatmul.mubr.f32.gmra.mrb[0].mxu0 %v2222
        %v2345 = vpop.f32.mrb[0].mxu0
        %v2346 = vadd.f32 0.0, %v2345
        %v2347 = vpop.f32.mrb[0].mxu0
        %2348 = vmatprep.mubr.f32.mxu0 0.0
        %2349 = vmatmul.mubr.f32.gmra.mrb[0].mxu0 %v2225
        %v2350 = vpop.f32.mrb[0].mxu0
        %v2351 = vadd.f32 0.0, %v2350
        %v2352 = vpop.f32.mrb[0].mxu0
        %2353 = vmatprep.mubr.f32.mxu0 0.0
        %2354 = vmatmul.mubr.f32.gmra.mrb[0].mxu0 %v2228
        %v2355 = vpop.f32.mrb[0].mxu0
        %v2356 = vadd.f32 0.0, %v2355
        %v2357 = vpop.f32.mrb[0].mxu0
        %2358 = vmatprep.mubr.f32.mxu0 0.0
        %2359 = vmatmul.mubr.f32.gmra.mrb[0].mxu0 %v2231
        %v2360 = vpop.f32.mrb[0].mxu0
        %v2361 = vadd.f32 0.0, %v2360
        %v2362 = vpop.f32.mrb[0].mxu0
        %2363 = vmatprep.mubr.f32.mxu0 0.0
        %2364 = vmatmul.mubr.f32.gmra.mrb[0].mxu0 %v2234
        %v2365 = vpop.f32.mrb[0].mxu0
        %v2366 = vadd.f32 0.0, %v2365
        %v2367 = vpop.f32.mrb[0].mxu0
        %2368 = vmatprep.mubr.f32.mxu0 0.0
        %2369 = vmatmul.mubr.f32.gmra.mrb[0].mxu0 %v2237
        %v2370 = vpop.f32.mrb[0].mxu0
        %v2371 = vadd.f32 0.0, %v2370
        %v2372 = vpop.f32.mrb[0].mxu0
        %2373 = vmatprep.mubr.f32.mxu0 0.0
        %2374 = vmatmul.mubr.f32.gmra.mrb[0].mxu0 %v2240
        %v2375 = vpop.f32.mrb[0].mxu0
        %v2376 = vadd.f32 0.0, %v2375
        %v2377 = vpop.f32.mrb[0].mxu0
        %2378 = vmatprep.mubr.f32.mxu0 0.0
        %2379 = vmatmul.mubr.f32.gmra.mrb[0].mxu0 %v2243
        %v2380 = vpop.f32.mrb[0].mxu0
        %v2381 = vadd.f32 0.0, %v2380
        %v2382 = vpop.f32.mrb[0].mxu0
        %2383 = vmatprep.mubr.f32.mxu0 0.0
        %2384 = vmatmul.mubr.f32.gmra.mrb[0].mxu0 %v2246
        %v2385 = vpop.f32.mrb[0].mxu0
        %v2386 = vadd.f32 0.0, %v2385
        %v2387 = vpop.f32.mrb[0].mxu0
        %2388 = vmatprep.mubr.f32.mxu0 0.0
        %2389 = vmatmul.mubr.f32.gmra.mrb[0].mxu0 %v2249
        %v2390 = vpop.f32.mrb[0].mxu0
        %v2391 = vadd.f32 0.0, %v2390
        %v2392 = vpop.f32.mrb[0].mxu0
        %2393 = vmatprep.mubr.f32.mxu0 0.0
        %2394 = vmatmul.mubr.f32.gmra.mrb[0].mxu0 %v2252
        %v2395 = vpop.f32.mrb[0].mxu0
        %v2396 = vadd.f32 0.0, %v2395
        %v2397 = vpop.f32.mrb[0].mxu0
        %2398 = vdwg.mxu0
        %v2400 = vsel %vm661, %v549, 0
        %v2403 = vsel %vm661, %v550, 0
        %v2406 = vsel %vm661, %v551, 0
        %v2409 = vsel %vm661, %v552, 0
        %v2412 = vsel %vm661, %v553, 0
        %v2415 = vsel %vm661, %v554, 0
        %v2418 = vsel %vm661, %v555, 0
        %v2421 = vsel %vm661, %v556, 0
        %v2424 = vsel %vm661, %v557, 0
        %v2427 = vsel %vm661, %v558, 0
        %v2430 = vsel %vm661, %v559, 0
        %v2433 = vsel %vm661, %v560, 0
        %v2436 = vsel %vm661, %v561, 0
        %v2439 = vsel %vm661, %v562, 0
        %v2442 = vsel %vm661, %v563, 0
        %v2445 = vsel %vm661, %v564, 0
        %2447 = vmatprep.subr.mxu0 0.0
        %2448 = vmatpush1.msra.mxu0 %v391
        %2449 = vmatprep.subr.mxu0 0.0
        %2450 = vmatpush1.msra.mxu0 %v392
        %2451 = vmatprep.subr.mxu0 0.0
        %2452 = vmatpush1.msra.mxu0 0.0
        %2453 = vmatprep.subr.mxu0 0.0
        %2454 = vmatpush1.msra.mxu0 0.0
        %2455 = vmatprep.subr.mxu0 0.0
        %2456 = vmatpush1.msra.mxu0 0.0
        %2457 = vmatprep.subr.mxu0 0.0
        %2458 = vmatpush1.msra.mxu0 0.0
        %2459 = vmatprep.subr.mxu0 0.0
        %2460 = vmatpush1.msra.mxu0 0.0
        %2461 = vmatprep.subr.mxu0 0.0
        %2462 = vmatpush1.msra.mxu0 0.0
        %2463 = vmatprep.subr.mxu0 0.0
        %2464 = vmatpush1.msra.mxu0 0.0
        %2465 = vmatprep.subr.mxu0 0.0
        %2466 = vmatpush1.msra.mxu0 0.0
        %2467 = vmatprep.subr.mxu0 0.0
        %2468 = vmatpush1.msra.mxu0 0.0
        %2469 = vmatprep.subr.mxu0 0.0
        %2470 = vmatpush1.msra.mxu0 0.0
        %2471 = vmatprep.subr.mxu0 0.0
        %2472 = vmatpush1.msra.mxu0 0.0
        %2473 = vmatprep.subr.mxu0 0.0
        %2474 = vmatpush1.msra.mxu0 0.0
        %2475 = vmatprep.subr.mxu0 0.0
        %2476 = vmatpush1.msra.mxu0 0.0
        %2477 = vmatprep.subr.mxu0 0.0
        %2478 = vmatpush1.msra.mxu0 0.0
        %2479 = vmatprep.subr.mxu0 0.0
        %2480 = vmatpush1.msra.mxu0 0.0
        %2481 = vmatprep.subr.mxu0 0.0
        %2482 = vmatpush1.msra.mxu0 0.0
        %2483 = vmatprep.subr.mxu0 0.0
        %2484 = vmatpush1.msra.mxu0 0.0
        %2485 = vmatprep.subr.mxu0 0.0
        %2486 = vmatpush1.msra.mxu0 0.0
        %2487 = vmatprep.subr.mxu0 0.0
        %2488 = vmatpush1.msra.mxu0 0.0
        %2489 = vmatprep.subr.mxu0 0.0
        %2490 = vmatpush1.msra.mxu0 0.0
        %2491 = vmatprep.subr.mxu0 0.0
        %2492 = vmatpush1.msra.mxu0 0.0
        %2493 = vmatprep.subr.mxu0 0.0
        %2494 = vmatpush1.msra.mxu0 0.0
        %2495 = vmatprep.subr.mxu0 0.0
        %2496 = vmatpush1.msra.mxu0 0.0
        %2497 = vmatprep.subr.mxu0 0.0
        %2498 = vmatpush1.msra.mxu0 0.0
        %2499 = vmatprep.subr.mxu0 0.0
        %2500 = vmatpush1.msra.mxu0 0.0
        %2501 = vmatprep.subr.mxu0 0.0
        %2502 = vmatpush1.msra.mxu0 0.0
        %2503 = vmatprep.subr.mxu0 0.0
        %2504 = vmatpush1.msra.mxu0 0.0
        %2505 = vmatprep.subr.mxu0 0.0
        %2506 = vmatpush1.msra.mxu0 0.0
        %2507 = vmatprep.subr.mxu0 0.0
        %2508 = vmatpush1.msra.mxu0 0.0
        %2509 = vmatprep.subr.mxu0 0.0
        %2510 = vmatpush1.msra.mxu0 0.0
        %2511 = vmatprep.mubr.f32.mxu0 0.0
        %2512 = vmatmul.mubr.f32.gmra.mrb[0].mxu0 %v2400
        %v2513 = vpop.f32.mrb[0].mxu0
        %v2514 = vadd.f32 0.0, %v2513
        %v2515 = vpop.f32.mrb[0].mxu0
        %2516 = vmatprep.mubr.f32.mxu0 0.0
        %2517 = vmatmul.mubr.f32.gmra.mrb[0].mxu0 %v2403
        %v2518 = vpop.f32.mrb[0].mxu0
        %v2519 = vadd.f32 0.0, %v2518
        %v2520 = vpop.f32.mrb[0].mxu0
        %2521 = vmatprep.mubr.f32.mxu0 0.0
        %2522 = vmatmul.mubr.f32.gmra.mrb[0].mxu0 %v2406
        %v2523 = vpop.f32.mrb[0].mxu0
        %v2524 = vadd.f32 0.0, %v2523
        %v2525 = vpop.f32.mrb[0].mxu0
        %2526 = vmatprep.mubr.f32.mxu0 0.0
        %2527 = vmatmul.mubr.f32.gmra.mrb[0].mxu0 %v2409
        %v2528 = vpop.f32.mrb[0].mxu0
        %v2529 = vadd.f32 0.0, %v2528
        %v2530 = vpop.f32.mrb[0].mxu0
        %2531 = vmatprep.mubr.f32.mxu0 0.0
        %2532 = vmatmul.mubr.f32.gmra.mrb[0].mxu0 %v2412
        %v2533 = vpop.f32.mrb[0].mxu0
        %v2534 = vadd.f32 0.0, %v2533
        %v2535 = vpop.f32.mrb[0].mxu0
        %2536 = vmatprep.mubr.f32.mxu0 0.0
        %2537 = vmatmul.mubr.f32.gmra.mrb[0].mxu0 %v2415
        %v2538 = vpop.f32.mrb[0].mxu0
        %v2539 = vadd.f32 0.0, %v2538
        %v2540 = vpop.f32.mrb[0].mxu0
        %2541 = vmatprep.mubr.f32.mxu0 0.0
        %2542 = vmatmul.mubr.f32.gmra.mrb[0].mxu0 %v2418
        %v2543 = vpop.f32.mrb[0].mxu0
        %v2544 = vadd.f32 0.0, %v2543
        %v2545 = vpop.f32.mrb[0].mxu0
        %2546 = vmatprep.mubr.f32.mxu0 0.0
        %2547 = vmatmul.mubr.f32.gmra.mrb[0].mxu0 %v2421
        %v2548 = vpop.f32.mrb[0].mxu0
        %v2549 = vadd.f32 0.0, %v2548
        %v2550 = vpop.f32.mrb[0].mxu0
        %2551 = vmatprep.mubr.f32.mxu0 0.0
        %2552 = vmatmul.mubr.f32.gmra.mrb[0].mxu0 %v2424
        %v2553 = vpop.f32.mrb[0].mxu0
        %v2554 = vadd.f32 0.0, %v2553
        %v2555 = vpop.f32.mrb[0].mxu0
        %2556 = vmatprep.mubr.f32.mxu0 0.0
        %2557 = vmatmul.mubr.f32.gmra.mrb[0].mxu0 %v2427
        %v2558 = vpop.f32.mrb[0].mxu0
        %v2559 = vadd.f32 0.0, %v2558
        %v2560 = vpop.f32.mrb[0].mxu0
        %2561 = vmatprep.mubr.f32.mxu0 0.0
        %2562 = vmatmul.mubr.f32.gmra.mrb[0].mxu0 %v2430
        %v2563 = vpop.f32.mrb[0].mxu0
        %v2564 = vadd.f32 0.0, %v2563
        %v2565 = vpop.f32.mrb[0].mxu0
        %2566 = vmatprep.mubr.f32.mxu0 0.0
        %2567 = vmatmul.mubr.f32.gmra.mrb[0].mxu0 %v2433
        %v2568 = vpop.f32.mrb[0].mxu0
        %v2569 = vadd.f32 0.0, %v2568
        %v2570 = vpop.f32.mrb[0].mxu0
        %2571 = vmatprep.mubr.f32.mxu0 0.0
        %2572 = vmatmul.mubr.f32.gmra.mrb[0].mxu0 %v2436
        %v2573 = vpop.f32.mrb[0].mxu0
        %v2574 = vadd.f32 0.0, %v2573
        %v2575 = vpop.f32.mrb[0].mxu0
        %2576 = vmatprep.mubr.f32.mxu0 0.0
        %2577 = vmatmul.mubr.f32.gmra.mrb[0].mxu0 %v2439
        %v2578 = vpop.f32.mrb[0].mxu0
        %v2579 = vadd.f32 0.0, %v2578
        %v2580 = vpop.f32.mrb[0].mxu0
        %2581 = vmatprep.mubr.f32.mxu0 0.0
        %2582 = vmatmul.mubr.f32.gmra.mrb[0].mxu0 %v2442
        %v2583 = vpop.f32.mrb[0].mxu0
        %v2584 = vadd.f32 0.0, %v2583
        %v2585 = vpop.f32.mrb[0].mxu0
        %2586 = vmatprep.mubr.f32.mxu0 0.0
        %2587 = vmatmul.mubr.f32.gmra.mrb[0].mxu0 %v2445
        %v2588 = vpop.f32.mrb[0].mxu0
        %v2589 = vadd.f32 0.0, %v2588
        %v2590 = vpop.f32.mrb[0].mxu0
        %2591 = vdwg.mxu0
        %v2593 = vsel %vm661, %v565, 0
        %v2596 = vsel %vm661, %v566, 0
        %v2599 = vsel %vm661, %v567, 0
        %v2602 = vsel %vm661, %v568, 0
        %v2605 = vsel %vm661, %v569, 0
        %v2608 = vsel %vm661, %v570, 0
        %v2611 = vsel %vm661, %v571, 0
        %v2614 = vsel %vm661, %v572, 0
        %v2617 = vsel %vm661, %v573, 0
        %v2620 = vsel %vm661, %v574, 0
        %v2623 = vsel %vm661, %v575, 0
        %v2626 = vsel %vm661, %v576, 0
        %v2629 = vsel %vm661, %v577, 0
        %v2632 = vsel %vm661, %v578, 0
        %v2635 = vsel %vm661, %v579, 0
        %v2638 = vsel %vm661, %v580, 0
        %2640 = vmatprep.subr.mxu0 0.0
        %2641 = vmatpush1.msra.mxu0 %v393
        %2642 = vmatprep.subr.mxu0 0.0
        %2643 = vmatpush1.msra.mxu0 %v394
        %2644 = vmatprep.subr.mxu0 0.0
        %2645 = vmatpush1.msra.mxu0 0.0
        %2646 = vmatprep.subr.mxu0 0.0
        %2647 = vmatpush1.msra.mxu0 0.0
        %2648 = vmatprep.subr.mxu0 0.0
        %2649 = vmatpush1.msra.mxu0 0.0
        %2650 = vmatprep.subr.mxu0 0.0
        %2651 = vmatpush1.msra.mxu0 0.0
        %2652 = vmatprep.subr.mxu0 0.0
        %2653 = vmatpush1.msra.mxu0 0.0
        %2654 = vmatprep.subr.mxu0 0.0
        %2655 = vmatpush1.msra.mxu0 0.0
        %2656 = vmatprep.subr.mxu0 0.0
        %2657 = vmatpush1.msra.mxu0 0.0
        %2658 = vmatprep.subr.mxu0 0.0
        %2659 = vmatpush1.msra.mxu0 0.0
        %2660 = vmatprep.subr.mxu0 0.0
        %2661 = vmatpush1.msra.mxu0 0.0
        %2662 = vmatprep.subr.mxu0 0.0
        %2663 = vmatpush1.msra.mxu0 0.0
        %2664 = vmatprep.subr.mxu0 0.0
        %2665 = vmatpush1.msra.mxu0 0.0
        %2666 = vmatprep.subr.mxu0 0.0
        %2667 = vmatpush1.msra.mxu0 0.0
        %2668 = vmatprep.subr.mxu0 0.0
        %2669 = vmatpush1.msra.mxu0 0.0
        %2670 = vmatprep.subr.mxu0 0.0
        %2671 = vmatpush1.msra.mxu0 0.0
        %2672 = vmatprep.subr.mxu0 0.0
        %2673 = vmatpush1.msra.mxu0 0.0
        %2674 = vmatprep.subr.mxu0 0.0
        %2675 = vmatpush1.msra.mxu0 0.0
        %2676 = vmatprep.subr.mxu0 0.0
        %2677 = vmatpush1.msra.mxu0 0.0
        %2678 = vmatprep.subr.mxu0 0.0
        %2679 = vmatpush1.msra.mxu0 0.0
        %2680 = vmatprep.subr.mxu0 0.0
        %2681 = vmatpush1.msra.mxu0 0.0
        %2682 = vmatprep.subr.mxu0 0.0
        %2683 = vmatpush1.msra.mxu0 0.0
        %2684 = vmatprep.subr.mxu0 0.0
        %2685 = vmatpush1.msra.mxu0 0.0
        %2686 = vmatprep.subr.mxu0 0.0
        %2687 = vmatpush1.msra.mxu0 0.0
        %2688 = vmatprep.subr.mxu0 0.0
        %2689 = vmatpush1.msra.mxu0 0.0
        %2690 = vmatprep.subr.mxu0 0.0
        %2691 = vmatpush1.msra.mxu0 0.0
        %2692 = vmatprep.subr.mxu0 0.0
        %2693 = vmatpush1.msra.mxu0 0.0
        %2694 = vmatprep.subr.mxu0 0.0
        %2695 = vmatpush1.msra.mxu0 0.0
        %2696 = vmatprep.subr.mxu0 0.0
        %2697 = vmatpush1.msra.mxu0 0.0
        %2698 = vmatprep.subr.mxu0 0.0
        %2699 = vmatpush1.msra.mxu0 0.0
        %2700 = vmatprep.subr.mxu0 0.0
        %2701 = vmatpush1.msra.mxu0 0.0
        %2702 = vmatprep.subr.mxu0 0.0
        %2703 = vmatpush1.msra.mxu0 0.0
        %2704 = vmatprep.mubr.f32.mxu0 0.0
        %2705 = vmatmul.mubr.f32.gmra.mrb[0].mxu0 %v2593
        %v2706 = vpop.f32.mrb[0].mxu0
        %v2707 = vadd.f32 0.0, %v2706
        %v2708 = vpop.f32.mrb[0].mxu0
        %2709 = vmatprep.mubr.f32.mxu0 0.0
        %2710 = vmatmul.mubr.f32.gmra.mrb[0].mxu0 %v2596
        %v2711 = vpop.f32.mrb[0].mxu0
        %v2712 = vadd.f32 0.0, %v2711
        %v2713 = vpop.f32.mrb[0].mxu0
        %2714 = vmatprep.mubr.f32.mxu0 0.0
        %2715 = vmatmul.mubr.f32.gmra.mrb[0].mxu0 %v2599
        %v2716 = vpop.f32.mrb[0].mxu0
        %v2717 = vadd.f32 0.0, %v2716
        %v2718 = vpop.f32.mrb[0].mxu0
        %2719 = vmatprep.mubr.f32.mxu0 0.0
        %2720 = vmatmul.mubr.f32.gmra.mrb[0].mxu0 %v2602
        %v2721 = vpop.f32.mrb[0].mxu0
        %v2722 = vadd.f32 0.0, %v2721
        %v2723 = vpop.f32.mrb[0].mxu0
        %2724 = vmatprep.mubr.f32.mxu0 0.0
        %2725 = vmatmul.mubr.f32.gmra.mrb[0].mxu0 %v2605
        %v2726 = vpop.f32.mrb[0].mxu0
        %v2727 = vadd.f32 0.0, %v2726
        %v2728 = vpop.f32.mrb[0].mxu0
        %2729 = vmatprep.mubr.f32.mxu0 0.0
        %2730 = vmatmul.mubr.f32.gmra.mrb[0].mxu0 %v2608
        %v2731 = vpop.f32.mrb[0].mxu0
        %v2732 = vadd.f32 0.0, %v2731
        %v2733 = vpop.f32.mrb[0].mxu0
        %2734 = vmatprep.mubr.f32.mxu0 0.0
        %2735 = vmatmul.mubr.f32.gmra.mrb[0].mxu0 %v2611
        %v2736 = vpop.f32.mrb[0].mxu0
        %v2737 = vadd.f32 0.0, %v2736
        %v2738 = vpop.f32.mrb[0].mxu0
        %2739 = vmatprep.mubr.f32.mxu0 0.0
        %2740 = vmatmul.mubr.f32.gmra.mrb[0].mxu0 %v2614
        %v2741 = vpop.f32.mrb[0].mxu0
        %v2742 = vadd.f32 0.0, %v2741
        %v2743 = vpop.f32.mrb[0].mxu0
        %2744 = vmatprep.mubr.f32.mxu0 0.0
        %2745 = vmatmul.mubr.f32.gmra.mrb[0].mxu0 %v2617
        %v2746 = vpop.f32.mrb[0].mxu0
        %v2747 = vadd.f32 0.0, %v2746
        %v2748 = vpop.f32.mrb[0].mxu0
        %2749 = vmatprep.mubr.f32.mxu0 0.0
        %2750 = vmatmul.mubr.f32.gmra.mrb[0].mxu0 %v2620
        %v2751 = vpop.f32.mrb[0].mxu0
        %v2752 = vadd.f32 0.0, %v2751
        %v2753 = vpop.f32.mrb[0].mxu0
        %2754 = vmatprep.mubr.f32.mxu0 0.0
        %2755 = vmatmul.mubr.f32.gmra.mrb[0].mxu0 %v2623
        %v2756 = vpop.f32.mrb[0].mxu0
        %v2757 = vadd.f32 0.0, %v2756
        %v2758 = vpop.f32.mrb[0].mxu0
        %2759 = vmatprep.mubr.f32.mxu0 0.0
        %2760 = vmatmul.mubr.f32.gmra.mrb[0].mxu0 %v2626
        %v2761 = vpop.f32.mrb[0].mxu0
        %v2762 = vadd.f32 0.0, %v2761
        %v2763 = vpop.f32.mrb[0].mxu0
        %2764 = vmatprep.mubr.f32.mxu0 0.0
        %2765 = vmatmul.mubr.f32.gmra.mrb[0].mxu0 %v2629
        %v2766 = vpop.f32.mrb[0].mxu0
        %v2767 = vadd.f32 0.0, %v2766
        %v2768 = vpop.f32.mrb[0].mxu0
        %2769 = vmatprep.mubr.f32.mxu0 0.0
        %2770 = vmatmul.mubr.f32.gmra.mrb[0].mxu0 %v2632
        %v2771 = vpop.f32.mrb[0].mxu0
        %v2772 = vadd.f32 0.0, %v2771
        %v2773 = vpop.f32.mrb[0].mxu0
        %2774 = vmatprep.mubr.f32.mxu0 0.0
        %2775 = vmatmul.mubr.f32.gmra.mrb[0].mxu0 %v2635
        %v2776 = vpop.f32.mrb[0].mxu0
        %v2777 = vadd.f32 0.0, %v2776
        %v2778 = vpop.f32.mrb[0].mxu0
        %2779 = vmatprep.mubr.f32.mxu0 0.0
        %2780 = vmatmul.mubr.f32.gmra.mrb[0].mxu0 %v2638
        %v2781 = vpop.f32.mrb[0].mxu0
        %v2782 = vadd.f32 0.0, %v2781
        %v2783 = vpop.f32.mrb[0].mxu0
        %2784 = vdwg.mxu0
        %v2786 = vsel %vm661, %v581, 0
        %v2789 = vsel %vm661, %v582, 0
        %v2792 = vsel %vm661, %v583, 0
        %v2795 = vsel %vm661, %v584, 0
        %v2798 = vsel %vm661, %v585, 0
        %v2801 = vsel %vm661, %v586, 0
        %v2804 = vsel %vm661, %v587, 0
        %v2807 = vsel %vm661, %v588, 0
        %v2810 = vsel %vm661, %v589, 0
        %v2813 = vsel %vm661, %v590, 0
        %v2816 = vsel %vm661, %v591, 0
        %v2819 = vsel %vm661, %v592, 0
        %v2822 = vsel %vm661, %v593, 0
        %v2825 = vsel %vm661, %v594, 0
        %v2828 = vsel %vm661, %v595, 0
        %v2831 = vsel %vm661, %v596, 0
        %2833 = vmatprep.subr.mxu0 0.0
        %2834 = vmatpush1.msra.mxu0 %v395
        %2835 = vmatprep.subr.mxu0 0.0
        %2836 = vmatpush1.msra.mxu0 %v396
        %2837 = vmatprep.subr.mxu0 0.0
        %2838 = vmatpush1.msra.mxu0 0.0
        %2839 = vmatprep.subr.mxu0 0.0
        %2840 = vmatpush1.msra.mxu0 0.0
        %2841 = vmatprep.subr.mxu0 0.0
        %2842 = vmatpush1.msra.mxu0 0.0
        %2843 = vmatprep.subr.mxu0 0.0
        %2844 = vmatpush1.msra.mxu0 0.0
        %2845 = vmatprep.subr.mxu0 0.0
        %2846 = vmatpush1.msra.mxu0 0.0
        %2847 = vmatprep.subr.mxu0 0.0
        %2848 = vmatpush1.msra.mxu0 0.0
        %2849 = vmatprep.subr.mxu0 0.0
        %2850 = vmatpush1.msra.mxu0 0.0
        %2851 = vmatprep.subr.mxu0 0.0
        %2852 = vmatpush1.msra.mxu0 0.0
        %2853 = vmatprep.subr.mxu0 0.0
        %2854 = vmatpush1.msra.mxu0 0.0
        %2855 = vmatprep.subr.mxu0 0.0
        %2856 = vmatpush1.msra.mxu0 0.0
        %2857 = vmatprep.subr.mxu0 0.0
        %2858 = vmatpush1.msra.mxu0 0.0
        %2859 = vmatprep.subr.mxu0 0.0
        %2860 = vmatpush1.msra.mxu0 0.0
        %2861 = vmatprep.subr.mxu0 0.0
        %2862 = vmatpush1.msra.mxu0 0.0
        %2863 = vmatprep.subr.mxu0 0.0
        %2864 = vmatpush1.msra.mxu0 0.0
        %2865 = vmatprep.subr.mxu0 0.0
        %2866 = vmatpush1.msra.mxu0 0.0
        %2867 = vmatprep.subr.mxu0 0.0
        %2868 = vmatpush1.msra.mxu0 0.0
        %2869 = vmatprep.subr.mxu0 0.0
        %2870 = vmatpush1.msra.mxu0 0.0
        %2871 = vmatprep.subr.mxu0 0.0
        %2872 = vmatpush1.msra.mxu0 0.0
        %2873 = vmatprep.subr.mxu0 0.0
        %2874 = vmatpush1.msra.mxu0 0.0
        %2875 = vmatprep.subr.mxu0 0.0
        %2876 = vmatpush1.msra.mxu0 0.0
        %2877 = vmatprep.subr.mxu0 0.0
        %2878 = vmatpush1.msra.mxu0 0.0
        %2879 = vmatprep.subr.mxu0 0.0
        %2880 = vmatpush1.msra.mxu0 0.0
        %2881 = vmatprep.subr.mxu0 0.0
        %2882 = vmatpush1.msra.mxu0 0.0
        %2883 = vmatprep.subr.mxu0 0.0
        %2884 = vmatpush1.msra.mxu0 0.0
        %2885 = vmatprep.subr.mxu0 0.0
        %2886 = vmatpush1.msra.mxu0 0.0
        %2887 = vmatprep.subr.mxu0 0.0
        %2888 = vmatpush1.msra.mxu0 0.0
        %2889 = vmatprep.subr.mxu0 0.0
        %2890 = vmatpush1.msra.mxu0 0.0
        %2891 = vmatprep.subr.mxu0 0.0
        %2892 = vmatpush1.msra.mxu0 0.0
        %2893 = vmatprep.subr.mxu0 0.0
        %2894 = vmatpush1.msra.mxu0 0.0
        %2895 = vmatprep.subr.mxu0 0.0
        %2896 = vmatpush1.msra.mxu0 0.0
        %2897 = vmatprep.mubr.f32.mxu0 0.0
        %2898 = vmatmul.mubr.f32.gmra.mrb[0].mxu0 %v2786
        %v2899 = vpop.f32.mrb[0].mxu0
        %v2900 = vadd.f32 0.0, %v2899
        %v2901 = vpop.f32.mrb[0].mxu0
        %2902 = vmatprep.mubr.f32.mxu0 0.0
        %2903 = vmatmul.mubr.f32.gmra.mrb[0].mxu0 %v2789
        %v2904 = vpop.f32.mrb[0].mxu0
        %v2905 = vadd.f32 0.0, %v2904
        %v2906 = vpop.f32.mrb[0].mxu0
        %2907 = vmatprep.mubr.f32.mxu0 0.0
        %2908 = vmatmul.mubr.f32.gmra.mrb[0].mxu0 %v2792
        %v2909 = vpop.f32.mrb[0].mxu0
        %v2910 = vadd.f32 0.0, %v2909
        %v2911 = vpop.f32.mrb[0].mxu0
        %2912 = vmatprep.mubr.f32.mxu0 0.0
        %2913 = vmatmul.mubr.f32.gmra.mrb[0].mxu0 %v2795
        %v2914 = vpop.f32.mrb[0].mxu0
        %v2915 = vadd.f32 0.0, %v2914
        %v2916 = vpop.f32.mrb[0].mxu0
        %2917 = vmatprep.mubr.f32.mxu0 0.0
        %2918 = vmatmul.mubr.f32.gmra.mrb[0].mxu0 %v2798
        %v2919 = vpop.f32.mrb[0].mxu0
        %v2920 = vadd.f32 0.0, %v2919
        %v2921 = vpop.f32.mrb[0].mxu0
        %2922 = vmatprep.mubr.f32.mxu0 0.0
        %2923 = vmatmul.mubr.f32.gmra.mrb[0].mxu0 %v2801
        %v2924 = vpop.f32.mrb[0].mxu0
        %v2925 = vadd.f32 0.0, %v2924
        %v2926 = vpop.f32.mrb[0].mxu0
        %2927 = vmatprep.mubr.f32.mxu0 0.0
        %2928 = vmatmul.mubr.f32.gmra.mrb[0].mxu0 %v2804
        %v2929 = vpop.f32.mrb[0].mxu0
        %v2930 = vadd.f32 0.0, %v2929
        %v2931 = vpop.f32.mrb[0].mxu0
        %2932 = vmatprep.mubr.f32.mxu0 0.0
        %2933 = vmatmul.mubr.f32.gmra.mrb[0].mxu0 %v2807
        %v2934 = vpop.f32.mrb[0].mxu0
        %v2935 = vadd.f32 0.0, %v2934
        %v2936 = vpop.f32.mrb[0].mxu0
        %2937 = vmatprep.mubr.f32.mxu0 0.0
        %2938 = vmatmul.mubr.f32.gmra.mrb[0].mxu0 %v2810
        %v2939 = vpop.f32.mrb[0].mxu0
        %v2940 = vadd.f32 0.0, %v2939
        %v2941 = vpop.f32.mrb[0].mxu0
        %2942 = vmatprep.mubr.f32.mxu0 0.0
        %2943 = vmatmul.mubr.f32.gmra.mrb[0].mxu0 %v2813
        %v2944 = vpop.f32.mrb[0].mxu0
        %v2945 = vadd.f32 0.0, %v2944
        %v2946 = vpop.f32.mrb[0].mxu0
        %2947 = vmatprep.mubr.f32.mxu0 0.0
        %2948 = vmatmul.mubr.f32.gmra.mrb[0].mxu0 %v2816
        %v2949 = vpop.f32.mrb[0].mxu0
        %v2950 = vadd.f32 0.0, %v2949
        %v2951 = vpop.f32.mrb[0].mxu0
        %2952 = vmatprep.mubr.f32.mxu0 0.0
        %2953 = vmatmul.mubr.f32.gmra.mrb[0].mxu0 %v2819
        %v2954 = vpop.f32.mrb[0].mxu0
        %v2955 = vadd.f32 0.0, %v2954
        %v2956 = vpop.f32.mrb[0].mxu0
        %2957 = vmatprep.mubr.f32.mxu0 0.0
        %2958 = vmatmul.mubr.f32.gmra.mrb[0].mxu0 %v2822
        %v2959 = vpop.f32.mrb[0].mxu0
        %v2960 = vadd.f32 0.0, %v2959
        %v2961 = vpop.f32.mrb[0].mxu0
        %2962 = vmatprep.mubr.f32.mxu0 0.0
        %2963 = vmatmul.mubr.f32.gmra.mrb[0].mxu0 %v2825
        %v2964 = vpop.f32.mrb[0].mxu0
        %v2965 = vadd.f32 0.0, %v2964
        %v2966 = vpop.f32.mrb[0].mxu0
        %2967 = vmatprep.mubr.f32.mxu0 0.0
        %2968 = vmatmul.mubr.f32.gmra.mrb[0].mxu0 %v2828
        %v2969 = vpop.f32.mrb[0].mxu0
        %v2970 = vadd.f32 0.0, %v2969
        %v2971 = vpop.f32.mrb[0].mxu0
        %2972 = vmatprep.mubr.f32.mxu0 0.0
        %2973 = vmatmul.mubr.f32.gmra.mrb[0].mxu0 %v2831
        %v2974 = vpop.f32.mrb[0].mxu0
        %v2975 = vadd.f32 0.0, %v2974
        %v2976 = vpop.f32.mrb[0].mxu0
        %2977 = vdwg.mxu0
        %v2979 = vsel %vm661, %v597, 0
        %v2982 = vsel %vm661, %v598, 0
        %v2985 = vsel %vm661, %v599, 0
        %v2988 = vsel %vm661, %v600, 0
        %v2991 = vsel %vm661, %v601, 0
        %v2994 = vsel %vm661, %v602, 0
        %v2997 = vsel %vm661, %v603, 0
        %v3000 = vsel %vm661, %v604, 0
        %v3003 = vsel %vm661, %v605, 0
        %v3006 = vsel %vm661, %v606, 0
        %v3009 = vsel %vm661, %v607, 0
        %v3012 = vsel %vm661, %v608, 0
        %v3015 = vsel %vm661, %v609, 0
        %v3018 = vsel %vm661, %v610, 0
        %v3021 = vsel %vm661, %v611, 0
        %v3024 = vsel %vm661, %v612, 0
        %3026 = vmatprep.subr.mxu0 0.0
        %3027 = vmatpush1.msra.mxu0 %v397
        %3028 = vmatprep.subr.mxu0 0.0
        %3029 = vmatpush1.msra.mxu0 %v398
        %3030 = vmatprep.subr.mxu0 0.0
        %3031 = vmatpush1.msra.mxu0 0.0
        %3032 = vmatprep.subr.mxu0 0.0
        %3033 = vmatpush1.msra.mxu0 0.0
        %3034 = vmatprep.subr.mxu0 0.0
        %3035 = vmatpush1.msra.mxu0 0.0
        %3036 = vmatprep.subr.mxu0 0.0
        %3037 = vmatpush1.msra.mxu0 0.0
        %3038 = vmatprep.subr.mxu0 0.0
        %3039 = vmatpush1.msra.mxu0 0.0
        %3040 = vmatprep.subr.mxu0 0.0
        %3041 = vmatpush1.msra.mxu0 0.0
        %3042 = vmatprep.subr.mxu0 0.0
        %3043 = vmatpush1.msra.mxu0 0.0
        %3044 = vmatprep.subr.mxu0 0.0
        %3045 = vmatpush1.msra.mxu0 0.0
        %3046 = vmatprep.subr.mxu0 0.0
        %3047 = vmatpush1.msra.mxu0 0.0
        %3048 = vmatprep.subr.mxu0 0.0
        %3049 = vmatpush1.msra.mxu0 0.0
        %3050 = vmatprep.subr.mxu0 0.0
        %3051 = vmatpush1.msra.mxu0 0.0
        %3052 = vmatprep.subr.mxu0 0.0
        %3053 = vmatpush1.msra.mxu0 0.0
        %3054 = vmatprep.subr.mxu0 0.0
        %3055 = vmatpush1.msra.mxu0 0.0
        %3056 = vmatprep.subr.mxu0 0.0
        %3057 = vmatpush1.msra.mxu0 0.0
        %3058 = vmatprep.subr.mxu0 0.0
        %3059 = vmatpush1.msra.mxu0 0.0
        %3060 = vmatprep.subr.mxu0 0.0
        %3061 = vmatpush1.msra.mxu0 0.0
        %3062 = vmatprep.subr.mxu0 0.0
        %3063 = vmatpush1.msra.mxu0 0.0
        %3064 = vmatprep.subr.mxu0 0.0
        %3065 = vmatpush1.msra.mxu0 0.0
        %3066 = vmatprep.subr.mxu0 0.0
        %3067 = vmatpush1.msra.mxu0 0.0
        %3068 = vmatprep.subr.mxu0 0.0
        %3069 = vmatpush1.msra.mxu0 0.0
        %3070 = vmatprep.subr.mxu0 0.0
        %3071 = vmatpush1.msra.mxu0 0.0
        %3072 = vmatprep.subr.mxu0 0.0
        %3073 = vmatpush1.msra.mxu0 0.0
        %3074 = vmatprep.subr.mxu0 0.0
        %3075 = vmatpush1.msra.mxu0 0.0
        %3076 = vmatprep.subr.mxu0 0.0
        %3077 = vmatpush1.msra.mxu0 0.0
        %3078 = vmatprep.subr.mxu0 0.0
        %3079 = vmatpush1.msra.mxu0 0.0
        %3080 = vmatprep.subr.mxu0 0.0
        %3081 = vmatpush1.msra.mxu0 0.0
        %3082 = vmatprep.subr.mxu0 0.0
        %3083 = vmatpush1.msra.mxu0 0.0
        %3084 = vmatprep.subr.mxu0 0.0
        %3085 = vmatpush1.msra.mxu0 0.0
        %3086 = vmatprep.subr.mxu0 0.0
        %3087 = vmatpush1.msra.mxu0 0.0
        %3088 = vmatprep.subr.mxu0 0.0
        %3089 = vmatpush1.msra.mxu0 0.0
        %3090 = vmatprep.mubr.f32.mxu0 0.0
        %3091 = vmatmul.mubr.f32.gmra.mrb[0].mxu0 %v2979
        %v3092 = vpop.f32.mrb[0].mxu0
        %v3093 = vadd.f32 0.0, %v3092
        %v3094 = vpop.f32.mrb[0].mxu0
        %3095 = vmatprep.mubr.f32.mxu0 0.0
        %3096 = vmatmul.mubr.f32.gmra.mrb[0].mxu0 %v2982
        %v3097 = vpop.f32.mrb[0].mxu0
        %v3098 = vadd.f32 0.0, %v3097
        %v3099 = vpop.f32.mrb[0].mxu0
        %3100 = vmatprep.mubr.f32.mxu0 0.0
        %3101 = vmatmul.mubr.f32.gmra.mrb[0].mxu0 %v2985
        %v3102 = vpop.f32.mrb[0].mxu0
        %v3103 = vadd.f32 0.0, %v3102
        %v3104 = vpop.f32.mrb[0].mxu0
        %3105 = vmatprep.mubr.f32.mxu0 0.0
        %3106 = vmatmul.mubr.f32.gmra.mrb[0].mxu0 %v2988
        %v3107 = vpop.f32.mrb[0].mxu0
        %v3108 = vadd.f32 0.0, %v3107
        %v3109 = vpop.f32.mrb[0].mxu0
        %3110 = vmatprep.mubr.f32.mxu0 0.0
        %3111 = vmatmul.mubr.f32.gmra.mrb[0].mxu0 %v2991
        %v3112 = vpop.f32.mrb[0].mxu0
        %v3113 = vadd.f32 0.0, %v3112
        %v3114 = vpop.f32.mrb[0].mxu0
        %3115 = vmatprep.mubr.f32.mxu0 0.0
        %3116 = vmatmul.mubr.f32.gmra.mrb[0].mxu0 %v2994
        %v3117 = vpop.f32.mrb[0].mxu0
        %v3118 = vadd.f32 0.0, %v3117
        %v3119 = vpop.f32.mrb[0].mxu0
        %3120 = vmatprep.mubr.f32.mxu0 0.0
        %3121 = vmatmul.mubr.f32.gmra.mrb[0].mxu0 %v2997
        %v3122 = vpop.f32.mrb[0].mxu0
        %v3123 = vadd.f32 0.0, %v3122
        %v3124 = vpop.f32.mrb[0].mxu0
        %3125 = vmatprep.mubr.f32.mxu0 0.0
        %3126 = vmatmul.mubr.f32.gmra.mrb[0].mxu0 %v3000
        %v3127 = vpop.f32.mrb[0].mxu0
        %v3128 = vadd.f32 0.0, %v3127
        %v3129 = vpop.f32.mrb[0].mxu0
        %3130 = vmatprep.mubr.f32.mxu0 0.0
        %3131 = vmatmul.mubr.f32.gmra.mrb[0].mxu0 %v3003
        %v3132 = vpop.f32.mrb[0].mxu0
        %v3133 = vadd.f32 0.0, %v3132
        %v3134 = vpop.f32.mrb[0].mxu0
        %3135 = vmatprep.mubr.f32.mxu0 0.0
        %3136 = vmatmul.mubr.f32.gmra.mrb[0].mxu0 %v3006
        %v3137 = vpop.f32.mrb[0].mxu0
        %v3138 = vadd.f32 0.0, %v3137
        %v3139 = vpop.f32.mrb[0].mxu0
        %3140 = vmatprep.mubr.f32.mxu0 0.0
        %3141 = vmatmul.mubr.f32.gmra.mrb[0].mxu0 %v3009
        %v3142 = vpop.f32.mrb[0].mxu0
        %v3143 = vadd.f32 0.0, %v3142
        %v3144 = vpop.f32.mrb[0].mxu0
        %3145 = vmatprep.mubr.f32.mxu0 0.0
        %3146 = vmatmul.mubr.f32.gmra.mrb[0].mxu0 %v3012
        %v3147 = vpop.f32.mrb[0].mxu0
        %v3148 = vadd.f32 0.0, %v3147
        %v3149 = vpop.f32.mrb[0].mxu0
        %3150 = vmatprep.mubr.f32.mxu0 0.0
        %3151 = vmatmul.mubr.f32.gmra.mrb[0].mxu0 %v3015
        %v3152 = vpop.f32.mrb[0].mxu0
        %v3153 = vadd.f32 0.0, %v3152
        %v3154 = vpop.f32.mrb[0].mxu0
        %3155 = vmatprep.mubr.f32.mxu0 0.0
        %3156 = vmatmul.mubr.f32.gmra.mrb[0].mxu0 %v3018
        %v3157 = vpop.f32.mrb[0].mxu0
        %v3158 = vadd.f32 0.0, %v3157
        %v3159 = vpop.f32.mrb[0].mxu0
        %3160 = vmatprep.mubr.f32.mxu0 0.0
        %3161 = vmatmul.mubr.f32.gmra.mrb[0].mxu0 %v3021
        %v3162 = vpop.f32.mrb[0].mxu0
        %v3163 = vadd.f32 0.0, %v3162
        %v3164 = vpop.f32.mrb[0].mxu0
        %3165 = vmatprep.mubr.f32.mxu0 0.0
        %3166 = vmatmul.mubr.f32.gmra.mrb[0].mxu0 %v3024
        %v3167 = vpop.f32.mrb[0].mxu0
        %v3168 = vadd.f32 0.0, %v3167
        %v3169 = vpop.f32.mrb[0].mxu0
        %3170 = vdwg.mxu0
        %v3172 = vsel %vm661, %v613, 0
        %v3175 = vsel %vm661, %v614, 0
        %v3178 = vsel %vm661, %v615, 0
        %v3181 = vsel %vm661, %v616, 0
        %v3184 = vsel %vm661, %v617, 0
        %v3187 = vsel %vm661, %v618, 0
        %v3190 = vsel %vm661, %v619, 0
        %v3193 = vsel %vm661, %v620, 0
        %v3196 = vsel %vm661, %v621, 0
        %v3199 = vsel %vm661, %v622, 0
        %v3202 = vsel %vm661, %v623, 0
        %v3205 = vsel %vm661, %v624, 0
        %v3208 = vsel %vm661, %v625, 0
        %v3211 = vsel %vm661, %v626, 0
        %v3214 = vsel %vm661, %v627, 0
        %v3217 = vsel %vm661, %v628, 0
        %3219 = vmatprep.subr.mxu0 0.0
        %3220 = vmatpush1.msra.mxu0 %v399
        %3221 = vmatprep.subr.mxu0 0.0
        %3222 = vmatpush1.msra.mxu0 %v400
        %3223 = vmatprep.subr.mxu0 0.0
        %3224 = vmatpush1.msra.mxu0 0.0
        %3225 = vmatprep.subr.mxu0 0.0
        %3226 = vmatpush1.msra.mxu0 0.0
        %3227 = vmatprep.subr.mxu0 0.0
        %3228 = vmatpush1.msra.mxu0 0.0
        %3229 = vmatprep.subr.mxu0 0.0
        %3230 = vmatpush1.msra.mxu0 0.0
        %3231 = vmatprep.subr.mxu0 0.0
        %3232 = vmatpush1.msra.mxu0 0.0
        %3233 = vmatprep.subr.mxu0 0.0
        %3234 = vmatpush1.msra.mxu0 0.0
        %3235 = vmatprep.subr.mxu0 0.0
        %3236 = vmatpush1.msra.mxu0 0.0
        %3237 = vmatprep.subr.mxu0 0.0
        %3238 = vmatpush1.msra.mxu0 0.0
        %3239 = vmatprep.subr.mxu0 0.0
        %3240 = vmatpush1.msra.mxu0 0.0
        %3241 = vmatprep.subr.mxu0 0.0
        %3242 = vmatpush1.msra.mxu0 0.0
        %3243 = vmatprep.subr.mxu0 0.0
        %3244 = vmatpush1.msra.mxu0 0.0
        %3245 = vmatprep.subr.mxu0 0.0
        %3246 = vmatpush1.msra.mxu0 0.0
        %3247 = vmatprep.subr.mxu0 0.0
        %3248 = vmatpush1.msra.mxu0 0.0
        %3249 = vmatprep.subr.mxu0 0.0
        %3250 = vmatpush1.msra.mxu0 0.0
        %3251 = vmatprep.subr.mxu0 0.0
        %3252 = vmatpush1.msra.mxu0 0.0
        %3253 = vmatprep.subr.mxu0 0.0
        %3254 = vmatpush1.msra.mxu0 0.0
        %3255 = vmatprep.subr.mxu0 0.0
        %3256 = vmatpush1.msra.mxu0 0.0
        %3257 = vmatprep.subr.mxu0 0.0
        %3258 = vmatpush1.msra.mxu0 0.0
        %3259 = vmatprep.subr.mxu0 0.0
        %3260 = vmatpush1.msra.mxu0 0.0
        %3261 = vmatprep.subr.mxu0 0.0
        %3262 = vmatpush1.msra.mxu0 0.0
        %3263 = vmatprep.subr.mxu0 0.0
        %3264 = vmatpush1.msra.mxu0 0.0
        %3265 = vmatprep.subr.mxu0 0.0
        %3266 = vmatpush1.msra.mxu0 0.0
        %3267 = vmatprep.subr.mxu0 0.0
        %3268 = vmatpush1.msra.mxu0 0.0
        %3269 = vmatprep.subr.mxu0 0.0
        %3270 = vmatpush1.msra.mxu0 0.0
        %3271 = vmatprep.subr.mxu0 0.0
        %3272 = vmatpush1.msra.mxu0 0.0
        %3273 = vmatprep.subr.mxu0 0.0
        %3274 = vmatpush1.msra.mxu0 0.0
        %3275 = vmatprep.subr.mxu0 0.0
        %3276 = vmatpush1.msra.mxu0 0.0
        %3277 = vmatprep.subr.mxu0 0.0
        %3278 = vmatpush1.msra.mxu0 0.0
        %3279 = vmatprep.subr.mxu0 0.0
        %3280 = vmatpush1.msra.mxu0 0.0
        %3281 = vmatprep.subr.mxu0 0.0
        %3282 = vmatpush1.msra.mxu0 0.0
        %3283 = vmatprep.mubr.f32.mxu0 0.0
        %3284 = vmatmul.mubr.f32.gmra.mrb[0].mxu0 %v3172
        %v3285 = vpop.f32.mrb[0].mxu0
        %v3286 = vadd.f32 0.0, %v3285
        %v3287 = vpop.f32.mrb[0].mxu0
        %3288 = vmatprep.mubr.f32.mxu0 0.0
        %3289 = vmatmul.mubr.f32.gmra.mrb[0].mxu0 %v3175
        %v3290 = vpop.f32.mrb[0].mxu0
        %v3291 = vadd.f32 0.0, %v3290
        %v3292 = vpop.f32.mrb[0].mxu0
        %3293 = vmatprep.mubr.f32.mxu0 0.0
        %3294 = vmatmul.mubr.f32.gmra.mrb[0].mxu0 %v3178
        %v3295 = vpop.f32.mrb[0].mxu0
        %v3296 = vadd.f32 0.0, %v3295
        %v3297 = vpop.f32.mrb[0].mxu0
        %3298 = vmatprep.mubr.f32.mxu0 0.0
        %3299 = vmatmul.mubr.f32.gmra.mrb[0].mxu0 %v3181
        %v3300 = vpop.f32.mrb[0].mxu0
        %v3301 = vadd.f32 0.0, %v3300
        %v3302 = vpop.f32.mrb[0].mxu0
        %3303 = vmatprep.mubr.f32.mxu0 0.0
        %3304 = vmatmul.mubr.f32.gmra.mrb[0].mxu0 %v3184
        %v3305 = vpop.f32.mrb[0].mxu0
        %v3306 = vadd.f32 0.0, %v3305
        %v3307 = vpop.f32.mrb[0].mxu0
        %3308 = vmatprep.mubr.f32.mxu0 0.0
        %3309 = vmatmul.mubr.f32.gmra.mrb[0].mxu0 %v3187
        %v3310 = vpop.f32.mrb[0].mxu0
        %v3311 = vadd.f32 0.0, %v3310
        %v3312 = vpop.f32.mrb[0].mxu0
        %3313 = vmatprep.mubr.f32.mxu0 0.0
        %3314 = vmatmul.mubr.f32.gmra.mrb[0].mxu0 %v3190
        %v3315 = vpop.f32.mrb[0].mxu0
        %v3316 = vadd.f32 0.0, %v3315
        %v3317 = vpop.f32.mrb[0].mxu0
        %3318 = vmatprep.mubr.f32.mxu0 0.0
        %3319 = vmatmul.mubr.f32.gmra.mrb[0].mxu0 %v3193
        %v3320 = vpop.f32.mrb[0].mxu0
        %v3321 = vadd.f32 0.0, %v3320
        %v3322 = vpop.f32.mrb[0].mxu0
        %3323 = vmatprep.mubr.f32.mxu0 0.0
        %3324 = vmatmul.mubr.f32.gmra.mrb[0].mxu0 %v3196
        %v3325 = vpop.f32.mrb[0].mxu0
        %v3326 = vadd.f32 0.0, %v3325
        %v3327 = vpop.f32.mrb[0].mxu0
        %3328 = vmatprep.mubr.f32.mxu0 0.0
        %3329 = vmatmul.mubr.f32.gmra.mrb[0].mxu0 %v3199
        %v3330 = vpop.f32.mrb[0].mxu0
        %v3331 = vadd.f32 0.0, %v3330
        %v3332 = vpop.f32.mrb[0].mxu0
        %3333 = vmatprep.mubr.f32.mxu0 0.0
        %3334 = vmatmul.mubr.f32.gmra.mrb[0].mxu0 %v3202
        %v3335 = vpop.f32.mrb[0].mxu0
        %v3336 = vadd.f32 0.0, %v3335
        %v3337 = vpop.f32.mrb[0].mxu0
        %3338 = vmatprep.mubr.f32.mxu0 0.0
        %3339 = vmatmul.mubr.f32.gmra.mrb[0].mxu0 %v3205
        %v3340 = vpop.f32.mrb[0].mxu0
        %v3341 = vadd.f32 0.0, %v3340
        %v3342 = vpop.f32.mrb[0].mxu0
        %3343 = vmatprep.mubr.f32.mxu0 0.0
        %3344 = vmatmul.mubr.f32.gmra.mrb[0].mxu0 %v3208
        %v3345 = vpop.f32.mrb[0].mxu0
        %v3346 = vadd.f32 0.0, %v3345
        %v3347 = vpop.f32.mrb[0].mxu0
        %3348 = vmatprep.mubr.f32.mxu0 0.0
        %3349 = vmatmul.mubr.f32.gmra.mrb[0].mxu0 %v3211
        %v3350 = vpop.f32.mrb[0].mxu0
        %v3351 = vadd.f32 0.0, %v3350
        %v3352 = vpop.f32.mrb[0].mxu0
        %3353 = vmatprep.mubr.f32.mxu0 0.0
        %3354 = vmatmul.mubr.f32.gmra.mrb[0].mxu0 %v3214
        %v3355 = vpop.f32.mrb[0].mxu0
        %v3356 = vadd.f32 0.0, %v3355
        %v3357 = vpop.f32.mrb[0].mxu0
        %3358 = vmatprep.mubr.f32.mxu0 0.0
        %3359 = vmatmul.mubr.f32.gmra.mrb[0].mxu0 %v3217
        %v3360 = vpop.f32.mrb[0].mxu0
        %v3361 = vadd.f32 0.0, %v3360
        %v3362 = vpop.f32.mrb[0].mxu0
        %3363 = vdwg.mxu0
        %v3365 = vsel %vm661, %v629, 0
        %v3368 = vsel %vm661, %v630, 0
        %v3371 = vsel %vm661, %v631, 0
        %v3374 = vsel %vm661, %v632, 0
        %v3377 = vsel %vm661, %v633, 0
        %v3380 = vsel %vm661, %v634, 0
        %v3383 = vsel %vm661, %v635, 0
        %v3386 = vsel %vm661, %v636, 0
        %v3389 = vsel %vm661, %v637, 0
        %v3392 = vsel %vm661, %v638, 0
        %v3395 = vsel %vm661, %v639, 0
        %v3398 = vsel %vm661, %v640, 0
        %v3401 = vsel %vm661, %v641, 0
        %v3404 = vsel %vm661, %v642, 0
        %v3407 = vsel %vm661, %v643, 0
        %v3410 = vsel %vm661, %v644, 0
        %3412 = vmatprep.subr.mxu0 0.0
        %3413 = vmatpush1.msra.mxu0 %v401
        %3414 = vmatprep.subr.mxu0 0.0
        %3415 = vmatpush1.msra.mxu0 %v402
        %3416 = vmatprep.subr.mxu0 0.0
        %3417 = vmatpush1.msra.mxu0 0.0
        %3418 = vmatprep.subr.mxu0 0.0
        %3419 = vmatpush1.msra.mxu0 0.0
        %3420 = vmatprep.subr.mxu0 0.0
        %3421 = vmatpush1.msra.mxu0 0.0
        %3422 = vmatprep.subr.mxu0 0.0
        %3423 = vmatpush1.msra.mxu0 0.0
        %3424 = vmatprep.subr.mxu0 0.0
        %3425 = vmatpush1.msra.mxu0 0.0
        %3426 = vmatprep.subr.mxu0 0.0
        %3427 = vmatpush1.msra.mxu0 0.0
        %3428 = vmatprep.subr.mxu0 0.0
        %3429 = vmatpush1.msra.mxu0 0.0
        %3430 = vmatprep.subr.mxu0 0.0
        %3431 = vmatpush1.msra.mxu0 0.0
        %3432 = vmatprep.subr.mxu0 0.0
        %3433 = vmatpush1.msra.mxu0 0.0
        %3434 = vmatprep.subr.mxu0 0.0
        %3435 = vmatpush1.msra.mxu0 0.0
        %3436 = vmatprep.subr.mxu0 0.0
        %3437 = vmatpush1.msra.mxu0 0.0
        %3438 = vmatprep.subr.mxu0 0.0
        %3439 = vmatpush1.msra.mxu0 0.0
        %3440 = vmatprep.subr.mxu0 0.0
        %3441 = vmatpush1.msra.mxu0 0.0
        %3442 = vmatprep.subr.mxu0 0.0
        %3443 = vmatpush1.msra.mxu0 0.0
        %3444 = vmatprep.subr.mxu0 0.0
        %3445 = vmatpush1.msra.mxu0 0.0
        %3446 = vmatprep.subr.mxu0 0.0
        %3447 = vmatpush1.msra.mxu0 0.0
        %3448 = vmatprep.subr.mxu0 0.0
        %3449 = vmatpush1.msra.mxu0 0.0
        %3450 = vmatprep.subr.mxu0 0.0
        %3451 = vmatpush1.msra.mxu0 0.0
        %3452 = vmatprep.subr.mxu0 0.0
        %3453 = vmatpush1.msra.mxu0 0.0
        %3454 = vmatprep.subr.mxu0 0.0
        %3455 = vmatpush1.msra.mxu0 0.0
        %3456 = vmatprep.subr.mxu0 0.0
        %3457 = vmatpush1.msra.mxu0 0.0
        %3458 = vmatprep.subr.mxu0 0.0
        %3459 = vmatpush1.msra.mxu0 0.0
        %3460 = vmatprep.subr.mxu0 0.0
        %3461 = vmatpush1.msra.mxu0 0.0
        %3462 = vmatprep.subr.mxu0 0.0
        %3463 = vmatpush1.msra.mxu0 0.0
        %3464 = vmatprep.subr.mxu0 0.0
        %3465 = vmatpush1.msra.mxu0 0.0
        %3466 = vmatprep.subr.mxu0 0.0
        %3467 = vmatpush1.msra.mxu0 0.0
        %3468 = vmatprep.subr.mxu0 0.0
        %3469 = vmatpush1.msra.mxu0 0.0
        %3470 = vmatprep.subr.mxu0 0.0
        %3471 = vmatpush1.msra.mxu0 0.0
        %3472 = vmatprep.subr.mxu0 0.0
        %3473 = vmatpush1.msra.mxu0 0.0
        %3474 = vmatprep.subr.mxu0 0.0
        %3475 = vmatpush1.msra.mxu0 0.0
        %3476 = vmatprep.mubr.f32.mxu0 0.0
        %3477 = vmatmul.mubr.f32.gmra.mrb[0].mxu0 %v3365
        %v3478 = vpop.f32.mrb[0].mxu0
        %v3479 = vadd.f32 0.0, %v3478
        %v3480 = vpop.f32.mrb[0].mxu0
        %3481 = vmatprep.mubr.f32.mxu0 0.0
        %3482 = vmatmul.mubr.f32.gmra.mrb[0].mxu0 %v3368
        %v3483 = vpop.f32.mrb[0].mxu0
        %v3484 = vadd.f32 0.0, %v3483
        %v3485 = vpop.f32.mrb[0].mxu0
        %3486 = vmatprep.mubr.f32.mxu0 0.0
        %3487 = vmatmul.mubr.f32.gmra.mrb[0].mxu0 %v3371
        %v3488 = vpop.f32.mrb[0].mxu0
        %v3489 = vadd.f32 0.0, %v3488
        %v3490 = vpop.f32.mrb[0].mxu0
        %3491 = vmatprep.mubr.f32.mxu0 0.0
        %3492 = vmatmul.mubr.f32.gmra.mrb[0].mxu0 %v3374
        %v3493 = vpop.f32.mrb[0].mxu0
        %v3494 = vadd.f32 0.0, %v3493
        %v3495 = vpop.f32.mrb[0].mxu0
        %3496 = vmatprep.mubr.f32.mxu0 0.0
        %3497 = vmatmul.mubr.f32.gmra.mrb[0].mxu0 %v3377
        %v3498 = vpop.f32.mrb[0].mxu0
        %v3499 = vadd.f32 0.0, %v3498
        %v3500 = vpop.f32.mrb[0].mxu0
        %3501 = vmatprep.mubr.f32.mxu0 0.0
        %3502 = vmatmul.mubr.f32.gmra.mrb[0].mxu0 %v3380
        %v3503 = vpop.f32.mrb[0].mxu0
        %v3504 = vadd.f32 0.0, %v3503
        %v3505 = vpop.f32.mrb[0].mxu0
        %3506 = vmatprep.mubr.f32.mxu0 0.0
        %3507 = vmatmul.mubr.f32.gmra.mrb[0].mxu0 %v3383
        %v3508 = vpop.f32.mrb[0].mxu0
        %v3509 = vadd.f32 0.0, %v3508
        %v3510 = vpop.f32.mrb[0].mxu0
        %3511 = vmatprep.mubr.f32.mxu0 0.0
        %3512 = vmatmul.mubr.f32.gmra.mrb[0].mxu0 %v3386
        %v3513 = vpop.f32.mrb[0].mxu0
        %v3514 = vadd.f32 0.0, %v3513
        %v3515 = vpop.f32.mrb[0].mxu0
        %3516 = vmatprep.mubr.f32.mxu0 0.0
        %3517 = vmatmul.mubr.f32.gmra.mrb[0].mxu0 %v3389
        %v3518 = vpop.f32.mrb[0].mxu0
        %v3519 = vadd.f32 0.0, %v3518
        %v3520 = vpop.f32.mrb[0].mxu0
        %3521 = vmatprep.mubr.f32.mxu0 0.0
        %3522 = vmatmul.mubr.f32.gmra.mrb[0].mxu0 %v3392
        %v3523 = vpop.f32.mrb[0].mxu0
        %v3524 = vadd.f32 0.0, %v3523
        %v3525 = vpop.f32.mrb[0].mxu0
        %3526 = vmatprep.mubr.f32.mxu0 0.0
        %3527 = vmatmul.mubr.f32.gmra.mrb[0].mxu0 %v3395
        %v3528 = vpop.f32.mrb[0].mxu0
        %v3529 = vadd.f32 0.0, %v3528
        %v3530 = vpop.f32.mrb[0].mxu0
        %3531 = vmatprep.mubr.f32.mxu0 0.0
        %3532 = vmatmul.mubr.f32.gmra.mrb[0].mxu0 %v3398
        %v3533 = vpop.f32.mrb[0].mxu0
        %v3534 = vadd.f32 0.0, %v3533
        %v3535 = vpop.f32.mrb[0].mxu0
        %3536 = vmatprep.mubr.f32.mxu0 0.0
        %3537 = vmatmul.mubr.f32.gmra.mrb[0].mxu0 %v3401
        %v3538 = vpop.f32.mrb[0].mxu0
        %v3539 = vadd.f32 0.0, %v3538
        %v3540 = vpop.f32.mrb[0].mxu0
        %3541 = vmatprep.mubr.f32.mxu0 0.0
        %3542 = vmatmul.mubr.f32.gmra.mrb[0].mxu0 %v3404
        %v3543 = vpop.f32.mrb[0].mxu0
        %v3544 = vadd.f32 0.0, %v3543
        %v3545 = vpop.f32.mrb[0].mxu0
        %3546 = vmatprep.mubr.f32.mxu0 0.0
        %3547 = vmatmul.mubr.f32.gmra.mrb[0].mxu0 %v3407
        %v3548 = vpop.f32.mrb[0].mxu0
        %v3549 = vadd.f32 0.0, %v3548
        %v3550 = vpop.f32.mrb[0].mxu0
        %3551 = vmatprep.mubr.f32.mxu0 0.0
        %3552 = vmatmul.mubr.f32.gmra.mrb[0].mxu0 %v3410
        %v3553 = vpop.f32.mrb[0].mxu0
        %v3554 = vadd.f32 0.0, %v3553
        %v3555 = vpop.f32.mrb[0].mxu0
        %3556 = vdwg.mxu0
        %v3558 = vsel %vm661, %v645, 0
        %v3561 = vsel %vm661, %v646, 0
        %v3564 = vsel %vm661, %v647, 0
        %v3567 = vsel %vm661, %v648, 0
        %v3570 = vsel %vm661, %v649, 0
        %v3573 = vsel %vm661, %v650, 0
        %v3576 = vsel %vm661, %v651, 0
        %v3579 = vsel %vm661, %v652, 0
        %v3582 = vsel %vm661, %v653, 0
        %v3585 = vsel %vm661, %v654, 0
        %v3588 = vsel %vm661, %v655, 0
        %v3591 = vsel %vm661, %v656, 0
        %v3594 = vsel %vm661, %v657, 0
        %v3597 = vsel %vm661, %v658, 0
        %v3600 = vsel %vm661, %v659, 0
        %v3603 = vsel %vm661, %v660, 0
        %3605 = vmatprep.subr.mxu0 0.0
        %3606 = vmatpush1.msra.mxu0 %v403
        %3607 = vmatprep.subr.mxu0 0.0
        %3608 = vmatpush1.msra.mxu0 %v404
        %3609 = vmatprep.subr.mxu0 0.0
        %3610 = vmatpush1.msra.mxu0 0.0
        %3611 = vmatprep.subr.mxu0 0.0
        %3612 = vmatpush1.msra.mxu0 0.0
        %3613 = vmatprep.subr.mxu0 0.0
        %3614 = vmatpush1.msra.mxu0 0.0
        %3615 = vmatprep.subr.mxu0 0.0
        %3616 = vmatpush1.msra.mxu0 0.0
        %3617 = vmatprep.subr.mxu0 0.0
        %3618 = vmatpush1.msra.mxu0 0.0
        %3619 = vmatprep.subr.mxu0 0.0
        %3620 = vmatpush1.msra.mxu0 0.0
        %3621 = vmatprep.subr.mxu0 0.0
        %3622 = vmatpush1.msra.mxu0 0.0
        %3623 = vmatprep.subr.mxu0 0.0
        %3624 = vmatpush1.msra.mxu0 0.0
        %3625 = vmatprep.subr.mxu0 0.0
        %3626 = vmatpush1.msra.mxu0 0.0
        %3627 = vmatprep.subr.mxu0 0.0
        %3628 = vmatpush1.msra.mxu0 0.0
        %3629 = vmatprep.subr.mxu0 0.0
        %3630 = vmatpush1.msra.mxu0 0.0
        %3631 = vmatprep.subr.mxu0 0.0
        %3632 = vmatpush1.msra.mxu0 0.0
        %3633 = vmatprep.subr.mxu0 0.0
        %3634 = vmatpush1.msra.mxu0 0.0
        %3635 = vmatprep.subr.mxu0 0.0
        %3636 = vmatpush1.msra.mxu0 0.0
        %3637 = vmatprep.subr.mxu0 0.0
        %3638 = vmatpush1.msra.mxu0 0.0
        %3639 = vmatprep.subr.mxu0 0.0
        %3640 = vmatpush1.msra.mxu0 0.0
        %3641 = vmatprep.subr.mxu0 0.0
        %3642 = vmatpush1.msra.mxu0 0.0
        %3643 = vmatprep.subr.mxu0 0.0
        %3644 = vmatpush1.msra.mxu0 0.0
        %3645 = vmatprep.subr.mxu0 0.0
        %3646 = vmatpush1.msra.mxu0 0.0
        %3647 = vmatprep.subr.mxu0 0.0
        %3648 = vmatpush1.msra.mxu0 0.0
        %3649 = vmatprep.subr.mxu0 0.0
        %3650 = vmatpush1.msra.mxu0 0.0
        %3651 = vmatprep.subr.mxu0 0.0
        %3652 = vmatpush1.msra.mxu0 0.0
        %3653 = vmatprep.subr.mxu0 0.0
        %3654 = vmatpush1.msra.mxu0 0.0
        %3655 = vmatprep.subr.mxu0 0.0
        %3656 = vmatpush1.msra.mxu0 0.0
        %3657 = vmatprep.subr.mxu0 0.0
        %3658 = vmatpush1.msra.mxu0 0.0
        %3659 = vmatprep.subr.mxu0 0.0
        %3660 = vmatpush1.msra.mxu0 0.0
        %3661 = vmatprep.subr.mxu0 0.0
        %3662 = vmatpush1.msra.mxu0 0.0
        %3663 = vmatprep.subr.mxu0 0.0
        %3664 = vmatpush1.msra.mxu0 0.0
        %3665 = vmatprep.subr.mxu0 0.0
        %3666 = vmatpush1.msra.mxu0 0.0
        %3667 = vmatprep.subr.mxu0 0.0
        %3668 = vmatpush1.msra.mxu0 0.0
        %3669 = vmatprep.mubr.f32.mxu0 0.0
        %3670 = vmatmul.mubr.f32.gmra.mrb[0].mxu0 %v3558
        %v3671 = vpop.f32.mrb[0].mxu0
        %v3672 = vadd.f32 0.0, %v3671
        %v3673 = vpop.f32.mrb[0].mxu0
        %3674 = vmatprep.mubr.f32.mxu0 0.0
        %3675 = vmatmul.mubr.f32.gmra.mrb[0].mxu0 %v3561
        %v3676 = vpop.f32.mrb[0].mxu0
        %v3677 = vadd.f32 0.0, %v3676
        %v3678 = vpop.f32.mrb[0].mxu0
        %3679 = vmatprep.mubr.f32.mxu0 0.0
        %3680 = vmatmul.mubr.f32.gmra.mrb[0].mxu0 %v3564
        %v3681 = vpop.f32.mrb[0].mxu0
        %v3682 = vadd.f32 0.0, %v3681
        %v3683 = vpop.f32.mrb[0].mxu0
        %3684 = vmatprep.mubr.f32.mxu0 0.0
        %3685 = vmatmul.mubr.f32.gmra.mrb[0].mxu0 %v3567
        %v3686 = vpop.f32.mrb[0].mxu0
        %v3687 = vadd.f32 0.0, %v3686
        %v3688 = vpop.f32.mrb[0].mxu0
        %3689 = vmatprep.mubr.f32.mxu0 0.0
        %3690 = vmatmul.mubr.f32.gmra.mrb[0].mxu0 %v3570
        %v3691 = vpop.f32.mrb[0].mxu0
        %v3692 = vadd.f32 0.0, %v3691
        %v3693 = vpop.f32.mrb[0].mxu0
        %3694 = vmatprep.mubr.f32.mxu0 0.0
        %3695 = vmatmul.mubr.f32.gmra.mrb[0].mxu0 %v3573
        %v3696 = vpop.f32.mrb[0].mxu0
        %v3697 = vadd.f32 0.0, %v3696
        %v3698 = vpop.f32.mrb[0].mxu0
        %3699 = vmatprep.mubr.f32.mxu0 0.0
        %3700 = vmatmul.mubr.f32.gmra.mrb[0].mxu0 %v3576
        %v3701 = vpop.f32.mrb[0].mxu0
        %v3702 = vadd.f32 0.0, %v3701
        %v3703 = vpop.f32.mrb[0].mxu0
        %3704 = vmatprep.mubr.f32.mxu0 0.0
        %3705 = vmatmul.mubr.f32.gmra.mrb[0].mxu0 %v3579
        %v3706 = vpop.f32.mrb[0].mxu0
        %v3707 = vadd.f32 0.0, %v3706
        %v3708 = vpop.f32.mrb[0].mxu0
        %3709 = vmatprep.mubr.f32.mxu0 0.0
        %3710 = vmatmul.mubr.f32.gmra.mrb[0].mxu0 %v3582
        %v3711 = vpop.f32.mrb[0].mxu0
        %v3712 = vadd.f32 0.0, %v3711
        %v3713 = vpop.f32.mrb[0].mxu0
        %3714 = vmatprep.mubr.f32.mxu0 0.0
        %3715 = vmatmul.mubr.f32.gmra.mrb[0].mxu0 %v3585
        %v3716 = vpop.f32.mrb[0].mxu0
        %v3717 = vadd.f32 0.0, %v3716
        %v3718 = vpop.f32.mrb[0].mxu0
        %3719 = vmatprep.mubr.f32.mxu0 0.0
        %3720 = vmatmul.mubr.f32.gmra.mrb[0].mxu0 %v3588
        %v3721 = vpop.f32.mrb[0].mxu0
        %v3722 = vadd.f32 0.0, %v3721
        %v3723 = vpop.f32.mrb[0].mxu0
        %3724 = vmatprep.mubr.f32.mxu0 0.0
        %3725 = vmatmul.mubr.f32.gmra.mrb[0].mxu0 %v3591
        %v3726 = vpop.f32.mrb[0].mxu0
        %v3727 = vadd.f32 0.0, %v3726
        %v3728 = vpop.f32.mrb[0].mxu0
        %3729 = vmatprep.mubr.f32.mxu0 0.0
        %3730 = vmatmul.mubr.f32.gmra.mrb[0].mxu0 %v3594
        %v3731 = vpop.f32.mrb[0].mxu0
        %v3732 = vadd.f32 0.0, %v3731
        %v3733 = vpop.f32.mrb[0].mxu0
        %3734 = vmatprep.mubr.f32.mxu0 0.0
        %3735 = vmatmul.mubr.f32.gmra.mrb[0].mxu0 %v3597
        %v3736 = vpop.f32.mrb[0].mxu0
        %v3737 = vadd.f32 0.0, %v3736
        %v3738 = vpop.f32.mrb[0].mxu0
        %3739 = vmatprep.mubr.f32.mxu0 0.0
        %3740 = vmatmul.mubr.f32.gmra.mrb[0].mxu0 %v3600
        %v3741 = vpop.f32.mrb[0].mxu0
        %v3742 = vadd.f32 0.0, %v3741
        %v3743 = vpop.f32.mrb[0].mxu0
        %3744 = vmatprep.mubr.f32.mxu0 0.0
        %3745 = vmatmul.mubr.f32.gmra.mrb[0].mxu0 %v3603
        %v3746 = vpop.f32.mrb[0].mxu0
        %v3747 = vadd.f32 0.0, %v3746
        %v3748 = vpop.f32.mrb[0].mxu0
        %3749 = vdwg.mxu0
        %v3750 = vld [vmem:[#allocation2] sm:$0xff]
        %v3751 = vld [vmem:[#allocation2 + $0x8] sm:$0xff]
        %v3753 = vsel %vm661, %v777, 0
        %v3756 = vsel %vm661, %v782, 0
        %v3759 = vsel %vm661, %v787, 0
        %v3762 = vsel %vm661, %v792, 0
        %v3765 = vsel %vm661, %v797, 0
        %v3768 = vsel %vm661, %v802, 0
        %v3771 = vsel %vm661, %v807, 0
        %v3774 = vsel %vm661, %v812, 0
        %v3777 = vsel %vm661, %v817, 0
        %v3780 = vsel %vm661, %v822, 0
        %v3783 = vsel %vm661, %v827, 0
        %v3786 = vsel %vm661, %v832, 0
        %v3789 = vsel %vm661, %v837, 0
        %v3792 = vsel %vm661, %v842, 0
        %v3795 = vsel %vm661, %v847, 0
        %v3798 = vsel %vm661, %v852, 0
        %v3801 = vsel %vm661, %v970, 0
        %v3804 = vsel %vm661, %v975, 0
        %v3807 = vsel %vm661, %v980, 0
        %v3810 = vsel %vm661, %v985, 0
        %v3813 = vsel %vm661, %v990, 0
        %v3816 = vsel %vm661, %v995, 0
        %v3819 = vsel %vm661, %v1000, 0
        %v3822 = vsel %vm661, %v1005, 0
        %v3825 = vsel %vm661, %v1010, 0
        %v3828 = vsel %vm661, %v1015, 0
        %v3831 = vsel %vm661, %v1020, 0
        %v3834 = vsel %vm661, %v1025, 0
        %v3837 = vsel %vm661, %v1030, 0
        %v3840 = vsel %vm661, %v1035, 0
        %v3843 = vsel %vm661, %v1040, 0
        %v3846 = vsel %vm661, %v1045, 0
        %v3849 = vsel %vm661, %v1163, 0
        %v3852 = vsel %vm661, %v1168, 0
        %v3855 = vsel %vm661, %v1173, 0
        %v3858 = vsel %vm661, %v1178, 0
        %v3861 = vsel %vm661, %v1183, 0
        %v3864 = vsel %vm661, %v1188, 0
        %v3867 = vsel %vm661, %v1193, 0
        %v3870 = vsel %vm661, %v1198, 0
        %v3873 = vsel %vm661, %v1203, 0
        %v3876 = vsel %vm661, %v1208, 0
        %v3879 = vsel %vm661, %v1213, 0
        %v3882 = vsel %vm661, %v1218, 0
        %v3885 = vsel %vm661, %v1223, 0
        %v3888 = vsel %vm661, %v1228, 0
        %v3891 = vsel %vm661, %v1233, 0
        %v3894 = vsel %vm661, %v1238, 0
        %v3897 = vsel %vm661, %v1356, 0
        %v3900 = vsel %vm661, %v1361, 0
        %v3903 = vsel %vm661, %v1366, 0
        %v3906 = vsel %vm661, %v1371, 0
        %v3909 = vsel %vm661, %v1376, 0
        %v3912 = vsel %vm661, %v1381, 0
        %v3915 = vsel %vm661, %v1386, 0
        %v3918 = vsel %vm661, %v1391, 0
        %v3921 = vsel %vm661, %v1396, 0
        %v3924 = vsel %vm661, %v1401, 0
        %v3927 = vsel %vm661, %v1406, 0
        %v3930 = vsel %vm661, %v1411, 0
        %v3933 = vsel %vm661, %v1416, 0
        %v3936 = vsel %vm661, %v1421, 0
        %v3939 = vsel %vm661, %v1426, 0
        %v3942 = vsel %vm661, %v1431, 0
        %v3945 = vsel %vm661, %v1549, 0
        %v3948 = vsel %vm661, %v1554, 0
        %v3951 = vsel %vm661, %v1559, 0
        %v3954 = vsel %vm661, %v1564, 0
        %v3957 = vsel %vm661, %v1569, 0
        %v3960 = vsel %vm661, %v1574, 0
        %v3963 = vsel %vm661, %v1579, 0
        %v3966 = vsel %vm661, %v1584, 0
        %v3969 = vsel %vm661, %v1589, 0
        %v3972 = vsel %vm661, %v1594, 0
        %v3975 = vsel %vm661, %v1599, 0
        %v3978 = vsel %vm661, %v1604, 0
        %v3981 = vsel %vm661, %v1609, 0
        %v3984 = vsel %vm661, %v1614, 0
        %v3987 = vsel %vm661, %v1619, 0
        %v3990 = vsel %vm661, %v1624, 0
        %v3993 = vsel %vm661, %v1742, 0
        %v3996 = vsel %vm661, %v1747, 0
        %v3999 = vsel %vm661, %v1752, 0
        %v4002 = vsel %vm661, %v1757, 0
        %v4005 = vsel %vm661, %v1762, 0
        %v4008 = vsel %vm661, %v1767, 0
        %v4011 = vsel %vm661, %v1772, 0
        %v4014 = vsel %vm661, %v1777, 0
        %v4017 = vsel %vm661, %v1782, 0
        %v4020 = vsel %vm661, %v1787, 0
        %v4023 = vsel %vm661, %v1792, 0
        %v4026 = vsel %vm661, %v1797, 0
        %v4029 = vsel %vm661, %v1802, 0
        %v4032 = vsel %vm661, %v1807, 0
        %v4035 = vsel %vm661, %v1812, 0
        %v4038 = vsel %vm661, %v1817, 0
        %v4041 = vsel %vm661, %v1935, 0
        %v4044 = vsel %vm661, %v1940, 0
        %v4047 = vsel %vm661, %v1945, 0
        %v4050 = vsel %vm661, %v1950, 0
        %v4053 = vsel %vm661, %v1955, 0
        %v4056 = vsel %vm661, %v1960, 0
        %v4059 = vsel %vm661, %v1965, 0
        %v4062 = vsel %vm661, %v1970, 0
        %v4065 = vsel %vm661, %v1975, 0
        %v4068 = vsel %vm661, %v1980, 0
        %v4071 = vsel %vm661, %v1985, 0
        %v4074 = vsel %vm661, %v1990, 0
        %v4077 = vsel %vm661, %v1995, 0
        %v4080 = vsel %vm661, %v2000, 0
        %v4083 = vsel %vm661, %v2005, 0
        %v4086 = vsel %vm661, %v2010, 0
        %v4089 = vsel %vm661, %v2128, 0
        %v4092 = vsel %vm661, %v2133, 0
        %v4095 = vsel %vm661, %v2138, 0
        %v4098 = vsel %vm661, %v2143, 0
        %v4101 = vsel %vm661, %v2148, 0
        %v4104 = vsel %vm661, %v2153, 0
        %v4107 = vsel %vm661, %v2158, 0
        %v4110 = vsel %vm661, %v2163, 0
        %v4113 = vsel %vm661, %v2168, 0
        %v4116 = vsel %vm661, %v2173, 0
        %v4119 = vsel %vm661, %v2178, 0
        %v4122 = vsel %vm661, %v2183, 0
        %v4125 = vsel %vm661, %v2188, 0
        %v4128 = vsel %vm661, %v2193, 0
        %v4131 = vsel %vm661, %v2198, 0
        %v4134 = vsel %vm661, %v2203, 0
        %v4137 = vsel %vm661, %v2321, 0
        %v4140 = vsel %vm661, %v2326, 0
        %v4143 = vsel %vm661, %v2331, 0
        %v4146 = vsel %vm661, %v2336, 0
        %v4149 = vsel %vm661, %v2341, 0
        %v4152 = vsel %vm661, %v2346, 0
        %v4155 = vsel %vm661, %v2351, 0
        %v4158 = vsel %vm661, %v2356, 0
        %v4161 = vsel %vm661, %v2361, 0
        %v4164 = vsel %vm661, %v2366, 0
        %v4167 = vsel %vm661, %v2371, 0
        %v4170 = vsel %vm661, %v2376, 0
        %v4173 = vsel %vm661, %v2381, 0
        %v4176 = vsel %vm661, %v2386, 0
        %v4179 = vsel %vm661, %v2391, 0
        %v4182 = vsel %vm661, %v2396, 0
        %v4185 = vsel %vm661, %v2514, 0
        %v4188 = vsel %vm661, %v2519, 0
        %v4191 = vsel %vm661, %v2524, 0
        %v4194 = vsel %vm661, %v2529, 0
        %v4197 = vsel %vm661, %v2534, 0
        %v4200 = vsel %vm661, %v2539, 0
        %v4203 = vsel %vm661, %v2544, 0
        %v4206 = vsel %vm661, %v2549, 0
        %v4209 = vsel %vm661, %v2554, 0
        %v4212 = vsel %vm661, %v2559, 0
        %v4215 = vsel %vm661, %v2564, 0
        %v4218 = vsel %vm661, %v2569, 0
        %v4221 = vsel %vm661, %v2574, 0
        %v4224 = vsel %vm661, %v2579, 0
        %v4227 = vsel %vm661, %v2584, 0
        %v4230 = vsel %vm661, %v2589, 0
        %v4233 = vsel %vm661, %v2707, 0
        %v4236 = vsel %vm661, %v2712, 0
        %v4239 = vsel %vm661, %v2717, 0
        %v4242 = vsel %vm661, %v2722, 0
        %v4245 = vsel %vm661, %v2727, 0
        %v4248 = vsel %vm661, %v2732, 0
        %v4251 = vsel %vm661, %v2737, 0
        %v4254 = vsel %vm661, %v2742, 0
        %v4257 = vsel %vm661, %v2747, 0
        %v4260 = vsel %vm661, %v2752, 0
        %v4263 = vsel %vm661, %v2757, 0
        %v4266 = vsel %vm661, %v2762, 0
        %v4269 = vsel %vm661, %v2767, 0
        %v4272 = vsel %vm661, %v2772, 0
        %v4275 = vsel %vm661, %v2777, 0
        %v4278 = vsel %vm661, %v2782, 0
        %v4281 = vsel %vm661, %v2900, 0
        %v4284 = vsel %vm661, %v2905, 0
        %v4287 = vsel %vm661, %v2910, 0
        %v4290 = vsel %vm661, %v2915, 0
        %v4293 = vsel %vm661, %v2920, 0
        %v4296 = vsel %vm661, %v2925, 0
        %v4299 = vsel %vm661, %v2930, 0
        %v4302 = vsel %vm661, %v2935, 0
        %v4305 = vsel %vm661, %v2940, 0
        %v4308 = vsel %vm661, %v2945, 0
        %v4311 = vsel %vm661, %v2950, 0
        %v4314 = vsel %vm661, %v2955, 0
        %v4317 = vsel %vm661, %v2960, 0
        %v4320 = vsel %vm661, %v2965, 0
        %v4323 = vsel %vm661, %v2970, 0
        %v4326 = vsel %vm661, %v2975, 0
        %v4329 = vsel %vm661, %v3093, 0
        %v4332 = vsel %vm661, %v3098, 0
        %v4335 = vsel %vm661, %v3103, 0
        %v4338 = vsel %vm661, %v3108, 0
        %v4341 = vsel %vm661, %v3113, 0
        %v4344 = vsel %vm661, %v3118, 0
        %v4347 = vsel %vm661, %v3123, 0
        %v4350 = vsel %vm661, %v3128, 0
        %v4353 = vsel %vm661, %v3133, 0
        %v4356 = vsel %vm661, %v3138, 0
        %v4359 = vsel %vm661, %v3143, 0
        %v4362 = vsel %vm661, %v3148, 0
        %v4365 = vsel %vm661, %v3153, 0
        %v4368 = vsel %vm661, %v3158, 0
        %v4371 = vsel %vm661, %v3163, 0
        %v4374 = vsel %vm661, %v3168, 0
        %v4377 = vsel %vm661, %v3286, 0
        %v4380 = vsel %vm661, %v3291, 0
        %v4383 = vsel %vm661, %v3296, 0
        %v4386 = vsel %vm661, %v3301, 0
        %v4389 = vsel %vm661, %v3306, 0
        %v4392 = vsel %vm661, %v3311, 0
        %v4395 = vsel %vm661, %v3316, 0
        %v4398 = vsel %vm661, %v3321, 0
        %v4401 = vsel %vm661, %v3326, 0
        %v4404 = vsel %vm661, %v3331, 0
        %v4407 = vsel %vm661, %v3336, 0
        %v4410 = vsel %vm661, %v3341, 0
        %v4413 = vsel %vm661, %v3346, 0
        %v4416 = vsel %vm661, %v3351, 0
        %v4419 = vsel %vm661, %v3356, 0
        %v4422 = vsel %vm661, %v3361, 0
        %v4425 = vsel %vm661, %v3479, 0
        %v4428 = vsel %vm661, %v3484, 0
        %v4431 = vsel %vm661, %v3489, 0
        %v4434 = vsel %vm661, %v3494, 0
        %v4437 = vsel %vm661, %v3499, 0
        %v4440 = vsel %vm661, %v3504, 0
        %v4443 = vsel %vm661, %v3509, 0
        %v4446 = vsel %vm661, %v3514, 0
        %v4449 = vsel %vm661, %v3519, 0
        %v4452 = vsel %vm661, %v3524, 0
        %v4455 = vsel %vm661, %v3529, 0
        %v4458 = vsel %vm661, %v3534, 0
        %v4461 = vsel %vm661, %v3539, 0
        %v4464 = vsel %vm661, %v3544, 0
        %v4467 = vsel %vm661, %v3549, 0
        %v4470 = vsel %vm661, %v3554, 0
        %v4473 = vsel %vm661, %v3672, 0
        %v4476 = vsel %vm661, %v3677, 0
        %v4479 = vsel %vm661, %v3682, 0
        %v4482 = vsel %vm661, %v3687, 0
        %v4485 = vsel %vm661, %v3692, 0
        %v4488 = vsel %vm661, %v3697, 0
        %v4491 = vsel %vm661, %v3702, 0
        %v4494 = vsel %vm661, %v3707, 0
        %v4497 = vsel %vm661, %v3712, 0
        %v4500 = vsel %vm661, %v3717, 0
        %v4503 = vsel %vm661, %v3722, 0
        %v4506 = vsel %vm661, %v3727, 0
        %v4509 = vsel %vm661, %v3732, 0
        %v4512 = vsel %vm661, %v3737, 0
        %v4515 = vsel %vm661, %v3742, 0
        %v4518 = vsel %vm661, %v3747, 0
        %4520 = vmatprep.subr.mxu0 0.0
        %4521 = vmatpush1.msra.mxu0 %v3750
        %4522 = vmatprep.subr.mxu0 0.0
        %4523 = vmatpush1.msra.mxu0 %v3751
        %4524 = vmatprep.subr.mxu0 0.0
        %4525 = vmatpush1.msra.mxu0 0.0
        %4526 = vmatprep.subr.mxu0 0.0
        %4527 = vmatpush1.msra.mxu0 0.0
        %4528 = vmatprep.subr.mxu0 0.0
        %4529 = vmatpush1.msra.mxu0 0.0
        %4530 = vmatprep.subr.mxu0 0.0
        %4531 = vmatpush1.msra.mxu0 0.0
        %4532 = vmatprep.subr.mxu0 0.0
        %4533 = vmatpush1.msra.mxu0 0.0
        %4534 = vmatprep.subr.mxu0 0.0
        %4535 = vmatpush1.msra.mxu0 0.0
        %4536 = vmatprep.subr.mxu0 0.0
        %4537 = vmatpush1.msra.mxu0 0.0
        %4538 = vmatprep.subr.mxu0 0.0
        %4539 = vmatpush1.msra.mxu0 0.0
        %4540 = vmatprep.subr.mxu0 0.0
        %4541 = vmatpush1.msra.mxu0 0.0
        %4542 = vmatprep.subr.mxu0 0.0
        %4543 = vmatpush1.msra.mxu0 0.0
        %4544 = vmatprep.subr.mxu0 0.0
        %4545 = vmatpush1.msra.mxu0 0.0
        %4546 = vmatprep.subr.mxu0 0.0
        %4547 = vmatpush1.msra.mxu0 0.0
        %4548 = vmatprep.subr.mxu0 0.0
        %4549 = vmatpush1.msra.mxu0 0.0
        %4550 = vmatprep.subr.mxu0 0.0
        %4551 = vmatpush1.msra.mxu0 0.0
        %4552 = vmatprep.subr.mxu0 0.0
        %4553 = vmatpush1.msra.mxu0 0.0
        %4554 = vmatprep.subr.mxu0 0.0
        %4555 = vmatpush1.msra.mxu0 0.0
        %4556 = vmatprep.subr.mxu0 0.0
        %4557 = vmatpush1.msra.mxu0 0.0
        %4558 = vmatprep.subr.mxu0 0.0
        %4559 = vmatpush1.msra.mxu0 0.0
        %4560 = vmatprep.subr.mxu0 0.0
        %4561 = vmatpush1.msra.mxu0 0.0
        %4562 = vmatprep.subr.mxu0 0.0
        %4563 = vmatpush1.msra.mxu0 0.0
        %4564 = vmatprep.subr.mxu0 0.0
        %4565 = vmatpush1.msra.mxu0 0.0
        %4566 = vmatprep.subr.mxu0 0.0
        %4567 = vmatpush1.msra.mxu0 0.0
        %4568 = vmatprep.subr.mxu0 0.0
        %4569 = vmatpush1.msra.mxu0 0.0
        %4570 = vmatprep.subr.mxu0 0.0
        %4571 = vmatpush1.msra.mxu0 0.0
        %4572 = vmatprep.subr.mxu0 0.0
        %4573 = vmatpush1.msra.mxu0 0.0
        %4574 = vmatprep.subr.mxu0 0.0
        %4575 = vmatpush1.msra.mxu0 0.0
        %4576 = vmatprep.subr.mxu0 0.0
        %4577 = vmatpush1.msra.mxu0 0.0
        %4578 = vmatprep.subr.mxu0 0.0
        %4579 = vmatpush1.msra.mxu0 0.0
        %4580 = vmatprep.subr.mxu0 0.0
        %4581 = vmatpush1.msra.mxu0 0.0
        %4582 = vmatprep.subr.mxu0 0.0
        %4583 = vmatpush1.msra.mxu0 0.0
        %4584 = vmatprep.mubr.f32.mxu0 0.0
        %4585 = vmatmul.mubr.f32.gmra.mrb[0].mxu0 %v3753
        %v4586 = vpop.f32.mrb[0].mxu0
        %v4587 = vadd.f32 0.0, %v4586
        %v4588 = vpop.f32.mrb[0].mxu0
        %4589 = vmatprep.mubr.f32.mxu0 0.0
        %4590 = vmatmul.mubr.f32.gmra.mrb[0].mxu0 %v3756
        %v4591 = vpop.f32.mrb[0].mxu0
        %v4592 = vadd.f32 0.0, %v4591
        %v4593 = vpop.f32.mrb[0].mxu0
        %4594 = vmatprep.mubr.f32.mxu0 0.0
        %4595 = vmatmul.mubr.f32.gmra.mrb[0].mxu0 %v3759
        %v4596 = vpop.f32.mrb[0].mxu0
        %v4597 = vadd.f32 0.0, %v4596
        %v4598 = vpop.f32.mrb[0].mxu0
        %4599 = vmatprep.mubr.f32.mxu0 0.0
        %4600 = vmatmul.mubr.f32.gmra.mrb[0].mxu0 %v3762
        %v4601 = vpop.f32.mrb[0].mxu0
        %v4602 = vadd.f32 0.0, %v4601
        %v4603 = vpop.f32.mrb[0].mxu0
        %4604 = vmatprep.mubr.f32.mxu0 0.0
        %4605 = vmatmul.mubr.f32.gmra.mrb[0].mxu0 %v3765
        %v4606 = vpop.f32.mrb[0].mxu0
        %v4607 = vadd.f32 0.0, %v4606
        %v4608 = vpop.f32.mrb[0].mxu0
        %4609 = vmatprep.mubr.f32.mxu0 0.0
        %4610 = vmatmul.mubr.f32.gmra.mrb[0].mxu0 %v3768
        %v4611 = vpop.f32.mrb[0].mxu0
        %v4612 = vadd.f32 0.0, %v4611
        %v4613 = vpop.f32.mrb[0].mxu0
        %4614 = vmatprep.mubr.f32.mxu0 0.0
        %4615 = vmatmul.mubr.f32.gmra.mrb[0].mxu0 %v3771
        %v4616 = vpop.f32.mrb[0].mxu0
        %v4617 = vadd.f32 0.0, %v4616
        %v4618 = vpop.f32.mrb[0].mxu0
        %4619 = vmatprep.mubr.f32.mxu0 0.0
        %4620 = vmatmul.mubr.f32.gmra.mrb[0].mxu0 %v3774
        %v4621 = vpop.f32.mrb[0].mxu0
        %v4622 = vadd.f32 0.0, %v4621
        %v4623 = vpop.f32.mrb[0].mxu0
        %4624 = vmatprep.mubr.f32.mxu0 0.0
        %4625 = vmatmul.mubr.f32.gmra.mrb[0].mxu0 %v3777
        %v4626 = vpop.f32.mrb[0].mxu0
        %v4627 = vadd.f32 0.0, %v4626
        %v4628 = vpop.f32.mrb[0].mxu0
        %4629 = vmatprep.mubr.f32.mxu0 0.0
        %4630 = vmatmul.mubr.f32.gmra.mrb[0].mxu0 %v3780
        %v4631 = vpop.f32.mrb[0].mxu0
        %v4632 = vadd.f32 0.0, %v4631
        %v4633 = vpop.f32.mrb[0].mxu0
        %4634 = vmatprep.mubr.f32.mxu0 0.0
        %4635 = vmatmul.mubr.f32.gmra.mrb[0].mxu0 %v3783
        %v4636 = vpop.f32.mrb[0].mxu0
        %v4637 = vadd.f32 0.0, %v4636
        %v4638 = vpop.f32.mrb[0].mxu0
        %4639 = vmatprep.mubr.f32.mxu0 0.0
        %4640 = vmatmul.mubr.f32.gmra.mrb[0].mxu0 %v3786
        %v4641 = vpop.f32.mrb[0].mxu0
        %v4642 = vadd.f32 0.0, %v4641
        %v4643 = vpop.f32.mrb[0].mxu0
        %4644 = vmatprep.mubr.f32.mxu0 0.0
        %4645 = vmatmul.mubr.f32.gmra.mrb[0].mxu0 %v3789
        %v4646 = vpop.f32.mrb[0].mxu0
        %v4647 = vadd.f32 0.0, %v4646
        %v4648 = vpop.f32.mrb[0].mxu0
        %4649 = vmatprep.mubr.f32.mxu0 0.0
        %4650 = vmatmul.mubr.f32.gmra.mrb[0].mxu0 %v3792
        %v4651 = vpop.f32.mrb[0].mxu0
        %v4652 = vadd.f32 0.0, %v4651
        %v4653 = vpop.f32.mrb[0].mxu0
        %4654 = vmatprep.mubr.f32.mxu0 0.0
        %4655 = vmatmul.mubr.f32.gmra.mrb[0].mxu0 %v3795
        %v4656 = vpop.f32.mrb[0].mxu0
        %v4657 = vadd.f32 0.0, %v4656
        %v4658 = vpop.f32.mrb[0].mxu0
        %4659 = vmatprep.mubr.f32.mxu0 0.0
        %4660 = vmatmul.mubr.f32.gmra.mrb[0].mxu0 %v3798
        %v4661 = vpop.f32.mrb[0].mxu0
        %v4662 = vadd.f32 0.0, %v4661
        %v4663 = vpop.f32.mrb[0].mxu0
        %4664 = vmatprep.mubr.f32.mxu0 0.0
        %4665 = vmatmul.mubr.f32.gmra.mrb[0].mxu0 %v3801
        %v4666 = vpop.f32.mrb[0].mxu0
        %v4667 = vadd.f32 0.0, %v4666
        %v4668 = vpop.f32.mrb[0].mxu0
        %4669 = vmatprep.mubr.f32.mxu0 0.0
        %4670 = vmatmul.mubr.f32.gmra.mrb[0].mxu0 %v3804
        %v4671 = vpop.f32.mrb[0].mxu0
        %v4672 = vadd.f32 0.0, %v4671
        %v4673 = vpop.f32.mrb[0].mxu0
        %4674 = vmatprep.mubr.f32.mxu0 0.0
        %4675 = vmatmul.mubr.f32.gmra.mrb[0].mxu0 %v3807
        %v4676 = vpop.f32.mrb[0].mxu0
        %v4677 = vadd.f32 0.0, %v4676
        %v4678 = vpop.f32.mrb[0].mxu0
        %4679 = vmatprep.mubr.f32.mxu0 0.0
        %4680 = vmatmul.mubr.f32.gmra.mrb[0].mxu0 %v3810
        %v4681 = vpop.f32.mrb[0].mxu0
        %v4682 = vadd.f32 0.0, %v4681
        %v4683 = vpop.f32.mrb[0].mxu0
        %4684 = vmatprep.mubr.f32.mxu0 0.0
        %4685 = vmatmul.mubr.f32.gmra.mrb[0].mxu0 %v3813
        %v4686 = vpop.f32.mrb[0].mxu0
        %v4687 = vadd.f32 0.0, %v4686
        %v4688 = vpop.f32.mrb[0].mxu0
        %4689 = vmatprep.mubr.f32.mxu0 0.0
        %4690 = vmatmul.mubr.f32.gmra.mrb[0].mxu0 %v3816
        %v4691 = vpop.f32.mrb[0].mxu0
        %v4692 = vadd.f32 0.0, %v4691
        %v4693 = vpop.f32.mrb[0].mxu0
        %4694 = vmatprep.mubr.f32.mxu0 0.0
        %4695 = vmatmul.mubr.f32.gmra.mrb[0].mxu0 %v3819
        %v4696 = vpop.f32.mrb[0].mxu0
        %v4697 = vadd.f32 0.0, %v4696
        %v4698 = vpop.f32.mrb[0].mxu0
        %4699 = vmatprep.mubr.f32.mxu0 0.0
        %4700 = vmatmul.mubr.f32.gmra.mrb[0].mxu0 %v3822
        %v4701 = vpop.f32.mrb[0].mxu0
        %v4702 = vadd.f32 0.0, %v4701
        %v4703 = vpop.f32.mrb[0].mxu0
        %4704 = vmatprep.mubr.f32.mxu0 0.0
        %4705 = vmatmul.mubr.f32.gmra.mrb[0].mxu0 %v3825
        %v4706 = vpop.f32.mrb[0].mxu0
        %v4707 = vadd.f32 0.0, %v4706
        %v4708 = vpop.f32.mrb[0].mxu0
        %4709 = vmatprep.mubr.f32.mxu0 0.0
        %4710 = vmatmul.mubr.f32.gmra.mrb[0].mxu0 %v3828
        %v4711 = vpop.f32.mrb[0].mxu0
        %v4712 = vadd.f32 0.0, %v4711
        %v4713 = vpop.f32.mrb[0].mxu0
        %4714 = vmatprep.mubr.f32.mxu0 0.0
        %4715 = vmatmul.mubr.f32.gmra.mrb[0].mxu0 %v3831
        %v4716 = vpop.f32.mrb[0].mxu0
        %v4717 = vadd.f32 0.0, %v4716
        %v4718 = vpop.f32.mrb[0].mxu0
        %4719 = vmatprep.mubr.f32.mxu0 0.0
        %4720 = vmatmul.mubr.f32.gmra.mrb[0].mxu0 %v3834
        %v4721 = vpop.f32.mrb[0].mxu0
        %v4722 = vadd.f32 0.0, %v4721
        %v4723 = vpop.f32.mrb[0].mxu0
        %4724 = vmatprep.mubr.f32.mxu0 0.0
        %4725 = vmatmul.mubr.f32.gmra.mrb[0].mxu0 %v3837
        %v4726 = vpop.f32.mrb[0].mxu0
        %v4727 = vadd.f32 0.0, %v4726
        %v4728 = vpop.f32.mrb[0].mxu0
        %4729 = vmatprep.mubr.f32.mxu0 0.0
        %4730 = vmatmul.mubr.f32.gmra.mrb[0].mxu0 %v3840
        %v4731 = vpop.f32.mrb[0].mxu0
        %v4732 = vadd.f32 0.0, %v4731
        %v4733 = vpop.f32.mrb[0].mxu0
        %4734 = vmatprep.mubr.f32.mxu0 0.0
        %4735 = vmatmul.mubr.f32.gmra.mrb[0].mxu0 %v3843
        %v4736 = vpop.f32.mrb[0].mxu0
        %v4737 = vadd.f32 0.0, %v4736
        %v4738 = vpop.f32.mrb[0].mxu0
        %4739 = vmatprep.mubr.f32.mxu0 0.0
        %4740 = vmatmul.mubr.f32.gmra.mrb[0].mxu0 %v3846
        %v4741 = vpop.f32.mrb[0].mxu0
        %v4742 = vadd.f32 0.0, %v4741
        %v4743 = vpop.f32.mrb[0].mxu0
        %4744 = vmatprep.mubr.f32.mxu0 0.0
        %4745 = vmatmul.mubr.f32.gmra.mrb[0].mxu0 %v3849
        %v4746 = vpop.f32.mrb[0].mxu0
        %v4747 = vadd.f32 0.0, %v4746
        %v4748 = vpop.f32.mrb[0].mxu0
        %4749 = vmatprep.mubr.f32.mxu0 0.0
        %4750 = vmatmul.mubr.f32.gmra.mrb[0].mxu0 %v3852
        %v4751 = vpop.f32.mrb[0].mxu0
        %v4752 = vadd.f32 0.0, %v4751
        %v4753 = vpop.f32.mrb[0].mxu0
        %4754 = vmatprep.mubr.f32.mxu0 0.0
        %4755 = vmatmul.mubr.f32.gmra.mrb[0].mxu0 %v3855
        %v4756 = vpop.f32.mrb[0].mxu0
        %v4757 = vadd.f32 0.0, %v4756
        %v4758 = vpop.f32.mrb[0].mxu0
        %4759 = vmatprep.mubr.f32.mxu0 0.0
        %4760 = vmatmul.mubr.f32.gmra.mrb[0].mxu0 %v3858
        %v4761 = vpop.f32.mrb[0].mxu0
        %v4762 = vadd.f32 0.0, %v4761
        %v4763 = vpop.f32.mrb[0].mxu0
        %4764 = vmatprep.mubr.f32.mxu0 0.0
        %4765 = vmatmul.mubr.f32.gmra.mrb[0].mxu0 %v3861
        %v4766 = vpop.f32.mrb[0].mxu0
        %v4767 = vadd.f32 0.0, %v4766
        %v4768 = vpop.f32.mrb[0].mxu0
        %4769 = vmatprep.mubr.f32.mxu0 0.0
        %4770 = vmatmul.mubr.f32.gmra.mrb[0].mxu0 %v3864
        %v4771 = vpop.f32.mrb[0].mxu0
        %v4772 = vadd.f32 0.0, %v4771
        %v4773 = vpop.f32.mrb[0].mxu0
        %4774 = vmatprep.mubr.f32.mxu0 0.0
        %4775 = vmatmul.mubr.f32.gmra.mrb[0].mxu0 %v3867
        %v4776 = vpop.f32.mrb[0].mxu0
        %v4777 = vadd.f32 0.0, %v4776
        %v4778 = vpop.f32.mrb[0].mxu0
        %4779 = vmatprep.mubr.f32.mxu0 0.0
        %4780 = vmatmul.mubr.f32.gmra.mrb[0].mxu0 %v3870
        %v4781 = vpop.f32.mrb[0].mxu0
        %v4782 = vadd.f32 0.0, %v4781
        %v4783 = vpop.f32.mrb[0].mxu0
        %4784 = vmatprep.mubr.f32.mxu0 0.0
        %4785 = vmatmul.mubr.f32.gmra.mrb[0].mxu0 %v3873
        %v4786 = vpop.f32.mrb[0].mxu0
        %v4787 = vadd.f32 0.0, %v4786
        %v4788 = vpop.f32.mrb[0].mxu0
        %4789 = vmatprep.mubr.f32.mxu0 0.0
        %4790 = vmatmul.mubr.f32.gmra.mrb[0].mxu0 %v3876
        %v4791 = vpop.f32.mrb[0].mxu0
        %v4792 = vadd.f32 0.0, %v4791
        %v4793 = vpop.f32.mrb[0].mxu0
        %4794 = vmatprep.mubr.f32.mxu0 0.0
        %4795 = vmatmul.mubr.f32.gmra.mrb[0].mxu0 %v3879
        %v4796 = vpop.f32.mrb[0].mxu0
        %v4797 = vadd.f32 0.0, %v4796
        %v4798 = vpop.f32.mrb[0].mxu0
        %4799 = vmatprep.mubr.f32.mxu0 0.0
        %4800 = vmatmul.mubr.f32.gmra.mrb[0].mxu0 %v3882
        %v4801 = vpop.f32.mrb[0].mxu0
        %v4802 = vadd.f32 0.0, %v4801
        %v4803 = vpop.f32.mrb[0].mxu0
        %4804 = vmatprep.mubr.f32.mxu0 0.0
        %4805 = vmatmul.mubr.f32.gmra.mrb[0].mxu0 %v3885
        %v4806 = vpop.f32.mrb[0].mxu0
        %v4807 = vadd.f32 0.0, %v4806
        %v4808 = vpop.f32.mrb[0].mxu0
        %4809 = vmatprep.mubr.f32.mxu0 0.0
        %4810 = vmatmul.mubr.f32.gmra.mrb[0].mxu0 %v3888
        %v4811 = vpop.f32.mrb[0].mxu0
        %v4812 = vadd.f32 0.0, %v4811
        %v4813 = vpop.f32.mrb[0].mxu0
        %4814 = vmatprep.mubr.f32.mxu0 0.0
        %4815 = vmatmul.mubr.f32.gmra.mrb[0].mxu0 %v3891
        %v4816 = vpop.f32.mrb[0].mxu0
        %v4817 = vadd.f32 0.0, %v4816
        %v4818 = vpop.f32.mrb[0].mxu0
        %4819 = vmatprep.mubr.f32.mxu0 0.0
        %4820 = vmatmul.mubr.f32.gmra.mrb[0].mxu0 %v3894
        %v4821 = vpop.f32.mrb[0].mxu0
        %v4822 = vadd.f32 0.0, %v4821
        %v4823 = vpop.f32.mrb[0].mxu0
        %4824 = vmatprep.mubr.f32.mxu0 0.0
        %4825 = vmatmul.mubr.f32.gmra.mrb[0].mxu0 %v3897
        %v4826 = vpop.f32.mrb[0].mxu0
        %v4827 = vadd.f32 0.0, %v4826
        %v4828 = vpop.f32.mrb[0].mxu0
        %4829 = vmatprep.mubr.f32.mxu0 0.0
        %4830 = vmatmul.mubr.f32.gmra.mrb[0].mxu0 %v3900
        %v4831 = vpop.f32.mrb[0].mxu0
        %v4832 = vadd.f32 0.0, %v4831
        %v4833 = vpop.f32.mrb[0].mxu0
        %4834 = vmatprep.mubr.f32.mxu0 0.0
        %4835 = vmatmul.mubr.f32.gmra.mrb[0].mxu0 %v3903
        %v4836 = vpop.f32.mrb[0].mxu0
        %v4837 = vadd.f32 0.0, %v4836
        %v4838 = vpop.f32.mrb[0].mxu0
        %4839 = vmatprep.mubr.f32.mxu0 0.0
        %4840 = vmatmul.mubr.f32.gmra.mrb[0].mxu0 %v3906
        %v4841 = vpop.f32.mrb[0].mxu0
        %v4842 = vadd.f32 0.0, %v4841
        %v4843 = vpop.f32.mrb[0].mxu0
        %4844 = vmatprep.mubr.f32.mxu0 0.0
        %4845 = vmatmul.mubr.f32.gmra.mrb[0].mxu0 %v3909
        %v4846 = vpop.f32.mrb[0].mxu0
        %v4847 = vadd.f32 0.0, %v4846
        %v4848 = vpop.f32.mrb[0].mxu0
        %4849 = vmatprep.mubr.f32.mxu0 0.0
        %4850 = vmatmul.mubr.f32.gmra.mrb[0].mxu0 %v3912
        %v4851 = vpop.f32.mrb[0].mxu0
        %v4852 = vadd.f32 0.0, %v4851
        %v4853 = vpop.f32.mrb[0].mxu0
        %4854 = vmatprep.mubr.f32.mxu0 0.0
        %4855 = vmatmul.mubr.f32.gmra.mrb[0].mxu0 %v3915
        %v4856 = vpop.f32.mrb[0].mxu0
        %v4857 = vadd.f32 0.0, %v4856
        %v4858 = vpop.f32.mrb[0].mxu0
        %4859 = vmatprep.mubr.f32.mxu0 0.0
        %4860 = vmatmul.mubr.f32.gmra.mrb[0].mxu0 %v3918
        %v4861 = vpop.f32.mrb[0].mxu0
        %v4862 = vadd.f32 0.0, %v4861
        %v4863 = vpop.f32.mrb[0].mxu0
        %4864 = vmatprep.mubr.f32.mxu0 0.0
        %4865 = vmatmul.mubr.f32.gmra.mrb[0].mxu0 %v3921
        %v4866 = vpop.f32.mrb[0].mxu0
        %v4867 = vadd.f32 0.0, %v4866
        %v4868 = vpop.f32.mrb[0].mxu0
        %4869 = vmatprep.mubr.f32.mxu0 0.0
        %4870 = vmatmul.mubr.f32.gmra.mrb[0].mxu0 %v3924
        %v4871 = vpop.f32.mrb[0].mxu0
        %v4872 = vadd.f32 0.0, %v4871
        %v4873 = vpop.f32.mrb[0].mxu0
        %4874 = vmatprep.mubr.f32.mxu0 0.0
        %4875 = vmatmul.mubr.f32.gmra.mrb[0].mxu0 %v3927
        %v4876 = vpop.f32.mrb[0].mxu0
        %v4877 = vadd.f32 0.0, %v4876
        %v4878 = vpop.f32.mrb[0].mxu0
        %4879 = vmatprep.mubr.f32.mxu0 0.0
        %4880 = vmatmul.mubr.f32.gmra.mrb[0].mxu0 %v3930
        %v4881 = vpop.f32.mrb[0].mxu0
        %v4882 = vadd.f32 0.0, %v4881
        %v4883 = vpop.f32.mrb[0].mxu0
        %4884 = vmatprep.mubr.f32.mxu0 0.0
        %4885 = vmatmul.mubr.f32.gmra.mrb[0].mxu0 %v3933
        %v4886 = vpop.f32.mrb[0].mxu0
        %v4887 = vadd.f32 0.0, %v4886
        %v4888 = vpop.f32.mrb[0].mxu0
        %4889 = vmatprep.mubr.f32.mxu0 0.0
        %4890 = vmatmul.mubr.f32.gmra.mrb[0].mxu0 %v3936
        %v4891 = vpop.f32.mrb[0].mxu0
        %v4892 = vadd.f32 0.0, %v4891
        %v4893 = vpop.f32.mrb[0].mxu0
        %4894 = vmatprep.mubr.f32.mxu0 0.0
        %4895 = vmatmul.mubr.f32.gmra.mrb[0].mxu0 %v3939
        %v4896 = vpop.f32.mrb[0].mxu0
        %v4897 = vadd.f32 0.0, %v4896
        %v4898 = vpop.f32.mrb[0].mxu0
        %4899 = vmatprep.mubr.f32.mxu0 0.0
        %4900 = vmatmul.mubr.f32.gmra.mrb[0].mxu0 %v3942
        %v4901 = vpop.f32.mrb[0].mxu0
        %v4902 = vadd.f32 0.0, %v4901
        %v4903 = vpop.f32.mrb[0].mxu0
        %4904 = vmatprep.mubr.f32.mxu0 0.0
        %4905 = vmatmul.mubr.f32.gmra.mrb[0].mxu0 %v3945
        %v4906 = vpop.f32.mrb[0].mxu0
        %v4907 = vadd.f32 0.0, %v4906
        %v4908 = vpop.f32.mrb[0].mxu0
        %4909 = vmatprep.mubr.f32.mxu0 0.0
        %4910 = vmatmul.mubr.f32.gmra.mrb[0].mxu0 %v3948
        %v4911 = vpop.f32.mrb[0].mxu0
        %v4912 = vadd.f32 0.0, %v4911
        %v4913 = vpop.f32.mrb[0].mxu0
        %4914 = vmatprep.mubr.f32.mxu0 0.0
        %4915 = vmatmul.mubr.f32.gmra.mrb[0].mxu0 %v3951
        %v4916 = vpop.f32.mrb[0].mxu0
        %v4917 = vadd.f32 0.0, %v4916
        %v4918 = vpop.f32.mrb[0].mxu0
        %4919 = vmatprep.mubr.f32.mxu0 0.0
        %4920 = vmatmul.mubr.f32.gmra.mrb[0].mxu0 %v3954
        %v4921 = vpop.f32.mrb[0].mxu0
        %v4922 = vadd.f32 0.0, %v4921
        %v4923 = vpop.f32.mrb[0].mxu0
        %4924 = vmatprep.mubr.f32.mxu0 0.0
        %4925 = vmatmul.mubr.f32.gmra.mrb[0].mxu0 %v3957
        %v4926 = vpop.f32.mrb[0].mxu0
        %v4927 = vadd.f32 0.0, %v4926
        %v4928 = vpop.f32.mrb[0].mxu0
        %4929 = vmatprep.mubr.f32.mxu0 0.0
        %4930 = vmatmul.mubr.f32.gmra.mrb[0].mxu0 %v3960
        %v4931 = vpop.f32.mrb[0].mxu0
        %v4932 = vadd.f32 0.0, %v4931
        %v4933 = vpop.f32.mrb[0].mxu0
        %4934 = vmatprep.mubr.f32.mxu0 0.0
        %4935 = vmatmul.mubr.f32.gmra.mrb[0].mxu0 %v3963
        %v4936 = vpop.f32.mrb[0].mxu0
        %v4937 = vadd.f32 0.0, %v4936
        %v4938 = vpop.f32.mrb[0].mxu0
        %4939 = vmatprep.mubr.f32.mxu0 0.0
        %4940 = vmatmul.mubr.f32.gmra.mrb[0].mxu0 %v3966
        %v4941 = vpop.f32.mrb[0].mxu0
        %v4942 = vadd.f32 0.0, %v4941
        %v4943 = vpop.f32.mrb[0].mxu0
        %4944 = vmatprep.mubr.f32.mxu0 0.0
        %4945 = vmatmul.mubr.f32.gmra.mrb[0].mxu0 %v3969
        %v4946 = vpop.f32.mrb[0].mxu0
        %v4947 = vadd.f32 0.0, %v4946
        %v4948 = vpop.f32.mrb[0].mxu0
        %4949 = vmatprep.mubr.f32.mxu0 0.0
        %4950 = vmatmul.mubr.f32.gmra.mrb[0].mxu0 %v3972
        %v4951 = vpop.f32.mrb[0].mxu0
        %v4952 = vadd.f32 0.0, %v4951
        %v4953 = vpop.f32.mrb[0].mxu0
        %4954 = vmatprep.mubr.f32.mxu0 0.0
        %4955 = vmatmul.mubr.f32.gmra.mrb[0].mxu0 %v3975
        %v4956 = vpop.f32.mrb[0].mxu0
        %v4957 = vadd.f32 0.0, %v4956
        %v4958 = vpop.f32.mrb[0].mxu0
        %4959 = vmatprep.mubr.f32.mxu0 0.0
        %4960 = vmatmul.mubr.f32.gmra.mrb[0].mxu0 %v3978
        %v4961 = vpop.f32.mrb[0].mxu0
        %v4962 = vadd.f32 0.0, %v4961
        %v4963 = vpop.f32.mrb[0].mxu0
        %4964 = vmatprep.mubr.f32.mxu0 0.0
        %4965 = vmatmul.mubr.f32.gmra.mrb[0].mxu0 %v3981
        %v4966 = vpop.f32.mrb[0].mxu0
        %v4967 = vadd.f32 0.0, %v4966
        %v4968 = vpop.f32.mrb[0].mxu0
        %4969 = vmatprep.mubr.f32.mxu0 0.0
        %4970 = vmatmul.mubr.f32.gmra.mrb[0].mxu0 %v3984
        %v4971 = vpop.f32.mrb[0].mxu0
        %v4972 = vadd.f32 0.0, %v4971
        %v4973 = vpop.f32.mrb[0].mxu0
        %4974 = vmatprep.mubr.f32.mxu0 0.0
        %4975 = vmatmul.mubr.f32.gmra.mrb[0].mxu0 %v3987
        %v4976 = vpop.f32.mrb[0].mxu0
        %v4977 = vadd.f32 0.0, %v4976
        %v4978 = vpop.f32.mrb[0].mxu0
        %4979 = vmatprep.mubr.f32.mxu0 0.0
        %4980 = vmatmul.mubr.f32.gmra.mrb[0].mxu0 %v3990
        %v4981 = vpop.f32.mrb[0].mxu0
        %v4982 = vadd.f32 0.0, %v4981
        %v4983 = vpop.f32.mrb[0].mxu0
        %4984 = vmatprep.mubr.f32.mxu0 0.0
        %4985 = vmatmul.mubr.f32.gmra.mrb[0].mxu0 %v3993
        %v4986 = vpop.f32.mrb[0].mxu0
        %v4987 = vadd.f32 0.0, %v4986
        %v4988 = vpop.f32.mrb[0].mxu0
        %4989 = vmatprep.mubr.f32.mxu0 0.0
        %4990 = vmatmul.mubr.f32.gmra.mrb[0].mxu0 %v3996
        %v4991 = vpop.f32.mrb[0].mxu0
        %v4992 = vadd.f32 0.0, %v4991
        %v4993 = vpop.f32.mrb[0].mxu0
        %4994 = vmatprep.mubr.f32.mxu0 0.0
        %4995 = vmatmul.mubr.f32.gmra.mrb[0].mxu0 %v3999
        %v4996 = vpop.f32.mrb[0].mxu0
        %v4997 = vadd.f32 0.0, %v4996
        %v4998 = vpop.f32.mrb[0].mxu0
        %4999 = vmatprep.mubr.f32.mxu0 0.0
        %5000 = vmatmul.mubr.f32.gmra.mrb[0].mxu0 %v4002
        %v5001 = vpop.f32.mrb[0].mxu0
        %v5002 = vadd.f32 0.0, %v5001
        %v5003 = vpop.f32.mrb[0].mxu0
        %5004 = vmatprep.mubr.f32.mxu0 0.0
        %5005 = vmatmul.mubr.f32.gmra.mrb[0].mxu0 %v4005
        %v5006 = vpop.f32.mrb[0].mxu0
        %v5007 = vadd.f32 0.0, %v5006
        %v5008 = vpop.f32.mrb[0].mxu0
        %5009 = vmatprep.mubr.f32.mxu0 0.0
        %5010 = vmatmul.mubr.f32.gmra.mrb[0].mxu0 %v4008
        %v5011 = vpop.f32.mrb[0].mxu0
        %v5012 = vadd.f32 0.0, %v5011
        %v5013 = vpop.f32.mrb[0].mxu0
        %5014 = vmatprep.mubr.f32.mxu0 0.0
        %5015 = vmatmul.mubr.f32.gmra.mrb[0].mxu0 %v4011
        %v5016 = vpop.f32.mrb[0].mxu0
        %v5017 = vadd.f32 0.0, %v5016
        %v5018 = vpop.f32.mrb[0].mxu0
        %5019 = vmatprep.mubr.f32.mxu0 0.0
        %5020 = vmatmul.mubr.f32.gmra.mrb[0].mxu0 %v4014
        %v5021 = vpop.f32.mrb[0].mxu0
        %v5022 = vadd.f32 0.0, %v5021
        %v5023 = vpop.f32.mrb[0].mxu0
        %5024 = vmatprep.mubr.f32.mxu0 0.0
        %5025 = vmatmul.mubr.f32.gmra.mrb[0].mxu0 %v4017
        %v5026 = vpop.f32.mrb[0].mxu0
        %v5027 = vadd.f32 0.0, %v5026
        %v5028 = vpop.f32.mrb[0].mxu0
        %5029 = vmatprep.mubr.f32.mxu0 0.0
        %5030 = vmatmul.mubr.f32.gmra.mrb[0].mxu0 %v4020
        %v5031 = vpop.f32.mrb[0].mxu0
        %v5032 = vadd.f32 0.0, %v5031
        %v5033 = vpop.f32.mrb[0].mxu0
        %5034 = vmatprep.mubr.f32.mxu0 0.0
        %5035 = vmatmul.mubr.f32.gmra.mrb[0].mxu0 %v4023
        %v5036 = vpop.f32.mrb[0].mxu0
        %v5037 = vadd.f32 0.0, %v5036
        %v5038 = vpop.f32.mrb[0].mxu0
        %5039 = vmatprep.mubr.f32.mxu0 0.0
        %5040 = vmatmul.mubr.f32.gmra.mrb[0].mxu0 %v4026
        %v5041 = vpop.f32.mrb[0].mxu0
        %v5042 = vadd.f32 0.0, %v5041
        %v5043 = vpop.f32.mrb[0].mxu0
        %5044 = vmatprep.mubr.f32.mxu0 0.0
        %5045 = vmatmul.mubr.f32.gmra.mrb[0].mxu0 %v4029
        %v5046 = vpop.f32.mrb[0].mxu0
        %v5047 = vadd.f32 0.0, %v5046
        %v5048 = vpop.f32.mrb[0].mxu0
        %5049 = vmatprep.mubr.f32.mxu0 0.0
        %5050 = vmatmul.mubr.f32.gmra.mrb[0].mxu0 %v4032
        %v5051 = vpop.f32.mrb[0].mxu0
        %v5052 = vadd.f32 0.0, %v5051
        %v5053 = vpop.f32.mrb[0].mxu0
        %5054 = vmatprep.mubr.f32.mxu0 0.0
        %5055 = vmatmul.mubr.f32.gmra.mrb[0].mxu0 %v4035
        %v5056 = vpop.f32.mrb[0].mxu0
        %v5057 = vadd.f32 0.0, %v5056
        %v5058 = vpop.f32.mrb[0].mxu0
        %5059 = vmatprep.mubr.f32.mxu0 0.0
        %5060 = vmatmul.mubr.f32.gmra.mrb[0].mxu0 %v4038
        %v5061 = vpop.f32.mrb[0].mxu0
        %v5062 = vadd.f32 0.0, %v5061
        %v5063 = vpop.f32.mrb[0].mxu0
        %5064 = vmatprep.mubr.f32.mxu0 0.0
        %5065 = vmatmul.mubr.f32.gmra.mrb[0].mxu0 %v4041
        %v5066 = vpop.f32.mrb[0].mxu0
        %v5067 = vadd.f32 0.0, %v5066
        %v5068 = vpop.f32.mrb[0].mxu0
        %5069 = vmatprep.mubr.f32.mxu0 0.0
        %5070 = vmatmul.mubr.f32.gmra.mrb[0].mxu0 %v4044
        %v5071 = vpop.f32.mrb[0].mxu0
        %v5072 = vadd.f32 0.0, %v5071
        %v5073 = vpop.f32.mrb[0].mxu0
        %5074 = vmatprep.mubr.f32.mxu0 0.0
        %5075 = vmatmul.mubr.f32.gmra.mrb[0].mxu0 %v4047
        %v5076 = vpop.f32.mrb[0].mxu0
        %v5077 = vadd.f32 0.0, %v5076
        %v5078 = vpop.f32.mrb[0].mxu0
        %5079 = vmatprep.mubr.f32.mxu0 0.0
        %5080 = vmatmul.mubr.f32.gmra.mrb[0].mxu0 %v4050
        %v5081 = vpop.f32.mrb[0].mxu0
        %v5082 = vadd.f32 0.0, %v5081
        %v5083 = vpop.f32.mrb[0].mxu0
        %5084 = vmatprep.mubr.f32.mxu0 0.0
        %5085 = vmatmul.mubr.f32.gmra.mrb[0].mxu0 %v4053
        %v5086 = vpop.f32.mrb[0].mxu0
        %v5087 = vadd.f32 0.0, %v5086
        %v5088 = vpop.f32.mrb[0].mxu0
        %5089 = vmatprep.mubr.f32.mxu0 0.0
        %5090 = vmatmul.mubr.f32.gmra.mrb[0].mxu0 %v4056
        %v5091 = vpop.f32.mrb[0].mxu0
        %v5092 = vadd.f32 0.0, %v5091
        %v5093 = vpop.f32.mrb[0].mxu0
        %5094 = vmatprep.mubr.f32.mxu0 0.0
        %5095 = vmatmul.mubr.f32.gmra.mrb[0].mxu0 %v4059
        %v5096 = vpop.f32.mrb[0].mxu0
        %v5097 = vadd.f32 0.0, %v5096
        %v5098 = vpop.f32.mrb[0].mxu0
        %5099 = vmatprep.mubr.f32.mxu0 0.0
        %5100 = vmatmul.mubr.f32.gmra.mrb[0].mxu0 %v4062
        %v5101 = vpop.f32.mrb[0].mxu0
        %v5102 = vadd.f32 0.0, %v5101
        %v5103 = vpop.f32.mrb[0].mxu0
        %5104 = vmatprep.mubr.f32.mxu0 0.0
        %5105 = vmatmul.mubr.f32.gmra.mrb[0].mxu0 %v4065
        %v5106 = vpop.f32.mrb[0].mxu0
        %v5107 = vadd.f32 0.0, %v5106
        %v5108 = vpop.f32.mrb[0].mxu0
        %5109 = vmatprep.mubr.f32.mxu0 0.0
        %5110 = vmatmul.mubr.f32.gmra.mrb[0].mxu0 %v4068
        %v5111 = vpop.f32.mrb[0].mxu0
        %v5112 = vadd.f32 0.0, %v5111
        %v5113 = vpop.f32.mrb[0].mxu0
        %5114 = vmatprep.mubr.f32.mxu0 0.0
        %5115 = vmatmul.mubr.f32.gmra.mrb[0].mxu0 %v4071
        %v5116 = vpop.f32.mrb[0].mxu0
        %v5117 = vadd.f32 0.0, %v5116
        %v5118 = vpop.f32.mrb[0].mxu0
        %5119 = vmatprep.mubr.f32.mxu0 0.0
        %5120 = vmatmul.mubr.f32.gmra.mrb[0].mxu0 %v4074
        %v5121 = vpop.f32.mrb[0].mxu0
        %v5122 = vadd.f32 0.0, %v5121
        %v5123 = vpop.f32.mrb[0].mxu0
        %5124 = vmatprep.mubr.f32.mxu0 0.0
        %5125 = vmatmul.mubr.f32.gmra.mrb[0].mxu0 %v4077
        %v5126 = vpop.f32.mrb[0].mxu0
        %v5127 = vadd.f32 0.0, %v5126
        %v5128 = vpop.f32.mrb[0].mxu0
        %5129 = vmatprep.mubr.f32.mxu0 0.0
        %5130 = vmatmul.mubr.f32.gmra.mrb[0].mxu0 %v4080
        %v5131 = vpop.f32.mrb[0].mxu0
        %v5132 = vadd.f32 0.0, %v5131
        %v5133 = vpop.f32.mrb[0].mxu0
        %5134 = vmatprep.mubr.f32.mxu0 0.0
        %5135 = vmatmul.mubr.f32.gmra.mrb[0].mxu0 %v4083
        %v5136 = vpop.f32.mrb[0].mxu0
        %v5137 = vadd.f32 0.0, %v5136
        %v5138 = vpop.f32.mrb[0].mxu0
        %5139 = vmatprep.mubr.f32.mxu0 0.0
        %5140 = vmatmul.mubr.f32.gmra.mrb[0].mxu0 %v4086
        %v5141 = vpop.f32.mrb[0].mxu0
        %v5142 = vadd.f32 0.0, %v5141
        %v5143 = vpop.f32.mrb[0].mxu0
        %5144 = vmatprep.mubr.f32.mxu0 0.0
        %5145 = vmatmul.mubr.f32.gmra.mrb[0].mxu0 %v4089
        %v5146 = vpop.f32.mrb[0].mxu0
        %v5147 = vadd.f32 0.0, %v5146
        %v5148 = vpop.f32.mrb[0].mxu0
        %5149 = vmatprep.mubr.f32.mxu0 0.0
        %5150 = vmatmul.mubr.f32.gmra.mrb[0].mxu0 %v4092
        %v5151 = vpop.f32.mrb[0].mxu0
        %v5152 = vadd.f32 0.0, %v5151
        %v5153 = vpop.f32.mrb[0].mxu0
        %5154 = vmatprep.mubr.f32.mxu0 0.0
        %5155 = vmatmul.mubr.f32.gmra.mrb[0].mxu0 %v4095
        %v5156 = vpop.f32.mrb[0].mxu0
        %v5157 = vadd.f32 0.0, %v5156
        %v5158 = vpop.f32.mrb[0].mxu0
        %5159 = vmatprep.mubr.f32.mxu0 0.0
        %5160 = vmatmul.mubr.f32.gmra.mrb[0].mxu0 %v4098
        %v5161 = vpop.f32.mrb[0].mxu0
        %v5162 = vadd.f32 0.0, %v5161
        %v5163 = vpop.f32.mrb[0].mxu0
        %5164 = vmatprep.mubr.f32.mxu0 0.0
        %5165 = vmatmul.mubr.f32.gmra.mrb[0].mxu0 %v4101
        %v5166 = vpop.f32.mrb[0].mxu0
        %v5167 = vadd.f32 0.0, %v5166
        %v5168 = vpop.f32.mrb[0].mxu0
        %5169 = vmatprep.mubr.f32.mxu0 0.0
        %5170 = vmatmul.mubr.f32.gmra.mrb[0].mxu0 %v4104
        %v5171 = vpop.f32.mrb[0].mxu0
        %v5172 = vadd.f32 0.0, %v5171
        %v5173 = vpop.f32.mrb[0].mxu0
        %5174 = vmatprep.mubr.f32.mxu0 0.0
        %5175 = vmatmul.mubr.f32.gmra.mrb[0].mxu0 %v4107
        %v5176 = vpop.f32.mrb[0].mxu0
        %v5177 = vadd.f32 0.0, %v5176
        %v5178 = vpop.f32.mrb[0].mxu0
        %5179 = vmatprep.mubr.f32.mxu0 0.0
        %5180 = vmatmul.mubr.f32.gmra.mrb[0].mxu0 %v4110
        %v5181 = vpop.f32.mrb[0].mxu0
        %v5182 = vadd.f32 0.0, %v5181
        %v5183 = vpop.f32.mrb[0].mxu0
        %5184 = vmatprep.mubr.f32.mxu0 0.0
        %5185 = vmatmul.mubr.f32.gmra.mrb[0].mxu0 %v4113
        %v5186 = vpop.f32.mrb[0].mxu0
        %v5187 = vadd.f32 0.0, %v5186
        %v5188 = vpop.f32.mrb[0].mxu0
        %5189 = vmatprep.mubr.f32.mxu0 0.0
        %5190 = vmatmul.mubr.f32.gmra.mrb[0].mxu0 %v4116
        %v5191 = vpop.f32.mrb[0].mxu0
        %v5192 = vadd.f32 0.0, %v5191
        %v5193 = vpop.f32.mrb[0].mxu0
        %5194 = vmatprep.mubr.f32.mxu0 0.0
        %5195 = vmatmul.mubr.f32.gmra.mrb[0].mxu0 %v4119
        %v5196 = vpop.f32.mrb[0].mxu0
        %v5197 = vadd.f32 0.0, %v5196
        %v5198 = vpop.f32.mrb[0].mxu0
        %5199 = vmatprep.mubr.f32.mxu0 0.0
        %5200 = vmatmul.mubr.f32.gmra.mrb[0].mxu0 %v4122
        %v5201 = vpop.f32.mrb[0].mxu0
        %v5202 = vadd.f32 0.0, %v5201
        %v5203 = vpop.f32.mrb[0].mxu0
        %5204 = vmatprep.mubr.f32.mxu0 0.0
        %5205 = vmatmul.mubr.f32.gmra.mrb[0].mxu0 %v4125
        %v5206 = vpop.f32.mrb[0].mxu0
        %v5207 = vadd.f32 0.0, %v5206
        %v5208 = vpop.f32.mrb[0].mxu0
        %5209 = vmatprep.mubr.f32.mxu0 0.0
        %5210 = vmatmul.mubr.f32.gmra.mrb[0].mxu0 %v4128
        %v5211 = vpop.f32.mrb[0].mxu0
        %v5212 = vadd.f32 0.0, %v5211
        %v5213 = vpop.f32.mrb[0].mxu0
        %5214 = vmatprep.mubr.f32.mxu0 0.0
        %5215 = vmatmul.mubr.f32.gmra.mrb[0].mxu0 %v4131
        %v5216 = vpop.f32.mrb[0].mxu0
        %v5217 = vadd.f32 0.0, %v5216
        %v5218 = vpop.f32.mrb[0].mxu0
        %5219 = vmatprep.mubr.f32.mxu0 0.0
        %5220 = vmatmul.mubr.f32.gmra.mrb[0].mxu0 %v4134
        %v5221 = vpop.f32.mrb[0].mxu0
        %v5222 = vadd.f32 0.0, %v5221
        %v5223 = vpop.f32.mrb[0].mxu0
        %5224 = vmatprep.mubr.f32.mxu0 0.0
        %5225 = vmatmul.mubr.f32.gmra.mrb[0].mxu0 %v4137
        %v5226 = vpop.f32.mrb[0].mxu0
        %v5227 = vadd.f32 0.0, %v5226
        %v5228 = vpop.f32.mrb[0].mxu0
        %5229 = vmatprep.mubr.f32.mxu0 0.0
        %5230 = vmatmul.mubr.f32.gmra.mrb[0].mxu0 %v4140
        %v5231 = vpop.f32.mrb[0].mxu0
        %v5232 = vadd.f32 0.0, %v5231
        %v5233 = vpop.f32.mrb[0].mxu0
        %5234 = vmatprep.mubr.f32.mxu0 0.0
        %5235 = vmatmul.mubr.f32.gmra.mrb[0].mxu0 %v4143
        %v5236 = vpop.f32.mrb[0].mxu0
        %v5237 = vadd.f32 0.0, %v5236
        %v5238 = vpop.f32.mrb[0].mxu0
        %5239 = vmatprep.mubr.f32.mxu0 0.0
        %5240 = vmatmul.mubr.f32.gmra.mrb[0].mxu0 %v4146
        %v5241 = vpop.f32.mrb[0].mxu0
        %v5242 = vadd.f32 0.0, %v5241
        %v5243 = vpop.f32.mrb[0].mxu0
        %5244 = vmatprep.mubr.f32.mxu0 0.0
        %5245 = vmatmul.mubr.f32.gmra.mrb[0].mxu0 %v4149
        %v5246 = vpop.f32.mrb[0].mxu0
        %v5247 = vadd.f32 0.0, %v5246
        %v5248 = vpop.f32.mrb[0].mxu0
        %5249 = vmatprep.mubr.f32.mxu0 0.0
        %5250 = vmatmul.mubr.f32.gmra.mrb[0].mxu0 %v4152
        %v5251 = vpop.f32.mrb[0].mxu0
        %v5252 = vadd.f32 0.0, %v5251
        %v5253 = vpop.f32.mrb[0].mxu0
        %5254 = vmatprep.mubr.f32.mxu0 0.0
        %5255 = vmatmul.mubr.f32.gmra.mrb[0].mxu0 %v4155
        %v5256 = vpop.f32.mrb[0].mxu0
        %v5257 = vadd.f32 0.0, %v5256
        %v5258 = vpop.f32.mrb[0].mxu0
        %5259 = vmatprep.mubr.f32.mxu0 0.0
        %5260 = vmatmul.mubr.f32.gmra.mrb[0].mxu0 %v4158
        %v5261 = vpop.f32.mrb[0].mxu0
        %v5262 = vadd.f32 0.0, %v5261
        %v5263 = vpop.f32.mrb[0].mxu0
        %5264 = vmatprep.mubr.f32.mxu0 0.0
        %5265 = vmatmul.mubr.f32.gmra.mrb[0].mxu0 %v4161
        %v5266 = vpop.f32.mrb[0].mxu0
        %v5267 = vadd.f32 0.0, %v5266
        %v5268 = vpop.f32.mrb[0].mxu0
        %5269 = vmatprep.mubr.f32.mxu0 0.0
        %5270 = vmatmul.mubr.f32.gmra.mrb[0].mxu0 %v4164
        %v5271 = vpop.f32.mrb[0].mxu0
        %v5272 = vadd.f32 0.0, %v5271
        %v5273 = vpop.f32.mrb[0].mxu0
        %5274 = vmatprep.mubr.f32.mxu0 0.0
        %5275 = vmatmul.mubr.f32.gmra.mrb[0].mxu0 %v4167
        %v5276 = vpop.f32.mrb[0].mxu0
        %v5277 = vadd.f32 0.0, %v5276
        %v5278 = vpop.f32.mrb[0].mxu0
        %5279 = vmatprep.mubr.f32.mxu0 0.0
        %5280 = vmatmul.mubr.f32.gmra.mrb[0].mxu0 %v4170
        %v5281 = vpop.f32.mrb[0].mxu0
        %v5282 = vadd.f32 0.0, %v5281
        %v5283 = vpop.f32.mrb[0].mxu0
        %5284 = vmatprep.mubr.f32.mxu0 0.0
        %5285 = vmatmul.mubr.f32.gmra.mrb[0].mxu0 %v4173
        %v5286 = vpop.f32.mrb[0].mxu0
        %v5287 = vadd.f32 0.0, %v5286
        %v5288 = vpop.f32.mrb[0].mxu0
        %5289 = vmatprep.mubr.f32.mxu0 0.0
        %5290 = vmatmul.mubr.f32.gmra.mrb[0].mxu0 %v4176
        %v5291 = vpop.f32.mrb[0].mxu0
        %v5292 = vadd.f32 0.0, %v5291
        %v5293 = vpop.f32.mrb[0].mxu0
        %5294 = vmatprep.mubr.f32.mxu0 0.0
        %5295 = vmatmul.mubr.f32.gmra.mrb[0].mxu0 %v4179
        %v5296 = vpop.f32.mrb[0].mxu0
        %v5297 = vadd.f32 0.0, %v5296
        %v5298 = vpop.f32.mrb[0].mxu0
        %5299 = vmatprep.mubr.f32.mxu0 0.0
        %5300 = vmatmul.mubr.f32.gmra.mrb[0].mxu0 %v4182
        %v5301 = vpop.f32.mrb[0].mxu0
        %v5302 = vadd.f32 0.0, %v5301
        %v5303 = vpop.f32.mrb[0].mxu0
        %5304 = vmatprep.mubr.f32.mxu0 0.0
        %5305 = vmatmul.mubr.f32.gmra.mrb[0].mxu0 %v4185
        %v5306 = vpop.f32.mrb[0].mxu0
        %v5307 = vadd.f32 0.0, %v5306
        %v5308 = vpop.f32.mrb[0].mxu0
        %5309 = vmatprep.mubr.f32.mxu0 0.0
        %5310 = vmatmul.mubr.f32.gmra.mrb[0].mxu0 %v4188
        %v5311 = vpop.f32.mrb[0].mxu0
        %v5312 = vadd.f32 0.0, %v5311
        %v5313 = vpop.f32.mrb[0].mxu0
        %5314 = vmatprep.mubr.f32.mxu0 0.0
        %5315 = vmatmul.mubr.f32.gmra.mrb[0].mxu0 %v4191
        %v5316 = vpop.f32.mrb[0].mxu0
        %v5317 = vadd.f32 0.0, %v5316
        %v5318 = vpop.f32.mrb[0].mxu0
        %5319 = vmatprep.mubr.f32.mxu0 0.0
        %5320 = vmatmul.mubr.f32.gmra.mrb[0].mxu0 %v4194
        %v5321 = vpop.f32.mrb[0].mxu0
        %v5322 = vadd.f32 0.0, %v5321
        %v5323 = vpop.f32.mrb[0].mxu0
        %5324 = vmatprep.mubr.f32.mxu0 0.0
        %5325 = vmatmul.mubr.f32.gmra.mrb[0].mxu0 %v4197
        %v5326 = vpop.f32.mrb[0].mxu0
        %v5327 = vadd.f32 0.0, %v5326
        %v5328 = vpop.f32.mrb[0].mxu0
        %5329 = vmatprep.mubr.f32.mxu0 0.0
        %5330 = vmatmul.mubr.f32.gmra.mrb[0].mxu0 %v4200
        %v5331 = vpop.f32.mrb[0].mxu0
        %v5332 = vadd.f32 0.0, %v5331
        %v5333 = vpop.f32.mrb[0].mxu0
        %5334 = vmatprep.mubr.f32.mxu0 0.0
        %5335 = vmatmul.mubr.f32.gmra.mrb[0].mxu0 %v4203
        %v5336 = vpop.f32.mrb[0].mxu0
        %v5337 = vadd.f32 0.0, %v5336
        %v5338 = vpop.f32.mrb[0].mxu0
        %5339 = vmatprep.mubr.f32.mxu0 0.0
        %5340 = vmatmul.mubr.f32.gmra.mrb[0].mxu0 %v4206
        %v5341 = vpop.f32.mrb[0].mxu0
        %v5342 = vadd.f32 0.0, %v5341
        %v5343 = vpop.f32.mrb[0].mxu0
        %5344 = vmatprep.mubr.f32.mxu0 0.0
        %5345 = vmatmul.mubr.f32.gmra.mrb[0].mxu0 %v4209
        %v5346 = vpop.f32.mrb[0].mxu0
        %v5347 = vadd.f32 0.0, %v5346
        %v5348 = vpop.f32.mrb[0].mxu0
        %5349 = vmatprep.mubr.f32.mxu0 0.0
        %5350 = vmatmul.mubr.f32.gmra.mrb[0].mxu0 %v4212
        %v5351 = vpop.f32.mrb[0].mxu0
        %v5352 = vadd.f32 0.0, %v5351
        %v5353 = vpop.f32.mrb[0].mxu0
        %5354 = vmatprep.mubr.f32.mxu0 0.0
        %5355 = vmatmul.mubr.f32.gmra.mrb[0].mxu0 %v4215
        %v5356 = vpop.f32.mrb[0].mxu0
        %v5357 = vadd.f32 0.0, %v5356
        %v5358 = vpop.f32.mrb[0].mxu0
        %5359 = vmatprep.mubr.f32.mxu0 0.0
        %5360 = vmatmul.mubr.f32.gmra.mrb[0].mxu0 %v4218
        %v5361 = vpop.f32.mrb[0].mxu0
        %v5362 = vadd.f32 0.0, %v5361
        %v5363 = vpop.f32.mrb[0].mxu0
        %5364 = vmatprep.mubr.f32.mxu0 0.0
        %5365 = vmatmul.mubr.f32.gmra.mrb[0].mxu0 %v4221
        %v5366 = vpop.f32.mrb[0].mxu0
        %v5367 = vadd.f32 0.0, %v5366
        %v5368 = vpop.f32.mrb[0].mxu0
        %5369 = vmatprep.mubr.f32.mxu0 0.0
        %5370 = vmatmul.mubr.f32.gmra.mrb[0].mxu0 %v4224
        %v5371 = vpop.f32.mrb[0].mxu0
        %v5372 = vadd.f32 0.0, %v5371
        %v5373 = vpop.f32.mrb[0].mxu0
        %5374 = vmatprep.mubr.f32.mxu0 0.0
        %5375 = vmatmul.mubr.f32.gmra.mrb[0].mxu0 %v4227
        %v5376 = vpop.f32.mrb[0].mxu0
        %v5377 = vadd.f32 0.0, %v5376
        %v5378 = vpop.f32.mrb[0].mxu0
        %5379 = vmatprep.mubr.f32.mxu0 0.0
        %5380 = vmatmul.mubr.f32.gmra.mrb[0].mxu0 %v4230
        %v5381 = vpop.f32.mrb[0].mxu0
        %v5382 = vadd.f32 0.0, %v5381
        %v5383 = vpop.f32.mrb[0].mxu0
        %5384 = vmatprep.mubr.f32.mxu0 0.0
        %5385 = vmatmul.mubr.f32.gmra.mrb[0].mxu0 %v4233
        %v5386 = vpop.f32.mrb[0].mxu0
        %v5387 = vadd.f32 0.0, %v5386
        %v5388 = vpop.f32.mrb[0].mxu0
        %5389 = vmatprep.mubr.f32.mxu0 0.0
        %5390 = vmatmul.mubr.f32.gmra.mrb[0].mxu0 %v4236
        %v5391 = vpop.f32.mrb[0].mxu0
        %v5392 = vadd.f32 0.0, %v5391
        %v5393 = vpop.f32.mrb[0].mxu0
        %5394 = vmatprep.mubr.f32.mxu0 0.0
        %5395 = vmatmul.mubr.f32.gmra.mrb[0].mxu0 %v4239
        %v5396 = vpop.f32.mrb[0].mxu0
        %v5397 = vadd.f32 0.0, %v5396
        %v5398 = vpop.f32.mrb[0].mxu0
        %5399 = vmatprep.mubr.f32.mxu0 0.0
        %5400 = vmatmul.mubr.f32.gmra.mrb[0].mxu0 %v4242
        %v5401 = vpop.f32.mrb[0].mxu0
        %v5402 = vadd.f32 0.0, %v5401
        %v5403 = vpop.f32.mrb[0].mxu0
        %5404 = vmatprep.mubr.f32.mxu0 0.0
        %5405 = vmatmul.mubr.f32.gmra.mrb[0].mxu0 %v4245
        %v5406 = vpop.f32.mrb[0].mxu0
        %v5407 = vadd.f32 0.0, %v5406
        %v5408 = vpop.f32.mrb[0].mxu0
        %5409 = vmatprep.mubr.f32.mxu0 0.0
        %5410 = vmatmul.mubr.f32.gmra.mrb[0].mxu0 %v4248
        %v5411 = vpop.f32.mrb[0].mxu0
        %v5412 = vadd.f32 0.0, %v5411
        %v5413 = vpop.f32.mrb[0].mxu0
        %5414 = vmatprep.mubr.f32.mxu0 0.0
        %5415 = vmatmul.mubr.f32.gmra.mrb[0].mxu0 %v4251
        %v5416 = vpop.f32.mrb[0].mxu0
        %v5417 = vadd.f32 0.0, %v5416
        %v5418 = vpop.f32.mrb[0].mxu0
        %5419 = vmatprep.mubr.f32.mxu0 0.0
        %5420 = vmatmul.mubr.f32.gmra.mrb[0].mxu0 %v4254
        %v5421 = vpop.f32.mrb[0].mxu0
        %v5422 = vadd.f32 0.0, %v5421
        %v5423 = vpop.f32.mrb[0].mxu0
        %5424 = vmatprep.mubr.f32.mxu0 0.0
        %5425 = vmatmul.mubr.f32.gmra.mrb[0].mxu0 %v4257
        %v5426 = vpop.f32.mrb[0].mxu0
        %v5427 = vadd.f32 0.0, %v5426
        %v5428 = vpop.f32.mrb[0].mxu0
        %5429 = vmatprep.mubr.f32.mxu0 0.0
        %5430 = vmatmul.mubr.f32.gmra.mrb[0].mxu0 %v4260
        %v5431 = vpop.f32.mrb[0].mxu0
        %v5432 = vadd.f32 0.0, %v5431
        %v5433 = vpop.f32.mrb[0].mxu0
        %5434 = vmatprep.mubr.f32.mxu0 0.0
        %5435 = vmatmul.mubr.f32.gmra.mrb[0].mxu0 %v4263
        %v5436 = vpop.f32.mrb[0].mxu0
        %v5437 = vadd.f32 0.0, %v5436
        %v5438 = vpop.f32.mrb[0].mxu0
        %5439 = vmatprep.mubr.f32.mxu0 0.0
        %5440 = vmatmul.mubr.f32.gmra.mrb[0].mxu0 %v4266
        %v5441 = vpop.f32.mrb[0].mxu0
        %v5442 = vadd.f32 0.0, %v5441
        %v5443 = vpop.f32.mrb[0].mxu0
        %5444 = vmatprep.mubr.f32.mxu0 0.0
        %5445 = vmatmul.mubr.f32.gmra.mrb[0].mxu0 %v4269
        %v5446 = vpop.f32.mrb[0].mxu0
        %v5447 = vadd.f32 0.0, %v5446
        %v5448 = vpop.f32.mrb[0].mxu0
        %5449 = vmatprep.mubr.f32.mxu0 0.0
        %5450 = vmatmul.mubr.f32.gmra.mrb[0].mxu0 %v4272
        %v5451 = vpop.f32.mrb[0].mxu0
        %v5452 = vadd.f32 0.0, %v5451
        %v5453 = vpop.f32.mrb[0].mxu0
        %5454 = vmatprep.mubr.f32.mxu0 0.0
        %5455 = vmatmul.mubr.f32.gmra.mrb[0].mxu0 %v4275
        %v5456 = vpop.f32.mrb[0].mxu0
        %v5457 = vadd.f32 0.0, %v5456
        %v5458 = vpop.f32.mrb[0].mxu0
        %5459 = vmatprep.mubr.f32.mxu0 0.0
        %5460 = vmatmul.mubr.f32.gmra.mrb[0].mxu0 %v4278
        %v5461 = vpop.f32.mrb[0].mxu0
        %v5462 = vadd.f32 0.0, %v5461
        %v5463 = vpop.f32.mrb[0].mxu0
        %5464 = vmatprep.mubr.f32.mxu0 0.0
        %5465 = vmatmul.mubr.f32.gmra.mrb[0].mxu0 %v4281
        %v5466 = vpop.f32.mrb[0].mxu0
        %v5467 = vadd.f32 0.0, %v5466
        %v5468 = vpop.f32.mrb[0].mxu0
        %5469 = vmatprep.mubr.f32.mxu0 0.0
        %5470 = vmatmul.mubr.f32.gmra.mrb[0].mxu0 %v4284
        %v5471 = vpop.f32.mrb[0].mxu0
        %v5472 = vadd.f32 0.0, %v5471
        %v5473 = vpop.f32.mrb[0].mxu0
        %5474 = vmatprep.mubr.f32.mxu0 0.0
        %5475 = vmatmul.mubr.f32.gmra.mrb[0].mxu0 %v4287
        %v5476 = vpop.f32.mrb[0].mxu0
        %v5477 = vadd.f32 0.0, %v5476
        %v5478 = vpop.f32.mrb[0].mxu0
        %5479 = vmatprep.mubr.f32.mxu0 0.0
        %5480 = vmatmul.mubr.f32.gmra.mrb[0].mxu0 %v4290
        %v5481 = vpop.f32.mrb[0].mxu0
        %v5482 = vadd.f32 0.0, %v5481
        %v5483 = vpop.f32.mrb[0].mxu0
        %5484 = vmatprep.mubr.f32.mxu0 0.0
        %5485 = vmatmul.mubr.f32.gmra.mrb[0].mxu0 %v4293
        %v5486 = vpop.f32.mrb[0].mxu0
        %v5487 = vadd.f32 0.0, %v5486
        %v5488 = vpop.f32.mrb[0].mxu0
        %5489 = vmatprep.mubr.f32.mxu0 0.0
        %5490 = vmatmul.mubr.f32.gmra.mrb[0].mxu0 %v4296
        %v5491 = vpop.f32.mrb[0].mxu0
        %v5492 = vadd.f32 0.0, %v5491
        %v5493 = vpop.f32.mrb[0].mxu0
        %5494 = vmatprep.mubr.f32.mxu0 0.0
        %5495 = vmatmul.mubr.f32.gmra.mrb[0].mxu0 %v4299
        %v5496 = vpop.f32.mrb[0].mxu0
        %v5497 = vadd.f32 0.0, %v5496
        %v5498 = vpop.f32.mrb[0].mxu0
        %5499 = vmatprep.mubr.f32.mxu0 0.0
        %5500 = vmatmul.mubr.f32.gmra.mrb[0].mxu0 %v4302
        %v5501 = vpop.f32.mrb[0].mxu0
        %v5502 = vadd.f32 0.0, %v5501
        %v5503 = vpop.f32.mrb[0].mxu0
        %5504 = vmatprep.mubr.f32.mxu0 0.0
        %5505 = vmatmul.mubr.f32.gmra.mrb[0].mxu0 %v4305
        %v5506 = vpop.f32.mrb[0].mxu0
        %v5507 = vadd.f32 0.0, %v5506
        %v5508 = vpop.f32.mrb[0].mxu0
        %5509 = vmatprep.mubr.f32.mxu0 0.0
        %5510 = vmatmul.mubr.f32.gmra.mrb[0].mxu0 %v4308
        %v5511 = vpop.f32.mrb[0].mxu0
        %v5512 = vadd.f32 0.0, %v5511
        %v5513 = vpop.f32.mrb[0].mxu0
        %5514 = vmatprep.mubr.f32.mxu0 0.0
        %5515 = vmatmul.mubr.f32.gmra.mrb[0].mxu0 %v4311
        %v5516 = vpop.f32.mrb[0].mxu0
        %v5517 = vadd.f32 0.0, %v5516
        %v5518 = vpop.f32.mrb[0].mxu0
        %5519 = vmatprep.mubr.f32.mxu0 0.0
        %5520 = vmatmul.mubr.f32.gmra.mrb[0].mxu0 %v4314
        %v5521 = vpop.f32.mrb[0].mxu0
        %v5522 = vadd.f32 0.0, %v5521
        %v5523 = vpop.f32.mrb[0].mxu0
        %5524 = vmatprep.mubr.f32.mxu0 0.0
        %5525 = vmatmul.mubr.f32.gmra.mrb[0].mxu0 %v4317
        %v5526 = vpop.f32.mrb[0].mxu0
        %v5527 = vadd.f32 0.0, %v5526
        %v5528 = vpop.f32.mrb[0].mxu0
        %5529 = vmatprep.mubr.f32.mxu0 0.0
        %5530 = vmatmul.mubr.f32.gmra.mrb[0].mxu0 %v4320
        %v5531 = vpop.f32.mrb[0].mxu0
        %v5532 = vadd.f32 0.0, %v5531
        %v5533 = vpop.f32.mrb[0].mxu0
        %5534 = vmatprep.mubr.f32.mxu0 0.0
        %5535 = vmatmul.mubr.f32.gmra.mrb[0].mxu0 %v4323
        %v5536 = vpop.f32.mrb[0].mxu0
        %v5537 = vadd.f32 0.0, %v5536
        %v5538 = vpop.f32.mrb[0].mxu0
        %5539 = vmatprep.mubr.f32.mxu0 0.0
        %5540 = vmatmul.mubr.f32.gmra.mrb[0].mxu0 %v4326
        %v5541 = vpop.f32.mrb[0].mxu0
        %v5542 = vadd.f32 0.0, %v5541
        %v5543 = vpop.f32.mrb[0].mxu0
        %5544 = vmatprep.mubr.f32.mxu0 0.0
        %5545 = vmatmul.mubr.f32.gmra.mrb[0].mxu0 %v4329
        %v5546 = vpop.f32.mrb[0].mxu0
        %v5547 = vadd.f32 0.0, %v5546
        %v5548 = vpop.f32.mrb[0].mxu0
        %5549 = vmatprep.mubr.f32.mxu0 0.0
        %5550 = vmatmul.mubr.f32.gmra.mrb[0].mxu0 %v4332
        %v5551 = vpop.f32.mrb[0].mxu0
        %v5552 = vadd.f32 0.0, %v5551
        %v5553 = vpop.f32.mrb[0].mxu0
        %5554 = vmatprep.mubr.f32.mxu0 0.0
        %5555 = vmatmul.mubr.f32.gmra.mrb[0].mxu0 %v4335
        %v5556 = vpop.f32.mrb[0].mxu0
        %v5557 = vadd.f32 0.0, %v5556
        %v5558 = vpop.f32.mrb[0].mxu0
        %5559 = vmatprep.mubr.f32.mxu0 0.0
        %5560 = vmatmul.mubr.f32.gmra.mrb[0].mxu0 %v4338
        %v5561 = vpop.f32.mrb[0].mxu0
        %v5562 = vadd.f32 0.0, %v5561
        %v5563 = vpop.f32.mrb[0].mxu0
        %5564 = vmatprep.mubr.f32.mxu0 0.0
        %5565 = vmatmul.mubr.f32.gmra.mrb[0].mxu0 %v4341
        %v5566 = vpop.f32.mrb[0].mxu0
        %v5567 = vadd.f32 0.0, %v5566
        %v5568 = vpop.f32.mrb[0].mxu0
        %5569 = vmatprep.mubr.f32.mxu0 0.0
        %5570 = vmatmul.mubr.f32.gmra.mrb[0].mxu0 %v4344
        %v5571 = vpop.f32.mrb[0].mxu0
        %v5572 = vadd.f32 0.0, %v5571
        %v5573 = vpop.f32.mrb[0].mxu0
        %5574 = vmatprep.mubr.f32.mxu0 0.0
        %5575 = vmatmul.mubr.f32.gmra.mrb[0].mxu0 %v4347
        %v5576 = vpop.f32.mrb[0].mxu0
        %v5577 = vadd.f32 0.0, %v5576
        %v5578 = vpop.f32.mrb[0].mxu0
        %5579 = vmatprep.mubr.f32.mxu0 0.0
        %5580 = vmatmul.mubr.f32.gmra.mrb[0].mxu0 %v4350
        %v5581 = vpop.f32.mrb[0].mxu0
        %v5582 = vadd.f32 0.0, %v5581
        %v5583 = vpop.f32.mrb[0].mxu0
        %5584 = vmatprep.mubr.f32.mxu0 0.0
        %5585 = vmatmul.mubr.f32.gmra.mrb[0].mxu0 %v4353
        %v5586 = vpop.f32.mrb[0].mxu0
        %v5587 = vadd.f32 0.0, %v5586
        %v5588 = vpop.f32.mrb[0].mxu0
        %5589 = vmatprep.mubr.f32.mxu0 0.0
        %5590 = vmatmul.mubr.f32.gmra.mrb[0].mxu0 %v4356
        %v5591 = vpop.f32.mrb[0].mxu0
        %v5592 = vadd.f32 0.0, %v5591
        %v5593 = vpop.f32.mrb[0].mxu0
        %5594 = vmatprep.mubr.f32.mxu0 0.0
        %5595 = vmatmul.mubr.f32.gmra.mrb[0].mxu0 %v4359
        %v5596 = vpop.f32.mrb[0].mxu0
        %v5597 = vadd.f32 0.0, %v5596
        %v5598 = vpop.f32.mrb[0].mxu0
        %5599 = vmatprep.mubr.f32.mxu0 0.0
        %5600 = vmatmul.mubr.f32.gmra.mrb[0].mxu0 %v4362
        %v5601 = vpop.f32.mrb[0].mxu0
        %v5602 = vadd.f32 0.0, %v5601
        %v5603 = vpop.f32.mrb[0].mxu0
        %5604 = vmatprep.mubr.f32.mxu0 0.0
        %5605 = vmatmul.mubr.f32.gmra.mrb[0].mxu0 %v4365
        %v5606 = vpop.f32.mrb[0].mxu0
        %v5607 = vadd.f32 0.0, %v5606
        %v5608 = vpop.f32.mrb[0].mxu0
        %5609 = vmatprep.mubr.f32.mxu0 0.0
        %5610 = vmatmul.mubr.f32.gmra.mrb[0].mxu0 %v4368
        %v5611 = vpop.f32.mrb[0].mxu0
        %v5612 = vadd.f32 0.0, %v5611
        %v5613 = vpop.f32.mrb[0].mxu0
        %5614 = vmatprep.mubr.f32.mxu0 0.0
        %5615 = vmatmul.mubr.f32.gmra.mrb[0].mxu0 %v4371
        %v5616 = vpop.f32.mrb[0].mxu0
        %v5617 = vadd.f32 0.0, %v5616
        %v5618 = vpop.f32.mrb[0].mxu0
        %5619 = vmatprep.mubr.f32.mxu0 0.0
        %5620 = vmatmul.mubr.f32.gmra.mrb[0].mxu0 %v4374
        %v5621 = vpop.f32.mrb[0].mxu0
        %v5622 = vadd.f32 0.0, %v5621
        %v5623 = vpop.f32.mrb[0].mxu0
        %5624 = vmatprep.mubr.f32.mxu0 0.0
        %5625 = vmatmul.mubr.f32.gmra.mrb[0].mxu0 %v4377
        %v5626 = vpop.f32.mrb[0].mxu0
        %v5627 = vadd.f32 0.0, %v5626
        %v5628 = vpop.f32.mrb[0].mxu0
        %5629 = vmatprep.mubr.f32.mxu0 0.0
        %5630 = vmatmul.mubr.f32.gmra.mrb[0].mxu0 %v4380
        %v5631 = vpop.f32.mrb[0].mxu0
        %v5632 = vadd.f32 0.0, %v5631
        %v5633 = vpop.f32.mrb[0].mxu0
        %5634 = vmatprep.mubr.f32.mxu0 0.0
        %5635 = vmatmul.mubr.f32.gmra.mrb[0].mxu0 %v4383
        %v5636 = vpop.f32.mrb[0].mxu0
        %v5637 = vadd.f32 0.0, %v5636
        %v5638 = vpop.f32.mrb[0].mxu0
        %5639 = vmatprep.mubr.f32.mxu0 0.0
        %5640 = vmatmul.mubr.f32.gmra.mrb[0].mxu0 %v4386
        %v5641 = vpop.f32.mrb[0].mxu0
        %v5642 = vadd.f32 0.0, %v5641
        %v5643 = vpop.f32.mrb[0].mxu0
        %5644 = vmatprep.mubr.f32.mxu0 0.0
        %5645 = vmatmul.mubr.f32.gmra.mrb[0].mxu0 %v4389
        %v5646 = vpop.f32.mrb[0].mxu0
        %v5647 = vadd.f32 0.0, %v5646
        %v5648 = vpop.f32.mrb[0].mxu0
        %5649 = vmatprep.mubr.f32.mxu0 0.0
        %5650 = vmatmul.mubr.f32.gmra.mrb[0].mxu0 %v4392
        %v5651 = vpop.f32.mrb[0].mxu0
        %v5652 = vadd.f32 0.0, %v5651
        %v5653 = vpop.f32.mrb[0].mxu0
        %5654 = vmatprep.mubr.f32.mxu0 0.0
        %5655 = vmatmul.mubr.f32.gmra.mrb[0].mxu0 %v4395
        %v5656 = vpop.f32.mrb[0].mxu0
        %v5657 = vadd.f32 0.0, %v5656
        %v5658 = vpop.f32.mrb[0].mxu0
        %5659 = vmatprep.mubr.f32.mxu0 0.0
        %5660 = vmatmul.mubr.f32.gmra.mrb[0].mxu0 %v4398
        %v5661 = vpop.f32.mrb[0].mxu0
        %v5662 = vadd.f32 0.0, %v5661
        %v5663 = vpop.f32.mrb[0].mxu0
        %5664 = vmatprep.mubr.f32.mxu0 0.0
        %5665 = vmatmul.mubr.f32.gmra.mrb[0].mxu0 %v4401
        %v5666 = vpop.f32.mrb[0].mxu0
        %v5667 = vadd.f32 0.0, %v5666
        %v5668 = vpop.f32.mrb[0].mxu0
        %5669 = vmatprep.mubr.f32.mxu0 0.0
        %5670 = vmatmul.mubr.f32.gmra.mrb[0].mxu0 %v4404
        %v5671 = vpop.f32.mrb[0].mxu0
        %v5672 = vadd.f32 0.0, %v5671
        %v5673 = vpop.f32.mrb[0].mxu0
        %5674 = vmatprep.mubr.f32.mxu0 0.0
        %5675 = vmatmul.mubr.f32.gmra.mrb[0].mxu0 %v4407
        %v5676 = vpop.f32.mrb[0].mxu0
        %v5677 = vadd.f32 0.0, %v5676
        %v5678 = vpop.f32.mrb[0].mxu0
        %5679 = vmatprep.mubr.f32.mxu0 0.0
        %5680 = vmatmul.mubr.f32.gmra.mrb[0].mxu0 %v4410
        %v5681 = vpop.f32.mrb[0].mxu0
        %v5682 = vadd.f32 0.0, %v5681
        %v5683 = vpop.f32.mrb[0].mxu0
        %5684 = vmatprep.mubr.f32.mxu0 0.0
        %5685 = vmatmul.mubr.f32.gmra.mrb[0].mxu0 %v4413
        %v5686 = vpop.f32.mrb[0].mxu0
        %v5687 = vadd.f32 0.0, %v5686
        %v5688 = vpop.f32.mrb[0].mxu0
        %5689 = vmatprep.mubr.f32.mxu0 0.0
        %5690 = vmatmul.mubr.f32.gmra.mrb[0].mxu0 %v4416
        %v5691 = vpop.f32.mrb[0].mxu0
        %v5692 = vadd.f32 0.0, %v5691
        %v5693 = vpop.f32.mrb[0].mxu0
        %5694 = vmatprep.mubr.f32.mxu0 0.0
        %5695 = vmatmul.mubr.f32.gmra.mrb[0].mxu0 %v4419
        %v5696 = vpop.f32.mrb[0].mxu0
        %v5697 = vadd.f32 0.0, %v5696
        %v5698 = vpop.f32.mrb[0].mxu0
        %5699 = vmatprep.mubr.f32.mxu0 0.0
        %5700 = vmatmul.mubr.f32.gmra.mrb[0].mxu0 %v4422
        %v5701 = vpop.f32.mrb[0].mxu0
        %v5702 = vadd.f32 0.0, %v5701
        %v5703 = vpop.f32.mrb[0].mxu0
        %5704 = vmatprep.mubr.f32.mxu0 0.0
        %5705 = vmatmul.mubr.f32.gmra.mrb[0].mxu0 %v4425
        %v5706 = vpop.f32.mrb[0].mxu0
        %v5707 = vadd.f32 0.0, %v5706
        %v5708 = vpop.f32.mrb[0].mxu0
        %5709 = vmatprep.mubr.f32.mxu0 0.0
        %5710 = vmatmul.mubr.f32.gmra.mrb[0].mxu0 %v4428
        %v5711 = vpop.f32.mrb[0].mxu0
        %v5712 = vadd.f32 0.0, %v5711
        %v5713 = vpop.f32.mrb[0].mxu0
        %5714 = vmatprep.mubr.f32.mxu0 0.0
        %5715 = vmatmul.mubr.f32.gmra.mrb[0].mxu0 %v4431
        %v5716 = vpop.f32.mrb[0].mxu0
        %v5717 = vadd.f32 0.0, %v5716
        %v5718 = vpop.f32.mrb[0].mxu0
        %5719 = vmatprep.mubr.f32.mxu0 0.0
        %5720 = vmatmul.mubr.f32.gmra.mrb[0].mxu0 %v4434
        %v5721 = vpop.f32.mrb[0].mxu0
        %v5722 = vadd.f32 0.0, %v5721
        %v5723 = vpop.f32.mrb[0].mxu0
        %5724 = vmatprep.mubr.f32.mxu0 0.0
        %5725 = vmatmul.mubr.f32.gmra.mrb[0].mxu0 %v4437
        %v5726 = vpop.f32.mrb[0].mxu0
        %v5727 = vadd.f32 0.0, %v5726
        %v5728 = vpop.f32.mrb[0].mxu0
        %5729 = vmatprep.mubr.f32.mxu0 0.0
        %5730 = vmatmul.mubr.f32.gmra.mrb[0].mxu0 %v4440
        %v5731 = vpop.f32.mrb[0].mxu0
        %v5732 = vadd.f32 0.0, %v5731
        %v5733 = vpop.f32.mrb[0].mxu0
        %5734 = vmatprep.mubr.f32.mxu0 0.0
        %5735 = vmatmul.mubr.f32.gmra.mrb[0].mxu0 %v4443
        %v5736 = vpop.f32.mrb[0].mxu0
        %v5737 = vadd.f32 0.0, %v5736
        %v5738 = vpop.f32.mrb[0].mxu0
        %5739 = vmatprep.mubr.f32.mxu0 0.0
        %5740 = vmatmul.mubr.f32.gmra.mrb[0].mxu0 %v4446
        %v5741 = vpop.f32.mrb[0].mxu0
        %v5742 = vadd.f32 0.0, %v5741
        %v5743 = vpop.f32.mrb[0].mxu0
        %5744 = vmatprep.mubr.f32.mxu0 0.0
        %5745 = vmatmul.mubr.f32.gmra.mrb[0].mxu0 %v4449
        %v5746 = vpop.f32.mrb[0].mxu0
        %v5747 = vadd.f32 0.0, %v5746
        %v5748 = vpop.f32.mrb[0].mxu0
        %5749 = vmatprep.mubr.f32.mxu0 0.0
        %5750 = vmatmul.mubr.f32.gmra.mrb[0].mxu0 %v4452
        %v5751 = vpop.f32.mrb[0].mxu0
        %v5752 = vadd.f32 0.0, %v5751
        %v5753 = vpop.f32.mrb[0].mxu0
        %5754 = vmatprep.mubr.f32.mxu0 0.0
        %5755 = vmatmul.mubr.f32.gmra.mrb[0].mxu0 %v4455
        %v5756 = vpop.f32.mrb[0].mxu0
        %v5757 = vadd.f32 0.0, %v5756
        %v5758 = vpop.f32.mrb[0].mxu0
        %5759 = vmatprep.mubr.f32.mxu0 0.0
        %5760 = vmatmul.mubr.f32.gmra.mrb[0].mxu0 %v4458
        %v5761 = vpop.f32.mrb[0].mxu0
        %v5762 = vadd.f32 0.0, %v5761
        %v5763 = vpop.f32.mrb[0].mxu0
        %5764 = vmatprep.mubr.f32.mxu0 0.0
        %5765 = vmatmul.mubr.f32.gmra.mrb[0].mxu0 %v4461
        %v5766 = vpop.f32.mrb[0].mxu0
        %v5767 = vadd.f32 0.0, %v5766
        %v5768 = vpop.f32.mrb[0].mxu0
        %5769 = vmatprep.mubr.f32.mxu0 0.0
        %5770 = vmatmul.mubr.f32.gmra.mrb[0].mxu0 %v4464
        %v5771 = vpop.f32.mrb[0].mxu0
        %v5772 = vadd.f32 0.0, %v5771
        %v5773 = vpop.f32.mrb[0].mxu0
        %5774 = vmatprep.mubr.f32.mxu0 0.0
        %5775 = vmatmul.mubr.f32.gmra.mrb[0].mxu0 %v4467
        %v5776 = vpop.f32.mrb[0].mxu0
        %v5777 = vadd.f32 0.0, %v5776
        %v5778 = vpop.f32.mrb[0].mxu0
        %5779 = vmatprep.mubr.f32.mxu0 0.0
        %5780 = vmatmul.mubr.f32.gmra.mrb[0].mxu0 %v4470
        %v5781 = vpop.f32.mrb[0].mxu0
        %v5782 = vadd.f32 0.0, %v5781
        %v5783 = vpop.f32.mrb[0].mxu0
        %5784 = vmatprep.mubr.f32.mxu0 0.0
        %5785 = vmatmul.mubr.f32.gmra.mrb[0].mxu0 %v4473
        %v5786 = vpop.f32.mrb[0].mxu0
        %v5787 = vadd.f32 0.0, %v5786
        %v5788 = vpop.f32.mrb[0].mxu0
        %5789 = vmatprep.mubr.f32.mxu0 0.0
        %5790 = vmatmul.mubr.f32.gmra.mrb[0].mxu0 %v4476
        %v5791 = vpop.f32.mrb[0].mxu0
        %v5792 = vadd.f32 0.0, %v5791
        %v5793 = vpop.f32.mrb[0].mxu0
        %5794 = vmatprep.mubr.f32.mxu0 0.0
        %5795 = vmatmul.mubr.f32.gmra.mrb[0].mxu0 %v4479
        %v5796 = vpop.f32.mrb[0].mxu0
        %v5797 = vadd.f32 0.0, %v5796
        %v5798 = vpop.f32.mrb[0].mxu0
        %5799 = vmatprep.mubr.f32.mxu0 0.0
        %5800 = vmatmul.mubr.f32.gmra.mrb[0].mxu0 %v4482
        %v5801 = vpop.f32.mrb[0].mxu0
        %v5802 = vadd.f32 0.0, %v5801
        %v5803 = vpop.f32.mrb[0].mxu0
        %5804 = vmatprep.mubr.f32.mxu0 0.0
        %5805 = vmatmul.mubr.f32.gmra.mrb[0].mxu0 %v4485
        %v5806 = vpop.f32.mrb[0].mxu0
        %v5807 = vadd.f32 0.0, %v5806
        %v5808 = vpop.f32.mrb[0].mxu0
        %5809 = vmatprep.mubr.f32.mxu0 0.0
        %5810 = vmatmul.mubr.f32.gmra.mrb[0].mxu0 %v4488
        %v5811 = vpop.f32.mrb[0].mxu0
        %v5812 = vadd.f32 0.0, %v5811
        %v5813 = vpop.f32.mrb[0].mxu0
        %5814 = vmatprep.mubr.f32.mxu0 0.0
        %5815 = vmatmul.mubr.f32.gmra.mrb[0].mxu0 %v4491
        %v5816 = vpop.f32.mrb[0].mxu0
        %v5817 = vadd.f32 0.0, %v5816
        %v5818 = vpop.f32.mrb[0].mxu0
        %5819 = vmatprep.mubr.f32.mxu0 0.0
        %5820 = vmatmul.mubr.f32.gmra.mrb[0].mxu0 %v4494
        %v5821 = vpop.f32.mrb[0].mxu0
        %v5822 = vadd.f32 0.0, %v5821
        %v5823 = vpop.f32.mrb[0].mxu0
        %5824 = vmatprep.mubr.f32.mxu0 0.0
        %5825 = vmatmul.mubr.f32.gmra.mrb[0].mxu0 %v4497
        %v5826 = vpop.f32.mrb[0].mxu0
        %v5827 = vadd.f32 0.0, %v5826
        %v5828 = vpop.f32.mrb[0].mxu0
        %5829 = vmatprep.mubr.f32.mxu0 0.0
        %5830 = vmatmul.mubr.f32.gmra.mrb[0].mxu0 %v4500
        %v5831 = vpop.f32.mrb[0].mxu0
        %v5832 = vadd.f32 0.0, %v5831
        %v5833 = vpop.f32.mrb[0].mxu0
        %5834 = vmatprep.mubr.f32.mxu0 0.0
        %5835 = vmatmul.mubr.f32.gmra.mrb[0].mxu0 %v4503
        %v5836 = vpop.f32.mrb[0].mxu0
        %v5837 = vadd.f32 0.0, %v5836
        %v5838 = vpop.f32.mrb[0].mxu0
        %5839 = vmatprep.mubr.f32.mxu0 0.0
        %5840 = vmatmul.mubr.f32.gmra.mrb[0].mxu0 %v4506
        %v5841 = vpop.f32.mrb[0].mxu0
        %v5842 = vadd.f32 0.0, %v5841
        %v5843 = vpop.f32.mrb[0].mxu0
        %5844 = vmatprep.mubr.f32.mxu0 0.0
        %5845 = vmatmul.mubr.f32.gmra.mrb[0].mxu0 %v4509
        %v5846 = vpop.f32.mrb[0].mxu0
        %v5847 = vadd.f32 0.0, %v5846
        %v5848 = vpop.f32.mrb[0].mxu0
        %5849 = vmatprep.mubr.f32.mxu0 0.0
        %5850 = vmatmul.mubr.f32.gmra.mrb[0].mxu0 %v4512
        %v5851 = vpop.f32.mrb[0].mxu0
        %v5852 = vadd.f32 0.0, %v5851
        %v5853 = vpop.f32.mrb[0].mxu0
        %5854 = vmatprep.mubr.f32.mxu0 0.0
        %5855 = vmatmul.mubr.f32.gmra.mrb[0].mxu0 %v4515
        %v5856 = vpop.f32.mrb[0].mxu0
        %v5857 = vadd.f32 0.0, %v5856
        %v5858 = vpop.f32.mrb[0].mxu0
        %5859 = vmatprep.mubr.f32.mxu0 0.0
        %5860 = vmatmul.mubr.f32.gmra.mrb[0].mxu0 %v4518
        %v5861 = vpop.f32.mrb[0].mxu0
        %v5862 = vadd.f32 0.0, %v5861
        %v5863 = vpop.f32.mrb[0].mxu0
        %5864 = vdwg.mxu0
        %5865 = vst [vmem:[%s351] sm:$0xff] %v4587
        %5866 = vst [vmem:[%s351 + $0x8] sm:$0xff] %v4592
        %5867 = vst [vmem:[%s351 + $0x10] sm:$0xff] %v4597
        %5868 = vst [vmem:[%s351 + $0x18] sm:$0xff] %v4602
        %5869 = vst [vmem:[%s351 + $0x20] sm:$0xff] %v4607
        %5870 = vst [vmem:[%s351 + $0x28] sm:$0xff] %v4612
        %5871 = vst [vmem:[%s351 + $0x30] sm:$0xff] %v4617
        %5872 = vst [vmem:[%s351 + $0x38] sm:$0xff] %v4622
        %5873 = vst [vmem:[%s351 + $0x40] sm:$0xff] %v4627
        %5874 = vst [vmem:[%s351 + $0x48] sm:$0xff] %v4632
        %5875 = vst [vmem:[%s351 + $0x50] sm:$0xff] %v4637
        %5876 = vst [vmem:[%s351 + $0x58] sm:$0xff] %v4642
        %5877 = vst [vmem:[%s351 + $0x60] sm:$0xff] %v4647
        %5878 = vst [vmem:[%s351 + $0x68] sm:$0xff] %v4652
        %5879 = vst [vmem:[%s351 + $0x70] sm:$0xff] %v4657
        %5880 = vst [vmem:[%s351 + $0x78] sm:$0xff] %v4662
        %5881 = vst [vmem:[%s351 + $0x80] sm:$0xff] %v4667
        %5882 = vst [vmem:[%s351 + $0x88] sm:$0xff] %v4672
        %5883 = vst [vmem:[%s351 + $0x90] sm:$0xff] %v4677
        %5884 = vst [vmem:[%s351 + $0x98] sm:$0xff] %v4682
        %5885 = vst [vmem:[%s351 + $0xa0] sm:$0xff] %v4687
        %5886 = vst [vmem:[%s351 + $0xa8] sm:$0xff] %v4692
        %5887 = vst [vmem:[%s351 + $0xb0] sm:$0xff] %v4697
        %5888 = vst [vmem:[%s351 + $0xb8] sm:$0xff] %v4702
        %5889 = vst [vmem:[%s351 + $0xc0] sm:$0xff] %v4707
        %5890 = vst [vmem:[%s351 + $0xc8] sm:$0xff] %v4712
        %5891 = vst [vmem:[%s351 + $0xd0] sm:$0xff] %v4717
        %5892 = vst [vmem:[%s351 + $0xd8] sm:$0xff] %v4722
        %5893 = vst [vmem:[%s351 + $0xe0] sm:$0xff] %v4727
        %5894 = vst [vmem:[%s351 + $0xe8] sm:$0xff] %v4732
        %5895 = vst [vmem:[%s351 + $0xf0] sm:$0xff] %v4737
        %5896 = vst [vmem:[%s351 + $0xf8] sm:$0xff] %v4742
        %5897 = vst [vmem:[%s351 + $0x100] sm:$0xff] %v4747
        %5898 = vst [vmem:[%s351 + $0x108] sm:$0xff] %v4752
        %5899 = vst [vmem:[%s351 + $0x110] sm:$0xff] %v4757
        %5900 = vst [vmem:[%s351 + $0x118] sm:$0xff] %v4762
        %5901 = vst [vmem:[%s351 + $0x120] sm:$0xff] %v4767
        %5902 = vst [vmem:[%s351 + $0x128] sm:$0xff] %v4772
        %5903 = vst [vmem:[%s351 + $0x130] sm:$0xff] %v4777
        %5904 = vst [vmem:[%s351 + $0x138] sm:$0xff] %v4782
        %5905 = vst [vmem:[%s351 + $0x140] sm:$0xff] %v4787
        %5906 = vst [vmem:[%s351 + $0x148] sm:$0xff] %v4792
        %5907 = vst [vmem:[%s351 + $0x150] sm:$0xff] %v4797
        %5908 = vst [vmem:[%s351 + $0x158] sm:$0xff] %v4802
        %5909 = vst [vmem:[%s351 + $0x160] sm:$0xff] %v4807
        %5910 = vst [vmem:[%s351 + $0x168] sm:$0xff] %v4812
        %5911 = vst [vmem:[%s351 + $0x170] sm:$0xff] %v4817
        %5912 = vst [vmem:[%s351 + $0x178] sm:$0xff] %v4822
        %5913 = vst [vmem:[%s351 + $0x180] sm:$0xff] %v4827
        %5914 = vst [vmem:[%s351 + $0x188] sm:$0xff] %v4832
        %5915 = vst [vmem:[%s351 + $0x190] sm:$0xff] %v4837
        %5916 = vst [vmem:[%s351 + $0x198] sm:$0xff] %v4842
        %5917 = vst [vmem:[%s351 + $0x1a0] sm:$0xff] %v4847
        %5918 = vst [vmem:[%s351 + $0x1a8] sm:$0xff] %v4852
        %5919 = vst [vmem:[%s351 + $0x1b0] sm:$0xff] %v4857
        %5920 = vst [vmem:[%s351 + $0x1b8] sm:$0xff] %v4862
        %5921 = vst [vmem:[%s351 + $0x1c0] sm:$0xff] %v4867
        %5922 = vst [vmem:[%s351 + $0x1c8] sm:$0xff] %v4872
        %5923 = vst [vmem:[%s351 + $0x1d0] sm:$0xff] %v4877
        %5924 = vst [vmem:[%s351 + $0x1d8] sm:$0xff] %v4882
        %5925 = vst [vmem:[%s351 + $0x1e0] sm:$0xff] %v4887
        %5926 = vst [vmem:[%s351 + $0x1e8] sm:$0xff] %v4892
        %5927 = vst [vmem:[%s351 + $0x1f0] sm:$0xff] %v4897
        %5928 = vst [vmem:[%s351 + $0x1f8] sm:$0xff] %v4902
        %5929 = vst [vmem:[%s351 + $0x200] sm:$0xff] %v4907
        %5930 = vst [vmem:[%s351 + $0x208] sm:$0xff] %v4912
        %5931 = vst [vmem:[%s351 + $0x210] sm:$0xff] %v4917
        %5932 = vst [vmem:[%s351 + $0x218] sm:$0xff] %v4922
        %5933 = vst [vmem:[%s351 + $0x220] sm:$0xff] %v4927
        %5934 = vst [vmem:[%s351 + $0x228] sm:$0xff] %v4932
        %5935 = vst [vmem:[%s351 + $0x230] sm:$0xff] %v4937
        %5936 = vst [vmem:[%s351 + $0x238] sm:$0xff] %v4942
        %5937 = vst [vmem:[%s351 + $0x240] sm:$0xff] %v4947
        %5938 = vst [vmem:[%s351 + $0x248] sm:$0xff] %v4952
        %5939 = vst [vmem:[%s351 + $0x250] sm:$0xff] %v4957
        %5940 = vst [vmem:[%s351 + $0x258] sm:$0xff] %v4962
        %5941 = vst [vmem:[%s351 + $0x260] sm:$0xff] %v4967
        %5942 = vst [vmem:[%s351 + $0x268] sm:$0xff] %v4972
        %5943 = vst [vmem:[%s351 + $0x270] sm:$0xff] %v4977
        %5944 = vst [vmem:[%s351 + $0x278] sm:$0xff] %v4982
        %5945 = vst [vmem:[%s351 + $0x280] sm:$0xff] %v4987
        %5946 = vst [vmem:[%s351 + $0x288] sm:$0xff] %v4992
        %5947 = vst [vmem:[%s351 + $0x290] sm:$0xff] %v4997
        %5948 = vst [vmem:[%s351 + $0x298] sm:$0xff] %v5002
        %5949 = vst [vmem:[%s351 + $0x2a0] sm:$0xff] %v5007
        %5950 = vst [vmem:[%s351 + $0x2a8] sm:$0xff] %v5012
        %5951 = vst [vmem:[%s351 + $0x2b0] sm:$0xff] %v5017
        %5952 = vst [vmem:[%s351 + $0x2b8] sm:$0xff] %v5022
        %5953 = vst [vmem:[%s351 + $0x2c0] sm:$0xff] %v5027
        %5954 = vst [vmem:[%s351 + $0x2c8] sm:$0xff] %v5032
        %5955 = vst [vmem:[%s351 + $0x2d0] sm:$0xff] %v5037
        %5956 = vst [vmem:[%s351 + $0x2d8] sm:$0xff] %v5042
        %5957 = vst [vmem:[%s351 + $0x2e0] sm:$0xff] %v5047
        %5958 = vst [vmem:[%s351 + $0x2e8] sm:$0xff] %v5052
        %5959 = vst [vmem:[%s351 + $0x2f0] sm:$0xff] %v5057
        %5960 = vst [vmem:[%s351 + $0x2f8] sm:$0xff] %v5062
        %5961 = vst [vmem:[%s351 + $0x300] sm:$0xff] %v5067
        %5962 = vst [vmem:[%s351 + $0x308] sm:$0xff] %v5072
        %5963 = vst [vmem:[%s351 + $0x310] sm:$0xff] %v5077
        %5964 = vst [vmem:[%s351 + $0x318] sm:$0xff] %v5082
        %5965 = vst [vmem:[%s351 + $0x320] sm:$0xff] %v5087
        %5966 = vst [vmem:[%s351 + $0x328] sm:$0xff] %v5092
        %5967 = vst [vmem:[%s351 + $0x330] sm:$0xff] %v5097
        %5968 = vst [vmem:[%s351 + $0x338] sm:$0xff] %v5102
        %5969 = vst [vmem:[%s351 + $0x340] sm:$0xff] %v5107
        %5970 = vst [vmem:[%s351 + $0x348] sm:$0xff] %v5112
        %5971 = vst [vmem:[%s351 + $0x350] sm:$0xff] %v5117
        %5972 = vst [vmem:[%s351 + $0x358] sm:$0xff] %v5122
        %5973 = vst [vmem:[%s351 + $0x360] sm:$0xff] %v5127
        %5974 = vst [vmem:[%s351 + $0x368] sm:$0xff] %v5132
        %5975 = vst [vmem:[%s351 + $0x370] sm:$0xff] %v5137
        %5976 = vst [vmem:[%s351 + $0x378] sm:$0xff] %v5142
        %5977 = vst [vmem:[%s351 + $0x380] sm:$0xff] %v5147
        %5978 = vst [vmem:[%s351 + $0x388] sm:$0xff] %v5152
        %5979 = vst [vmem:[%s351 + $0x390] sm:$0xff] %v5157
        %5980 = vst [vmem:[%s351 + $0x398] sm:$0xff] %v5162
        %5981 = vst [vmem:[%s351 + $0x3a0] sm:$0xff] %v5167
        %5982 = vst [vmem:[%s351 + $0x3a8] sm:$0xff] %v5172
        %5983 = vst [vmem:[%s351 + $0x3b0] sm:$0xff] %v5177
        %5984 = vst [vmem:[%s351 + $0x3b8] sm:$0xff] %v5182
        %5985 = vst [vmem:[%s351 + $0x3c0] sm:$0xff] %v5187
        %5986 = vst [vmem:[%s351 + $0x3c8] sm:$0xff] %v5192
        %5987 = vst [vmem:[%s351 + $0x3d0] sm:$0xff] %v5197
        %5988 = vst [vmem:[%s351 + $0x3d8] sm:$0xff] %v5202
        %5989 = vst [vmem:[%s351 + $0x3e0] sm:$0xff] %v5207
        %5990 = vst [vmem:[%s351 + $0x3e8] sm:$0xff] %v5212
        %5991 = vst [vmem:[%s351 + $0x3f0] sm:$0xff] %v5217
        %5992 = vst [vmem:[%s351 + $0x3f8] sm:$0xff] %v5222
        %5993 = vst [vmem:[%s351 + $0x400] sm:$0xff] %v5227
        %5994 = vst [vmem:[%s351 + $0x408] sm:$0xff] %v5232
        %5995 = vst [vmem:[%s351 + $0x410] sm:$0xff] %v5237
        %5996 = vst [vmem:[%s351 + $0x418] sm:$0xff] %v5242
        %5997 = vst [vmem:[%s351 + $0x420] sm:$0xff] %v5247
        %5998 = vst [vmem:[%s351 + $0x428] sm:$0xff] %v5252
        %5999 = vst [vmem:[%s351 + $0x430] sm:$0xff] %v5257
        %6000 = vst [vmem:[%s351 + $0x438] sm:$0xff] %v5262
        %6001 = vst [vmem:[%s351 + $0x440] sm:$0xff] %v5267
        %6002 = vst [vmem:[%s351 + $0x448] sm:$0xff] %v5272
        %6003 = vst [vmem:[%s351 + $0x450] sm:$0xff] %v5277
        %6004 = vst [vmem:[%s351 + $0x458] sm:$0xff] %v5282
        %6005 = vst [vmem:[%s351 + $0x460] sm:$0xff] %v5287
        %6006 = vst [vmem:[%s351 + $0x468] sm:$0xff] %v5292
        %6007 = vst [vmem:[%s351 + $0x470] sm:$0xff] %v5297
        %6008 = vst [vmem:[%s351 + $0x478] sm:$0xff] %v5302
        %6009 = vst [vmem:[%s351 + $0x480] sm:$0xff] %v5307
        %6010 = vst [vmem:[%s351 + $0x488] sm:$0xff] %v5312
        %6011 = vst [vmem:[%s351 + $0x490] sm:$0xff] %v5317
        %6012 = vst [vmem:[%s351 + $0x498] sm:$0xff] %v5322
        %6013 = vst [vmem:[%s351 + $0x4a0] sm:$0xff] %v5327
        %6014 = vst [vmem:[%s351 + $0x4a8] sm:$0xff] %v5332
        %6015 = vst [vmem:[%s351 + $0x4b0] sm:$0xff] %v5337
        %6016 = vst [vmem:[%s351 + $0x4b8] sm:$0xff] %v5342
        %6017 = vst [vmem:[%s351 + $0x4c0] sm:$0xff] %v5347
        %6018 = vst [vmem:[%s351 + $0x4c8] sm:$0xff] %v5352
        %6019 = vst [vmem:[%s351 + $0x4d0] sm:$0xff] %v5357
        %6020 = vst [vmem:[%s351 + $0x4d8] sm:$0xff] %v5362
        %6021 = vst [vmem:[%s351 + $0x4e0] sm:$0xff] %v5367
        %6022 = vst [vmem:[%s351 + $0x4e8] sm:$0xff] %v5372
        %6023 = vst [vmem:[%s351 + $0x4f0] sm:$0xff] %v5377
        %6024 = vst [vmem:[%s351 + $0x4f8] sm:$0xff] %v5382
        %6025 = vst [vmem:[%s351 + $0x500] sm:$0xff] %v5387
        %6026 = vst [vmem:[%s351 + $0x508] sm:$0xff] %v5392
        %6027 = vst [vmem:[%s351 + $0x510] sm:$0xff] %v5397
        %6028 = vst [vmem:[%s351 + $0x518] sm:$0xff] %v5402
        %6029 = vst [vmem:[%s351 + $0x520] sm:$0xff] %v5407
        %6030 = vst [vmem:[%s351 + $0x528] sm:$0xff] %v5412
        %6031 = vst [vmem:[%s351 + $0x530] sm:$0xff] %v5417
        %6032 = vst [vmem:[%s351 + $0x538] sm:$0xff] %v5422
        %6033 = vst [vmem:[%s351 + $0x540] sm:$0xff] %v5427
        %6034 = vst [vmem:[%s351 + $0x548] sm:$0xff] %v5432
        %6035 = vst [vmem:[%s351 + $0x550] sm:$0xff] %v5437
        %6036 = vst [vmem:[%s351 + $0x558] sm:$0xff] %v5442
        %6037 = vst [vmem:[%s351 + $0x560] sm:$0xff] %v5447
        %6038 = vst [vmem:[%s351 + $0x568] sm:$0xff] %v5452
        %6039 = vst [vmem:[%s351 + $0x570] sm:$0xff] %v5457
        %6040 = vst [vmem:[%s351 + $0x578] sm:$0xff] %v5462
        %6041 = vst [vmem:[%s351 + $0x580] sm:$0xff] %v5467
        %6042 = vst [vmem:[%s351 + $0x588] sm:$0xff] %v5472
        %6043 = vst [vmem:[%s351 + $0x590] sm:$0xff] %v5477
        %6044 = vst [vmem:[%s351 + $0x598] sm:$0xff] %v5482
        %6045 = vst [vmem:[%s351 + $0x5a0] sm:$0xff] %v5487
        %6046 = vst [vmem:[%s351 + $0x5a8] sm:$0xff] %v5492
        %6047 = vst [vmem:[%s351 + $0x5b0] sm:$0xff] %v5497
        %6048 = vst [vmem:[%s351 + $0x5b8] sm:$0xff] %v5502
        %6049 = vst [vmem:[%s351 + $0x5c0] sm:$0xff] %v5507
        %6050 = vst [vmem:[%s351 + $0x5c8] sm:$0xff] %v5512
        %6051 = vst [vmem:[%s351 + $0x5d0] sm:$0xff] %v5517
        %6052 = vst [vmem:[%s351 + $0x5d8] sm:$0xff] %v5522
        %6053 = vst [vmem:[%s351 + $0x5e0] sm:$0xff] %v5527
        %6054 = vst [vmem:[%s351 + $0x5e8] sm:$0xff] %v5532
        %6055 = vst [vmem:[%s351 + $0x5f0] sm:$0xff] %v5537
        %6056 = vst [vmem:[%s351 + $0x5f8] sm:$0xff] %v5542
        %6057 = vst [vmem:[%s351 + $0x600] sm:$0xff] %v5547
        %6058 = vst [vmem:[%s351 + $0x608] sm:$0xff] %v5552
        %6059 = vst [vmem:[%s351 + $0x610] sm:$0xff] %v5557
        %6060 = vst [vmem:[%s351 + $0x618] sm:$0xff] %v5562
        %6061 = vst [vmem:[%s351 + $0x620] sm:$0xff] %v5567
        %6062 = vst [vmem:[%s351 + $0x628] sm:$0xff] %v5572
        %6063 = vst [vmem:[%s351 + $0x630] sm:$0xff] %v5577
        %6064 = vst [vmem:[%s351 + $0x638] sm:$0xff] %v5582
        %6065 = vst [vmem:[%s351 + $0x640] sm:$0xff] %v5587
        %6066 = vst [vmem:[%s351 + $0x648] sm:$0xff] %v5592
        %6067 = vst [vmem:[%s351 + $0x650] sm:$0xff] %v5597
        %6068 = vst [vmem:[%s351 + $0x658] sm:$0xff] %v5602
        %6069 = vst [vmem:[%s351 + $0x660] sm:$0xff] %v5607
        %6070 = vst [vmem:[%s351 + $0x668] sm:$0xff] %v5612
        %6071 = vst [vmem:[%s351 + $0x670] sm:$0xff] %v5617
        %6072 = vst [vmem:[%s351 + $0x678] sm:$0xff] %v5622
        %6073 = vst [vmem:[%s351 + $0x680] sm:$0xff] %v5627
        %6074 = vst [vmem:[%s351 + $0x688] sm:$0xff] %v5632
        %6075 = vst [vmem:[%s351 + $0x690] sm:$0xff] %v5637
        %6076 = vst [vmem:[%s351 + $0x698] sm:$0xff] %v5642
        %6077 = vst [vmem:[%s351 + $0x6a0] sm:$0xff] %v5647
        %6078 = vst [vmem:[%s351 + $0x6a8] sm:$0xff] %v5652
        %6079 = vst [vmem:[%s351 + $0x6b0] sm:$0xff] %v5657
        %6080 = vst [vmem:[%s351 + $0x6b8] sm:$0xff] %v5662
        %6081 = vst [vmem:[%s351 + $0x6c0] sm:$0xff] %v5667
        %6082 = vst [vmem:[%s351 + $0x6c8] sm:$0xff] %v5672
        %6083 = vst [vmem:[%s351 + $0x6d0] sm:$0xff] %v5677
        %6084 = vst [vmem:[%s351 + $0x6d8] sm:$0xff] %v5682
        %6085 = vst [vmem:[%s351 + $0x6e0] sm:$0xff] %v5687
        %6086 = vst [vmem:[%s351 + $0x6e8] sm:$0xff] %v5692
        %6087 = vst [vmem:[%s351 + $0x6f0] sm:$0xff] %v5697
        %6088 = vst [vmem:[%s351 + $0x6f8] sm:$0xff] %v5702
        %6089 = vst [vmem:[%s351 + $0x700] sm:$0xff] %v5707
        %6090 = vst [vmem:[%s351 + $0x708] sm:$0xff] %v5712
        %6091 = vst [vmem:[%s351 + $0x710] sm:$0xff] %v5717
        %6092 = vst [vmem:[%s351 + $0x718] sm:$0xff] %v5722
        %6093 = vst [vmem:[%s351 + $0x720] sm:$0xff] %v5727
        %6094 = vst [vmem:[%s351 + $0x728] sm:$0xff] %v5732
        %6095 = vst [vmem:[%s351 + $0x730] sm:$0xff] %v5737
        %6096 = vst [vmem:[%s351 + $0x738] sm:$0xff] %v5742
        %6097 = vst [vmem:[%s351 + $0x740] sm:$0xff] %v5747
        %6098 = vst [vmem:[%s351 + $0x748] sm:$0xff] %v5752
        %6099 = vst [vmem:[%s351 + $0x750] sm:$0xff] %v5757
        %6100 = vst [vmem:[%s351 + $0x758] sm:$0xff] %v5762
        %6101 = vst [vmem:[%s351 + $0x760] sm:$0xff] %v5767
        %6102 = vst [vmem:[%s351 + $0x768] sm:$0xff] %v5772
        %6103 = vst [vmem:[%s351 + $0x770] sm:$0xff] %v5777
        %6104 = vst [vmem:[%s351 + $0x778] sm:$0xff] %v5782
        %6105 = vst [vmem:[%s351 + $0x780] sm:$0xff] %v5787
        %6106 = vst [vmem:[%s351 + $0x788] sm:$0xff] %v5792
        %6107 = vst [vmem:[%s351 + $0x790] sm:$0xff] %v5797
        %6108 = vst [vmem:[%s351 + $0x798] sm:$0xff] %v5802
        %6109 = vst [vmem:[%s351 + $0x7a0] sm:$0xff] %v5807
        %6110 = vst [vmem:[%s351 + $0x7a8] sm:$0xff] %v5812
        %6111 = vst [vmem:[%s351 + $0x7b0] sm:$0xff] %v5817
        %6112 = vst [vmem:[%s351 + $0x7b8] sm:$0xff] %v5822
        %6113 = vst [vmem:[%s351 + $0x7c0] sm:$0xff] %v5827
        %6114 = vst [vmem:[%s351 + $0x7c8] sm:$0xff] %v5832
        %6115 = vst [vmem:[%s351 + $0x7d0] sm:$0xff] %v5837
        %6116 = vst [vmem:[%s351 + $0x7d8] sm:$0xff] %v5842
        %6117 = vst [vmem:[%s351 + $0x7e0] sm:$0xff] %v5847
        %6118 = vst [vmem:[%s351 + $0x7e8] sm:$0xff] %v5852
        %6119 = vst [vmem:[%s351 + $0x7f0] sm:$0xff] %v5857
        %6120 = vst [vmem:[%s351 + $0x7f8] sm:$0xff] %v5862
        %v6121 = vld [vmem:[%s311] sm:$0xff]
        %v6122 = vld [vmem:[%s311 + $0x8] sm:$0xff]
        %v6123 = vld [vmem:[%s311 + $0x10] sm:$0xff]
        %v6124 = vld [vmem:[%s311 + $0x18] sm:$0xff]
        %v6125 = vld [vmem:[#allocation7] sm:$0xff]
        %v6126 = vld [vmem:[#allocation7 + $0x8] sm:$0xff]
        %v6127 = vld [vmem:[#allocation7 + $0x10] sm:$0xff]
        %v6128 = vld [vmem:[#allocation7 + $0x18] sm:$0xff]
        %v6129 = vld [vmem:[#allocation7 + $0x20] sm:$0xff]
        %v6130 = vld [vmem:[#allocation7 + $0x28] sm:$0xff]
        %v6131 = vld [vmem:[#allocation7 + $0x30] sm:$0xff]
        %v6132 = vld [vmem:[#allocation7 + $0x38] sm:$0xff]
        %v6133 = vld [vmem:[#allocation7 + $0x40] sm:$0xff]
        %v6134 = vld [vmem:[#allocation7 + $0x48] sm:$0xff]
        %v6135 = vld [vmem:[#allocation7 + $0x50] sm:$0xff]
        %v6136 = vld [vmem:[#allocation7 + $0x58] sm:$0xff]
        %v6137 = vld [vmem:[#allocation7 + $0x60] sm:$0xff]
        %v6138 = vld [vmem:[#allocation7 + $0x68] sm:$0xff]
        %v6139 = vld [vmem:[#allocation7 + $0x70] sm:$0xff]
        %v6140 = vld [vmem:[#allocation7 + $0x78] sm:$0xff]
        %v6141 = vld [vmem:[#allocation7 + $0x80] sm:$0xff]
        %v6142 = vld [vmem:[#allocation7 + $0x88] sm:$0xff]
        %v6143 = vld [vmem:[#allocation7 + $0x90] sm:$0xff]
        %v6144 = vld [vmem:[#allocation7 + $0x98] sm:$0xff]
        %v6145 = vld [vmem:[#allocation7 + $0xa0] sm:$0xff]
        %v6146 = vld [vmem:[#allocation7 + $0xa8] sm:$0xff]
        %v6147 = vld [vmem:[#allocation7 + $0xb0] sm:$0xff]
        %v6148 = vld [vmem:[#allocation7 + $0xb8] sm:$0xff]
        %v6149 = vld [vmem:[#allocation7 + $0xc0] sm:$0xff]
        %v6150 = vld [vmem:[#allocation7 + $0xc8] sm:$0xff]
        %v6151 = vld [vmem:[#allocation7 + $0xd0] sm:$0xff]
        %v6152 = vld [vmem:[#allocation7 + $0xd8] sm:$0xff]
        %v6153 = vld [vmem:[#allocation7 + $0xe0] sm:$0xff]
        %v6154 = vld [vmem:[#allocation7 + $0xe8] sm:$0xff]
        %v6155 = vld [vmem:[#allocation7 + $0xf0] sm:$0xff]
        %v6156 = vld [vmem:[#allocation7 + $0xf8] sm:$0xff]
        %v6157 = vld [vmem:[#allocation7 + $0x100] sm:$0xff]
        %v6158 = vld [vmem:[#allocation7 + $0x108] sm:$0xff]
        %v6159 = vld [vmem:[#allocation7 + $0x110] sm:$0xff]
        %v6160 = vld [vmem:[#allocation7 + $0x118] sm:$0xff]
        %v6161 = vld [vmem:[#allocation7 + $0x120] sm:$0xff]
        %v6162 = vld [vmem:[#allocation7 + $0x128] sm:$0xff]
        %v6163 = vld [vmem:[#allocation7 + $0x130] sm:$0xff]
        %v6164 = vld [vmem:[#allocation7 + $0x138] sm:$0xff]
        %v6165 = vld [vmem:[#allocation7 + $0x140] sm:$0xff]
        %v6166 = vld [vmem:[#allocation7 + $0x148] sm:$0xff]
        %v6167 = vld [vmem:[#allocation7 + $0x150] sm:$0xff]
        %v6168 = vld [vmem:[#allocation7 + $0x158] sm:$0xff]
        %v6169 = vld [vmem:[#allocation7 + $0x160] sm:$0xff]
        %v6170 = vld [vmem:[#allocation7 + $0x168] sm:$0xff]
        %v6171 = vld [vmem:[#allocation7 + $0x170] sm:$0xff]
        %v6172 = vld [vmem:[#allocation7 + $0x178] sm:$0xff]
        %v6173 = vld [vmem:[#allocation7 + $0x180] sm:$0xff]
        %v6174 = vld [vmem:[#allocation7 + $0x188] sm:$0xff]
        %v6175 = vld [vmem:[#allocation7 + $0x190] sm:$0xff]
        %v6176 = vld [vmem:[#allocation7 + $0x198] sm:$0xff]
        %v6177 = vld [vmem:[#allocation7 + $0x1a0] sm:$0xff]
        %v6178 = vld [vmem:[#allocation7 + $0x1a8] sm:$0xff]
        %v6179 = vld [vmem:[#allocation7 + $0x1b0] sm:$0xff]
        %v6180 = vld [vmem:[#allocation7 + $0x1b8] sm:$0xff]
        %v6181 = vld [vmem:[#allocation7 + $0x1c0] sm:$0xff]
        %v6182 = vld [vmem:[#allocation7 + $0x1c8] sm:$0xff]
        %v6183 = vld [vmem:[#allocation7 + $0x1d0] sm:$0xff]
        %v6184 = vld [vmem:[#allocation7 + $0x1d8] sm:$0xff]
        %v6185 = vld [vmem:[#allocation7 + $0x1e0] sm:$0xff]
        %v6186 = vld [vmem:[#allocation7 + $0x1e8] sm:$0xff]
        %v6187 = vld [vmem:[#allocation7 + $0x1f0] sm:$0xff]
        %v6188 = vld [vmem:[#allocation7 + $0x1f8] sm:$0xff]
        %v6189 = vld [vmem:[#allocation7 + $0x200] sm:$0xff]
        %v6190 = vld [vmem:[#allocation7 + $0x208] sm:$0xff]
        %v6191 = vld [vmem:[#allocation7 + $0x210] sm:$0xff]
        %v6192 = vld [vmem:[#allocation7 + $0x218] sm:$0xff]
        %v6193 = vld [vmem:[#allocation7 + $0x220] sm:$0xff]
        %v6194 = vld [vmem:[#allocation7 + $0x228] sm:$0xff]
        %v6195 = vld [vmem:[#allocation7 + $0x230] sm:$0xff]
        %v6196 = vld [vmem:[#allocation7 + $0x238] sm:$0xff]
        %v6197 = vld [vmem:[#allocation7 + $0x240] sm:$0xff]
        %v6198 = vld [vmem:[#allocation7 + $0x248] sm:$0xff]
        %v6199 = vld [vmem:[#allocation7 + $0x250] sm:$0xff]
        %v6200 = vld [vmem:[#allocation7 + $0x258] sm:$0xff]
        %v6201 = vld [vmem:[#allocation7 + $0x260] sm:$0xff]
        %v6202 = vld [vmem:[#allocation7 + $0x268] sm:$0xff]
        %v6203 = vld [vmem:[#allocation7 + $0x270] sm:$0xff]
        %v6204 = vld [vmem:[#allocation7 + $0x278] sm:$0xff]
        %v6205 = vld [vmem:[#allocation7 + $0x280] sm:$0xff]
        %v6206 = vld [vmem:[#allocation7 + $0x288] sm:$0xff]
        %v6207 = vld [vmem:[#allocation7 + $0x290] sm:$0xff]
        %v6208 = vld [vmem:[#allocation7 + $0x298] sm:$0xff]
        %v6209 = vld [vmem:[#allocation7 + $0x2a0] sm:$0xff]
        %v6210 = vld [vmem:[#allocation7 + $0x2a8] sm:$0xff]
        %v6211 = vld [vmem:[#allocation7 + $0x2b0] sm:$0xff]
        %v6212 = vld [vmem:[#allocation7 + $0x2b8] sm:$0xff]
        %v6213 = vld [vmem:[#allocation7 + $0x2c0] sm:$0xff]
        %v6214 = vld [vmem:[#allocation7 + $0x2c8] sm:$0xff]
        %v6215 = vld [vmem:[#allocation7 + $0x2d0] sm:$0xff]
        %v6216 = vld [vmem:[#allocation7 + $0x2d8] sm:$0xff]
        %v6217 = vld [vmem:[#allocation7 + $0x2e0] sm:$0xff]
        %v6218 = vld [vmem:[#allocation7 + $0x2e8] sm:$0xff]
        %v6219 = vld [vmem:[#allocation7 + $0x2f0] sm:$0xff]
        %v6220 = vld [vmem:[#allocation7 + $0x2f8] sm:$0xff]
        %v6221 = vld [vmem:[#allocation7 + $0x300] sm:$0xff]
        %v6222 = vld [vmem:[#allocation7 + $0x308] sm:$0xff]
        %v6223 = vld [vmem:[#allocation7 + $0x310] sm:$0xff]
        %v6224 = vld [vmem:[#allocation7 + $0x318] sm:$0xff]
        %v6225 = vld [vmem:[#allocation7 + $0x320] sm:$0xff]
        %v6226 = vld [vmem:[#allocation7 + $0x328] sm:$0xff]
        %v6227 = vld [vmem:[#allocation7 + $0x330] sm:$0xff]
        %v6228 = vld [vmem:[#allocation7 + $0x338] sm:$0xff]
        %v6229 = vld [vmem:[#allocation7 + $0x340] sm:$0xff]
        %v6230 = vld [vmem:[#allocation7 + $0x348] sm:$0xff]
        %v6231 = vld [vmem:[#allocation7 + $0x350] sm:$0xff]
        %v6232 = vld [vmem:[#allocation7 + $0x358] sm:$0xff]
        %v6233 = vld [vmem:[#allocation7 + $0x360] sm:$0xff]
        %v6234 = vld [vmem:[#allocation7 + $0x368] sm:$0xff]
        %v6235 = vld [vmem:[#allocation7 + $0x370] sm:$0xff]
        %v6236 = vld [vmem:[#allocation7 + $0x378] sm:$0xff]
        %v6237 = vld [vmem:[#allocation7 + $0x380] sm:$0xff]
        %v6238 = vld [vmem:[#allocation7 + $0x388] sm:$0xff]
        %v6239 = vld [vmem:[#allocation7 + $0x390] sm:$0xff]
        %v6240 = vld [vmem:[#allocation7 + $0x398] sm:$0xff]
        %v6241 = vld [vmem:[#allocation7 + $0x3a0] sm:$0xff]
        %v6242 = vld [vmem:[#allocation7 + $0x3a8] sm:$0xff]
        %v6243 = vld [vmem:[#allocation7 + $0x3b0] sm:$0xff]
        %v6244 = vld [vmem:[#allocation7 + $0x3b8] sm:$0xff]
        %v6245 = vld [vmem:[#allocation7 + $0x3c0] sm:$0xff]
        %v6246 = vld [vmem:[#allocation7 + $0x3c8] sm:$0xff]
        %v6247 = vld [vmem:[#allocation7 + $0x3d0] sm:$0xff]
        %v6248 = vld [vmem:[#allocation7 + $0x3d8] sm:$0xff]
        %v6249 = vld [vmem:[#allocation7 + $0x3e0] sm:$0xff]
        %v6250 = vld [vmem:[#allocation7 + $0x3e8] sm:$0xff]
        %v6251 = vld [vmem:[#allocation7 + $0x3f0] sm:$0xff]
        %v6252 = vld [vmem:[#allocation7 + $0x3f8] sm:$0xff]
        %v6253 = vld [vmem:[#allocation7 + $0x400] sm:$0xff]
        %v6254 = vld [vmem:[#allocation7 + $0x408] sm:$0xff]
        %v6255 = vld [vmem:[#allocation7 + $0x410] sm:$0xff]
        %v6256 = vld [vmem:[#allocation7 + $0x418] sm:$0xff]
        %v6257 = vld [vmem:[#allocation7 + $0x420] sm:$0xff]
        %v6258 = vld [vmem:[#allocation7 + $0x428] sm:$0xff]
        %v6259 = vld [vmem:[#allocation7 + $0x430] sm:$0xff]
        %v6260 = vld [vmem:[#allocation7 + $0x438] sm:$0xff]
        %v6261 = vld [vmem:[#allocation7 + $0x440] sm:$0xff]
        %v6262 = vld [vmem:[#allocation7 + $0x448] sm:$0xff]
        %v6263 = vld [vmem:[#allocation7 + $0x450] sm:$0xff]
        %v6264 = vld [vmem:[#allocation7 + $0x458] sm:$0xff]
        %v6265 = vld [vmem:[#allocation7 + $0x460] sm:$0xff]
        %v6266 = vld [vmem:[#allocation7 + $0x468] sm:$0xff]
        %v6267 = vld [vmem:[#allocation7 + $0x470] sm:$0xff]
        %v6268 = vld [vmem:[#allocation7 + $0x478] sm:$0xff]
        %v6269 = vld [vmem:[#allocation7 + $0x480] sm:$0xff]
        %v6270 = vld [vmem:[#allocation7 + $0x488] sm:$0xff]
        %v6271 = vld [vmem:[#allocation7 + $0x490] sm:$0xff]
        %v6272 = vld [vmem:[#allocation7 + $0x498] sm:$0xff]
        %v6273 = vld [vmem:[#allocation7 + $0x4a0] sm:$0xff]
        %v6274 = vld [vmem:[#allocation7 + $0x4a8] sm:$0xff]
        %v6275 = vld [vmem:[#allocation7 + $0x4b0] sm:$0xff]
        %v6276 = vld [vmem:[#allocation7 + $0x4b8] sm:$0xff]
        %v6277 = vld [vmem:[#allocation7 + $0x4c0] sm:$0xff]
        %v6278 = vld [vmem:[#allocation7 + $0x4c8] sm:$0xff]
        %v6279 = vld [vmem:[#allocation7 + $0x4d0] sm:$0xff]
        %v6280 = vld [vmem:[#allocation7 + $0x4d8] sm:$0xff]
        %v6281 = vld [vmem:[#allocation7 + $0x4e0] sm:$0xff]
        %v6282 = vld [vmem:[#allocation7 + $0x4e8] sm:$0xff]
        %v6283 = vld [vmem:[#allocation7 + $0x4f0] sm:$0xff]
        %v6284 = vld [vmem:[#allocation7 + $0x4f8] sm:$0xff]
        %v6285 = vld [vmem:[#allocation7 + $0x500] sm:$0xff]
        %v6286 = vld [vmem:[#allocation7 + $0x508] sm:$0xff]
        %v6287 = vld [vmem:[#allocation7 + $0x510] sm:$0xff]
        %v6288 = vld [vmem:[#allocation7 + $0x518] sm:$0xff]
        %v6289 = vld [vmem:[#allocation7 + $0x520] sm:$0xff]
        %v6290 = vld [vmem:[#allocation7 + $0x528] sm:$0xff]
        %v6291 = vld [vmem:[#allocation7 + $0x530] sm:$0xff]
        %v6292 = vld [vmem:[#allocation7 + $0x538] sm:$0xff]
        %v6293 = vld [vmem:[#allocation7 + $0x540] sm:$0xff]
        %v6294 = vld [vmem:[#allocation7 + $0x548] sm:$0xff]
        %v6295 = vld [vmem:[#allocation7 + $0x550] sm:$0xff]
        %v6296 = vld [vmem:[#allocation7 + $0x558] sm:$0xff]
        %v6297 = vld [vmem:[#allocation7 + $0x560] sm:$0xff]
        %v6298 = vld [vmem:[#allocation7 + $0x568] sm:$0xff]
        %v6299 = vld [vmem:[#allocation7 + $0x570] sm:$0xff]
        %v6300 = vld [vmem:[#allocation7 + $0x578] sm:$0xff]
        %v6301 = vld [vmem:[#allocation7 + $0x580] sm:$0xff]
        %v6302 = vld [vmem:[#allocation7 + $0x588] sm:$0xff]
        %v6303 = vld [vmem:[#allocation7 + $0x590] sm:$0xff]
        %v6304 = vld [vmem:[#allocation7 + $0x598] sm:$0xff]
        %v6305 = vld [vmem:[#allocation7 + $0x5a0] sm:$0xff]
        %v6306 = vld [vmem:[#allocation7 + $0x5a8] sm:$0xff]
        %v6307 = vld [vmem:[#allocation7 + $0x5b0] sm:$0xff]
        %v6308 = vld [vmem:[#allocation7 + $0x5b8] sm:$0xff]
        %v6309 = vld [vmem:[#allocation7 + $0x5c0] sm:$0xff]
        %v6310 = vld [vmem:[#allocation7 + $0x5c8] sm:$0xff]
        %v6311 = vld [vmem:[#allocation7 + $0x5d0] sm:$0xff]
        %v6312 = vld [vmem:[#allocation7 + $0x5d8] sm:$0xff]
        %v6313 = vld [vmem:[#allocation7 + $0x5e0] sm:$0xff]
        %v6314 = vld [vmem:[#allocation7 + $0x5e8] sm:$0xff]
        %v6315 = vld [vmem:[#allocation7 + $0x5f0] sm:$0xff]
        %v6316 = vld [vmem:[#allocation7 + $0x5f8] sm:$0xff]
        %v6317 = vld [vmem:[#allocation7 + $0x600] sm:$0xff]
        %v6318 = vld [vmem:[#allocation7 + $0x608] sm:$0xff]
        %v6319 = vld [vmem:[#allocation7 + $0x610] sm:$0xff]
        %v6320 = vld [vmem:[#allocation7 + $0x618] sm:$0xff]
        %v6321 = vld [vmem:[#allocation7 + $0x620] sm:$0xff]
        %v6322 = vld [vmem:[#allocation7 + $0x628] sm:$0xff]
        %v6323 = vld [vmem:[#allocation7 + $0x630] sm:$0xff]
        %v6324 = vld [vmem:[#allocation7 + $0x638] sm:$0xff]
        %v6325 = vld [vmem:[#allocation7 + $0x640] sm:$0xff]
        %v6326 = vld [vmem:[#allocation7 + $0x648] sm:$0xff]
        %v6327 = vld [vmem:[#allocation7 + $0x650] sm:$0xff]
        %v6328 = vld [vmem:[#allocation7 + $0x658] sm:$0xff]
        %v6329 = vld [vmem:[#allocation7 + $0x660] sm:$0xff]
        %v6330 = vld [vmem:[#allocation7 + $0x668] sm:$0xff]
        %v6331 = vld [vmem:[#allocation7 + $0x670] sm:$0xff]
        %v6332 = vld [vmem:[#allocation7 + $0x678] sm:$0xff]
        %v6333 = vld [vmem:[#allocation7 + $0x680] sm:$0xff]
        %v6334 = vld [vmem:[#allocation7 + $0x688] sm:$0xff]
        %v6335 = vld [vmem:[#allocation7 + $0x690] sm:$0xff]
        %v6336 = vld [vmem:[#allocation7 + $0x698] sm:$0xff]
        %v6337 = vld [vmem:[#allocation7 + $0x6a0] sm:$0xff]
        %v6338 = vld [vmem:[#allocation7 + $0x6a8] sm:$0xff]
        %v6339 = vld [vmem:[#allocation7 + $0x6b0] sm:$0xff]
        %v6340 = vld [vmem:[#allocation7 + $0x6b8] sm:$0xff]
        %v6341 = vld [vmem:[#allocation7 + $0x6c0] sm:$0xff]
        %v6342 = vld [vmem:[#allocation7 + $0x6c8] sm:$0xff]
        %v6343 = vld [vmem:[#allocation7 + $0x6d0] sm:$0xff]
        %v6344 = vld [vmem:[#allocation7 + $0x6d8] sm:$0xff]
        %v6345 = vld [vmem:[#allocation7 + $0x6e0] sm:$0xff]
        %v6346 = vld [vmem:[#allocation7 + $0x6e8] sm:$0xff]
        %v6347 = vld [vmem:[#allocation7 + $0x6f0] sm:$0xff]
        %v6348 = vld [vmem:[#allocation7 + $0x6f8] sm:$0xff]
        %v6349 = vld [vmem:[#allocation7 + $0x700] sm:$0xff]
        %v6350 = vld [vmem:[#allocation7 + $0x708] sm:$0xff]
        %v6351 = vld [vmem:[#allocation7 + $0x710] sm:$0xff]
        %v6352 = vld [vmem:[#allocation7 + $0x718] sm:$0xff]
        %v6353 = vld [vmem:[#allocation7 + $0x720] sm:$0xff]
        %v6354 = vld [vmem:[#allocation7 + $0x728] sm:$0xff]
        %v6355 = vld [vmem:[#allocation7 + $0x730] sm:$0xff]
        %v6356 = vld [vmem:[#allocation7 + $0x738] sm:$0xff]
        %v6357 = vld [vmem:[#allocation7 + $0x740] sm:$0xff]
        %v6358 = vld [vmem:[#allocation7 + $0x748] sm:$0xff]
        %v6359 = vld [vmem:[#allocation7 + $0x750] sm:$0xff]
        %v6360 = vld [vmem:[#allocation7 + $0x758] sm:$0xff]
        %v6361 = vld [vmem:[#allocation7 + $0x760] sm:$0xff]
        %v6362 = vld [vmem:[#allocation7 + $0x768] sm:$0xff]
        %v6363 = vld [vmem:[#allocation7 + $0x770] sm:$0xff]
        %v6364 = vld [vmem:[#allocation7 + $0x778] sm:$0xff]
        %v6365 = vld [vmem:[#allocation7 + $0x780] sm:$0xff]
        %v6366 = vld [vmem:[#allocation7 + $0x788] sm:$0xff]
        %v6367 = vld [vmem:[#allocation7 + $0x790] sm:$0xff]
        %v6368 = vld [vmem:[#allocation7 + $0x798] sm:$0xff]
        %v6369 = vld [vmem:[#allocation7 + $0x7a0] sm:$0xff]
        %v6370 = vld [vmem:[#allocation7 + $0x7a8] sm:$0xff]
        %v6371 = vld [vmem:[#allocation7 + $0x7b0] sm:$0xff]
        %v6372 = vld [vmem:[#allocation7 + $0x7b8] sm:$0xff]
        %v6373 = vld [vmem:[#allocation7 + $0x7c0] sm:$0xff]
        %v6374 = vld [vmem:[#allocation7 + $0x7c8] sm:$0xff]
        %v6375 = vld [vmem:[#allocation7 + $0x7d0] sm:$0xff]
        %v6376 = vld [vmem:[#allocation7 + $0x7d8] sm:$0xff]
        %v6377 = vld [vmem:[#allocation7 + $0x7e0] sm:$0xff]
        %v6378 = vld [vmem:[#allocation7 + $0x7e8] sm:$0xff]
        %v6379 = vld [vmem:[#allocation7 + $0x7f0] sm:$0xff]
        %v6380 = vld [vmem:[#allocation7 + $0x7f8] sm:$0xff]
        %v6381 = vld [vmem:[#allocation7 + $0x800] sm:$0xff]
        %v6382 = vld [vmem:[#allocation7 + $0x808] sm:$0xff]
        %v6383 = vld [vmem:[#allocation7 + $0x810] sm:$0xff]
        %v6384 = vld [vmem:[#allocation7 + $0x818] sm:$0xff]
        %v6385 = vld [vmem:[#allocation7 + $0x820] sm:$0xff]
        %v6386 = vld [vmem:[#allocation7 + $0x828] sm:$0xff]
        %v6387 = vld [vmem:[#allocation7 + $0x830] sm:$0xff]
        %v6388 = vld [vmem:[#allocation7 + $0x838] sm:$0xff]
        %v6389 = vld [vmem:[#allocation7 + $0x840] sm:$0xff]
        %v6390 = vld [vmem:[#allocation7 + $0x848] sm:$0xff]
        %v6391 = vld [vmem:[#allocation7 + $0x850] sm:$0xff]
        %v6392 = vld [vmem:[#allocation7 + $0x858] sm:$0xff]
        %v6393 = vld [vmem:[#allocation7 + $0x860] sm:$0xff]
        %v6394 = vld [vmem:[#allocation7 + $0x868] sm:$0xff]
        %v6395 = vld [vmem:[#allocation7 + $0x870] sm:$0xff]
        %v6396 = vld [vmem:[#allocation7 + $0x878] sm:$0xff]
        %v6397 = vld [vmem:[#allocation7 + $0x880] sm:$0xff]
        %v6398 = vld [vmem:[#allocation7 + $0x888] sm:$0xff]
        %v6399 = vld [vmem:[#allocation7 + $0x890] sm:$0xff]
        %v6400 = vld [vmem:[#allocation7 + $0x898] sm:$0xff]
        %v6401 = vld [vmem:[#allocation7 + $0x8a0] sm:$0xff]
        %v6402 = vld [vmem:[#allocation7 + $0x8a8] sm:$0xff]
        %v6403 = vld [vmem:[#allocation7 + $0x8b0] sm:$0xff]
        %v6404 = vld [vmem:[#allocation7 + $0x8b8] sm:$0xff]
        %v6405 = vld [vmem:[#allocation7 + $0x8c0] sm:$0xff]
        %v6406 = vld [vmem:[#allocation7 + $0x8c8] sm:$0xff]
        %v6407 = vld [vmem:[#allocation7 + $0x8d0] sm:$0xff]
        %v6408 = vld [vmem:[#allocation7 + $0x8d8] sm:$0xff]
        %v6409 = vld [vmem:[#allocation7 + $0x8e0] sm:$0xff]
        %v6410 = vld [vmem:[#allocation7 + $0x8e8] sm:$0xff]
        %v6411 = vld [vmem:[#allocation7 + $0x8f0] sm:$0xff]
        %v6412 = vld [vmem:[#allocation7 + $0x8f8] sm:$0xff]
        %v6413 = vld [vmem:[#allocation7 + $0x900] sm:$0xff]
        %v6414 = vld [vmem:[#allocation7 + $0x908] sm:$0xff]
        %v6415 = vld [vmem:[#allocation7 + $0x910] sm:$0xff]
        %v6416 = vld [vmem:[#allocation7 + $0x918] sm:$0xff]
        %v6417 = vld [vmem:[#allocation7 + $0x920] sm:$0xff]
        %v6418 = vld [vmem:[#allocation7 + $0x928] sm:$0xff]
        %v6419 = vld [vmem:[#allocation7 + $0x930] sm:$0xff]
        %v6420 = vld [vmem:[#allocation7 + $0x938] sm:$0xff]
        %v6421 = vld [vmem:[#allocation7 + $0x940] sm:$0xff]
        %v6422 = vld [vmem:[#allocation7 + $0x948] sm:$0xff]
        %v6423 = vld [vmem:[#allocation7 + $0x950] sm:$0xff]
        %v6424 = vld [vmem:[#allocation7 + $0x958] sm:$0xff]
        %v6425 = vld [vmem:[#allocation7 + $0x960] sm:$0xff]
        %v6426 = vld [vmem:[#allocation7 + $0x968] sm:$0xff]
        %v6427 = vld [vmem:[#allocation7 + $0x970] sm:$0xff]
        %v6428 = vld [vmem:[#allocation7 + $0x978] sm:$0xff]
        %v6429 = vld [vmem:[#allocation7 + $0x980] sm:$0xff]
        %v6430 = vld [vmem:[#allocation7 + $0x988] sm:$0xff]
        %v6431 = vld [vmem:[#allocation7 + $0x990] sm:$0xff]
        %v6432 = vld [vmem:[#allocation7 + $0x998] sm:$0xff]
        %v6433 = vld [vmem:[#allocation7 + $0x9a0] sm:$0xff]
        %v6434 = vld [vmem:[#allocation7 + $0x9a8] sm:$0xff]
        %v6435 = vld [vmem:[#allocation7 + $0x9b0] sm:$0xff]
        %v6436 = vld [vmem:[#allocation7 + $0x9b8] sm:$0xff]
        %v6437 = vld [vmem:[#allocation7 + $0x9c0] sm:$0xff]
        %v6438 = vld [vmem:[#allocation7 + $0x9c8] sm:$0xff]
        %v6439 = vld [vmem:[#allocation7 + $0x9d0] sm:$0xff]
        %v6440 = vld [vmem:[#allocation7 + $0x9d8] sm:$0xff]
        %v6441 = vld [vmem:[#allocation7 + $0x9e0] sm:$0xff]
        %v6442 = vld [vmem:[#allocation7 + $0x9e8] sm:$0xff]
        %v6443 = vld [vmem:[#allocation7 + $0x9f0] sm:$0xff]
        %v6444 = vld [vmem:[#allocation7 + $0x9f8] sm:$0xff]
        %v6445 = vld [vmem:[#allocation7 + $0xa00] sm:$0xff]
        %v6446 = vld [vmem:[#allocation7 + $0xa08] sm:$0xff]
        %v6447 = vld [vmem:[#allocation7 + $0xa10] sm:$0xff]
        %v6448 = vld [vmem:[#allocation7 + $0xa18] sm:$0xff]
        %v6449 = vld [vmem:[#allocation7 + $0xa20] sm:$0xff]
        %v6450 = vld [vmem:[#allocation7 + $0xa28] sm:$0xff]
        %v6451 = vld [vmem:[#allocation7 + $0xa30] sm:$0xff]
        %v6452 = vld [vmem:[#allocation7 + $0xa38] sm:$0xff]
        %v6453 = vld [vmem:[#allocation7 + $0xa40] sm:$0xff]
        %v6454 = vld [vmem:[#allocation7 + $0xa48] sm:$0xff]
        %v6455 = vld [vmem:[#allocation7 + $0xa50] sm:$0xff]
        %v6456 = vld [vmem:[#allocation7 + $0xa58] sm:$0xff]
        %v6457 = vld [vmem:[#allocation7 + $0xa60] sm:$0xff]
        %v6458 = vld [vmem:[#allocation7 + $0xa68] sm:$0xff]
        %v6459 = vld [vmem:[#allocation7 + $0xa70] sm:$0xff]
        %v6460 = vld [vmem:[#allocation7 + $0xa78] sm:$0xff]
        %v6461 = vld [vmem:[#allocation7 + $0xa80] sm:$0xff]
        %v6462 = vld [vmem:[#allocation7 + $0xa88] sm:$0xff]
        %v6463 = vld [vmem:[#allocation7 + $0xa90] sm:$0xff]
        %v6464 = vld [vmem:[#allocation7 + $0xa98] sm:$0xff]
        %v6465 = vld [vmem:[#allocation7 + $0xaa0] sm:$0xff]
        %v6466 = vld [vmem:[#allocation7 + $0xaa8] sm:$0xff]
        %v6467 = vld [vmem:[#allocation7 + $0xab0] sm:$0xff]
        %v6468 = vld [vmem:[#allocation7 + $0xab8] sm:$0xff]
        %v6469 = vld [vmem:[#allocation7 + $0xac0] sm:$0xff]
        %v6470 = vld [vmem:[#allocation7 + $0xac8] sm:$0xff]
        %v6471 = vld [vmem:[#allocation7 + $0xad0] sm:$0xff]
        %v6472 = vld [vmem:[#allocation7 + $0xad8] sm:$0xff]
        %v6473 = vld [vmem:[#allocation7 + $0xae0] sm:$0xff]
        %v6474 = vld [vmem:[#allocation7 + $0xae8] sm:$0xff]
        %v6475 = vld [vmem:[#allocation7 + $0xaf0] sm:$0xff]
        %v6476 = vld [vmem:[#allocation7 + $0xaf8] sm:$0xff]
        %v6477 = vld [vmem:[#allocation7 + $0xb00] sm:$0xff]
        %v6478 = vld [vmem:[#allocation7 + $0xb08] sm:$0xff]
        %v6479 = vld [vmem:[#allocation7 + $0xb10] sm:$0xff]
        %v6480 = vld [vmem:[#allocation7 + $0xb18] sm:$0xff]
        %v6481 = vld [vmem:[#allocation7 + $0xb20] sm:$0xff]
        %v6482 = vld [vmem:[#allocation7 + $0xb28] sm:$0xff]
        %v6483 = vld [vmem:[#allocation7 + $0xb30] sm:$0xff]
        %v6484 = vld [vmem:[#allocation7 + $0xb38] sm:$0xff]
        %v6485 = vld [vmem:[#allocation7 + $0xb40] sm:$0xff]
        %v6486 = vld [vmem:[#allocation7 + $0xb48] sm:$0xff]
        %v6487 = vld [vmem:[#allocation7 + $0xb50] sm:$0xff]
        %v6488 = vld [vmem:[#allocation7 + $0xb58] sm:$0xff]
        %v6489 = vld [vmem:[#allocation7 + $0xb60] sm:$0xff]
        %v6490 = vld [vmem:[#allocation7 + $0xb68] sm:$0xff]
        %v6491 = vld [vmem:[#allocation7 + $0xb70] sm:$0xff]
        %v6492 = vld [vmem:[#allocation7 + $0xb78] sm:$0xff]
        %v6493 = vld [vmem:[#allocation7 + $0xb80] sm:$0xff]
        %v6494 = vld [vmem:[#allocation7 + $0xb88] sm:$0xff]
        %v6495 = vld [vmem:[#allocation7 + $0xb90] sm:$0xff]
        %v6496 = vld [vmem:[#allocation7 + $0xb98] sm:$0xff]
        %v6497 = vld [vmem:[#allocation7 + $0xba0] sm:$0xff]
        %v6498 = vld [vmem:[#allocation7 + $0xba8] sm:$0xff]
        %v6499 = vld [vmem:[#allocation7 + $0xbb0] sm:$0xff]
        %v6500 = vld [vmem:[#allocation7 + $0xbb8] sm:$0xff]
        %v6501 = vld [vmem:[#allocation7 + $0xbc0] sm:$0xff]
        %v6502 = vld [vmem:[#allocation7 + $0xbc8] sm:$0xff]
        %v6503 = vld [vmem:[#allocation7 + $0xbd0] sm:$0xff]
        %v6504 = vld [vmem:[#allocation7 + $0xbd8] sm:$0xff]
        %v6505 = vld [vmem:[#allocation7 + $0xbe0] sm:$0xff]
        %v6506 = vld [vmem:[#allocation7 + $0xbe8] sm:$0xff]
        %v6507 = vld [vmem:[#allocation7 + $0xbf0] sm:$0xff]
        %v6508 = vld [vmem:[#allocation7 + $0xbf8] sm:$0xff]
        %v6509 = vld [vmem:[#allocation7 + $0xc00] sm:$0xff]
        %v6510 = vld [vmem:[#allocation7 + $0xc08] sm:$0xff]
        %v6511 = vld [vmem:[#allocation7 + $0xc10] sm:$0xff]
        %v6512 = vld [vmem:[#allocation7 + $0xc18] sm:$0xff]
        %v6513 = vld [vmem:[#allocation7 + $0xc20] sm:$0xff]
        %v6514 = vld [vmem:[#allocation7 + $0xc28] sm:$0xff]
        %v6515 = vld [vmem:[#allocation7 + $0xc30] sm:$0xff]
        %v6516 = vld [vmem:[#allocation7 + $0xc38] sm:$0xff]
        %v6517 = vld [vmem:[#allocation7 + $0xc40] sm:$0xff]
        %v6518 = vld [vmem:[#allocation7 + $0xc48] sm:$0xff]
        %v6519 = vld [vmem:[#allocation7 + $0xc50] sm:$0xff]
        %v6520 = vld [vmem:[#allocation7 + $0xc58] sm:$0xff]
        %v6521 = vld [vmem:[#allocation7 + $0xc60] sm:$0xff]
        %v6522 = vld [vmem:[#allocation7 + $0xc68] sm:$0xff]
        %v6523 = vld [vmem:[#allocation7 + $0xc70] sm:$0xff]
        %v6524 = vld [vmem:[#allocation7 + $0xc78] sm:$0xff]
        %v6525 = vld [vmem:[#allocation7 + $0xc80] sm:$0xff]
        %v6526 = vld [vmem:[#allocation7 + $0xc88] sm:$0xff]
        %v6527 = vld [vmem:[#allocation7 + $0xc90] sm:$0xff]
        %v6528 = vld [vmem:[#allocation7 + $0xc98] sm:$0xff]
        %v6529 = vld [vmem:[#allocation7 + $0xca0] sm:$0xff]
        %v6530 = vld [vmem:[#allocation7 + $0xca8] sm:$0xff]
        %v6531 = vld [vmem:[#allocation7 + $0xcb0] sm:$0xff]
        %v6532 = vld [vmem:[#allocation7 + $0xcb8] sm:$0xff]
        %v6533 = vld [vmem:[#allocation7 + $0xcc0] sm:$0xff]
        %v6534 = vld [vmem:[#allocation7 + $0xcc8] sm:$0xff]
        %v6535 = vld [vmem:[#allocation7 + $0xcd0] sm:$0xff]
        %v6536 = vld [vmem:[#allocation7 + $0xcd8] sm:$0xff]
        %v6537 = vld [vmem:[#allocation7 + $0xce0] sm:$0xff]
        %v6538 = vld [vmem:[#allocation7 + $0xce8] sm:$0xff]
        %v6539 = vld [vmem:[#allocation7 + $0xcf0] sm:$0xff]
        %v6540 = vld [vmem:[#allocation7 + $0xcf8] sm:$0xff]
        %v6541 = vld [vmem:[#allocation7 + $0xd00] sm:$0xff]
        %v6542 = vld [vmem:[#allocation7 + $0xd08] sm:$0xff]
        %v6543 = vld [vmem:[#allocation7 + $0xd10] sm:$0xff]
        %v6544 = vld [vmem:[#allocation7 + $0xd18] sm:$0xff]
        %v6545 = vld [vmem:[#allocation7 + $0xd20] sm:$0xff]
        %v6546 = vld [vmem:[#allocation7 + $0xd28] sm:$0xff]
        %v6547 = vld [vmem:[#allocation7 + $0xd30] sm:$0xff]
        %v6548 = vld [vmem:[#allocation7 + $0xd38] sm:$0xff]
        %v6549 = vld [vmem:[#allocation7 + $0xd40] sm:$0xff]
        %v6550 = vld [vmem:[#allocation7 + $0xd48] sm:$0xff]
        %v6551 = vld [vmem:[#allocation7 + $0xd50] sm:$0xff]
        %v6552 = vld [vmem:[#allocation7 + $0xd58] sm:$0xff]
        %v6553 = vld [vmem:[#allocation7 + $0xd60] sm:$0xff]
        %v6554 = vld [vmem:[#allocation7 + $0xd68] sm:$0xff]
        %v6555 = vld [vmem:[#allocation7 + $0xd70] sm:$0xff]
        %v6556 = vld [vmem:[#allocation7 + $0xd78] sm:$0xff]
        %v6557 = vld [vmem:[#allocation7 + $0xd80] sm:$0xff]
        %v6558 = vld [vmem:[#allocation7 + $0xd88] sm:$0xff]
        %v6559 = vld [vmem:[#allocation7 + $0xd90] sm:$0xff]
        %v6560 = vld [vmem:[#allocation7 + $0xd98] sm:$0xff]
        %v6561 = vld [vmem:[#allocation7 + $0xda0] sm:$0xff]
        %v6562 = vld [vmem:[#allocation7 + $0xda8] sm:$0xff]
        %v6563 = vld [vmem:[#allocation7 + $0xdb0] sm:$0xff]
        %v6564 = vld [vmem:[#allocation7 + $0xdb8] sm:$0xff]
        %v6565 = vld [vmem:[#allocation7 + $0xdc0] sm:$0xff]
        %v6566 = vld [vmem:[#allocation7 + $0xdc8] sm:$0xff]
        %v6567 = vld [vmem:[#allocation7 + $0xdd0] sm:$0xff]
        %v6568 = vld [vmem:[#allocation7 + $0xdd8] sm:$0xff]
        %v6569 = vld [vmem:[#allocation7 + $0xde0] sm:$0xff]
        %v6570 = vld [vmem:[#allocation7 + $0xde8] sm:$0xff]
        %v6571 = vld [vmem:[#allocation7 + $0xdf0] sm:$0xff]
        %v6572 = vld [vmem:[#allocation7 + $0xdf8] sm:$0xff]
        %v6573 = vld [vmem:[#allocation7 + $0xe00] sm:$0xff]
        %v6574 = vld [vmem:[#allocation7 + $0xe08] sm:$0xff]
        %v6575 = vld [vmem:[#allocation7 + $0xe10] sm:$0xff]
        %v6576 = vld [vmem:[#allocation7 + $0xe18] sm:$0xff]
        %v6577 = vld [vmem:[#allocation7 + $0xe20] sm:$0xff]
        %v6578 = vld [vmem:[#allocation7 + $0xe28] sm:$0xff]
        %v6579 = vld [vmem:[#allocation7 + $0xe30] sm:$0xff]
        %v6580 = vld [vmem:[#allocation7 + $0xe38] sm:$0xff]
        %v6581 = vld [vmem:[#allocation7 + $0xe40] sm:$0xff]
        %v6582 = vld [vmem:[#allocation7 + $0xe48] sm:$0xff]
        %v6583 = vld [vmem:[#allocation7 + $0xe50] sm:$0xff]
        %v6584 = vld [vmem:[#allocation7 + $0xe58] sm:$0xff]
        %v6585 = vld [vmem:[#allocation7 + $0xe60] sm:$0xff]
        %v6586 = vld [vmem:[#allocation7 + $0xe68] sm:$0xff]
        %v6587 = vld [vmem:[#allocation7 + $0xe70] sm:$0xff]
        %v6588 = vld [vmem:[#allocation7 + $0xe78] sm:$0xff]
        %v6589 = vld [vmem:[#allocation7 + $0xe80] sm:$0xff]
        %v6590 = vld [vmem:[#allocation7 + $0xe88] sm:$0xff]
        %v6591 = vld [vmem:[#allocation7 + $0xe90] sm:$0xff]
        %v6592 = vld [vmem:[#allocation7 + $0xe98] sm:$0xff]
        %v6593 = vld [vmem:[#allocation7 + $0xea0] sm:$0xff]
        %v6594 = vld [vmem:[#allocation7 + $0xea8] sm:$0xff]
        %v6595 = vld [vmem:[#allocation7 + $0xeb0] sm:$0xff]
        %v6596 = vld [vmem:[#allocation7 + $0xeb8] sm:$0xff]
        %v6597 = vld [vmem:[#allocation7 + $0xec0] sm:$0xff]
        %v6598 = vld [vmem:[#allocation7 + $0xec8] sm:$0xff]
        %v6599 = vld [vmem:[#allocation7 + $0xed0] sm:$0xff]
        %v6600 = vld [vmem:[#allocation7 + $0xed8] sm:$0xff]
        %v6601 = vld [vmem:[#allocation7 + $0xee0] sm:$0xff]
        %v6602 = vld [vmem:[#allocation7 + $0xee8] sm:$0xff]
        %v6603 = vld [vmem:[#allocation7 + $0xef0] sm:$0xff]
        %v6604 = vld [vmem:[#allocation7 + $0xef8] sm:$0xff]
        %v6605 = vld [vmem:[#allocation7 + $0xf00] sm:$0xff]
        %v6606 = vld [vmem:[#allocation7 + $0xf08] sm:$0xff]
        %v6607 = vld [vmem:[#allocation7 + $0xf10] sm:$0xff]
        %v6608 = vld [vmem:[#allocation7 + $0xf18] sm:$0xff]
        %v6609 = vld [vmem:[#allocation7 + $0xf20] sm:$0xff]
        %v6610 = vld [vmem:[#allocation7 + $0xf28] sm:$0xff]
        %v6611 = vld [vmem:[#allocation7 + $0xf30] sm:$0xff]
        %v6612 = vld [vmem:[#allocation7 + $0xf38] sm:$0xff]
        %v6613 = vld [vmem:[#allocation7 + $0xf40] sm:$0xff]
        %v6614 = vld [vmem:[#allocation7 + $0xf48] sm:$0xff]
        %v6615 = vld [vmem:[#allocation7 + $0xf50] sm:$0xff]
        %v6616 = vld [vmem:[#allocation7 + $0xf58] sm:$0xff]
        %v6617 = vld [vmem:[#allocation7 + $0xf60] sm:$0xff]
        %v6618 = vld [vmem:[#allocation7 + $0xf68] sm:$0xff]
        %v6619 = vld [vmem:[#allocation7 + $0xf70] sm:$0xff]
        %v6620 = vld [vmem:[#allocation7 + $0xf78] sm:$0xff]
        %v6621 = vld [vmem:[#allocation7 + $0xf80] sm:$0xff]
        %v6622 = vld [vmem:[#allocation7 + $0xf88] sm:$0xff]
        %v6623 = vld [vmem:[#allocation7 + $0xf90] sm:$0xff]
        %v6624 = vld [vmem:[#allocation7 + $0xf98] sm:$0xff]
        %v6625 = vld [vmem:[#allocation7 + $0xfa0] sm:$0xff]
        %v6626 = vld [vmem:[#allocation7 + $0xfa8] sm:$0xff]
        %v6627 = vld [vmem:[#allocation7 + $0xfb0] sm:$0xff]
        %v6628 = vld [vmem:[#allocation7 + $0xfb8] sm:$0xff]
        %v6629 = vld [vmem:[#allocation7 + $0xfc0] sm:$0xff]
        %v6630 = vld [vmem:[#allocation7 + $0xfc8] sm:$0xff]
        %v6631 = vld [vmem:[#allocation7 + $0xfd0] sm:$0xff]
        %v6632 = vld [vmem:[#allocation7 + $0xfd8] sm:$0xff]
        %v6633 = vld [vmem:[#allocation7 + $0xfe0] sm:$0xff]
        %v6634 = vld [vmem:[#allocation7 + $0xfe8] sm:$0xff]
        %v6635 = vld [vmem:[#allocation7 + $0xff0] sm:$0xff]
        %v6636 = vld [vmem:[#allocation7 + $0xff8] sm:$0xff]
        %v6637 = vld [vmem:[#allocation7 + $0x1000] sm:$0xff]
        %v6638 = vld [vmem:[#allocation7 + $0x1008] sm:$0xff]
        %v6639 = vld [vmem:[#allocation7 + $0x1010] sm:$0xff]
        %v6640 = vld [vmem:[#allocation7 + $0x1018] sm:$0xff]
        %v6641 = vld [vmem:[#allocation7 + $0x1020] sm:$0xff]
        %v6642 = vld [vmem:[#allocation7 + $0x1028] sm:$0xff]
        %v6643 = vld [vmem:[#allocation7 + $0x1030] sm:$0xff]
        %v6644 = vld [vmem:[#allocation7 + $0x1038] sm:$0xff]
        %v6645 = vld [vmem:[#allocation7 + $0x1040] sm:$0xff]
        %v6646 = vld [vmem:[#allocation7 + $0x1048] sm:$0xff]
        %v6647 = vld [vmem:[#allocation7 + $0x1050] sm:$0xff]
        %v6648 = vld [vmem:[#allocation7 + $0x1058] sm:$0xff]
        %v6649 = vld [vmem:[#allocation7 + $0x1060] sm:$0xff]
        %v6650 = vld [vmem:[#allocation7 + $0x1068] sm:$0xff]
        %v6651 = vld [vmem:[#allocation7 + $0x1070] sm:$0xff]
        %v6652 = vld [vmem:[#allocation7 + $0x1078] sm:$0xff]
        %v6653 = vld [vmem:[#allocation7 + $0x1080] sm:$0xff]
        %v6654 = vld [vmem:[#allocation7 + $0x1088] sm:$0xff]
        %v6655 = vld [vmem:[#allocation7 + $0x1090] sm:$0xff]
        %v6656 = vld [vmem:[#allocation7 + $0x1098] sm:$0xff]
        %v6657 = vld [vmem:[#allocation7 + $0x10a0] sm:$0xff]
        %v6658 = vld [vmem:[#allocation7 + $0x10a8] sm:$0xff]
        %v6659 = vld [vmem:[#allocation7 + $0x10b0] sm:$0xff]
        %v6660 = vld [vmem:[#allocation7 + $0x10b8] sm:$0xff]
        %v6661 = vld [vmem:[#allocation7 + $0x10c0] sm:$0xff]
        %v6662 = vld [vmem:[#allocation7 + $0x10c8] sm:$0xff]
        %v6663 = vld [vmem:[#allocation7 + $0x10d0] sm:$0xff]
        %v6664 = vld [vmem:[#allocation7 + $0x10d8] sm:$0xff]
        %v6665 = vld [vmem:[#allocation7 + $0x10e0] sm:$0xff]
        %v6666 = vld [vmem:[#allocation7 + $0x10e8] sm:$0xff]
        %v6667 = vld [vmem:[#allocation7 + $0x10f0] sm:$0xff]
        %v6668 = vld [vmem:[#allocation7 + $0x10f8] sm:$0xff]
        %v6669 = vld [vmem:[#allocation7 + $0x1100] sm:$0xff]
        %v6670 = vld [vmem:[#allocation7 + $0x1108] sm:$0xff]
        %v6671 = vld [vmem:[#allocation7 + $0x1110] sm:$0xff]
        %v6672 = vld [vmem:[#allocation7 + $0x1118] sm:$0xff]
        %v6673 = vld [vmem:[#allocation7 + $0x1120] sm:$0xff]
        %v6674 = vld [vmem:[#allocation7 + $0x1128] sm:$0xff]
        %v6675 = vld [vmem:[#allocation7 + $0x1130] sm:$0xff]
        %v6676 = vld [vmem:[#allocation7 + $0x1138] sm:$0xff]
        %v6677 = vld [vmem:[#allocation7 + $0x1140] sm:$0xff]
        %v6678 = vld [vmem:[#allocation7 + $0x1148] sm:$0xff]
        %v6679 = vld [vmem:[#allocation7 + $0x1150] sm:$0xff]
        %v6680 = vld [vmem:[#allocation7 + $0x1158] sm:$0xff]
        %v6681 = vld [vmem:[#allocation7 + $0x1160] sm:$0xff]
        %v6682 = vld [vmem:[#allocation7 + $0x1168] sm:$0xff]
        %v6683 = vld [vmem:[#allocation7 + $0x1170] sm:$0xff]
        %v6684 = vld [vmem:[#allocation7 + $0x1178] sm:$0xff]
        %v6685 = vld [vmem:[#allocation7 + $0x1180] sm:$0xff]
        %v6686 = vld [vmem:[#allocation7 + $0x1188] sm:$0xff]
        %v6687 = vld [vmem:[#allocation7 + $0x1190] sm:$0xff]
        %v6688 = vld [vmem:[#allocation7 + $0x1198] sm:$0xff]
        %v6689 = vld [vmem:[#allocation7 + $0x11a0] sm:$0xff]
        %v6690 = vld [vmem:[#allocation7 + $0x11a8] sm:$0xff]
        %v6691 = vld [vmem:[#allocation7 + $0x11b0] sm:$0xff]
        %v6692 = vld [vmem:[#allocation7 + $0x11b8] sm:$0xff]
        %v6693 = vld [vmem:[#allocation7 + $0x11c0] sm:$0xff]
        %v6694 = vld [vmem:[#allocation7 + $0x11c8] sm:$0xff]
        %v6695 = vld [vmem:[#allocation7 + $0x11d0] sm:$0xff]
        %v6696 = vld [vmem:[#allocation7 + $0x11d8] sm:$0xff]
        %v6697 = vld [vmem:[#allocation7 + $0x11e0] sm:$0xff]
        %v6698 = vld [vmem:[#allocation7 + $0x11e8] sm:$0xff]
        %v6699 = vld [vmem:[#allocation7 + $0x11f0] sm:$0xff]
        %v6700 = vld [vmem:[#allocation7 + $0x11f8] sm:$0xff]
        %v6701 = vld [vmem:[#allocation7 + $0x1200] sm:$0xff]
        %v6702 = vld [vmem:[#allocation7 + $0x1208] sm:$0xff]
        %v6703 = vld [vmem:[#allocation7 + $0x1210] sm:$0xff]
        %v6704 = vld [vmem:[#allocation7 + $0x1218] sm:$0xff]
        %v6705 = vld [vmem:[#allocation7 + $0x1220] sm:$0xff]
        %v6706 = vld [vmem:[#allocation7 + $0x1228] sm:$0xff]
        %v6707 = vld [vmem:[#allocation7 + $0x1230] sm:$0xff]
        %v6708 = vld [vmem:[#allocation7 + $0x1238] sm:$0xff]
        %v6709 = vld [vmem:[#allocation7 + $0x1240] sm:$0xff]
        %v6710 = vld [vmem:[#allocation7 + $0x1248] sm:$0xff]
        %v6711 = vld [vmem:[#allocation7 + $0x1250] sm:$0xff]
        %v6712 = vld [vmem:[#allocation7 + $0x1258] sm:$0xff]
        %v6713 = vld [vmem:[#allocation7 + $0x1260] sm:$0xff]
        %v6714 = vld [vmem:[#allocation7 + $0x1268] sm:$0xff]
        %v6715 = vld [vmem:[#allocation7 + $0x1270] sm:$0xff]
        %v6716 = vld [vmem:[#allocation7 + $0x1278] sm:$0xff]
        %v6717 = vld [vmem:[#allocation7 + $0x1280] sm:$0xff]
        %v6718 = vld [vmem:[#allocation7 + $0x1288] sm:$0xff]
        %v6719 = vld [vmem:[#allocation7 + $0x1290] sm:$0xff]
        %v6720 = vld [vmem:[#allocation7 + $0x1298] sm:$0xff]
        %v6721 = vld [vmem:[#allocation7 + $0x12a0] sm:$0xff]
        %v6722 = vld [vmem:[#allocation7 + $0x12a8] sm:$0xff]
        %v6723 = vld [vmem:[#allocation7 + $0x12b0] sm:$0xff]
        %v6724 = vld [vmem:[#allocation7 + $0x12b8] sm:$0xff]
        %v6725 = vld [vmem:[#allocation7 + $0x12c0] sm:$0xff]
        %v6726 = vld [vmem:[#allocation7 + $0x12c8] sm:$0xff]
        %v6727 = vld [vmem:[#allocation7 + $0x12d0] sm:$0xff]
        %v6728 = vld [vmem:[#allocation7 + $0x12d8] sm:$0xff]
        %v6729 = vld [vmem:[#allocation7 + $0x12e0] sm:$0xff]
        %v6730 = vld [vmem:[#allocation7 + $0x12e8] sm:$0xff]
        %v6731 = vld [vmem:[#allocation7 + $0x12f0] sm:$0xff]
        %v6732 = vld [vmem:[#allocation7 + $0x12f8] sm:$0xff]
        %v6733 = vld [vmem:[#allocation7 + $0x1300] sm:$0xff]
        %v6734 = vld [vmem:[#allocation7 + $0x1308] sm:$0xff]
        %v6735 = vld [vmem:[#allocation7 + $0x1310] sm:$0xff]
        %v6736 = vld [vmem:[#allocation7 + $0x1318] sm:$0xff]
        %v6737 = vld [vmem:[#allocation7 + $0x1320] sm:$0xff]
        %v6738 = vld [vmem:[#allocation7 + $0x1328] sm:$0xff]
        %v6739 = vld [vmem:[#allocation7 + $0x1330] sm:$0xff]
        %v6740 = vld [vmem:[#allocation7 + $0x1338] sm:$0xff]
        %v6741 = vld [vmem:[#allocation7 + $0x1340] sm:$0xff]
        %v6742 = vld [vmem:[#allocation7 + $0x1348] sm:$0xff]
        %v6743 = vld [vmem:[#allocation7 + $0x1350] sm:$0xff]
        %v6744 = vld [vmem:[#allocation7 + $0x1358] sm:$0xff]
        %v6745 = vld [vmem:[#allocation7 + $0x1360] sm:$0xff]
        %v6746 = vld [vmem:[#allocation7 + $0x1368] sm:$0xff]
        %v6747 = vld [vmem:[#allocation7 + $0x1370] sm:$0xff]
        %v6748 = vld [vmem:[#allocation7 + $0x1378] sm:$0xff]
        %v6749 = vld [vmem:[#allocation7 + $0x1380] sm:$0xff]
        %v6750 = vld [vmem:[#allocation7 + $0x1388] sm:$0xff]
        %v6751 = vld [vmem:[#allocation7 + $0x1390] sm:$0xff]
        %v6752 = vld [vmem:[#allocation7 + $0x1398] sm:$0xff]
        %v6753 = vld [vmem:[#allocation7 + $0x13a0] sm:$0xff]
        %v6754 = vld [vmem:[#allocation7 + $0x13a8] sm:$0xff]
        %v6755 = vld [vmem:[#allocation7 + $0x13b0] sm:$0xff]
        %v6756 = vld [vmem:[#allocation7 + $0x13b8] sm:$0xff]
        %v6757 = vld [vmem:[#allocation7 + $0x13c0] sm:$0xff]
        %v6758 = vld [vmem:[#allocation7 + $0x13c8] sm:$0xff]
        %v6759 = vld [vmem:[#allocation7 + $0x13d0] sm:$0xff]
        %v6760 = vld [vmem:[#allocation7 + $0x13d8] sm:$0xff]
        %v6761 = vld [vmem:[#allocation7 + $0x13e0] sm:$0xff]
        %v6762 = vld [vmem:[#allocation7 + $0x13e8] sm:$0xff]
        %v6763 = vld [vmem:[#allocation7 + $0x13f0] sm:$0xff]
        %v6764 = vld [vmem:[#allocation7 + $0x13f8] sm:$0xff]
        %v6765 = vld [vmem:[#allocation7 + $0x1400] sm:$0xff]
        %v6766 = vld [vmem:[#allocation7 + $0x1408] sm:$0xff]
        %v6767 = vld [vmem:[#allocation7 + $0x1410] sm:$0xff]
        %v6768 = vld [vmem:[#allocation7 + $0x1418] sm:$0xff]
        %v6769 = vld [vmem:[#allocation7 + $0x1420] sm:$0xff]
        %v6770 = vld [vmem:[#allocation7 + $0x1428] sm:$0xff]
        %v6771 = vld [vmem:[#allocation7 + $0x1430] sm:$0xff]
        %v6772 = vld [vmem:[#allocation7 + $0x1438] sm:$0xff]
        %v6773 = vld [vmem:[#allocation7 + $0x1440] sm:$0xff]
        %v6774 = vld [vmem:[#allocation7 + $0x1448] sm:$0xff]
        %v6775 = vld [vmem:[#allocation7 + $0x1450] sm:$0xff]
        %v6776 = vld [vmem:[#allocation7 + $0x1458] sm:$0xff]
        %v6777 = vld [vmem:[#allocation7 + $0x1460] sm:$0xff]
        %v6778 = vld [vmem:[#allocation7 + $0x1468] sm:$0xff]
        %v6779 = vld [vmem:[#allocation7 + $0x1470] sm:$0xff]
        %v6780 = vld [vmem:[#allocation7 + $0x1478] sm:$0xff]
        %v6781 = vld [vmem:[#allocation7 + $0x1480] sm:$0xff]
        %v6782 = vld [vmem:[#allocation7 + $0x1488] sm:$0xff]
        %v6783 = vld [vmem:[#allocation7 + $0x1490] sm:$0xff]
        %v6784 = vld [vmem:[#allocation7 + $0x1498] sm:$0xff]
        %v6785 = vld [vmem:[#allocation7 + $0x14a0] sm:$0xff]
        %v6786 = vld [vmem:[#allocation7 + $0x14a8] sm:$0xff]
        %v6787 = vld [vmem:[#allocation7 + $0x14b0] sm:$0xff]
        %v6788 = vld [vmem:[#allocation7 + $0x14b8] sm:$0xff]
        %v6789 = vld [vmem:[#allocation7 + $0x14c0] sm:$0xff]
        %v6790 = vld [vmem:[#allocation7 + $0x14c8] sm:$0xff]
        %v6791 = vld [vmem:[#allocation7 + $0x14d0] sm:$0xff]
        %v6792 = vld [vmem:[#allocation7 + $0x14d8] sm:$0xff]
        %v6793 = vld [vmem:[#allocation7 + $0x14e0] sm:$0xff]
        %v6794 = vld [vmem:[#allocation7 + $0x14e8] sm:$0xff]
        %v6795 = vld [vmem:[#allocation7 + $0x14f0] sm:$0xff]
        %v6796 = vld [vmem:[#allocation7 + $0x14f8] sm:$0xff]
        %v6797 = vld [vmem:[#allocation7 + $0x1500] sm:$0xff]
        %v6798 = vld [vmem:[#allocation7 + $0x1508] sm:$0xff]
        %v6799 = vld [vmem:[#allocation7 + $0x1510] sm:$0xff]
        %v6800 = vld [vmem:[#allocation7 + $0x1518] sm:$0xff]
        %v6801 = vld [vmem:[#allocation7 + $0x1520] sm:$0xff]
        %v6802 = vld [vmem:[#allocation7 + $0x1528] sm:$0xff]
        %v6803 = vld [vmem:[#allocation7 + $0x1530] sm:$0xff]
        %v6804 = vld [vmem:[#allocation7 + $0x1538] sm:$0xff]
        %v6805 = vld [vmem:[#allocation7 + $0x1540] sm:$0xff]
        %v6806 = vld [vmem:[#allocation7 + $0x1548] sm:$0xff]
        %v6807 = vld [vmem:[#allocation7 + $0x1550] sm:$0xff]
        %v6808 = vld [vmem:[#allocation7 + $0x1558] sm:$0xff]
        %v6809 = vld [vmem:[#allocation7 + $0x1560] sm:$0xff]
        %v6810 = vld [vmem:[#allocation7 + $0x1568] sm:$0xff]
        %v6811 = vld [vmem:[#allocation7 + $0x1570] sm:$0xff]
        %v6812 = vld [vmem:[#allocation7 + $0x1578] sm:$0xff]
        %v6813 = vld [vmem:[#allocation7 + $0x1580] sm:$0xff]
        %v6814 = vld [vmem:[#allocation7 + $0x1588] sm:$0xff]
        %v6815 = vld [vmem:[#allocation7 + $0x1590] sm:$0xff]
        %v6816 = vld [vmem:[#allocation7 + $0x1598] sm:$0xff]
        %v6817 = vld [vmem:[#allocation7 + $0x15a0] sm:$0xff]
        %v6818 = vld [vmem:[#allocation7 + $0x15a8] sm:$0xff]
        %v6819 = vld [vmem:[#allocation7 + $0x15b0] sm:$0xff]
        %v6820 = vld [vmem:[#allocation7 + $0x15b8] sm:$0xff]
        %v6821 = vld [vmem:[#allocation7 + $0x15c0] sm:$0xff]
        %v6822 = vld [vmem:[#allocation7 + $0x15c8] sm:$0xff]
        %v6823 = vld [vmem:[#allocation7 + $0x15d0] sm:$0xff]
        %v6824 = vld [vmem:[#allocation7 + $0x15d8] sm:$0xff]
        %v6825 = vld [vmem:[#allocation7 + $0x15e0] sm:$0xff]
        %v6826 = vld [vmem:[#allocation7 + $0x15e8] sm:$0xff]
        %v6827 = vld [vmem:[#allocation7 + $0x15f0] sm:$0xff]
        %v6828 = vld [vmem:[#allocation7 + $0x15f8] sm:$0xff]
        %v6829 = vld [vmem:[#allocation7 + $0x1600] sm:$0xff]
        %v6830 = vld [vmem:[#allocation7 + $0x1608] sm:$0xff]
        %v6831 = vld [vmem:[#allocation7 + $0x1610] sm:$0xff]
        %v6832 = vld [vmem:[#allocation7 + $0x1618] sm:$0xff]
        %v6833 = vld [vmem:[#allocation7 + $0x1620] sm:$0xff]
        %v6834 = vld [vmem:[#allocation7 + $0x1628] sm:$0xff]
        %v6835 = vld [vmem:[#allocation7 + $0x1630] sm:$0xff]
        %v6836 = vld [vmem:[#allocation7 + $0x1638] sm:$0xff]
        %v6837 = vld [vmem:[#allocation7 + $0x1640] sm:$0xff]
        %v6838 = vld [vmem:[#allocation7 + $0x1648] sm:$0xff]
        %v6839 = vld [vmem:[#allocation7 + $0x1650] sm:$0xff]
        %v6840 = vld [vmem:[#allocation7 + $0x1658] sm:$0xff]
        %v6841 = vld [vmem:[#allocation7 + $0x1660] sm:$0xff]
        %v6842 = vld [vmem:[#allocation7 + $0x1668] sm:$0xff]
        %v6843 = vld [vmem:[#allocation7 + $0x1670] sm:$0xff]
        %v6844 = vld [vmem:[#allocation7 + $0x1678] sm:$0xff]
        %v6845 = vld [vmem:[#allocation7 + $0x1680] sm:$0xff]
        %v6846 = vld [vmem:[#allocation7 + $0x1688] sm:$0xff]
        %v6847 = vld [vmem:[#allocation7 + $0x1690] sm:$0xff]
        %v6848 = vld [vmem:[#allocation7 + $0x1698] sm:$0xff]
        %v6849 = vld [vmem:[#allocation7 + $0x16a0] sm:$0xff]
        %v6850 = vld [vmem:[#allocation7 + $0x16a8] sm:$0xff]
        %v6851 = vld [vmem:[#allocation7 + $0x16b0] sm:$0xff]
        %v6852 = vld [vmem:[#allocation7 + $0x16b8] sm:$0xff]
        %v6853 = vld [vmem:[#allocation7 + $0x16c0] sm:$0xff]
        %v6854 = vld [vmem:[#allocation7 + $0x16c8] sm:$0xff]
        %v6855 = vld [vmem:[#allocation7 + $0x16d0] sm:$0xff]
        %v6856 = vld [vmem:[#allocation7 + $0x16d8] sm:$0xff]
        %v6857 = vld [vmem:[#allocation7 + $0x16e0] sm:$0xff]
        %v6858 = vld [vmem:[#allocation7 + $0x16e8] sm:$0xff]
        %v6859 = vld [vmem:[#allocation7 + $0x16f0] sm:$0xff]
        %v6860 = vld [vmem:[#allocation7 + $0x16f8] sm:$0xff]
        %v6861 = vld [vmem:[#allocation7 + $0x1700] sm:$0xff]
        %v6862 = vld [vmem:[#allocation7 + $0x1708] sm:$0xff]
        %v6863 = vld [vmem:[#allocation7 + $0x1710] sm:$0xff]
        %v6864 = vld [vmem:[#allocation7 + $0x1718] sm:$0xff]
        %v6865 = vld [vmem:[#allocation7 + $0x1720] sm:$0xff]
        %v6866 = vld [vmem:[#allocation7 + $0x1728] sm:$0xff]
        %v6867 = vld [vmem:[#allocation7 + $0x1730] sm:$0xff]
        %v6868 = vld [vmem:[#allocation7 + $0x1738] sm:$0xff]
        %v6869 = vld [vmem:[#allocation7 + $0x1740] sm:$0xff]
        %v6870 = vld [vmem:[#allocation7 + $0x1748] sm:$0xff]
        %v6871 = vld [vmem:[#allocation7 + $0x1750] sm:$0xff]
        %v6872 = vld [vmem:[#allocation7 + $0x1758] sm:$0xff]
        %v6873 = vld [vmem:[#allocation7 + $0x1760] sm:$0xff]
        %v6874 = vld [vmem:[#allocation7 + $0x1768] sm:$0xff]
        %v6875 = vld [vmem:[#allocation7 + $0x1770] sm:$0xff]
        %v6876 = vld [vmem:[#allocation7 + $0x1778] sm:$0xff]
        %v6877 = vld [vmem:[#allocation7 + $0x1780] sm:$0xff]
        %v6878 = vld [vmem:[#allocation7 + $0x1788] sm:$0xff]
        %v6879 = vld [vmem:[#allocation7 + $0x1790] sm:$0xff]
        %v6880 = vld [vmem:[#allocation7 + $0x1798] sm:$0xff]
        %v6881 = vld [vmem:[#allocation7 + $0x17a0] sm:$0xff]
        %v6882 = vld [vmem:[#allocation7 + $0x17a8] sm:$0xff]
        %v6883 = vld [vmem:[#allocation7 + $0x17b0] sm:$0xff]
        %v6884 = vld [vmem:[#allocation7 + $0x17b8] sm:$0xff]
        %v6885 = vld [vmem:[#allocation7 + $0x17c0] sm:$0xff]
        %v6886 = vld [vmem:[#allocation7 + $0x17c8] sm:$0xff]
        %v6887 = vld [vmem:[#allocation7 + $0x17d0] sm:$0xff]
        %v6888 = vld [vmem:[#allocation7 + $0x17d8] sm:$0xff]
        %v6889 = vld [vmem:[#allocation7 + $0x17e0] sm:$0xff]
        %v6890 = vld [vmem:[#allocation7 + $0x17e8] sm:$0xff]
        %v6891 = vld [vmem:[#allocation7 + $0x17f0] sm:$0xff]
        %v6892 = vld [vmem:[#allocation7 + $0x17f8] sm:$0xff]
        %v6893 = vld [vmem:[#allocation7 + $0x1800] sm:$0xff]
        %v6894 = vld [vmem:[#allocation7 + $0x1808] sm:$0xff]
        %v6895 = vld [vmem:[#allocation7 + $0x1810] sm:$0xff]
        %v6896 = vld [vmem:[#allocation7 + $0x1818] sm:$0xff]
        %v6897 = vld [vmem:[#allocation7 + $0x1820] sm:$0xff]
        %v6898 = vld [vmem:[#allocation7 + $0x1828] sm:$0xff]
        %v6899 = vld [vmem:[#allocation7 + $0x1830] sm:$0xff]
        %v6900 = vld [vmem:[#allocation7 + $0x1838] sm:$0xff]
        %v6901 = vld [vmem:[#allocation7 + $0x1840] sm:$0xff]
        %v6902 = vld [vmem:[#allocation7 + $0x1848] sm:$0xff]
        %v6903 = vld [vmem:[#allocation7 + $0x1850] sm:$0xff]
        %v6904 = vld [vmem:[#allocation7 + $0x1858] sm:$0xff]
        %v6905 = vld [vmem:[#allocation7 + $0x1860] sm:$0xff]
        %v6906 = vld [vmem:[#allocation7 + $0x1868] sm:$0xff]
        %v6907 = vld [vmem:[#allocation7 + $0x1870] sm:$0xff]
        %v6908 = vld [vmem:[#allocation7 + $0x1878] sm:$0xff]
        %v6909 = vld [vmem:[#allocation7 + $0x1880] sm:$0xff]
        %v6910 = vld [vmem:[#allocation7 + $0x1888] sm:$0xff]
        %v6911 = vld [vmem:[#allocation7 + $0x1890] sm:$0xff]
        %v6912 = vld [vmem:[#allocation7 + $0x1898] sm:$0xff]
        %v6913 = vld [vmem:[#allocation7 + $0x18a0] sm:$0xff]
        %v6914 = vld [vmem:[#allocation7 + $0x18a8] sm:$0xff]
        %v6915 = vld [vmem:[#allocation7 + $0x18b0] sm:$0xff]
        %v6916 = vld [vmem:[#allocation7 + $0x18b8] sm:$0xff]
        %v6917 = vld [vmem:[#allocation7 + $0x18c0] sm:$0xff]
        %v6918 = vld [vmem:[#allocation7 + $0x18c8] sm:$0xff]
        %v6919 = vld [vmem:[#allocation7 + $0x18d0] sm:$0xff]
        %v6920 = vld [vmem:[#allocation7 + $0x18d8] sm:$0xff]
        %v6921 = vld [vmem:[#allocation7 + $0x18e0] sm:$0xff]
        %v6922 = vld [vmem:[#allocation7 + $0x18e8] sm:$0xff]
        %v6923 = vld [vmem:[#allocation7 + $0x18f0] sm:$0xff]
        %v6924 = vld [vmem:[#allocation7 + $0x18f8] sm:$0xff]
        %v6925 = vld [vmem:[#allocation7 + $0x1900] sm:$0xff]
        %v6926 = vld [vmem:[#allocation7 + $0x1908] sm:$0xff]
        %v6927 = vld [vmem:[#allocation7 + $0x1910] sm:$0xff]
        %v6928 = vld [vmem:[#allocation7 + $0x1918] sm:$0xff]
        %v6929 = vld [vmem:[#allocation7 + $0x1920] sm:$0xff]
        %v6930 = vld [vmem:[#allocation7 + $0x1928] sm:$0xff]
        %v6931 = vld [vmem:[#allocation7 + $0x1930] sm:$0xff]
        %v6932 = vld [vmem:[#allocation7 + $0x1938] sm:$0xff]
        %v6933 = vld [vmem:[#allocation7 + $0x1940] sm:$0xff]
        %v6934 = vld [vmem:[#allocation7 + $0x1948] sm:$0xff]
        %v6935 = vld [vmem:[#allocation7 + $0x1950] sm:$0xff]
        %v6936 = vld [vmem:[#allocation7 + $0x1958] sm:$0xff]
        %v6937 = vld [vmem:[#allocation7 + $0x1960] sm:$0xff]
        %v6938 = vld [vmem:[#allocation7 + $0x1968] sm:$0xff]
        %v6939 = vld [vmem:[#allocation7 + $0x1970] sm:$0xff]
        %v6940 = vld [vmem:[#allocation7 + $0x1978] sm:$0xff]
        %v6941 = vld [vmem:[#allocation7 + $0x1980] sm:$0xff]
        %v6942 = vld [vmem:[#allocation7 + $0x1988] sm:$0xff]
        %v6943 = vld [vmem:[#allocation7 + $0x1990] sm:$0xff]
        %v6944 = vld [vmem:[#allocation7 + $0x1998] sm:$0xff]
        %v6945 = vld [vmem:[#allocation7 + $0x19a0] sm:$0xff]
        %v6946 = vld [vmem:[#allocation7 + $0x19a8] sm:$0xff]
        %v6947 = vld [vmem:[#allocation7 + $0x19b0] sm:$0xff]
        %v6948 = vld [vmem:[#allocation7 + $0x19b8] sm:$0xff]
        %v6949 = vld [vmem:[#allocation7 + $0x19c0] sm:$0xff]
        %v6950 = vld [vmem:[#allocation7 + $0x19c8] sm:$0xff]
        %v6951 = vld [vmem:[#allocation7 + $0x19d0] sm:$0xff]
        %v6952 = vld [vmem:[#allocation7 + $0x19d8] sm:$0xff]
        %v6953 = vld [vmem:[#allocation7 + $0x19e0] sm:$0xff]
        %v6954 = vld [vmem:[#allocation7 + $0x19e8] sm:$0xff]
        %v6955 = vld [vmem:[#allocation7 + $0x19f0] sm:$0xff]
        %v6956 = vld [vmem:[#allocation7 + $0x19f8] sm:$0xff]
        %v6957 = vld [vmem:[#allocation7 + $0x1a00] sm:$0xff]
        %v6958 = vld [vmem:[#allocation7 + $0x1a08] sm:$0xff]
        %v6959 = vld [vmem:[#allocation7 + $0x1a10] sm:$0xff]
        %v6960 = vld [vmem:[#allocation7 + $0x1a18] sm:$0xff]
        %v6961 = vld [vmem:[#allocation7 + $0x1a20] sm:$0xff]
        %v6962 = vld [vmem:[#allocation7 + $0x1a28] sm:$0xff]
        %v6963 = vld [vmem:[#allocation7 + $0x1a30] sm:$0xff]
        %v6964 = vld [vmem:[#allocation7 + $0x1a38] sm:$0xff]
        %v6965 = vld [vmem:[#allocation7 + $0x1a40] sm:$0xff]
        %v6966 = vld [vmem:[#allocation7 + $0x1a48] sm:$0xff]
        %v6967 = vld [vmem:[#allocation7 + $0x1a50] sm:$0xff]
        %v6968 = vld [vmem:[#allocation7 + $0x1a58] sm:$0xff]
        %v6969 = vld [vmem:[#allocation7 + $0x1a60] sm:$0xff]
        %v6970 = vld [vmem:[#allocation7 + $0x1a68] sm:$0xff]
        %v6971 = vld [vmem:[#allocation7 + $0x1a70] sm:$0xff]
        %v6972 = vld [vmem:[#allocation7 + $0x1a78] sm:$0xff]
        %v6973 = vld [vmem:[#allocation7 + $0x1a80] sm:$0xff]
        %v6974 = vld [vmem:[#allocation7 + $0x1a88] sm:$0xff]
        %v6975 = vld [vmem:[#allocation7 + $0x1a90] sm:$0xff]
        %v6976 = vld [vmem:[#allocation7 + $0x1a98] sm:$0xff]
        %v6977 = vld [vmem:[#allocation7 + $0x1aa0] sm:$0xff]
        %v6978 = vld [vmem:[#allocation7 + $0x1aa8] sm:$0xff]
        %v6979 = vld [vmem:[#allocation7 + $0x1ab0] sm:$0xff]
        %v6980 = vld [vmem:[#allocation7 + $0x1ab8] sm:$0xff]
        %v6981 = vld [vmem:[#allocation7 + $0x1ac0] sm:$0xff]
        %v6982 = vld [vmem:[#allocation7 + $0x1ac8] sm:$0xff]
        %v6983 = vld [vmem:[#allocation7 + $0x1ad0] sm:$0xff]
        %v6984 = vld [vmem:[#allocation7 + $0x1ad8] sm:$0xff]
        %v6985 = vld [vmem:[#allocation7 + $0x1ae0] sm:$0xff]
        %v6986 = vld [vmem:[#allocation7 + $0x1ae8] sm:$0xff]
        %v6987 = vld [vmem:[#allocation7 + $0x1af0] sm:$0xff]
        %v6988 = vld [vmem:[#allocation7 + $0x1af8] sm:$0xff]
        %v6989 = vld [vmem:[#allocation7 + $0x1b00] sm:$0xff]
        %v6990 = vld [vmem:[#allocation7 + $0x1b08] sm:$0xff]
        %v6991 = vld [vmem:[#allocation7 + $0x1b10] sm:$0xff]
        %v6992 = vld [vmem:[#allocation7 + $0x1b18] sm:$0xff]
        %v6993 = vld [vmem:[#allocation7 + $0x1b20] sm:$0xff]
        %v6994 = vld [vmem:[#allocation7 + $0x1b28] sm:$0xff]
        %v6995 = vld [vmem:[#allocation7 + $0x1b30] sm:$0xff]
        %v6996 = vld [vmem:[#allocation7 + $0x1b38] sm:$0xff]
        %v6997 = vld [vmem:[#allocation7 + $0x1b40] sm:$0xff]
        %v6998 = vld [vmem:[#allocation7 + $0x1b48] sm:$0xff]
        %v6999 = vld [vmem:[#allocation7 + $0x1b50] sm:$0xff]
        %v7000 = vld [vmem:[#allocation7 + $0x1b58] sm:$0xff]
        %v7001 = vld [vmem:[#allocation7 + $0x1b60] sm:$0xff]
        %v7002 = vld [vmem:[#allocation7 + $0x1b68] sm:$0xff]
        %v7003 = vld [vmem:[#allocation7 + $0x1b70] sm:$0xff]
        %v7004 = vld [vmem:[#allocation7 + $0x1b78] sm:$0xff]
        %v7005 = vld [vmem:[#allocation7 + $0x1b80] sm:$0xff]
        %v7006 = vld [vmem:[#allocation7 + $0x1b88] sm:$0xff]
        %v7007 = vld [vmem:[#allocation7 + $0x1b90] sm:$0xff]
        %v7008 = vld [vmem:[#allocation7 + $0x1b98] sm:$0xff]
        %v7009 = vld [vmem:[#allocation7 + $0x1ba0] sm:$0xff]
        %v7010 = vld [vmem:[#allocation7 + $0x1ba8] sm:$0xff]
        %v7011 = vld [vmem:[#allocation7 + $0x1bb0] sm:$0xff]
        %v7012 = vld [vmem:[#allocation7 + $0x1bb8] sm:$0xff]
        %v7013 = vld [vmem:[#allocation7 + $0x1bc0] sm:$0xff]
        %v7014 = vld [vmem:[#allocation7 + $0x1bc8] sm:$0xff]
        %v7015 = vld [vmem:[#allocation7 + $0x1bd0] sm:$0xff]
        %v7016 = vld [vmem:[#allocation7 + $0x1bd8] sm:$0xff]
        %v7017 = vld [vmem:[#allocation7 + $0x1be0] sm:$0xff]
        %v7018 = vld [vmem:[#allocation7 + $0x1be8] sm:$0xff]
        %v7019 = vld [vmem:[#allocation7 + $0x1bf0] sm:$0xff]
        %v7020 = vld [vmem:[#allocation7 + $0x1bf8] sm:$0xff]
        %v7021 = vld [vmem:[#allocation7 + $0x1c00] sm:$0xff]
        %v7022 = vld [vmem:[#allocation7 + $0x1c08] sm:$0xff]
        %v7023 = vld [vmem:[#allocation7 + $0x1c10] sm:$0xff]
        %v7024 = vld [vmem:[#allocation7 + $0x1c18] sm:$0xff]
        %v7025 = vld [vmem:[#allocation7 + $0x1c20] sm:$0xff]
        %v7026 = vld [vmem:[#allocation7 + $0x1c28] sm:$0xff]
        %v7027 = vld [vmem:[#allocation7 + $0x1c30] sm:$0xff]
        %v7028 = vld [vmem:[#allocation7 + $0x1c38] sm:$0xff]
        %v7029 = vld [vmem:[#allocation7 + $0x1c40] sm:$0xff]
        %v7030 = vld [vmem:[#allocation7 + $0x1c48] sm:$0xff]
        %v7031 = vld [vmem:[#allocation7 + $0x1c50] sm:$0xff]
        %v7032 = vld [vmem:[#allocation7 + $0x1c58] sm:$0xff]
        %v7033 = vld [vmem:[#allocation7 + $0x1c60] sm:$0xff]
        %v7034 = vld [vmem:[#allocation7 + $0x1c68] sm:$0xff]
        %v7035 = vld [vmem:[#allocation7 + $0x1c70] sm:$0xff]
        %v7036 = vld [vmem:[#allocation7 + $0x1c78] sm:$0xff]
        %v7037 = vld [vmem:[#allocation7 + $0x1c80] sm:$0xff]
        %v7038 = vld [vmem:[#allocation7 + $0x1c88] sm:$0xff]
        %v7039 = vld [vmem:[#allocation7 + $0x1c90] sm:$0xff]
        %v7040 = vld [vmem:[#allocation7 + $0x1c98] sm:$0xff]
        %v7041 = vld [vmem:[#allocation7 + $0x1ca0] sm:$0xff]
        %v7042 = vld [vmem:[#allocation7 + $0x1ca8] sm:$0xff]
        %v7043 = vld [vmem:[#allocation7 + $0x1cb0] sm:$0xff]
        %v7044 = vld [vmem:[#allocation7 + $0x1cb8] sm:$0xff]
        %v7045 = vld [vmem:[#allocation7 + $0x1cc0] sm:$0xff]
        %v7046 = vld [vmem:[#allocation7 + $0x1cc8] sm:$0xff]
        %v7047 = vld [vmem:[#allocation7 + $0x1cd0] sm:$0xff]
        %v7048 = vld [vmem:[#allocation7 + $0x1cd8] sm:$0xff]
        %v7049 = vld [vmem:[#allocation7 + $0x1ce0] sm:$0xff]
        %v7050 = vld [vmem:[#allocation7 + $0x1ce8] sm:$0xff]
        %v7051 = vld [vmem:[#allocation7 + $0x1cf0] sm:$0xff]
        %v7052 = vld [vmem:[#allocation7 + $0x1cf8] sm:$0xff]
        %v7053 = vld [vmem:[#allocation7 + $0x1d00] sm:$0xff]
        %v7054 = vld [vmem:[#allocation7 + $0x1d08] sm:$0xff]
        %v7055 = vld [vmem:[#allocation7 + $0x1d10] sm:$0xff]
        %v7056 = vld [vmem:[#allocation7 + $0x1d18] sm:$0xff]
        %v7057 = vld [vmem:[#allocation7 + $0x1d20] sm:$0xff]
        %v7058 = vld [vmem:[#allocation7 + $0x1d28] sm:$0xff]
        %v7059 = vld [vmem:[#allocation7 + $0x1d30] sm:$0xff]
        %v7060 = vld [vmem:[#allocation7 + $0x1d38] sm:$0xff]
        %v7061 = vld [vmem:[#allocation7 + $0x1d40] sm:$0xff]
        %v7062 = vld [vmem:[#allocation7 + $0x1d48] sm:$0xff]
        %v7063 = vld [vmem:[#allocation7 + $0x1d50] sm:$0xff]
        %v7064 = vld [vmem:[#allocation7 + $0x1d58] sm:$0xff]
        %v7065 = vld [vmem:[#allocation7 + $0x1d60] sm:$0xff]
        %v7066 = vld [vmem:[#allocation7 + $0x1d68] sm:$0xff]
        %v7067 = vld [vmem:[#allocation7 + $0x1d70] sm:$0xff]
        %v7068 = vld [vmem:[#allocation7 + $0x1d78] sm:$0xff]
        %v7069 = vld [vmem:[#allocation7 + $0x1d80] sm:$0xff]
        %v7070 = vld [vmem:[#allocation7 + $0x1d88] sm:$0xff]
        %v7071 = vld [vmem:[#allocation7 + $0x1d90] sm:$0xff]
        %v7072 = vld [vmem:[#allocation7 + $0x1d98] sm:$0xff]
        %v7073 = vld [vmem:[#allocation7 + $0x1da0] sm:$0xff]
        %v7074 = vld [vmem:[#allocation7 + $0x1da8] sm:$0xff]
        %v7075 = vld [vmem:[#allocation7 + $0x1db0] sm:$0xff]
        %v7076 = vld [vmem:[#allocation7 + $0x1db8] sm:$0xff]
        %v7077 = vld [vmem:[#allocation7 + $0x1dc0] sm:$0xff]
        %v7078 = vld [vmem:[#allocation7 + $0x1dc8] sm:$0xff]
        %v7079 = vld [vmem:[#allocation7 + $0x1dd0] sm:$0xff]
        %v7080 = vld [vmem:[#allocation7 + $0x1dd8] sm:$0xff]
        %v7081 = vld [vmem:[#allocation7 + $0x1de0] sm:$0xff]
        %v7082 = vld [vmem:[#allocation7 + $0x1de8] sm:$0xff]
        %v7083 = vld [vmem:[#allocation7 + $0x1df0] sm:$0xff]
        %v7084 = vld [vmem:[#allocation7 + $0x1df8] sm:$0xff]
        %v7085 = vld [vmem:[#allocation7 + $0x1e00] sm:$0xff]
        %v7086 = vld [vmem:[#allocation7 + $0x1e08] sm:$0xff]
        %v7087 = vld [vmem:[#allocation7 + $0x1e10] sm:$0xff]
        %v7088 = vld [vmem:[#allocation7 + $0x1e18] sm:$0xff]
        %v7089 = vld [vmem:[#allocation7 + $0x1e20] sm:$0xff]
        %v7090 = vld [vmem:[#allocation7 + $0x1e28] sm:$0xff]
        %v7091 = vld [vmem:[#allocation7 + $0x1e30] sm:$0xff]
        %v7092 = vld [vmem:[#allocation7 + $0x1e38] sm:$0xff]
        %v7093 = vld [vmem:[#allocation7 + $0x1e40] sm:$0xff]
        %v7094 = vld [vmem:[#allocation7 + $0x1e48] sm:$0xff]
        %v7095 = vld [vmem:[#allocation7 + $0x1e50] sm:$0xff]
        %v7096 = vld [vmem:[#allocation7 + $0x1e58] sm:$0xff]
        %v7097 = vld [vmem:[#allocation7 + $0x1e60] sm:$0xff]
        %v7098 = vld [vmem:[#allocation7 + $0x1e68] sm:$0xff]
        %v7099 = vld [vmem:[#allocation7 + $0x1e70] sm:$0xff]
        %v7100 = vld [vmem:[#allocation7 + $0x1e78] sm:$0xff]
        %v7101 = vld [vmem:[#allocation7 + $0x1e80] sm:$0xff]
        %v7102 = vld [vmem:[#allocation7 + $0x1e88] sm:$0xff]
        %v7103 = vld [vmem:[#allocation7 + $0x1e90] sm:$0xff]
        %v7104 = vld [vmem:[#allocation7 + $0x1e98] sm:$0xff]
        %v7105 = vld [vmem:[#allocation7 + $0x1ea0] sm:$0xff]
        %v7106 = vld [vmem:[#allocation7 + $0x1ea8] sm:$0xff]
        %v7107 = vld [vmem:[#allocation7 + $0x1eb0] sm:$0xff]
        %v7108 = vld [vmem:[#allocation7 + $0x1eb8] sm:$0xff]
        %v7109 = vld [vmem:[#allocation7 + $0x1ec0] sm:$0xff]
        %v7110 = vld [vmem:[#allocation7 + $0x1ec8] sm:$0xff]
        %v7111 = vld [vmem:[#allocation7 + $0x1ed0] sm:$0xff]
        %v7112 = vld [vmem:[#allocation7 + $0x1ed8] sm:$0xff]
        %v7113 = vld [vmem:[#allocation7 + $0x1ee0] sm:$0xff]
        %v7114 = vld [vmem:[#allocation7 + $0x1ee8] sm:$0xff]
        %v7115 = vld [vmem:[#allocation7 + $0x1ef0] sm:$0xff]
        %v7116 = vld [vmem:[#allocation7 + $0x1ef8] sm:$0xff]
        %v7117 = vld [vmem:[#allocation7 + $0x1f00] sm:$0xff]
        %v7118 = vld [vmem:[#allocation7 + $0x1f08] sm:$0xff]
        %v7119 = vld [vmem:[#allocation7 + $0x1f10] sm:$0xff]
        %v7120 = vld [vmem:[#allocation7 + $0x1f18] sm:$0xff]
        %v7121 = vld [vmem:[#allocation7 + $0x1f20] sm:$0xff]
        %v7122 = vld [vmem:[#allocation7 + $0x1f28] sm:$0xff]
        %v7123 = vld [vmem:[#allocation7 + $0x1f30] sm:$0xff]
        %v7124 = vld [vmem:[#allocation7 + $0x1f38] sm:$0xff]
        %v7125 = vld [vmem:[#allocation7 + $0x1f40] sm:$0xff]
        %v7126 = vld [vmem:[#allocation7 + $0x1f48] sm:$0xff]
        %v7127 = vld [vmem:[#allocation7 + $0x1f50] sm:$0xff]
        %v7128 = vld [vmem:[#allocation7 + $0x1f58] sm:$0xff]
        %v7129 = vld [vmem:[#allocation7 + $0x1f60] sm:$0xff]
        %v7130 = vld [vmem:[#allocation7 + $0x1f68] sm:$0xff]
        %v7131 = vld [vmem:[#allocation7 + $0x1f70] sm:$0xff]
        %v7132 = vld [vmem:[#allocation7 + $0x1f78] sm:$0xff]
        %v7133 = vld [vmem:[#allocation7 + $0x1f80] sm:$0xff]
        %v7134 = vld [vmem:[#allocation7 + $0x1f88] sm:$0xff]
        %v7135 = vld [vmem:[#allocation7 + $0x1f90] sm:$0xff]
        %v7136 = vld [vmem:[#allocation7 + $0x1f98] sm:$0xff]
        %v7137 = vld [vmem:[#allocation7 + $0x1fa0] sm:$0xff]
        %v7138 = vld [vmem:[#allocation7 + $0x1fa8] sm:$0xff]
        %v7139 = vld [vmem:[#allocation7 + $0x1fb0] sm:$0xff]
        %v7140 = vld [vmem:[#allocation7 + $0x1fb8] sm:$0xff]
        %v7141 = vld [vmem:[#allocation7 + $0x1fc0] sm:$0xff]
        %v7142 = vld [vmem:[#allocation7 + $0x1fc8] sm:$0xff]
        %v7143 = vld [vmem:[#allocation7 + $0x1fd0] sm:$0xff]
        %v7144 = vld [vmem:[#allocation7 + $0x1fd8] sm:$0xff]
        %v7145 = vld [vmem:[#allocation7 + $0x1fe0] sm:$0xff]
        %v7146 = vld [vmem:[#allocation7 + $0x1fe8] sm:$0xff]
        %v7147 = vld [vmem:[#allocation7 + $0x1ff0] sm:$0xff]
        %v7148 = vld [vmem:[#allocation7 + $0x1ff8] sm:$0xff]
        %7149 = vmatprep.subr.mxu0 %v6126
        %7150 = vmatpush1.msra.mxu0 %v6125
        %7151 = vmatprep.subr.mxu0 %v6158
        %7152 = vmatpush1.msra.mxu0 %v6157
        %7153 = vmatprep.subr.mxu0 %v6190
        %7154 = vmatpush1.msra.mxu0 %v6189
        %7155 = vmatprep.subr.mxu0 %v6222
        %7156 = vmatpush1.msra.mxu0 %v6221
        %7157 = vmatprep.subr.mxu0 %v6254
        %7158 = vmatpush1.msra.mxu0 %v6253
        %7159 = vmatprep.subr.mxu0 %v6286
        %7160 = vmatpush1.msra.mxu0 %v6285
        %7161 = vmatprep.subr.mxu0 %v6318
        %7162 = vmatpush1.msra.mxu0 %v6317
        %7163 = vmatprep.subr.mxu0 %v6350
        %7164 = vmatpush1.msra.mxu0 %v6349
        %7165 = vmatprep.subr.mxu0 %v6382
        %7166 = vmatpush1.msra.mxu0 %v6381
        %7167 = vmatprep.subr.mxu0 %v6414
        %7168 = vmatpush1.msra.mxu0 %v6413
        %7169 = vmatprep.subr.mxu0 %v6446
        %7170 = vmatpush1.msra.mxu0 %v6445
        %7171 = vmatprep.subr.mxu0 %v6478
        %7172 = vmatpush1.msra.mxu0 %v6477
        %7173 = vmatprep.subr.mxu0 %v6510
        %7174 = vmatpush1.msra.mxu0 %v6509
        %7175 = vmatprep.subr.mxu0 %v6542
        %7176 = vmatpush1.msra.mxu0 %v6541
        %7177 = vmatprep.subr.mxu0 %v6574
        %7178 = vmatpush1.msra.mxu0 %v6573
        %7179 = vmatprep.subr.mxu0 %v6606
        %7180 = vmatpush1.msra.mxu0 %v6605
        %7181 = vmatprep.subr.mxu0 %v6638
        %7182 = vmatpush1.msra.mxu0 %v6637
        %7183 = vmatprep.subr.mxu0 %v6670
        %7184 = vmatpush1.msra.mxu0 %v6669
        %7185 = vmatprep.subr.mxu0 %v6702
        %7186 = vmatpush1.msra.mxu0 %v6701
        %7187 = vmatprep.subr.mxu0 %v6734
        %7188 = vmatpush1.msra.mxu0 %v6733
        %7189 = vmatprep.subr.mxu0 %v6766
        %7190 = vmatpush1.msra.mxu0 %v6765
        %7191 = vmatprep.subr.mxu0 %v6798
        %7192 = vmatpush1.msra.mxu0 %v6797
        %7193 = vmatprep.subr.mxu0 %v6830
        %7194 = vmatpush1.msra.mxu0 %v6829
        %7195 = vmatprep.subr.mxu0 %v6862
        %7196 = vmatpush1.msra.mxu0 %v6861
        %7197 = vmatprep.subr.mxu0 %v6894
        %7198 = vmatpush1.msra.mxu0 %v6893
        %7199 = vmatprep.subr.mxu0 %v6926
        %7200 = vmatpush1.msra.mxu0 %v6925
        %7201 = vmatprep.subr.mxu0 %v6958
        %7202 = vmatpush1.msra.mxu0 %v6957
        %7203 = vmatprep.subr.mxu0 %v6990
        %7204 = vmatpush1.msra.mxu0 %v6989
        %7205 = vmatprep.subr.mxu0 %v7022
        %7206 = vmatpush1.msra.mxu0 %v7021
        %7207 = vmatprep.subr.mxu0 %v7054
        %7208 = vmatpush1.msra.mxu0 %v7053
        %7209 = vmatprep.subr.mxu0 %v7086
        %7210 = vmatpush1.msra.mxu0 %v7085
        %7211 = vmatprep.subr.mxu0 %v7118
        %7212 = vmatpush1.msra.mxu0 %v7117
        %7213 = vmatprep.mubr.f32.mxu0 %v6122
        %7214 = vmatmul.mubr.f32.gmra.mrb[0].mxu0 %v6121
        %v7215 = vpop.f32.mrb[0].mxu0
        %v7216 = vadd.f32 0.0, %v7215
        %v7217 = vpop.f32.mrb[0].mxu0
        %v7218 = vadd.f32 0.0, %v7217
        %7219 = vmatprep.mubr.f32.mxu0 %v6124
        %7220 = vmatmul.mubr.f32.gmra.mrb[0].mxu0 %v6123
        %v7221 = vpop.f32.mrb[0].mxu0
        %v7222 = vadd.f32 0.0, %v7221
        %v7223 = vpop.f32.mrb[0].mxu0
        %v7224 = vadd.f32 0.0, %v7223
        %7225 = vdwg.mxu0
        %7226 = vmatprep.subr.mxu0 %v6128
        %7227 = vmatpush1.msra.mxu0 %v6127
        %7228 = vmatprep.subr.mxu0 %v6160
        %7229 = vmatpush1.msra.mxu0 %v6159
        %7230 = vmatprep.subr.mxu0 %v6192
        %7231 = vmatpush1.msra.mxu0 %v6191
        %7232 = vmatprep.subr.mxu0 %v6224
        %7233 = vmatpush1.msra.mxu0 %v6223
        %7234 = vmatprep.subr.mxu0 %v6256
        %7235 = vmatpush1.msra.mxu0 %v6255
        %7236 = vmatprep.subr.mxu0 %v6288
        %7237 = vmatpush1.msra.mxu0 %v6287
        %7238 = vmatprep.subr.mxu0 %v6320
        %7239 = vmatpush1.msra.mxu0 %v6319
        %7240 = vmatprep.subr.mxu0 %v6352
        %7241 = vmatpush1.msra.mxu0 %v6351
        %7242 = vmatprep.subr.mxu0 %v6384
        %7243 = vmatpush1.msra.mxu0 %v6383
        %7244 = vmatprep.subr.mxu0 %v6416
        %7245 = vmatpush1.msra.mxu0 %v6415
        %7246 = vmatprep.subr.mxu0 %v6448
        %7247 = vmatpush1.msra.mxu0 %v6447
        %7248 = vmatprep.subr.mxu0 %v6480
        %7249 = vmatpush1.msra.mxu0 %v6479
        %7250 = vmatprep.subr.mxu0 %v6512
        %7251 = vmatpush1.msra.mxu0 %v6511
        %7252 = vmatprep.subr.mxu0 %v6544
        %7253 = vmatpush1.msra.mxu0 %v6543
        %7254 = vmatprep.subr.mxu0 %v6576
        %7255 = vmatpush1.msra.mxu0 %v6575
        %7256 = vmatprep.subr.mxu0 %v6608
        %7257 = vmatpush1.msra.mxu0 %v6607
        %7258 = vmatprep.subr.mxu0 %v6640
        %7259 = vmatpush1.msra.mxu0 %v6639
        %7260 = vmatprep.subr.mxu0 %v6672
        %7261 = vmatpush1.msra.mxu0 %v6671
        %7262 = vmatprep.subr.mxu0 %v6704
        %7263 = vmatpush1.msra.mxu0 %v6703
        %7264 = vmatprep.subr.mxu0 %v6736
        %7265 = vmatpush1.msra.mxu0 %v6735
        %7266 = vmatprep.subr.mxu0 %v6768
        %7267 = vmatpush1.msra.mxu0 %v6767
        %7268 = vmatprep.subr.mxu0 %v6800
        %7269 = vmatpush1.msra.mxu0 %v6799
        %7270 = vmatprep.subr.mxu0 %v6832
        %7271 = vmatpush1.msra.mxu0 %v6831
        %7272 = vmatprep.subr.mxu0 %v6864
        %7273 = vmatpush1.msra.mxu0 %v6863
        %7274 = vmatprep.subr.mxu0 %v6896
        %7275 = vmatpush1.msra.mxu0 %v6895
        %7276 = vmatprep.subr.mxu0 %v6928
        %7277 = vmatpush1.msra.mxu0 %v6927
        %7278 = vmatprep.subr.mxu0 %v6960
        %7279 = vmatpush1.msra.mxu0 %v6959
        %7280 = vmatprep.subr.mxu0 %v6992
        %7281 = vmatpush1.msra.mxu0 %v6991
        %7282 = vmatprep.subr.mxu0 %v7024
        %7283 = vmatpush1.msra.mxu0 %v7023
        %7284 = vmatprep.subr.mxu0 %v7056
        %7285 = vmatpush1.msra.mxu0 %v7055
        %7286 = vmatprep.subr.mxu0 %v7088
        %7287 = vmatpush1.msra.mxu0 %v7087
        %7288 = vmatprep.subr.mxu0 %v7120
        %7289 = vmatpush1.msra.mxu0 %v7119
        %7290 = vmatprep.mubr.f32.mxu0 %v6122
        %7291 = vmatmul.mubr.f32.gmra.mrb[0].mxu0 %v6121
        %v7292 = vpop.f32.mrb[0].mxu0
        %v7293 = vadd.f32 0.0, %v7292
        %v7294 = vpop.f32.mrb[0].mxu0
        %v7295 = vadd.f32 0.0, %v7294
        %7296 = vmatprep.mubr.f32.mxu0 %v6124
        %7297 = vmatmul.mubr.f32.gmra.mrb[0].mxu0 %v6123
        %v7298 = vpop.f32.mrb[0].mxu0
        %v7299 = vadd.f32 0.0, %v7298
        %v7300 = vpop.f32.mrb[0].mxu0
        %v7301 = vadd.f32 0.0, %v7300
        %7302 = vdwg.mxu0
        %7303 = vmatprep.subr.mxu0 %v6130
        %7304 = vmatpush1.msra.mxu0 %v6129
        %7305 = vmatprep.subr.mxu0 %v6162
        %7306 = vmatpush1.msra.mxu0 %v6161
        %7307 = vmatprep.subr.mxu0 %v6194
        %7308 = vmatpush1.msra.mxu0 %v6193
        %7309 = vmatprep.subr.mxu0 %v6226
        %7310 = vmatpush1.msra.mxu0 %v6225
        %7311 = vmatprep.subr.mxu0 %v6258
        %7312 = vmatpush1.msra.mxu0 %v6257
        %7313 = vmatprep.subr.mxu0 %v6290
        %7314 = vmatpush1.msra.mxu0 %v6289
        %7315 = vmatprep.subr.mxu0 %v6322
        %7316 = vmatpush1.msra.mxu0 %v6321
        %7317 = vmatprep.subr.mxu0 %v6354
        %7318 = vmatpush1.msra.mxu0 %v6353
        %7319 = vmatprep.subr.mxu0 %v6386
        %7320 = vmatpush1.msra.mxu0 %v6385
        %7321 = vmatprep.subr.mxu0 %v6418
        %7322 = vmatpush1.msra.mxu0 %v6417
        %7323 = vmatprep.subr.mxu0 %v6450
        %7324 = vmatpush1.msra.mxu0 %v6449
        %7325 = vmatprep.subr.mxu0 %v6482
        %7326 = vmatpush1.msra.mxu0 %v6481
        %7327 = vmatprep.subr.mxu0 %v6514
        %7328 = vmatpush1.msra.mxu0 %v6513
        %7329 = vmatprep.subr.mxu0 %v6546
        %7330 = vmatpush1.msra.mxu0 %v6545
        %7331 = vmatprep.subr.mxu0 %v6578
        %7332 = vmatpush1.msra.mxu0 %v6577
        %7333 = vmatprep.subr.mxu0 %v6610
        %7334 = vmatpush1.msra.mxu0 %v6609
        %7335 = vmatprep.subr.mxu0 %v6642
        %7336 = vmatpush1.msra.mxu0 %v6641
        %7337 = vmatprep.subr.mxu0 %v6674
        %7338 = vmatpush1.msra.mxu0 %v6673
        %7339 = vmatprep.subr.mxu0 %v6706
        %7340 = vmatpush1.msra.mxu0 %v6705
        %7341 = vmatprep.subr.mxu0 %v6738
        %7342 = vmatpush1.msra.mxu0 %v6737
        %7343 = vmatprep.subr.mxu0 %v6770
        %7344 = vmatpush1.msra.mxu0 %v6769
        %7345 = vmatprep.subr.mxu0 %v6802
        %7346 = vmatpush1.msra.mxu0 %v6801
        %7347 = vmatprep.subr.mxu0 %v6834
        %7348 = vmatpush1.msra.mxu0 %v6833
        %7349 = vmatprep.subr.mxu0 %v6866
        %7350 = vmatpush1.msra.mxu0 %v6865
        %7351 = vmatprep.subr.mxu0 %v6898
        %7352 = vmatpush1.msra.mxu0 %v6897
        %7353 = vmatprep.subr.mxu0 %v6930
        %7354 = vmatpush1.msra.mxu0 %v6929
        %7355 = vmatprep.subr.mxu0 %v6962
        %7356 = vmatpush1.msra.mxu0 %v6961
        %7357 = vmatprep.subr.mxu0 %v6994
        %7358 = vmatpush1.msra.mxu0 %v6993
        %7359 = vmatprep.subr.mxu0 %v7026
        %7360 = vmatpush1.msra.mxu0 %v7025
        %7361 = vmatprep.subr.mxu0 %v7058
        %7362 = vmatpush1.msra.mxu0 %v7057
        %7363 = vmatprep.subr.mxu0 %v7090
        %7364 = vmatpush1.msra.mxu0 %v7089
        %7365 = vmatprep.subr.mxu0 %v7122
        %7366 = vmatpush1.msra.mxu0 %v7121
        %7367 = vmatprep.mubr.f32.mxu0 %v6122
        %7368 = vmatmul.mubr.f32.gmra.mrb[0].mxu0 %v6121
        %v7369 = vpop.f32.mrb[0].mxu0
        %v7370 = vadd.f32 0.0, %v7369
        %v7371 = vpop.f32.mrb[0].mxu0
        %v7372 = vadd.f32 0.0, %v7371
        %7373 = vmatprep.mubr.f32.mxu0 %v6124
        %7374 = vmatmul.mubr.f32.gmra.mrb[0].mxu0 %v6123
        %v7375 = vpop.f32.mrb[0].mxu0
        %v7376 = vadd.f32 0.0, %v7375
        %v7377 = vpop.f32.mrb[0].mxu0
        %v7378 = vadd.f32 0.0, %v7377
        %7379 = vdwg.mxu0
        %7380 = vmatprep.subr.mxu0 %v6132
        %7381 = vmatpush1.msra.mxu0 %v6131
        %7382 = vmatprep.subr.mxu0 %v6164
        %7383 = vmatpush1.msra.mxu0 %v6163
        %7384 = vmatprep.subr.mxu0 %v6196
        %7385 = vmatpush1.msra.mxu0 %v6195
        %7386 = vmatprep.subr.mxu0 %v6228
        %7387 = vmatpush1.msra.mxu0 %v6227
        %7388 = vmatprep.subr.mxu0 %v6260
        %7389 = vmatpush1.msra.mxu0 %v6259
        %7390 = vmatprep.subr.mxu0 %v6292
        %7391 = vmatpush1.msra.mxu0 %v6291
        %7392 = vmatprep.subr.mxu0 %v6324
        %7393 = vmatpush1.msra.mxu0 %v6323
        %7394 = vmatprep.subr.mxu0 %v6356
        %7395 = vmatpush1.msra.mxu0 %v6355
        %7396 = vmatprep.subr.mxu0 %v6388
        %7397 = vmatpush1.msra.mxu0 %v6387
        %7398 = vmatprep.subr.mxu0 %v6420
        %7399 = vmatpush1.msra.mxu0 %v6419
        %7400 = vmatprep.subr.mxu0 %v6452
        %7401 = vmatpush1.msra.mxu0 %v6451
        %7402 = vmatprep.subr.mxu0 %v6484
        %7403 = vmatpush1.msra.mxu0 %v6483
        %7404 = vmatprep.subr.mxu0 %v6516
        %7405 = vmatpush1.msra.mxu0 %v6515
        %7406 = vmatprep.subr.mxu0 %v6548
        %7407 = vmatpush1.msra.mxu0 %v6547
        %7408 = vmatprep.subr.mxu0 %v6580
        %7409 = vmatpush1.msra.mxu0 %v6579
        %7410 = vmatprep.subr.mxu0 %v6612
        %7411 = vmatpush1.msra.mxu0 %v6611
        %7412 = vmatprep.subr.mxu0 %v6644
        %7413 = vmatpush1.msra.mxu0 %v6643
        %7414 = vmatprep.subr.mxu0 %v6676
        %7415 = vmatpush1.msra.mxu0 %v6675
        %7416 = vmatprep.subr.mxu0 %v6708
        %7417 = vmatpush1.msra.mxu0 %v6707
        %7418 = vmatprep.subr.mxu0 %v6740
        %7419 = vmatpush1.msra.mxu0 %v6739
        %7420 = vmatprep.subr.mxu0 %v6772
        %7421 = vmatpush1.msra.mxu0 %v6771
        %7422 = vmatprep.subr.mxu0 %v6804
        %7423 = vmatpush1.msra.mxu0 %v6803
        %7424 = vmatprep.subr.mxu0 %v6836
        %7425 = vmatpush1.msra.mxu0 %v6835
        %7426 = vmatprep.subr.mxu0 %v6868
        %7427 = vmatpush1.msra.mxu0 %v6867
        %7428 = vmatprep.subr.mxu0 %v6900
        %7429 = vmatpush1.msra.mxu0 %v6899
        %7430 = vmatprep.subr.mxu0 %v6932
        %7431 = vmatpush1.msra.mxu0 %v6931
        %7432 = vmatprep.subr.mxu0 %v6964
        %7433 = vmatpush1.msra.mxu0 %v6963
        %7434 = vmatprep.subr.mxu0 %v6996
        %7435 = vmatpush1.msra.mxu0 %v6995
        %7436 = vmatprep.subr.mxu0 %v7028
        %7437 = vmatpush1.msra.mxu0 %v7027
        %7438 = vmatprep.subr.mxu0 %v7060
        %7439 = vmatpush1.msra.mxu0 %v7059
        %7440 = vmatprep.subr.mxu0 %v7092
        %7441 = vmatpush1.msra.mxu0 %v7091
        %7442 = vmatprep.subr.mxu0 %v7124
        %7443 = vmatpush1.msra.mxu0 %v7123
        %7444 = vmatprep.mubr.f32.mxu0 %v6122
        %7445 = vmatmul.mubr.f32.gmra.mrb[0].mxu0 %v6121
        %v7446 = vpop.f32.mrb[0].mxu0
        %v7447 = vadd.f32 0.0, %v7446
        %v7448 = vpop.f32.mrb[0].mxu0
        %v7449 = vadd.f32 0.0, %v7448
        %7450 = vmatprep.mubr.f32.mxu0 %v6124
        %7451 = vmatmul.mubr.f32.gmra.mrb[0].mxu0 %v6123
        %v7452 = vpop.f32.mrb[0].mxu0
        %v7453 = vadd.f32 0.0, %v7452
        %v7454 = vpop.f32.mrb[0].mxu0
        %v7455 = vadd.f32 0.0, %v7454
        %7456 = vdwg.mxu0
        %7457 = vmatprep.subr.mxu0 %v6134
        %7458 = vmatpush1.msra.mxu0 %v6133
        %7459 = vmatprep.subr.mxu0 %v6166
        %7460 = vmatpush1.msra.mxu0 %v6165
        %7461 = vmatprep.subr.mxu0 %v6198
        %7462 = vmatpush1.msra.mxu0 %v6197
        %7463 = vmatprep.subr.mxu0 %v6230
        %7464 = vmatpush1.msra.mxu0 %v6229
        %7465 = vmatprep.subr.mxu0 %v6262
        %7466 = vmatpush1.msra.mxu0 %v6261
        %7467 = vmatprep.subr.mxu0 %v6294
        %7468 = vmatpush1.msra.mxu0 %v6293
        %7469 = vmatprep.subr.mxu0 %v6326
        %7470 = vmatpush1.msra.mxu0 %v6325
        %7471 = vmatprep.subr.mxu0 %v6358
        %7472 = vmatpush1.msra.mxu0 %v6357
        %7473 = vmatprep.subr.mxu0 %v6390
        %7474 = vmatpush1.msra.mxu0 %v6389
        %7475 = vmatprep.subr.mxu0 %v6422
        %7476 = vmatpush1.msra.mxu0 %v6421
        %7477 = vmatprep.subr.mxu0 %v6454
        %7478 = vmatpush1.msra.mxu0 %v6453
        %7479 = vmatprep.subr.mxu0 %v6486
        %7480 = vmatpush1.msra.mxu0 %v6485
        %7481 = vmatprep.subr.mxu0 %v6518
        %7482 = vmatpush1.msra.mxu0 %v6517
        %7483 = vmatprep.subr.mxu0 %v6550
        %7484 = vmatpush1.msra.mxu0 %v6549
        %7485 = vmatprep.subr.mxu0 %v6582
        %7486 = vmatpush1.msra.mxu0 %v6581
        %7487 = vmatprep.subr.mxu0 %v6614
        %7488 = vmatpush1.msra.mxu0 %v6613
        %7489 = vmatprep.subr.mxu0 %v6646
        %7490 = vmatpush1.msra.mxu0 %v6645
        %7491 = vmatprep.subr.mxu0 %v6678
        %7492 = vmatpush1.msra.mxu0 %v6677
        %7493 = vmatprep.subr.mxu0 %v6710
        %7494 = vmatpush1.msra.mxu0 %v6709
        %7495 = vmatprep.subr.mxu0 %v6742
        %7496 = vmatpush1.msra.mxu0 %v6741
        %7497 = vmatprep.subr.mxu0 %v6774
        %7498 = vmatpush1.msra.mxu0 %v6773
        %7499 = vmatprep.subr.mxu0 %v6806
        %7500 = vmatpush1.msra.mxu0 %v6805
        %7501 = vmatprep.subr.mxu0 %v6838
        %7502 = vmatpush1.msra.mxu0 %v6837
        %7503 = vmatprep.subr.mxu0 %v6870
        %7504 = vmatpush1.msra.mxu0 %v6869
        %7505 = vmatprep.subr.mxu0 %v6902
        %7506 = vmatpush1.msra.mxu0 %v6901
        %7507 = vmatprep.subr.mxu0 %v6934
        %7508 = vmatpush1.msra.mxu0 %v6933
        %7509 = vmatprep.subr.mxu0 %v6966
        %7510 = vmatpush1.msra.mxu0 %v6965
        %7511 = vmatprep.subr.mxu0 %v6998
        %7512 = vmatpush1.msra.mxu0 %v6997
        %7513 = vmatprep.subr.mxu0 %v7030
        %7514 = vmatpush1.msra.mxu0 %v7029
        %7515 = vmatprep.subr.mxu0 %v7062
        %7516 = vmatpush1.msra.mxu0 %v7061
        %7517 = vmatprep.subr.mxu0 %v7094
        %7518 = vmatpush1.msra.mxu0 %v7093
        %7519 = vmatprep.subr.mxu0 %v7126
        %7520 = vmatpush1.msra.mxu0 %v7125
        %7521 = vmatprep.mubr.f32.mxu0 %v6122
        %7522 = vmatmul.mubr.f32.gmra.mrb[0].mxu0 %v6121
        %v7523 = vpop.f32.mrb[0].mxu0
        %v7524 = vadd.f32 0.0, %v7523
        %v7525 = vpop.f32.mrb[0].mxu0
        %v7526 = vadd.f32 0.0, %v7525
        %7527 = vmatprep.mubr.f32.mxu0 %v6124
        %7528 = vmatmul.mubr.f32.gmra.mrb[0].mxu0 %v6123
        %v7529 = vpop.f32.mrb[0].mxu0
        %v7530 = vadd.f32 0.0, %v7529
        %v7531 = vpop.f32.mrb[0].mxu0
        %v7532 = vadd.f32 0.0, %v7531
        %7533 = vdwg.mxu0
        %7534 = vmatprep.subr.mxu0 %v6136
        %7535 = vmatpush1.msra.mxu0 %v6135
        %7536 = vmatprep.subr.mxu0 %v6168
        %7537 = vmatpush1.msra.mxu0 %v6167
        %7538 = vmatprep.subr.mxu0 %v6200
        %7539 = vmatpush1.msra.mxu0 %v6199
        %7540 = vmatprep.subr.mxu0 %v6232
        %7541 = vmatpush1.msra.mxu0 %v6231
        %7542 = vmatprep.subr.mxu0 %v6264
        %7543 = vmatpush1.msra.mxu0 %v6263
        %7544 = vmatprep.subr.mxu0 %v6296
        %7545 = vmatpush1.msra.mxu0 %v6295
        %7546 = vmatprep.subr.mxu0 %v6328
        %7547 = vmatpush1.msra.mxu0 %v6327
        %7548 = vmatprep.subr.mxu0 %v6360
        %7549 = vmatpush1.msra.mxu0 %v6359
        %7550 = vmatprep.subr.mxu0 %v6392
        %7551 = vmatpush1.msra.mxu0 %v6391
        %7552 = vmatprep.subr.mxu0 %v6424
        %7553 = vmatpush1.msra.mxu0 %v6423
        %7554 = vmatprep.subr.mxu0 %v6456
        %7555 = vmatpush1.msra.mxu0 %v6455
        %7556 = vmatprep.subr.mxu0 %v6488
        %7557 = vmatpush1.msra.mxu0 %v6487
        %7558 = vmatprep.subr.mxu0 %v6520
        %7559 = vmatpush1.msra.mxu0 %v6519
        %7560 = vmatprep.subr.mxu0 %v6552
        %7561 = vmatpush1.msra.mxu0 %v6551
        %7562 = vmatprep.subr.mxu0 %v6584
        %7563 = vmatpush1.msra.mxu0 %v6583
        %7564 = vmatprep.subr.mxu0 %v6616
        %7565 = vmatpush1.msra.mxu0 %v6615
        %7566 = vmatprep.subr.mxu0 %v6648
        %7567 = vmatpush1.msra.mxu0 %v6647
        %7568 = vmatprep.subr.mxu0 %v6680
        %7569 = vmatpush1.msra.mxu0 %v6679
        %7570 = vmatprep.subr.mxu0 %v6712
        %7571 = vmatpush1.msra.mxu0 %v6711
        %7572 = vmatprep.subr.mxu0 %v6744
        %7573 = vmatpush1.msra.mxu0 %v6743
        %7574 = vmatprep.subr.mxu0 %v6776
        %7575 = vmatpush1.msra.mxu0 %v6775
        %7576 = vmatprep.subr.mxu0 %v6808
        %7577 = vmatpush1.msra.mxu0 %v6807
        %7578 = vmatprep.subr.mxu0 %v6840
        %7579 = vmatpush1.msra.mxu0 %v6839
        %7580 = vmatprep.subr.mxu0 %v6872
        %7581 = vmatpush1.msra.mxu0 %v6871
        %7582 = vmatprep.subr.mxu0 %v6904
        %7583 = vmatpush1.msra.mxu0 %v6903
        %7584 = vmatprep.subr.mxu0 %v6936
        %7585 = vmatpush1.msra.mxu0 %v6935
        %7586 = vmatprep.subr.mxu0 %v6968
        %7587 = vmatpush1.msra.mxu0 %v6967
        %7588 = vmatprep.subr.mxu0 %v7000
        %7589 = vmatpush1.msra.mxu0 %v6999
        %7590 = vmatprep.subr.mxu0 %v7032
        %7591 = vmatpush1.msra.mxu0 %v7031
        %7592 = vmatprep.subr.mxu0 %v7064
        %7593 = vmatpush1.msra.mxu0 %v7063
        %7594 = vmatprep.subr.mxu0 %v7096
        %7595 = vmatpush1.msra.mxu0 %v7095
        %7596 = vmatprep.subr.mxu0 %v7128
        %7597 = vmatpush1.msra.mxu0 %v7127
        %7598 = vmatprep.mubr.f32.mxu0 %v6122
        %7599 = vmatmul.mubr.f32.gmra.mrb[0].mxu0 %v6121
        %v7600 = vpop.f32.mrb[0].mxu0
        %v7601 = vadd.f32 0.0, %v7600
        %v7602 = vpop.f32.mrb[0].mxu0
        %v7603 = vadd.f32 0.0, %v7602
        %7604 = vmatprep.mubr.f32.mxu0 %v6124
        %7605 = vmatmul.mubr.f32.gmra.mrb[0].mxu0 %v6123
        %v7606 = vpop.f32.mrb[0].mxu0
        %v7607 = vadd.f32 0.0, %v7606
        %v7608 = vpop.f32.mrb[0].mxu0
        %v7609 = vadd.f32 0.0, %v7608
        %7610 = vdwg.mxu0
        %7611 = vmatprep.subr.mxu0 %v6138
        %7612 = vmatpush1.msra.mxu0 %v6137
        %7613 = vmatprep.subr.mxu0 %v6170
        %7614 = vmatpush1.msra.mxu0 %v6169
        %7615 = vmatprep.subr.mxu0 %v6202
        %7616 = vmatpush1.msra.mxu0 %v6201
        %7617 = vmatprep.subr.mxu0 %v6234
        %7618 = vmatpush1.msra.mxu0 %v6233
        %7619 = vmatprep.subr.mxu0 %v6266
        %7620 = vmatpush1.msra.mxu0 %v6265
        %7621 = vmatprep.subr.mxu0 %v6298
        %7622 = vmatpush1.msra.mxu0 %v6297
        %7623 = vmatprep.subr.mxu0 %v6330
        %7624 = vmatpush1.msra.mxu0 %v6329
        %7625 = vmatprep.subr.mxu0 %v6362
        %7626 = vmatpush1.msra.mxu0 %v6361
        %7627 = vmatprep.subr.mxu0 %v6394
        %7628 = vmatpush1.msra.mxu0 %v6393
        %7629 = vmatprep.subr.mxu0 %v6426
        %7630 = vmatpush1.msra.mxu0 %v6425
        %7631 = vmatprep.subr.mxu0 %v6458
        %7632 = vmatpush1.msra.mxu0 %v6457
        %7633 = vmatprep.subr.mxu0 %v6490
        %7634 = vmatpush1.msra.mxu0 %v6489
        %7635 = vmatprep.subr.mxu0 %v6522
        %7636 = vmatpush1.msra.mxu0 %v6521
        %7637 = vmatprep.subr.mxu0 %v6554
        %7638 = vmatpush1.msra.mxu0 %v6553
        %7639 = vmatprep.subr.mxu0 %v6586
        %7640 = vmatpush1.msra.mxu0 %v6585
        %7641 = vmatprep.subr.mxu0 %v6618
        %7642 = vmatpush1.msra.mxu0 %v6617
        %7643 = vmatprep.subr.mxu0 %v6650
        %7644 = vmatpush1.msra.mxu0 %v6649
        %7645 = vmatprep.subr.mxu0 %v6682
        %7646 = vmatpush1.msra.mxu0 %v6681
        %7647 = vmatprep.subr.mxu0 %v6714
        %7648 = vmatpush1.msra.mxu0 %v6713
        %7649 = vmatprep.subr.mxu0 %v6746
        %7650 = vmatpush1.msra.mxu0 %v6745
        %7651 = vmatprep.subr.mxu0 %v6778
        %7652 = vmatpush1.msra.mxu0 %v6777
        %7653 = vmatprep.subr.mxu0 %v6810
        %7654 = vmatpush1.msra.mxu0 %v6809
        %7655 = vmatprep.subr.mxu0 %v6842
        %7656 = vmatpush1.msra.mxu0 %v6841
        %7657 = vmatprep.subr.mxu0 %v6874
        %7658 = vmatpush1.msra.mxu0 %v6873
        %7659 = vmatprep.subr.mxu0 %v6906
        %7660 = vmatpush1.msra.mxu0 %v6905
        %7661 = vmatprep.subr.mxu0 %v6938
        %7662 = vmatpush1.msra.mxu0 %v6937
        %7663 = vmatprep.subr.mxu0 %v6970
        %7664 = vmatpush1.msra.mxu0 %v6969
        %7665 = vmatprep.subr.mxu0 %v7002
        %7666 = vmatpush1.msra.mxu0 %v7001
        %7667 = vmatprep.subr.mxu0 %v7034
        %7668 = vmatpush1.msra.mxu0 %v7033
        %7669 = vmatprep.subr.mxu0 %v7066
        %7670 = vmatpush1.msra.mxu0 %v7065
        %7671 = vmatprep.subr.mxu0 %v7098
        %7672 = vmatpush1.msra.mxu0 %v7097
        %7673 = vmatprep.subr.mxu0 %v7130
        %7674 = vmatpush1.msra.mxu0 %v7129
        %7675 = vmatprep.mubr.f32.mxu0 %v6122
        %7676 = vmatmul.mubr.f32.gmra.mrb[0].mxu0 %v6121
        %v7677 = vpop.f32.mrb[0].mxu0
        %v7678 = vadd.f32 0.0, %v7677
        %v7679 = vpop.f32.mrb[0].mxu0
        %v7680 = vadd.f32 0.0, %v7679
        %7681 = vmatprep.mubr.f32.mxu0 %v6124
        %7682 = vmatmul.mubr.f32.gmra.mrb[0].mxu0 %v6123
        %v7683 = vpop.f32.mrb[0].mxu0
        %v7684 = vadd.f32 0.0, %v7683
        %v7685 = vpop.f32.mrb[0].mxu0
        %v7686 = vadd.f32 0.0, %v7685
        %7687 = vdwg.mxu0
        %7688 = vmatprep.subr.mxu0 %v6140
        %7689 = vmatpush1.msra.mxu0 %v6139
        %7690 = vmatprep.subr.mxu0 %v6172
        %7691 = vmatpush1.msra.mxu0 %v6171
        %7692 = vmatprep.subr.mxu0 %v6204
        %7693 = vmatpush1.msra.mxu0 %v6203
        %7694 = vmatprep.subr.mxu0 %v6236
        %7695 = vmatpush1.msra.mxu0 %v6235
        %7696 = vmatprep.subr.mxu0 %v6268
        %7697 = vmatpush1.msra.mxu0 %v6267
        %7698 = vmatprep.subr.mxu0 %v6300
        %7699 = vmatpush1.msra.mxu0 %v6299
        %7700 = vmatprep.subr.mxu0 %v6332
        %7701 = vmatpush1.msra.mxu0 %v6331
        %7702 = vmatprep.subr.mxu0 %v6364
        %7703 = vmatpush1.msra.mxu0 %v6363
        %7704 = vmatprep.subr.mxu0 %v6396
        %7705 = vmatpush1.msra.mxu0 %v6395
        %7706 = vmatprep.subr.mxu0 %v6428
        %7707 = vmatpush1.msra.mxu0 %v6427
        %7708 = vmatprep.subr.mxu0 %v6460
        %7709 = vmatpush1.msra.mxu0 %v6459
        %7710 = vmatprep.subr.mxu0 %v6492
        %7711 = vmatpush1.msra.mxu0 %v6491
        %7712 = vmatprep.subr.mxu0 %v6524
        %7713 = vmatpush1.msra.mxu0 %v6523
        %7714 = vmatprep.subr.mxu0 %v6556
        %7715 = vmatpush1.msra.mxu0 %v6555
        %7716 = vmatprep.subr.mxu0 %v6588
        %7717 = vmatpush1.msra.mxu0 %v6587
        %7718 = vmatprep.subr.mxu0 %v6620
        %7719 = vmatpush1.msra.mxu0 %v6619
        %7720 = vmatprep.subr.mxu0 %v6652
        %7721 = vmatpush1.msra.mxu0 %v6651
        %7722 = vmatprep.subr.mxu0 %v6684
        %7723 = vmatpush1.msra.mxu0 %v6683
        %7724 = vmatprep.subr.mxu0 %v6716
        %7725 = vmatpush1.msra.mxu0 %v6715
        %7726 = vmatprep.subr.mxu0 %v6748
        %7727 = vmatpush1.msra.mxu0 %v6747
        %7728 = vmatprep.subr.mxu0 %v6780
        %7729 = vmatpush1.msra.mxu0 %v6779
        %7730 = vmatprep.subr.mxu0 %v6812
        %7731 = vmatpush1.msra.mxu0 %v6811
        %7732 = vmatprep.subr.mxu0 %v6844
        %7733 = vmatpush1.msra.mxu0 %v6843
        %7734 = vmatprep.subr.mxu0 %v6876
        %7735 = vmatpush1.msra.mxu0 %v6875
        %7736 = vmatprep.subr.mxu0 %v6908
        %7737 = vmatpush1.msra.mxu0 %v6907
        %7738 = vmatprep.subr.mxu0 %v6940
        %7739 = vmatpush1.msra.mxu0 %v6939
        %7740 = vmatprep.subr.mxu0 %v6972
        %7741 = vmatpush1.msra.mxu0 %v6971
        %7742 = vmatprep.subr.mxu0 %v7004
        %7743 = vmatpush1.msra.mxu0 %v7003
        %7744 = vmatprep.subr.mxu0 %v7036
        %7745 = vmatpush1.msra.mxu0 %v7035
        %7746 = vmatprep.subr.mxu0 %v7068
        %7747 = vmatpush1.msra.mxu0 %v7067
        %7748 = vmatprep.subr.mxu0 %v7100
        %7749 = vmatpush1.msra.mxu0 %v7099
        %7750 = vmatprep.subr.mxu0 %v7132
        %7751 = vmatpush1.msra.mxu0 %v7131
        %7752 = vmatprep.mubr.f32.mxu0 %v6122
        %7753 = vmatmul.mubr.f32.gmra.mrb[0].mxu0 %v6121
        %v7754 = vpop.f32.mrb[0].mxu0
        %v7755 = vadd.f32 0.0, %v7754
        %v7756 = vpop.f32.mrb[0].mxu0
        %v7757 = vadd.f32 0.0, %v7756
        %7758 = vmatprep.mubr.f32.mxu0 %v6124
        %7759 = vmatmul.mubr.f32.gmra.mrb[0].mxu0 %v6123
        %v7760 = vpop.f32.mrb[0].mxu0
        %v7761 = vadd.f32 0.0, %v7760
        %v7762 = vpop.f32.mrb[0].mxu0
        %v7763 = vadd.f32 0.0, %v7762
        %7764 = vdwg.mxu0
        %7765 = vmatprep.subr.mxu0 %v6142
        %7766 = vmatpush1.msra.mxu0 %v6141
        %7767 = vmatprep.subr.mxu0 %v6174
        %7768 = vmatpush1.msra.mxu0 %v6173
        %7769 = vmatprep.subr.mxu0 %v6206
        %7770 = vmatpush1.msra.mxu0 %v6205
        %7771 = vmatprep.subr.mxu0 %v6238
        %7772 = vmatpush1.msra.mxu0 %v6237
        %7773 = vmatprep.subr.mxu0 %v6270
        %7774 = vmatpush1.msra.mxu0 %v6269
        %7775 = vmatprep.subr.mxu0 %v6302
        %7776 = vmatpush1.msra.mxu0 %v6301
        %7777 = vmatprep.subr.mxu0 %v6334
        %7778 = vmatpush1.msra.mxu0 %v6333
        %7779 = vmatprep.subr.mxu0 %v6366
        %7780 = vmatpush1.msra.mxu0 %v6365
        %7781 = vmatprep.subr.mxu0 %v6398
        %7782 = vmatpush1.msra.mxu0 %v6397
        %7783 = vmatprep.subr.mxu0 %v6430
        %7784 = vmatpush1.msra.mxu0 %v6429
        %7785 = vmatprep.subr.mxu0 %v6462
        %7786 = vmatpush1.msra.mxu0 %v6461
        %7787 = vmatprep.subr.mxu0 %v6494
        %7788 = vmatpush1.msra.mxu0 %v6493
        %7789 = vmatprep.subr.mxu0 %v6526
        %7790 = vmatpush1.msra.mxu0 %v6525
        %7791 = vmatprep.subr.mxu0 %v6558
        %7792 = vmatpush1.msra.mxu0 %v6557
        %7793 = vmatprep.subr.mxu0 %v6590
        %7794 = vmatpush1.msra.mxu0 %v6589
        %7795 = vmatprep.subr.mxu0 %v6622
        %7796 = vmatpush1.msra.mxu0 %v6621
        %7797 = vmatprep.subr.mxu0 %v6654
        %7798 = vmatpush1.msra.mxu0 %v6653
        %7799 = vmatprep.subr.mxu0 %v6686
        %7800 = vmatpush1.msra.mxu0 %v6685
        %7801 = vmatprep.subr.mxu0 %v6718
        %7802 = vmatpush1.msra.mxu0 %v6717
        %7803 = vmatprep.subr.mxu0 %v6750
        %7804 = vmatpush1.msra.mxu0 %v6749
        %7805 = vmatprep.subr.mxu0 %v6782
        %7806 = vmatpush1.msra.mxu0 %v6781
        %7807 = vmatprep.subr.mxu0 %v6814
        %7808 = vmatpush1.msra.mxu0 %v6813
        %7809 = vmatprep.subr.mxu0 %v6846
        %7810 = vmatpush1.msra.mxu0 %v6845
        %7811 = vmatprep.subr.mxu0 %v6878
        %7812 = vmatpush1.msra.mxu0 %v6877
        %7813 = vmatprep.subr.mxu0 %v6910
        %7814 = vmatpush1.msra.mxu0 %v6909
        %7815 = vmatprep.subr.mxu0 %v6942
        %7816 = vmatpush1.msra.mxu0 %v6941
        %7817 = vmatprep.subr.mxu0 %v6974
        %7818 = vmatpush1.msra.mxu0 %v6973
        %7819 = vmatprep.subr.mxu0 %v7006
        %7820 = vmatpush1.msra.mxu0 %v7005
        %7821 = vmatprep.subr.mxu0 %v7038
        %7822 = vmatpush1.msra.mxu0 %v7037
        %7823 = vmatprep.subr.mxu0 %v7070
        %7824 = vmatpush1.msra.mxu0 %v7069
        %7825 = vmatprep.subr.mxu0 %v7102
        %7826 = vmatpush1.msra.mxu0 %v7101
        %7827 = vmatprep.subr.mxu0 %v7134
        %7828 = vmatpush1.msra.mxu0 %v7133
        %7829 = vmatprep.mubr.f32.mxu0 %v6122
        %7830 = vmatmul.mubr.f32.gmra.mrb[0].mxu0 %v6121
        %v7831 = vpop.f32.mrb[0].mxu0
        %v7832 = vadd.f32 0.0, %v7831
        %v7833 = vpop.f32.mrb[0].mxu0
        %v7834 = vadd.f32 0.0, %v7833
        %7835 = vmatprep.mubr.f32.mxu0 %v6124
        %7836 = vmatmul.mubr.f32.gmra.mrb[0].mxu0 %v6123
        %v7837 = vpop.f32.mrb[0].mxu0
        %v7838 = vadd.f32 0.0, %v7837
        %v7839 = vpop.f32.mrb[0].mxu0
        %v7840 = vadd.f32 0.0, %v7839
        %7841 = vdwg.mxu0
        %7842 = vmatprep.subr.mxu0 %v6144
        %7843 = vmatpush1.msra.mxu0 %v6143
        %7844 = vmatprep.subr.mxu0 %v6176
        %7845 = vmatpush1.msra.mxu0 %v6175
        %7846 = vmatprep.subr.mxu0 %v6208
        %7847 = vmatpush1.msra.mxu0 %v6207
        %7848 = vmatprep.subr.mxu0 %v6240
        %7849 = vmatpush1.msra.mxu0 %v6239
        %7850 = vmatprep.subr.mxu0 %v6272
        %7851 = vmatpush1.msra.mxu0 %v6271
        %7852 = vmatprep.subr.mxu0 %v6304
        %7853 = vmatpush1.msra.mxu0 %v6303
        %7854 = vmatprep.subr.mxu0 %v6336
        %7855 = vmatpush1.msra.mxu0 %v6335
        %7856 = vmatprep.subr.mxu0 %v6368
        %7857 = vmatpush1.msra.mxu0 %v6367
        %7858 = vmatprep.subr.mxu0 %v6400
        %7859 = vmatpush1.msra.mxu0 %v6399
        %7860 = vmatprep.subr.mxu0 %v6432
        %7861 = vmatpush1.msra.mxu0 %v6431
        %7862 = vmatprep.subr.mxu0 %v6464
        %7863 = vmatpush1.msra.mxu0 %v6463
        %7864 = vmatprep.subr.mxu0 %v6496
        %7865 = vmatpush1.msra.mxu0 %v6495
        %7866 = vmatprep.subr.mxu0 %v6528
        %7867 = vmatpush1.msra.mxu0 %v6527
        %7868 = vmatprep.subr.mxu0 %v6560
        %7869 = vmatpush1.msra.mxu0 %v6559
        %7870 = vmatprep.subr.mxu0 %v6592
        %7871 = vmatpush1.msra.mxu0 %v6591
        %7872 = vmatprep.subr.mxu0 %v6624
        %7873 = vmatpush1.msra.mxu0 %v6623
        %7874 = vmatprep.subr.mxu0 %v6656
        %7875 = vmatpush1.msra.mxu0 %v6655
        %7876 = vmatprep.subr.mxu0 %v6688
        %7877 = vmatpush1.msra.mxu0 %v6687
        %7878 = vmatprep.subr.mxu0 %v6720
        %7879 = vmatpush1.msra.mxu0 %v6719
        %7880 = vmatprep.subr.mxu0 %v6752
        %7881 = vmatpush1.msra.mxu0 %v6751
        %7882 = vmatprep.subr.mxu0 %v6784
        %7883 = vmatpush1.msra.mxu0 %v6783
        %7884 = vmatprep.subr.mxu0 %v6816
        %7885 = vmatpush1.msra.mxu0 %v6815
        %7886 = vmatprep.subr.mxu0 %v6848
        %7887 = vmatpush1.msra.mxu0 %v6847
        %7888 = vmatprep.subr.mxu0 %v6880
        %7889 = vmatpush1.msra.mxu0 %v6879
        %7890 = vmatprep.subr.mxu0 %v6912
        %7891 = vmatpush1.msra.mxu0 %v6911
        %7892 = vmatprep.subr.mxu0 %v6944
        %7893 = vmatpush1.msra.mxu0 %v6943
        %7894 = vmatprep.subr.mxu0 %v6976
        %7895 = vmatpush1.msra.mxu0 %v6975
        %7896 = vmatprep.subr.mxu0 %v7008
        %7897 = vmatpush1.msra.mxu0 %v7007
        %7898 = vmatprep.subr.mxu0 %v7040
        %7899 = vmatpush1.msra.mxu0 %v7039
        %7900 = vmatprep.subr.mxu0 %v7072
        %7901 = vmatpush1.msra.mxu0 %v7071
        %7902 = vmatprep.subr.mxu0 %v7104
        %7903 = vmatpush1.msra.mxu0 %v7103
        %7904 = vmatprep.subr.mxu0 %v7136
        %7905 = vmatpush1.msra.mxu0 %v7135
        %7906 = vmatprep.mubr.f32.mxu0 %v6122
        %7907 = vmatmul.mubr.f32.gmra.mrb[0].mxu0 %v6121
        %v7908 = vpop.f32.mrb[0].mxu0
        %v7909 = vadd.f32 0.0, %v7908
        %v7910 = vpop.f32.mrb[0].mxu0
        %v7911 = vadd.f32 0.0, %v7910
        %7912 = vmatprep.mubr.f32.mxu0 %v6124
        %7913 = vmatmul.mubr.f32.gmra.mrb[0].mxu0 %v6123
        %v7914 = vpop.f32.mrb[0].mxu0
        %v7915 = vadd.f32 0.0, %v7914
        %v7916 = vpop.f32.mrb[0].mxu0
        %v7917 = vadd.f32 0.0, %v7916
        %7918 = vdwg.mxu0
        %7919 = vmatprep.subr.mxu0 %v6146
        %7920 = vmatpush1.msra.mxu0 %v6145
        %7921 = vmatprep.subr.mxu0 %v6178
        %7922 = vmatpush1.msra.mxu0 %v6177
        %7923 = vmatprep.subr.mxu0 %v6210
        %7924 = vmatpush1.msra.mxu0 %v6209
        %7925 = vmatprep.subr.mxu0 %v6242
        %7926 = vmatpush1.msra.mxu0 %v6241
        %7927 = vmatprep.subr.mxu0 %v6274
        %7928 = vmatpush1.msra.mxu0 %v6273
        %7929 = vmatprep.subr.mxu0 %v6306
        %7930 = vmatpush1.msra.mxu0 %v6305
        %7931 = vmatprep.subr.mxu0 %v6338
        %7932 = vmatpush1.msra.mxu0 %v6337
        %7933 = vmatprep.subr.mxu0 %v6370
        %7934 = vmatpush1.msra.mxu0 %v6369
        %7935 = vmatprep.subr.mxu0 %v6402
        %7936 = vmatpush1.msra.mxu0 %v6401
        %7937 = vmatprep.subr.mxu0 %v6434
        %7938 = vmatpush1.msra.mxu0 %v6433
        %7939 = vmatprep.subr.mxu0 %v6466
        %7940 = vmatpush1.msra.mxu0 %v6465
        %7941 = vmatprep.subr.mxu0 %v6498
        %7942 = vmatpush1.msra.mxu0 %v6497
        %7943 = vmatprep.subr.mxu0 %v6530
        %7944 = vmatpush1.msra.mxu0 %v6529
        %7945 = vmatprep.subr.mxu0 %v6562
        %7946 = vmatpush1.msra.mxu0 %v6561
        %7947 = vmatprep.subr.mxu0 %v6594
        %7948 = vmatpush1.msra.mxu0 %v6593
        %7949 = vmatprep.subr.mxu0 %v6626
        %7950 = vmatpush1.msra.mxu0 %v6625
        %7951 = vmatprep.subr.mxu0 %v6658
        %7952 = vmatpush1.msra.mxu0 %v6657
        %7953 = vmatprep.subr.mxu0 %v6690
        %7954 = vmatpush1.msra.mxu0 %v6689
        %7955 = vmatprep.subr.mxu0 %v6722
        %7956 = vmatpush1.msra.mxu0 %v6721
        %7957 = vmatprep.subr.mxu0 %v6754
        %7958 = vmatpush1.msra.mxu0 %v6753
        %7959 = vmatprep.subr.mxu0 %v6786
        %7960 = vmatpush1.msra.mxu0 %v6785
        %7961 = vmatprep.subr.mxu0 %v6818
        %7962 = vmatpush1.msra.mxu0 %v6817
        %7963 = vmatprep.subr.mxu0 %v6850
        %7964 = vmatpush1.msra.mxu0 %v6849
        %7965 = vmatprep.subr.mxu0 %v6882
        %7966 = vmatpush1.msra.mxu0 %v6881
        %7967 = vmatprep.subr.mxu0 %v6914
        %7968 = vmatpush1.msra.mxu0 %v6913
        %7969 = vmatprep.subr.mxu0 %v6946
        %7970 = vmatpush1.msra.mxu0 %v6945
        %7971 = vmatprep.subr.mxu0 %v6978
        %7972 = vmatpush1.msra.mxu0 %v6977
        %7973 = vmatprep.subr.mxu0 %v7010
        %7974 = vmatpush1.msra.mxu0 %v7009
        %7975 = vmatprep.subr.mxu0 %v7042
        %7976 = vmatpush1.msra.mxu0 %v7041
        %7977 = vmatprep.subr.mxu0 %v7074
        %7978 = vmatpush1.msra.mxu0 %v7073
        %7979 = vmatprep.subr.mxu0 %v7106
        %7980 = vmatpush1.msra.mxu0 %v7105
        %7981 = vmatprep.subr.mxu0 %v7138
        %7982 = vmatpush1.msra.mxu0 %v7137
        %7983 = vmatprep.mubr.f32.mxu0 %v6122
        %7984 = vmatmul.mubr.f32.gmra.mrb[0].mxu0 %v6121
        %v7985 = vpop.f32.mrb[0].mxu0
        %v7986 = vadd.f32 0.0, %v7985
        %v7987 = vpop.f32.mrb[0].mxu0
        %v7988 = vadd.f32 0.0, %v7987
        %7989 = vmatprep.mubr.f32.mxu0 %v6124
        %7990 = vmatmul.mubr.f32.gmra.mrb[0].mxu0 %v6123
        %v7991 = vpop.f32.mrb[0].mxu0
        %v7992 = vadd.f32 0.0, %v7991
        %v7993 = vpop.f32.mrb[0].mxu0
        %v7994 = vadd.f32 0.0, %v7993
        %7995 = vdwg.mxu0
        %7996 = vmatprep.subr.mxu0 %v6148
        %7997 = vmatpush1.msra.mxu0 %v6147
        %7998 = vmatprep.subr.mxu0 %v6180
        %7999 = vmatpush1.msra.mxu0 %v6179
        %8000 = vmatprep.subr.mxu0 %v6212
        %8001 = vmatpush1.msra.mxu0 %v6211
        %8002 = vmatprep.subr.mxu0 %v6244
        %8003 = vmatpush1.msra.mxu0 %v6243
        %8004 = vmatprep.subr.mxu0 %v6276
        %8005 = vmatpush1.msra.mxu0 %v6275
        %8006 = vmatprep.subr.mxu0 %v6308
        %8007 = vmatpush1.msra.mxu0 %v6307
        %8008 = vmatprep.subr.mxu0 %v6340
        %8009 = vmatpush1.msra.mxu0 %v6339
        %8010 = vmatprep.subr.mxu0 %v6372
        %8011 = vmatpush1.msra.mxu0 %v6371
        %8012 = vmatprep.subr.mxu0 %v6404
        %8013 = vmatpush1.msra.mxu0 %v6403
        %8014 = vmatprep.subr.mxu0 %v6436
        %8015 = vmatpush1.msra.mxu0 %v6435
        %8016 = vmatprep.subr.mxu0 %v6468
        %8017 = vmatpush1.msra.mxu0 %v6467
        %8018 = vmatprep.subr.mxu0 %v6500
        %8019 = vmatpush1.msra.mxu0 %v6499
        %8020 = vmatprep.subr.mxu0 %v6532
        %8021 = vmatpush1.msra.mxu0 %v6531
        %8022 = vmatprep.subr.mxu0 %v6564
        %8023 = vmatpush1.msra.mxu0 %v6563
        %8024 = vmatprep.subr.mxu0 %v6596
        %8025 = vmatpush1.msra.mxu0 %v6595
        %8026 = vmatprep.subr.mxu0 %v6628
        %8027 = vmatpush1.msra.mxu0 %v6627
        %8028 = vmatprep.subr.mxu0 %v6660
        %8029 = vmatpush1.msra.mxu0 %v6659
        %8030 = vmatprep.subr.mxu0 %v6692
        %8031 = vmatpush1.msra.mxu0 %v6691
        %8032 = vmatprep.subr.mxu0 %v6724
        %8033 = vmatpush1.msra.mxu0 %v6723
        %8034 = vmatprep.subr.mxu0 %v6756
        %8035 = vmatpush1.msra.mxu0 %v6755
        %8036 = vmatprep.subr.mxu0 %v6788
        %8037 = vmatpush1.msra.mxu0 %v6787
        %8038 = vmatprep.subr.mxu0 %v6820
        %8039 = vmatpush1.msra.mxu0 %v6819
        %8040 = vmatprep.subr.mxu0 %v6852
        %8041 = vmatpush1.msra.mxu0 %v6851
        %8042 = vmatprep.subr.mxu0 %v6884
        %8043 = vmatpush1.msra.mxu0 %v6883
        %8044 = vmatprep.subr.mxu0 %v6916
        %8045 = vmatpush1.msra.mxu0 %v6915
        %8046 = vmatprep.subr.mxu0 %v6948
        %8047 = vmatpush1.msra.mxu0 %v6947
        %8048 = vmatprep.subr.mxu0 %v6980
        %8049 = vmatpush1.msra.mxu0 %v6979
        %8050 = vmatprep.subr.mxu0 %v7012
        %8051 = vmatpush1.msra.mxu0 %v7011
        %8052 = vmatprep.subr.mxu0 %v7044
        %8053 = vmatpush1.msra.mxu0 %v7043
        %8054 = vmatprep.subr.mxu0 %v7076
        %8055 = vmatpush1.msra.mxu0 %v7075
        %8056 = vmatprep.subr.mxu0 %v7108
        %8057 = vmatpush1.msra.mxu0 %v7107
        %8058 = vmatprep.subr.mxu0 %v7140
        %8059 = vmatpush1.msra.mxu0 %v7139
        %8060 = vmatprep.mubr.f32.mxu0 %v6122
        %8061 = vmatmul.mubr.f32.gmra.mrb[0].mxu0 %v6121
        %v8062 = vpop.f32.mrb[0].mxu0
        %v8063 = vadd.f32 0.0, %v8062
        %v8064 = vpop.f32.mrb[0].mxu0
        %v8065 = vadd.f32 0.0, %v8064
        %8066 = vmatprep.mubr.f32.mxu0 %v6124
        %8067 = vmatmul.mubr.f32.gmra.mrb[0].mxu0 %v6123
        %v8068 = vpop.f32.mrb[0].mxu0
        %v8069 = vadd.f32 0.0, %v8068
        %v8070 = vpop.f32.mrb[0].mxu0
        %v8071 = vadd.f32 0.0, %v8070
        %8072 = vdwg.mxu0
        %8073 = vmatprep.subr.mxu0 %v6150
        %8074 = vmatpush1.msra.mxu0 %v6149
        %8075 = vmatprep.subr.mxu0 %v6182
        %8076 = vmatpush1.msra.mxu0 %v6181
        %8077 = vmatprep.subr.mxu0 %v6214
        %8078 = vmatpush1.msra.mxu0 %v6213
        %8079 = vmatprep.subr.mxu0 %v6246
        %8080 = vmatpush1.msra.mxu0 %v6245
        %8081 = vmatprep.subr.mxu0 %v6278
        %8082 = vmatpush1.msra.mxu0 %v6277
        %8083 = vmatprep.subr.mxu0 %v6310
        %8084 = vmatpush1.msra.mxu0 %v6309
        %8085 = vmatprep.subr.mxu0 %v6342
        %8086 = vmatpush1.msra.mxu0 %v6341
        %8087 = vmatprep.subr.mxu0 %v6374
        %8088 = vmatpush1.msra.mxu0 %v6373
        %8089 = vmatprep.subr.mxu0 %v6406
        %8090 = vmatpush1.msra.mxu0 %v6405
        %8091 = vmatprep.subr.mxu0 %v6438
        %8092 = vmatpush1.msra.mxu0 %v6437
        %8093 = vmatprep.subr.mxu0 %v6470
        %8094 = vmatpush1.msra.mxu0 %v6469
        %8095 = vmatprep.subr.mxu0 %v6502
        %8096 = vmatpush1.msra.mxu0 %v6501
        %8097 = vmatprep.subr.mxu0 %v6534
        %8098 = vmatpush1.msra.mxu0 %v6533
        %8099 = vmatprep.subr.mxu0 %v6566
        %8100 = vmatpush1.msra.mxu0 %v6565
        %8101 = vmatprep.subr.mxu0 %v6598
        %8102 = vmatpush1.msra.mxu0 %v6597
        %8103 = vmatprep.subr.mxu0 %v6630
        %8104 = vmatpush1.msra.mxu0 %v6629
        %8105 = vmatprep.subr.mxu0 %v6662
        %8106 = vmatpush1.msra.mxu0 %v6661
        %8107 = vmatprep.subr.mxu0 %v6694
        %8108 = vmatpush1.msra.mxu0 %v6693
        %8109 = vmatprep.subr.mxu0 %v6726
        %8110 = vmatpush1.msra.mxu0 %v6725
        %8111 = vmatprep.subr.mxu0 %v6758
        %8112 = vmatpush1.msra.mxu0 %v6757
        %8113 = vmatprep.subr.mxu0 %v6790
        %8114 = vmatpush1.msra.mxu0 %v6789
        %8115 = vmatprep.subr.mxu0 %v6822
        %8116 = vmatpush1.msra.mxu0 %v6821
        %8117 = vmatprep.subr.mxu0 %v6854
        %8118 = vmatpush1.msra.mxu0 %v6853
        %8119 = vmatprep.subr.mxu0 %v6886
        %8120 = vmatpush1.msra.mxu0 %v6885
        %8121 = vmatprep.subr.mxu0 %v6918
        %8122 = vmatpush1.msra.mxu0 %v6917
        %8123 = vmatprep.subr.mxu0 %v6950
        %8124 = vmatpush1.msra.mxu0 %v6949
        %8125 = vmatprep.subr.mxu0 %v6982
        %8126 = vmatpush1.msra.mxu0 %v6981
        %8127 = vmatprep.subr.mxu0 %v7014
        %8128 = vmatpush1.msra.mxu0 %v7013
        %8129 = vmatprep.subr.mxu0 %v7046
        %8130 = vmatpush1.msra.mxu0 %v7045
        %8131 = vmatprep.subr.mxu0 %v7078
        %8132 = vmatpush1.msra.mxu0 %v7077
        %8133 = vmatprep.subr.mxu0 %v7110
        %8134 = vmatpush1.msra.mxu0 %v7109
        %8135 = vmatprep.subr.mxu0 %v7142
        %8136 = vmatpush1.msra.mxu0 %v7141
        %8137 = vmatprep.mubr.f32.mxu0 %v6122
        %8138 = vmatmul.mubr.f32.gmra.mrb[0].mxu0 %v6121
        %v8139 = vpop.f32.mrb[0].mxu0
        %v8140 = vadd.f32 0.0, %v8139
        %v8141 = vpop.f32.mrb[0].mxu0
        %v8142 = vadd.f32 0.0, %v8141
        %8143 = vmatprep.mubr.f32.mxu0 %v6124
        %8144 = vmatmul.mubr.f32.gmra.mrb[0].mxu0 %v6123
        %v8145 = vpop.f32.mrb[0].mxu0
        %v8146 = vadd.f32 0.0, %v8145
        %v8147 = vpop.f32.mrb[0].mxu0
        %v8148 = vadd.f32 0.0, %v8147
        %8149 = vdwg.mxu0
        %8150 = vmatprep.subr.mxu0 %v6152
        %8151 = vmatpush1.msra.mxu0 %v6151
        %8152 = vmatprep.subr.mxu0 %v6184
        %8153 = vmatpush1.msra.mxu0 %v6183
        %8154 = vmatprep.subr.mxu0 %v6216
        %8155 = vmatpush1.msra.mxu0 %v6215
        %8156 = vmatprep.subr.mxu0 %v6248
        %8157 = vmatpush1.msra.mxu0 %v6247
        %8158 = vmatprep.subr.mxu0 %v6280
        %8159 = vmatpush1.msra.mxu0 %v6279
        %8160 = vmatprep.subr.mxu0 %v6312
        %8161 = vmatpush1.msra.mxu0 %v6311
        %8162 = vmatprep.subr.mxu0 %v6344
        %8163 = vmatpush1.msra.mxu0 %v6343
        %8164 = vmatprep.subr.mxu0 %v6376
        %8165 = vmatpush1.msra.mxu0 %v6375
        %8166 = vmatprep.subr.mxu0 %v6408
        %8167 = vmatpush1.msra.mxu0 %v6407
        %8168 = vmatprep.subr.mxu0 %v6440
        %8169 = vmatpush1.msra.mxu0 %v6439
        %8170 = vmatprep.subr.mxu0 %v6472
        %8171 = vmatpush1.msra.mxu0 %v6471
        %8172 = vmatprep.subr.mxu0 %v6504
        %8173 = vmatpush1.msra.mxu0 %v6503
        %8174 = vmatprep.subr.mxu0 %v6536
        %8175 = vmatpush1.msra.mxu0 %v6535
        %8176 = vmatprep.subr.mxu0 %v6568
        %8177 = vmatpush1.msra.mxu0 %v6567
        %8178 = vmatprep.subr.mxu0 %v6600
        %8179 = vmatpush1.msra.mxu0 %v6599
        %8180 = vmatprep.subr.mxu0 %v6632
        %8181 = vmatpush1.msra.mxu0 %v6631
        %8182 = vmatprep.subr.mxu0 %v6664
        %8183 = vmatpush1.msra.mxu0 %v6663
        %8184 = vmatprep.subr.mxu0 %v6696
        %8185 = vmatpush1.msra.mxu0 %v6695
        %8186 = vmatprep.subr.mxu0 %v6728
        %8187 = vmatpush1.msra.mxu0 %v6727
        %8188 = vmatprep.subr.mxu0 %v6760
        %8189 = vmatpush1.msra.mxu0 %v6759
        %8190 = vmatprep.subr.mxu0 %v6792
        %8191 = vmatpush1.msra.mxu0 %v6791
        %8192 = vmatprep.subr.mxu0 %v6824
        %8193 = vmatpush1.msra.mxu0 %v6823
        %8194 = vmatprep.subr.mxu0 %v6856
        %8195 = vmatpush1.msra.mxu0 %v6855
        %8196 = vmatprep.subr.mxu0 %v6888
        %8197 = vmatpush1.msra.mxu0 %v6887
        %8198 = vmatprep.subr.mxu0 %v6920
        %8199 = vmatpush1.msra.mxu0 %v6919
        %8200 = vmatprep.subr.mxu0 %v6952
        %8201 = vmatpush1.msra.mxu0 %v6951
        %8202 = vmatprep.subr.mxu0 %v6984
        %8203 = vmatpush1.msra.mxu0 %v6983
        %8204 = vmatprep.subr.mxu0 %v7016
        %8205 = vmatpush1.msra.mxu0 %v7015
        %8206 = vmatprep.subr.mxu0 %v7048
        %8207 = vmatpush1.msra.mxu0 %v7047
        %8208 = vmatprep.subr.mxu0 %v7080
        %8209 = vmatpush1.msra.mxu0 %v7079
        %8210 = vmatprep.subr.mxu0 %v7112
        %8211 = vmatpush1.msra.mxu0 %v7111
        %8212 = vmatprep.subr.mxu0 %v7144
        %8213 = vmatpush1.msra.mxu0 %v7143
        %8214 = vmatprep.mubr.f32.mxu0 %v6122
        %8215 = vmatmul.mubr.f32.gmra.mrb[0].mxu0 %v6121
        %v8216 = vpop.f32.mrb[0].mxu0
        %v8217 = vadd.f32 0.0, %v8216
        %v8218 = vpop.f32.mrb[0].mxu0
        %v8219 = vadd.f32 0.0, %v8218
        %8220 = vmatprep.mubr.f32.mxu0 %v6124
        %8221 = vmatmul.mubr.f32.gmra.mrb[0].mxu0 %v6123
        %v8222 = vpop.f32.mrb[0].mxu0
        %v8223 = vadd.f32 0.0, %v8222
        %v8224 = vpop.f32.mrb[0].mxu0
        %v8225 = vadd.f32 0.0, %v8224
        %8226 = vdwg.mxu0
        %8227 = vmatprep.subr.mxu0 %v6154
        %8228 = vmatpush1.msra.mxu0 %v6153
        %8229 = vmatprep.subr.mxu0 %v6186
        %8230 = vmatpush1.msra.mxu0 %v6185
        %8231 = vmatprep.subr.mxu0 %v6218
        %8232 = vmatpush1.msra.mxu0 %v6217
        %8233 = vmatprep.subr.mxu0 %v6250
        %8234 = vmatpush1.msra.mxu0 %v6249
        %8235 = vmatprep.subr.mxu0 %v6282
        %8236 = vmatpush1.msra.mxu0 %v6281
        %8237 = vmatprep.subr.mxu0 %v6314
        %8238 = vmatpush1.msra.mxu0 %v6313
        %8239 = vmatprep.subr.mxu0 %v6346
        %8240 = vmatpush1.msra.mxu0 %v6345
        %8241 = vmatprep.subr.mxu0 %v6378
        %8242 = vmatpush1.msra.mxu0 %v6377
        %8243 = vmatprep.subr.mxu0 %v6410
        %8244 = vmatpush1.msra.mxu0 %v6409
        %8245 = vmatprep.subr.mxu0 %v6442
        %8246 = vmatpush1.msra.mxu0 %v6441
        %8247 = vmatprep.subr.mxu0 %v6474
        %8248 = vmatpush1.msra.mxu0 %v6473
        %8249 = vmatprep.subr.mxu0 %v6506
        %8250 = vmatpush1.msra.mxu0 %v6505
        %8251 = vmatprep.subr.mxu0 %v6538
        %8252 = vmatpush1.msra.mxu0 %v6537
        %8253 = vmatprep.subr.mxu0 %v6570
        %8254 = vmatpush1.msra.mxu0 %v6569
        %8255 = vmatprep.subr.mxu0 %v6602
        %8256 = vmatpush1.msra.mxu0 %v6601
        %8257 = vmatprep.subr.mxu0 %v6634
        %8258 = vmatpush1.msra.mxu0 %v6633
        %8259 = vmatprep.subr.mxu0 %v6666
        %8260 = vmatpush1.msra.mxu0 %v6665
        %8261 = vmatprep.subr.mxu0 %v6698
        %8262 = vmatpush1.msra.mxu0 %v6697
        %8263 = vmatprep.subr.mxu0 %v6730
        %8264 = vmatpush1.msra.mxu0 %v6729
        %8265 = vmatprep.subr.mxu0 %v6762
        %8266 = vmatpush1.msra.mxu0 %v6761
        %8267 = vmatprep.subr.mxu0 %v6794
        %8268 = vmatpush1.msra.mxu0 %v6793
        %8269 = vmatprep.subr.mxu0 %v6826
        %8270 = vmatpush1.msra.mxu0 %v6825
        %8271 = vmatprep.subr.mxu0 %v6858
        %8272 = vmatpush1.msra.mxu0 %v6857
        %8273 = vmatprep.subr.mxu0 %v6890
        %8274 = vmatpush1.msra.mxu0 %v6889
        %8275 = vmatprep.subr.mxu0 %v6922
        %8276 = vmatpush1.msra.mxu0 %v6921
        %8277 = vmatprep.subr.mxu0 %v6954
        %8278 = vmatpush1.msra.mxu0 %v6953
        %8279 = vmatprep.subr.mxu0 %v6986
        %8280 = vmatpush1.msra.mxu0 %v6985
        %8281 = vmatprep.subr.mxu0 %v7018
        %8282 = vmatpush1.msra.mxu0 %v7017
        %8283 = vmatprep.subr.mxu0 %v7050
        %8284 = vmatpush1.msra.mxu0 %v7049
        %8285 = vmatprep.subr.mxu0 %v7082
        %8286 = vmatpush1.msra.mxu0 %v7081
        %8287 = vmatprep.subr.mxu0 %v7114
        %8288 = vmatpush1.msra.mxu0 %v7113
        %8289 = vmatprep.subr.mxu0 %v7146
        %8290 = vmatpush1.msra.mxu0 %v7145
        %8291 = vmatprep.mubr.f32.mxu0 %v6122
        %8292 = vmatmul.mubr.f32.gmra.mrb[0].mxu0 %v6121
        %v8293 = vpop.f32.mrb[0].mxu0
        %v8294 = vadd.f32 0.0, %v8293
        %v8295 = vpop.f32.mrb[0].mxu0
        %v8296 = vadd.f32 0.0, %v8295
        %8297 = vmatprep.mubr.f32.mxu0 %v6124
        %8298 = vmatmul.mubr.f32.gmra.mrb[0].mxu0 %v6123
        %v8299 = vpop.f32.mrb[0].mxu0
        %v8300 = vadd.f32 0.0, %v8299
        %v8301 = vpop.f32.mrb[0].mxu0
        %v8302 = vadd.f32 0.0, %v8301
        %8303 = vdwg.mxu0
        %8304 = vmatprep.subr.mxu0 %v6156
        %8305 = vmatpush1.msra.mxu0 %v6155
        %8306 = vmatprep.subr.mxu0 %v6188
        %8307 = vmatpush1.msra.mxu0 %v6187
        %8308 = vmatprep.subr.mxu0 %v6220
        %8309 = vmatpush1.msra.mxu0 %v6219
        %8310 = vmatprep.subr.mxu0 %v6252
        %8311 = vmatpush1.msra.mxu0 %v6251
        %8312 = vmatprep.subr.mxu0 %v6284
        %8313 = vmatpush1.msra.mxu0 %v6283
        %8314 = vmatprep.subr.mxu0 %v6316
        %8315 = vmatpush1.msra.mxu0 %v6315
        %8316 = vmatprep.subr.mxu0 %v6348
        %8317 = vmatpush1.msra.mxu0 %v6347
        %8318 = vmatprep.subr.mxu0 %v6380
        %8319 = vmatpush1.msra.mxu0 %v6379
        %8320 = vmatprep.subr.mxu0 %v6412
        %8321 = vmatpush1.msra.mxu0 %v6411
        %8322 = vmatprep.subr.mxu0 %v6444
        %8323 = vmatpush1.msra.mxu0 %v6443
        %8324 = vmatprep.subr.mxu0 %v6476
        %8325 = vmatpush1.msra.mxu0 %v6475
        %8326 = vmatprep.subr.mxu0 %v6508
        %8327 = vmatpush1.msra.mxu0 %v6507
        %8328 = vmatprep.subr.mxu0 %v6540
        %8329 = vmatpush1.msra.mxu0 %v6539
        %8330 = vmatprep.subr.mxu0 %v6572
        %8331 = vmatpush1.msra.mxu0 %v6571
        %8332 = vmatprep.subr.mxu0 %v6604
        %8333 = vmatpush1.msra.mxu0 %v6603
        %8334 = vmatprep.subr.mxu0 %v6636
        %8335 = vmatpush1.msra.mxu0 %v6635
        %8336 = vmatprep.subr.mxu0 %v6668
        %8337 = vmatpush1.msra.mxu0 %v6667
        %8338 = vmatprep.subr.mxu0 %v6700
        %8339 = vmatpush1.msra.mxu0 %v6699
        %8340 = vmatprep.subr.mxu0 %v6732
        %8341 = vmatpush1.msra.mxu0 %v6731
        %8342 = vmatprep.subr.mxu0 %v6764
        %8343 = vmatpush1.msra.mxu0 %v6763
        %8344 = vmatprep.subr.mxu0 %v6796
        %8345 = vmatpush1.msra.mxu0 %v6795
        %8346 = vmatprep.subr.mxu0 %v6828
        %8347 = vmatpush1.msra.mxu0 %v6827
        %8348 = vmatprep.subr.mxu0 %v6860
        %8349 = vmatpush1.msra.mxu0 %v6859
        %8350 = vmatprep.subr.mxu0 %v6892
        %8351 = vmatpush1.msra.mxu0 %v6891
        %8352 = vmatprep.subr.mxu0 %v6924
        %8353 = vmatpush1.msra.mxu0 %v6923
        %8354 = vmatprep.subr.mxu0 %v6956
        %8355 = vmatpush1.msra.mxu0 %v6955
        %8356 = vmatprep.subr.mxu0 %v6988
        %8357 = vmatpush1.msra.mxu0 %v6987
        %8358 = vmatprep.subr.mxu0 %v7020
        %8359 = vmatpush1.msra.mxu0 %v7019
        %8360 = vmatprep.subr.mxu0 %v7052
        %8361 = vmatpush1.msra.mxu0 %v7051
        %8362 = vmatprep.subr.mxu0 %v7084
        %8363 = vmatpush1.msra.mxu0 %v7083
        %8364 = vmatprep.subr.mxu0 %v7116
        %8365 = vmatpush1.msra.mxu0 %v7115
        %8366 = vmatprep.subr.mxu0 %v7148
        %8367 = vmatpush1.msra.mxu0 %v7147
        %8368 = vmatprep.mubr.f32.mxu0 %v6122
        %8369 = vmatmul.mubr.f32.gmra.mrb[0].mxu0 %v6121
        %v8370 = vpop.f32.mrb[0].mxu0
        %v8371 = vadd.f32 0.0, %v8370
        %v8372 = vpop.f32.mrb[0].mxu0
        %v8373 = vadd.f32 0.0, %v8372
        %8374 = vmatprep.mubr.f32.mxu0 %v6124
        %8375 = vmatmul.mubr.f32.gmra.mrb[0].mxu0 %v6123
        %v8376 = vpop.f32.mrb[0].mxu0
        %v8377 = vadd.f32 0.0, %v8376
        %v8378 = vpop.f32.mrb[0].mxu0
        %v8379 = vadd.f32 0.0, %v8378
        %8380 = vdwg.mxu0
        %8381 = vst [vmem:[%s358] sm:$0xff] %v7216
        %8382 = vst [vmem:[%s358 + $0x8] sm:$0xff] %v7218
        %8383 = vst [vmem:[%s358 + $0x10] sm:$0xff] %v7293
        %8384 = vst [vmem:[%s358 + $0x18] sm:$0xff] %v7295
        %8385 = vst [vmem:[%s358 + $0x20] sm:$0xff] %v7370
        %8386 = vst [vmem:[%s358 + $0x28] sm:$0xff] %v7372
        %8387 = vst [vmem:[%s358 + $0x30] sm:$0xff] %v7447
        %8388 = vst [vmem:[%s358 + $0x38] sm:$0xff] %v7449
        %8389 = vst [vmem:[%s358 + $0x40] sm:$0xff] %v7524
        %8390 = vst [vmem:[%s358 + $0x48] sm:$0xff] %v7526
        %8391 = vst [vmem:[%s358 + $0x50] sm:$0xff] %v7601
        %8392 = vst [vmem:[%s358 + $0x58] sm:$0xff] %v7603
        %8393 = vst [vmem:[%s358 + $0x60] sm:$0xff] %v7678
        %8394 = vst [vmem:[%s358 + $0x68] sm:$0xff] %v7680
        %8395 = vst [vmem:[%s358 + $0x70] sm:$0xff] %v7755
        %8396 = vst [vmem:[%s358 + $0x78] sm:$0xff] %v7757
        %8397 = vst [vmem:[%s358 + $0x80] sm:$0xff] %v7832
        %8398 = vst [vmem:[%s358 + $0x88] sm:$0xff] %v7834
        %8399 = vst [vmem:[%s358 + $0x90] sm:$0xff] %v7909
        %8400 = vst [vmem:[%s358 + $0x98] sm:$0xff] %v7911
        %8401 = vst [vmem:[%s358 + $0xa0] sm:$0xff] %v7986
        %8402 = vst [vmem:[%s358 + $0xa8] sm:$0xff] %v7988
        %8403 = vst [vmem:[%s358 + $0xb0] sm:$0xff] %v8063
        %8404 = vst [vmem:[%s358 + $0xb8] sm:$0xff] %v8065
        %8405 = vst [vmem:[%s358 + $0xc0] sm:$0xff] %v8140
        %8406 = vst [vmem:[%s358 + $0xc8] sm:$0xff] %v8142
        %8407 = vst [vmem:[%s358 + $0xd0] sm:$0xff] %v8217
        %8408 = vst [vmem:[%s358 + $0xd8] sm:$0xff] %v8219
        %8409 = vst [vmem:[%s358 + $0xe0] sm:$0xff] %v8294
        %8410 = vst [vmem:[%s358 + $0xe8] sm:$0xff] %v8296
        %8411 = vst [vmem:[%s358 + $0xf0] sm:$0xff] %v8371
        %8412 = vst [vmem:[%s358 + $0xf8] sm:$0xff] %v8373
        %8413 = vst [vmem:[%s358 + $0x100] sm:$0xff] %v7222
        %8414 = vst [vmem:[%s358 + $0x108] sm:$0xff] %v7224
        %8415 = vst [vmem:[%s358 + $0x110] sm:$0xff] %v7299
        %8416 = vst [vmem:[%s358 + $0x118] sm:$0xff] %v7301
        %8417 = vst [vmem:[%s358 + $0x120] sm:$0xff] %v7376
        %8418 = vst [vmem:[%s358 + $0x128] sm:$0xff] %v7378
        %8419 = vst [vmem:[%s358 + $0x130] sm:$0xff] %v7453
        %8420 = vst [vmem:[%s358 + $0x138] sm:$0xff] %v7455
        %8421 = vst [vmem:[%s358 + $0x140] sm:$0xff] %v7530
        %8422 = vst [vmem:[%s358 + $0x148] sm:$0xff] %v7532
        %8423 = vst [vmem:[%s358 + $0x150] sm:$0xff] %v7607
        %8424 = vst [vmem:[%s358 + $0x158] sm:$0xff] %v7609
        %8425 = vst [vmem:[%s358 + $0x160] sm:$0xff] %v7684
        %8426 = vst [vmem:[%s358 + $0x168] sm:$0xff] %v7686
        %8427 = vst [vmem:[%s358 + $0x170] sm:$0xff] %v7761
        %8428 = vst [vmem:[%s358 + $0x178] sm:$0xff] %v7763
        %8429 = vst [vmem:[%s358 + $0x180] sm:$0xff] %v7838
        %8430 = vst [vmem:[%s358 + $0x188] sm:$0xff] %v7840
        %8431 = vst [vmem:[%s358 + $0x190] sm:$0xff] %v7915
        %8432 = vst [vmem:[%s358 + $0x198] sm:$0xff] %v7917
        %8433 = vst [vmem:[%s358 + $0x1a0] sm:$0xff] %v7992
        %8434 = vst [vmem:[%s358 + $0x1a8] sm:$0xff] %v7994
        %8435 = vst [vmem:[%s358 + $0x1b0] sm:$0xff] %v8069
        %8436 = vst [vmem:[%s358 + $0x1b8] sm:$0xff] %v8071
        %8437 = vst [vmem:[%s358 + $0x1c0] sm:$0xff] %v8146
        %8438 = vst [vmem:[%s358 + $0x1c8] sm:$0xff] %v8148
        %8439 = vst [vmem:[%s358 + $0x1d0] sm:$0xff] %v8223
        %8440 = vst [vmem:[%s358 + $0x1d8] sm:$0xff] %v8225
        %8441 = vst [vmem:[%s358 + $0x1e0] sm:$0xff] %v8300
        %8442 = vst [vmem:[%s358 + $0x1e8] sm:$0xff] %v8302
        %8443 = vst [vmem:[%s358 + $0x1f0] sm:$0xff] %v8377
        %8444 = vst [vmem:[%s358 + $0x1f8] sm:$0xff] %v8379
        %s8445 = sand.u32 %s169, 1
        %s8446 = scalar_lea.sflag [#allocation4], %s8445
        %s8447 = sand.u32 %s169, 1
        %s8448 = smul.addr %s8447, 2048
        %s8449 = scalar_lea.vmem [#allocation8], %s8448
        %s8450 = sand.u32 %s197, 1
        %s8451 = scalar_lea.sflag [#allocation10], %s8450
        %s8452 = sand.u32 %s197, 1
        %s8453 = smul.addr %s8452, 512
        %s8454 = scalar_lea.vmem [#allocation9], %s8453
        // Predicated region
        $region53: #{tpu_custom_call.1} parent=39 // pred_check
          %p8455 = pneg %p179
        $region54: #{tpu_custom_call.1} parent=39 // pred_check_branch
          %8457 = sbr.rel (%p8455) target = $region56
        $region55: #{tpu_custom_call.1} parent=39 // pred_region
          %s8458 = smul.u32 16, %s33
          %s8460 = ssub.s32 32768, 32768
          %8461 = vsyncadd %s8446, %s8460
          %s8462 = smul.addr %s8458, 16
          %s8463 = smul.addr %s32, 512
          %s8464 = sadd.s32 %s8462, %s8463
          %s8465 = smul.addr %s8464, 128
          %s8466 = scalar_lea.hbm %s5, %s8465
          %s8467 = sshll.u32 %s8449, 4
          %s8468 = int_to_ptr.vmem [resolvable:$true] %s8467
          %8473 = dma.vmem_to_hbm [thread:$0]  %s8468, 32768, %s8466, %s8446, 128, 128, 8
        $region56: #{tpu_custom_call.1} parent=39 // pred_fallthru
          _
        // Predicated region
        $region57: #{tpu_custom_call.1} parent=39 // pred_check
          %p8474 = pneg %p207
        $region58: #{tpu_custom_call.1} parent=39 // pred_check_branch
          %8476 = sbr.rel (%p8474) target = $region60
        $region59: #{tpu_custom_call.1} parent=39 // pred_region
          %s8477 = smul.u32 2, %s33
          %s8479 = ssub.s32 8192, 8192
          %8480 = vsyncadd %s8451, %s8479
          %s8481 = smul.addr %s8477, 32
          %s8482 = smul.addr %s32, 128
          %s8483 = sadd.s32 %s8481, %s8482
          %s8484 = smul.addr %s8483, 128
          %s8485 = scalar_lea.hbm %s6, %s8484
          %s8486 = sshll.u32 %s8454, 4
          %s8487 = int_to_ptr.vmem [resolvable:$true] %s8486
          %8492 = dma.vmem_to_hbm [thread:$0]  %s8487, 8192, %s8485, %s8451, 4096, 4096, 256
        $region60: #{tpu_custom_call.1} parent=39 // pred_fallthru
          _
      $region40: #{tpu_custom_call.1} parent=5 // pred_fallthru
        _
      %p8493 = scmp.le.s32.totalorder 2, %s23
      // Predicated region
      $region61: #{tpu_custom_call.1} parent=5 // pred_check
        %p8494 = pneg %p8493
      $region62: #{tpu_custom_call.1} parent=5 // pred_check_branch
        %8496 = sbr.rel (%p8494) target = $region64
      $region63: #{tpu_custom_call.1} parent=5 // pred_region
        %s8497 = ssub.s32 %s23, 2
        // Predicated region
        $region65: #{tpu_custom_call.1} parent=63 // pred_check
          %p8498 = pneg %p185
        $region66: #{tpu_custom_call.1} parent=63 // pred_check_branch
          %8500 = sbr.rel (%p8498) target = $region68
        $region67: #{tpu_custom_call.1} parent=63 // pred_region
          %s8501 = sand.u32 %s170, 1
          %s8502 = scalar_lea.sflag [#allocation4], %s8501
          %s8503 = sand.u32 %s170, 1
          %s8504 = smul.addr %s8503, 2048
          %s8505 = scalar_lea.vmem [#allocation8], %s8504
          %8506 = dma.done %s8502, 32768
        $region68: #{tpu_custom_call.1} parent=63 // pred_fallthru
          _
        // Predicated region
        $region69: #{tpu_custom_call.1} parent=63 // pred_check
          %p8507 = pneg %p213
        $region70: #{tpu_custom_call.1} parent=63 // pred_check_branch
          %8509 = sbr.rel (%p8507) target = $region72
        $region71: #{tpu_custom_call.1} parent=63 // pred_region
          %s8510 = sand.u32 %s198, 1
          %s8511 = scalar_lea.sflag [#allocation10], %s8510
          %s8512 = sand.u32 %s198, 1
          %s8513 = smul.addr %s8512, 512
          %s8514 = scalar_lea.vmem [#allocation9], %s8513
          %8515 = dma.done %s8511, 8192
        $region72: #{tpu_custom_call.1} parent=63 // pred_fallthru
          _
      $region64: #{tpu_custom_call.1} parent=5 // pred_fallthru
        _
    $region6: #{tpu_custom_call.1} parent=1 // loop_footer
      %s27 = sadd.s32 1, %s23
    $region7: #{tpu_custom_call.1} parent=1 // loop_footer_branch
      %22 = sbr.rel target = $region3
    $region8: #{tpu_custom_call.1} parent=1 // loop_exit
      _
    %8516 = vsyncpa [#allocation3], 1
    %s8517 = scalar_lea.sflag [#allocation3], 1
    %8518 = vsyncpa %s8517, 1
    %8519 = vsyncpa [#allocation6], 1
    %s8520 = scalar_lea.sflag [#allocation6], 1
    %8521 = vsyncpa %s8520, 1
    %8522 = vsyncpa [#allocation4], 1
    %s8523 = scalar_lea.sflag [#allocation4], 1
    %8524 = vsyncpa %s8523, 1
    %8525 = vsyncpa [#allocation10], 1
    %s8526 = scalar_lea.sflag [#allocation10], 1
    %8527 = vsyncpa %s8526, 1

</llo_original>
